<compile_context>
chip_gen: v5e
topology: v5e:2x2
jax: 0.10.0
libtpu: 0.0.40
codegen_flags: <defaults>
</compile_context>

<pallas_src>
import functools
import math

import jax
import jax.numpy as jnp
from jax import lax
from jax.experimental import pallas as pl
from jax.experimental.pallas import tpu as pltpu

NEG_SLOPE = 0.01   # torch.nn.LeakyReLU / F.leaky_relu default
LANE_PAD = 128     # lane-dense output width for the narrow heads
NEG_BIG = -3.0e38  # masked-max sentinel (f32 only)


def _leaky_relu(v):
    return jnp.where(v >= 0, v, NEG_SLOPE * v)


def _pfnet7_kernel(
    # inputs ------------------------------------------------------------------
    x_tile_ref, x_full_ref, x_full_t_ref,
    ws_ref, bs_ref, wst_ref, bst_ref,            # GravNet lin_s (and transposed)
    wh_ref, bh_ref, wht_ref, bht_ref,            # GravNet lin_h (and transposed)
    wlx_ref, wlmn_ref, wlmx_ref, blin_ref,       # GravNet lin (split by concat block)
    w1v_ref, b1v_ref,                            # fused nn2.l1 + nn3.l1(x1 part)
    w2_ref, b2_ref, w3_ref, b3_ref, w4p_ref, b4p_ref,       # nn2 rest (head padded)
    vidp_ref, v2_ref, c2_ref, v3_ref, c3_ref, v4p_ref, c4p_ref,  # nn3 rest
    # outputs -----------------------------------------------------------------
    ids_ref, p4_ref, adj_ref,
    # scratch -----------------------------------------------------------------
    mmax_ref,
    *, r2, n_valid, hidden_dim,
):
    f32 = jnp.float32
    x_t = x_tile_ref[...]                       # [ti, D]  (query rows of this tile)
    x_f = x_full_ref[...]                       # [Np, D]  (all nodes, resident)
    x_ft = x_full_t_ref[...]                    # [D, Np]  (transposed in wrapper)
    ti = x_t.shape[0]
    n_pad = x_f.shape[0]

    # ---------------- GravNetConv embeddings (no in-kernel transposes) -------
    s_t = jnp.dot(x_t, ws_ref[...], preferred_element_type=f32) + bs_ref[...]    # [ti, S]
    s_ft = jnp.dot(wst_ref[...], x_ft, preferred_element_type=f32) + bst_ref[...]  # [S, Np]
    h_f = jnp.dot(x_f, wh_ref[...], preferred_element_type=f32) + bh_ref[...]    # [Np, P]
    h_ft = jnp.dot(wht_ref[...], x_ft, preferred_element_type=f32) + bht_ref[...]  # [P, Np]

    # ---------------- Gram-form squared distances ----------------------------
    gram = jnp.dot(s_t, s_ft, preferred_element_type=f32)          # [ti, Np]
    sq_i = jnp.sum(s_t * s_t, axis=-1, keepdims=True)              # [ti, 1]
    sq_j = jnp.sum(s_ft * s_ft, axis=0, keepdims=True)             # [1, Np]
    d2 = jnp.maximum(sq_i + sq_j - 2.0 * gram, 0.0)                # clamp: no tiny negatives

    i0 = pl.program_id(0) * ti
    row = i0 + lax.broadcasted_iota(jnp.int32, (ti, n_pad), 0)
    col = lax.broadcasted_iota(jnp.int32, (ti, n_pad), 1)
    adj = (d2 < r2) & (row != col) & (col < n_valid)               # [ti, Np] bool
    # TODO(synk): torch_geometric radius_graph caps max_num_neighbors per node
    # (nondeterministic selection); the dense kernel keeps every in-radius edge.

    w = jnp.where(adj, jnp.exp(-10.0 * d2), f32(0.0))              # edge weights

    # ---------------- mean aggregation ---------------------------------------
    cnt = jnp.sum(adj.astype(f32), axis=-1, keepdims=True)         # [ti, 1]
    msg_sum = jnp.dot(w, h_f, preferred_element_type=f32)          # [ti, P] (MXU)
    msg_mean = msg_sum * pl.reciprocal(jnp.maximum(cnt, 1.0), approx=True)

    # ---------------- max aggregation (per-feature, lane-dense) --------------
    neg = jnp.where(adj, f32(0.0), f32(NEG_BIG))                   # [ti, Np]
    for p in range(hidden_dim):
        wh_p = w * h_ft[p:p + 1, :] + neg                          # [ti, Np]
        mmax_ref[:, p:p + 1] = jnp.max(wh_p, axis=-1, keepdims=True)
    msg_max = jnp.where(cnt > 0.0, mmax_ref[...], f32(0.0))        # [ti, P]

    # lin(cat([x, mean, max], -1)) as split matmuls (avoids in-kernel concat)
    enc = (jnp.dot(x_t, wlx_ref[...], preferred_element_type=f32)
           + jnp.dot(msg_mean, wlmn_ref[...], preferred_element_type=f32)
           + jnp.dot(msg_max, wlmx_ref[...], preferred_element_type=f32)
           + blin_ref[...])                                        # [ti, E]
    x1 = _leaky_relu(enc)

    # ---------------- fused first layers of nn2 / nn3 ------------------------
    fused = jnp.dot(x1, w1v_ref[...], preferred_element_type=f32) + b1v_ref[...]  # [ti, 2H]

    # nn2: encoding -> candidate ids (head padded to 128 lanes)
    t = _leaky_relu(fused[:, :hidden_dim])
    t = _leaky_relu(jnp.dot(t, w2_ref[...], preferred_element_type=f32) + b2_ref[...])
    t = _leaky_relu(jnp.dot(t, w3_ref[...], preferred_element_type=f32) + b3_ref[...])
    cand_ids = jnp.dot(t, w4p_ref[...], preferred_element_type=f32) + b4p_ref[...]  # [ti, 128]

    # nn3: cat([x1, cand_ids]) -> candidate p4 (head padded to 128 lanes)
    u = _leaky_relu(fused[:, hidden_dim:]
                    + jnp.dot(cand_ids, vidp_ref[...], preferred_element_type=f32))
    u = _leaky_relu(jnp.dot(u, v2_ref[...], preferred_element_type=f32) + c2_ref[...])
    u = _leaky_relu(jnp.dot(u, v3_ref[...], preferred_element_type=f32) + c3_ref[...])
    cand_p4 = jnp.dot(u, v4p_ref[...], preferred_element_type=f32) + c4p_ref[...]    # [ti, 128]

    ids_ref[...] = cand_ids
    p4_ref[...] = cand_p4
    adj_ref[...] = adj.astype(jnp.int8)


def _linear_init(key, fan_in, fan_out):
    """Deterministic PyTorch-style Linear init; weight stored [in, out]."""
    kw, kb = jax.random.split(key)
    bound = 1.0 / math.sqrt(fan_in)
    w = jax.random.uniform(kw, (fan_in, fan_out), jnp.float32, -bound, bound)
    b = jax.random.uniform(kb, (1, fan_out), jnp.float32, -bound, bound)
    return w, b


def init_pfnet7_params(key, *, input_dim=12, hidden_dim=32, encoding_dim=256,
                       space_dim=2, output_dim_id=6, output_dim_p4=6):
    ks = jax.random.split(key, 11)
    ws, bs = _linear_init(ks[0], input_dim, space_dim)                      # GravNet lin_s
    wh, bh = _linear_init(ks[1], input_dim, hidden_dim)                     # GravNet lin_h
    wl, bl = _linear_init(ks[2], input_dim + 2 * hidden_dim, encoding_dim)  # GravNet lin
    w1, b1 = _linear_init(ks[3], encoding_dim, hidden_dim)                  # nn2
    w2, b2 = _linear_init(ks[4], hidden_dim, hidden_dim)
    w3, b3 = _linear_init(ks[5], hidden_dim, hidden_dim)
    w4, b4 = _linear_init(ks[6], hidden_dim, output_dim_id)
    v1, c1 = _linear_init(ks[7], encoding_dim + output_dim_id, hidden_dim)  # nn3
    v2, c2 = _linear_init(ks[8], hidden_dim, hidden_dim)
    v3, c3 = _linear_init(ks[9], hidden_dim, hidden_dim)
    v4, c4 = _linear_init(ks[10], hidden_dim, output_dim_p4)
    return dict(ws=ws, bs=bs, wh=wh, bh=bh, wl=wl, bl=bl,
                w1=w1, b1=b1, w2=w2, b2=b2, w3=w3, b3=b3, w4=w4, b4=b4,
                v1=v1, c1=c1, v2=v2, c2=c2, v3=v3, c3=c3, v4=v4, c4=c4)


def pfnet7_forward(x, params, *, radius=0.1, input_dim=12, hidden_dim=32,
                   encoding_dim=256, output_dim_id=6, output_dim_p4=6,
                   tile_i=128):
    """Runs the PFNet7 forward pass. Returns (cand_ids, cand_p4, dense_adj)."""
    n = x.shape[0]
    n_pad = ((n + tile_i - 1) // tile_i) * tile_i
    x_pad = jnp.pad(x, ((0, n_pad - n), (0, 0))) if n_pad != n else x
    x_pad_t = x_pad.T                                              # [D, Np]

    # --- wrapper-side weight glue (split concat blocks, transposes, padding) ---
    wl = params["wl"]
    wlx = wl[:input_dim, :]
    wlmn = wl[input_dim:input_dim + hidden_dim, :]
    wlmx = wl[input_dim + hidden_dim:input_dim + 2 * hidden_dim, :]
    v1 = params["v1"]
    vx1 = v1[:encoding_dim, :]
    vid = v1[encoding_dim:encoding_dim + output_dim_id, :]

    # Fuse nn2 layer-1 and the x1-part of nn3 layer-1 into one K=256 matmul.
    w1v = jnp.concatenate([params["w1"], vx1], axis=1)             # [E, 2H]
    b1v = jnp.concatenate([params["b1"], params["c1"]], axis=1)    # [1, 2H]

    # Lane-pad the 6-wide heads to 128 lanes (lane-dense stores).
    w4p = jnp.pad(params["w4"], ((0, 0), (0, LANE_PAD - output_dim_id)))
    b4p = jnp.pad(params["b4"], ((0, 0), (0, LANE_PAD - output_dim_id)))
    v4p = jnp.pad(params["v4"], ((0, 0), (0, LANE_PAD - output_dim_p4)))
    c4p = jnp.pad(params["c4"], ((0, 0), (0, LANE_PAD - output_dim_p4)))
    vidp = jnp.pad(vid, ((0, LANE_PAD - output_dim_id), (0, 0)))   # [128, H]

    # Transposed copies so the kernel needs no in-kernel transposes.
    wst = params["ws"].T                                           # [S, D]
    bst = params["bs"].T                                           # [S, 1]
    wht = params["wh"].T                                           # [P, D]
    bht = params["bh"].T                                           # [P, 1]

    args = (
        x_pad, x_pad, x_pad_t,
        params["ws"], params["bs"], wst, bst,
        params["wh"], params["bh"], wht, bht,
        wlx, wlmn, wlmx, params["bl"],
        w1v, b1v,
        params["w2"], params["b2"], params["w3"], params["b3"], w4p, b4p,
        vidp, params["v2"], params["c2"], params["v3"], params["c3"], v4p, c4p,
    )

    def _const_spec(a):
        # Full-array block, constant block index -> stays resident across steps.
        return pl.BlockSpec(tuple(a.shape), lambda i: (0, 0))

    in_specs = [
        pl.BlockSpec((tile_i, input_dim), lambda i: (i, 0)),       # x rows of this tile
        _const_spec(x_pad),                                        # x, all nodes
        _const_spec(x_pad_t),                                      # x.T, all nodes
    ] + [_const_spec(a) for a in args[3:]]

    out_specs = (
        pl.BlockSpec((tile_i, LANE_PAD), lambda i: (i, 0)),
        pl.BlockSpec((tile_i, LANE_PAD), lambda i: (i, 0)),
        pl.BlockSpec((tile_i, n_pad), lambda i: (i, 0)),
    )

    kernel = functools.partial(
        _pfnet7_kernel, r2=float(radius) ** 2, n_valid=n, hidden_dim=hidden_dim)

    ids_pad, p4_pad, adj_pad = pl.pallas_call(
        kernel,
        out_shape=(
            jax.ShapeDtypeStruct((n_pad, LANE_PAD), jnp.float32),
            jax.ShapeDtypeStruct((n_pad, LANE_PAD), jnp.float32),
            jax.ShapeDtypeStruct((n_pad, n_pad), jnp.int8),
        ),
        grid_spec=pltpu.PrefetchScalarGridSpec(
            num_scalar_prefetch=0,
            grid=(n_pad // tile_i,),
            in_specs=in_specs,
            out_specs=out_specs,
            scratch_shapes=[pltpu.VMEM((tile_i, hidden_dim), jnp.float32)],
        ),
        compiler_params=pltpu.CompilerParams(
            dimension_semantics=("parallel",),        # 2-TC sharding on v7x, no-op elsewhere
            vmem_limit_bytes=48 * 1024 * 1024,        # headroom for v7x's 64 MiB VMEM
        ),
    )(*args)

    cand_ids = ids_pad[:n, :output_dim_id]
    cand_p4 = p4_pad[:n, :output_dim_p4]
    dense_adj = adj_pad[:n, :n].astype(jnp.int32)     # cast outside the kernel
    return cand_ids, cand_p4, dense_adj


if __name__ == "__main__":
    key = jax.random.PRNGKey(0)
    k_x, k_p = jax.random.split(key)

    # Small shapes consistent with the module defaults (N deliberately not a
    # multiple of the 128-row tile to exercise the padding/masking path).
    N = 200
    INPUT_DIM = 12
    HIDDEN_DIM = 32
    ENCODING_DIM = 256
    SPACE_DIM = 2
    OUT_ID = 6
    OUT_P4 = 6

    x = jax.random.normal(k_x, (N, INPUT_DIM), jnp.float32)
    params = init_pfnet7_params(
        k_p, input_dim=INPUT_DIM, hidden_dim=HIDDEN_DIM,
        encoding_dim=ENCODING_DIM, space_dim=SPACE_DIM,
        output_dim_id=OUT_ID, output_dim_p4=OUT_P4)

    # Module default radius is 0.1; use a larger radius here so the random
    # example graph actually contains edges.
    cand_ids, cand_p4, dense_adj = pfnet7_forward(
        x, params, radius=1.0, input_dim=INPUT_DIM, hidden_dim=HIDDEN_DIM,
        encoding_dim=ENCODING_DIM, output_dim_id=OUT_ID, output_dim_p4=OUT_P4,
        tile_i=128)

    cand_ids, cand_p4, dense_adj = jax.block_until_ready(
        (cand_ids, cand_p4, dense_adj))

    assert cand_ids.shape == (N, OUT_ID)
    assert cand_p4.shape == (N, OUT_P4)
    assert dense_adj.shape == (N, N)
    assert bool(jnp.all(jnp.isfinite(cand_ids)))
    assert bool(jnp.all(jnp.isfinite(cand_p4)))
    print("KERNEL_OK")
</pallas_src>

<mosaic_0001>
module attributes {stable_mosaic.version = 11 : i64} {
  func.func @_pfnet7_kernel(%arg0: i32, %arg1: memref<128x12xf32, #tpu.memory_space<vmem>>, %arg2: memref<256x12xf32, #tpu.memory_space<vmem>>, %arg3: memref<12x256xf32, #tpu.memory_space<vmem>>, %arg4: memref<12x2xf32, #tpu.memory_space<vmem>>, %arg5: memref<1x2xf32, #tpu.memory_space<vmem>>, %arg6: memref<2x12xf32, #tpu.memory_space<vmem>>, %arg7: memref<2x1xf32, #tpu.memory_space<vmem>>, %arg8: memref<12x32xf32, #tpu.memory_space<vmem>>, %arg9: memref<1x32xf32, #tpu.memory_space<vmem>>, %arg10: memref<32x12xf32, #tpu.memory_space<vmem>>, %arg11: memref<32x1xf32, #tpu.memory_space<vmem>>, %arg12: memref<12x256xf32, #tpu.memory_space<vmem>>, %arg13: memref<32x256xf32, #tpu.memory_space<vmem>>, %arg14: memref<32x256xf32, #tpu.memory_space<vmem>>, %arg15: memref<1x256xf32, #tpu.memory_space<vmem>>, %arg16: memref<256x64xf32, #tpu.memory_space<vmem>>, %arg17: memref<1x64xf32, #tpu.memory_space<vmem>>, %arg18: memref<32x32xf32, #tpu.memory_space<vmem>>, %arg19: memref<1x32xf32, #tpu.memory_space<vmem>>, %arg20: memref<32x32xf32, #tpu.memory_space<vmem>>, %arg21: memref<1x32xf32, #tpu.memory_space<vmem>>, %arg22: memref<32x128xf32, #tpu.memory_space<vmem>>, %arg23: memref<1x128xf32, #tpu.memory_space<vmem>>, %arg24: memref<128x32xf32, #tpu.memory_space<vmem>>, %arg25: memref<32x32xf32, #tpu.memory_space<vmem>>, %arg26: memref<1x32xf32, #tpu.memory_space<vmem>>, %arg27: memref<32x32xf32, #tpu.memory_space<vmem>>, %arg28: memref<1x32xf32, #tpu.memory_space<vmem>>, %arg29: memref<32x128xf32, #tpu.memory_space<vmem>>, %arg30: memref<1x128xf32, #tpu.memory_space<vmem>>, %arg31: memref<128x128xf32, #tpu.memory_space<vmem>>, %arg32: memref<128x128xf32, #tpu.memory_space<vmem>>, %arg33: memref<128x256xi8, #tpu.memory_space<vmem>>, %arg34: memref<128x32xf32, #tpu.memory_space<vmem>>) attributes {dimension_semantics = [#tpu.dimension_semantics<parallel>], iteration_bounds = array<i64: 2>, scalar_prefetch = 0 : i64, scratch_operands = 1 : i64, tpu.core_type = #tpu.core_type<tc>, window_params = [{transform_indices = @transform_0, window_bounds = array<i64: 128, 12>}, {pipeline_mode = #tpu.pipeline_mode<synchronous>, transform_indices = @transform_1, window_bounds = array<i64: 256, 12>}, {pipeline_mode = #tpu.pipeline_mode<synchronous>, transform_indices = @transform_2, window_bounds = array<i64: 12, 256>}, {pipeline_mode = #tpu.pipeline_mode<synchronous>, transform_indices = @transform_3, window_bounds = array<i64: 12, 2>}, {pipeline_mode = #tpu.pipeline_mode<synchronous>, transform_indices = @transform_4, window_bounds = array<i64: 1, 2>}, {pipeline_mode = #tpu.pipeline_mode<synchronous>, transform_indices = @transform_5, window_bounds = array<i64: 2, 12>}, {pipeline_mode = #tpu.pipeline_mode<synchronous>, transform_indices = @transform_6, window_bounds = array<i64: 2, 1>}, {pipeline_mode = #tpu.pipeline_mode<synchronous>, transform_indices = @transform_7, window_bounds = array<i64: 12, 32>}, {pipeline_mode = #tpu.pipeline_mode<synchronous>, transform_indices = @transform_8, window_bounds = array<i64: 1, 32>}, {pipeline_mode = #tpu.pipeline_mode<synchronous>, transform_indices = @transform_9, window_bounds = array<i64: 32, 12>}, {pipeline_mode = #tpu.pipeline_mode<synchronous>, transform_indices = @transform_10, window_bounds = array<i64: 32, 1>}, {pipeline_mode = #tpu.pipeline_mode<synchronous>, transform_indices = @transform_11, window_bounds = array<i64: 12, 256>}, {pipeline_mode = #tpu.pipeline_mode<synchronous>, transform_indices = @transform_12, window_bounds = array<i64: 32, 256>}, {pipeline_mode = #tpu.pipeline_mode<synchronous>, transform_indices = @transform_13, window_bounds = array<i64: 32, 256>}, {pipeline_mode = #tpu.pipeline_mode<synchronous>, transform_indices = @transform_14, window_bounds = array<i64: 1, 256>}, {pipeline_mode = #tpu.pipeline_mode<synchronous>, transform_indices = @transform_15, window_bounds = array<i64: 256, 64>}, {pipeline_mode = #tpu.pipeline_mode<synchronous>, transform_indices = @transform_16, window_bounds = array<i64: 1, 64>}, {pipeline_mode = #tpu.pipeline_mode<synchronous>, transform_indices = @transform_17, window_bounds = array<i64: 32, 32>}, {pipeline_mode = #tpu.pipeline_mode<synchronous>, transform_indices = @transform_18, window_bounds = array<i64: 1, 32>}, {pipeline_mode = #tpu.pipeline_mode<synchronous>, transform_indices = @transform_19, window_bounds = array<i64: 32, 32>}, {pipeline_mode = #tpu.pipeline_mode<synchronous>, transform_indices = @transform_20, window_bounds = array<i64: 1, 32>}, {pipeline_mode = #tpu.pipeline_mode<synchronous>, transform_indices = @transform_21, window_bounds = array<i64: 32, 128>}, {pipeline_mode = #tpu.pipeline_mode<synchronous>, transform_indices = @transform_22, window_bounds = array<i64: 1, 128>}, {pipeline_mode = #tpu.pipeline_mode<synchronous>, transform_indices = @transform_23, window_bounds = array<i64: 128, 32>}, {pipeline_mode = #tpu.pipeline_mode<synchronous>, transform_indices = @transform_24, window_bounds = array<i64: 32, 32>}, {pipeline_mode = #tpu.pipeline_mode<synchronous>, transform_indices = @transform_25, window_bounds = array<i64: 1, 32>}, {pipeline_mode = #tpu.pipeline_mode<synchronous>, transform_indices = @transform_26, window_bounds = array<i64: 32, 32>}, {pipeline_mode = #tpu.pipeline_mode<synchronous>, transform_indices = @transform_27, window_bounds = array<i64: 1, 32>}, {pipeline_mode = #tpu.pipeline_mode<synchronous>, transform_indices = @transform_28, window_bounds = array<i64: 32, 128>}, {pipeline_mode = #tpu.pipeline_mode<synchronous>, transform_indices = @transform_29, window_bounds = array<i64: 1, 128>}, {transform_indices = @transform_30, window_bounds = array<i64: 128, 128>}, {transform_indices = @transform_31, window_bounds = array<i64: 128, 128>}, {transform_indices = @transform_32, window_bounds = array<i64: 128, 256>}]} {
    %c0 = arith.constant 0 : index
    %c0_0 = arith.constant 0 : index
    %0 = vector.load %arg1[%c0, %c0_0] : memref<128x12xf32, #tpu.memory_space<vmem>>, vector<128x12xf32>
    %c0_1 = arith.constant 0 : index
    %c0_2 = arith.constant 0 : index
    %1 = vector.load %arg2[%c0_1, %c0_2] : memref<256x12xf32, #tpu.memory_space<vmem>>, vector<256x12xf32>
    %c0_3 = arith.constant 0 : index
    %c0_4 = arith.constant 0 : index
    %2 = vector.load %arg3[%c0_3, %c0_4] : memref<12x256xf32, #tpu.memory_space<vmem>>, vector<12x256xf32>
    %c0_5 = arith.constant 0 : index
    %c0_6 = arith.constant 0 : index
    %3 = vector.load %arg4[%c0_5, %c0_6] : memref<12x2xf32, #tpu.memory_space<vmem>>, vector<12x2xf32>
    %cst = arith.constant dense<0.000000e+00> : vector<128x2xf32>
    %4 = tpu.matmul %0, %3, %cst {dimension_numbers = #tpu.dot_dimension_numbers<[1], [0], [0], [1], [0, 0, 1, 1], [], []>} : vector<128x12xf32>, vector<12x2xf32>, vector<128x2xf32> -> vector<128x2xf32>
    %c0_7 = arith.constant 0 : index
    %c0_8 = arith.constant 0 : index
    %5 = vector.load %arg5[%c0_7, %c0_8] : memref<1x2xf32, #tpu.memory_space<vmem>>, vector<1x2xf32>
    %6 = vector.broadcast %5 : vector<1x2xf32> to vector<128x2xf32>
    %7 = arith.addf %4, %6 : vector<128x2xf32>
    %c0_9 = arith.constant 0 : index
    %c0_10 = arith.constant 0 : index
    %8 = vector.load %arg6[%c0_9, %c0_10] : memref<2x12xf32, #tpu.memory_space<vmem>>, vector<2x12xf32>
    %cst_11 = arith.constant dense<0.000000e+00> : vector<2x256xf32>
    %9 = tpu.matmul %8, %2, %cst_11 {dimension_numbers = #tpu.dot_dimension_numbers<[1], [0], [0], [1], [0, 0, 1, 1], [], []>} : vector<2x12xf32>, vector<12x256xf32>, vector<2x256xf32> -> vector<2x256xf32>
    %c0_12 = arith.constant 0 : index
    %c0_13 = arith.constant 0 : index
    %10 = vector.load %arg7[%c0_12, %c0_13] : memref<2x1xf32, #tpu.memory_space<vmem>>, vector<2x1xf32>
    %11 = vector.broadcast %10 : vector<2x1xf32> to vector<2x256xf32>
    %12 = arith.addf %9, %11 : vector<2x256xf32>
    %c0_14 = arith.constant 0 : index
    %c0_15 = arith.constant 0 : index
    %13 = vector.load %arg8[%c0_14, %c0_15] : memref<12x32xf32, #tpu.memory_space<vmem>>, vector<12x32xf32>
    %cst_16 = arith.constant dense<0.000000e+00> : vector<256x32xf32>
    %14 = tpu.matmul %1, %13, %cst_16 {dimension_numbers = #tpu.dot_dimension_numbers<[1], [0], [0], [1], [0, 0, 1, 1], [], []>} : vector<256x12xf32>, vector<12x32xf32>, vector<256x32xf32> -> vector<256x32xf32>
    %c0_17 = arith.constant 0 : index
    %c0_18 = arith.constant 0 : index
    %15 = vector.load %arg9[%c0_17, %c0_18] : memref<1x32xf32, #tpu.memory_space<vmem>>, vector<1x32xf32>
    %16 = vector.broadcast %15 : vector<1x32xf32> to vector<256x32xf32>
    %17 = arith.addf %14, %16 : vector<256x32xf32>
    %c0_19 = arith.constant 0 : index
    %c0_20 = arith.constant 0 : index
    %18 = vector.load %arg10[%c0_19, %c0_20] : memref<32x12xf32, #tpu.memory_space<vmem>>, vector<32x12xf32>
    %cst_21 = arith.constant dense<0.000000e+00> : vector<32x256xf32>
    %19 = tpu.matmul %18, %2, %cst_21 {dimension_numbers = #tpu.dot_dimension_numbers<[1], [0], [0], [1], [0, 0, 1, 1], [], []>} : vector<32x12xf32>, vector<12x256xf32>, vector<32x256xf32> -> vector<32x256xf32>
    %c0_22 = arith.constant 0 : index
    %c0_23 = arith.constant 0 : index
    %20 = vector.load %arg11[%c0_22, %c0_23] : memref<32x1xf32, #tpu.memory_space<vmem>>, vector<32x1xf32>
    %21 = vector.broadcast %20 : vector<32x1xf32> to vector<32x256xf32>
    %22 = arith.addf %19, %21 : vector<32x256xf32>
    %cst_24 = arith.constant dense<0.000000e+00> : vector<128x256xf32>
    %23 = tpu.matmul %7, %12, %cst_24 {dimension_numbers = #tpu.dot_dimension_numbers<[1], [0], [0], [1], [0, 0, 1, 1], [], []>} : vector<128x2xf32>, vector<2x256xf32>, vector<128x256xf32> -> vector<128x256xf32>
    %24 = arith.mulf %7, %7 : vector<128x2xf32>
    %cst_25 = arith.constant dense<0.000000e+00> : vector<128xf32>
    %25 = vector.multi_reduction <add>, %24, %cst_25 [1] : vector<128x2xf32> to vector<128xf32>
    %26 = vector.shape_cast %25 : vector<128xf32> to vector<128x1xf32>
    %27 = arith.mulf %12, %12 : vector<2x256xf32>
    %cst_26 = arith.constant dense<0.000000e+00> : vector<256xf32>
    %28 = vector.multi_reduction <add>, %27, %cst_26 [0] : vector<2x256xf32> to vector<256xf32>
    %29 = vector.shape_cast %28 : vector<256xf32> to vector<1x256xf32>
    %30 = vector.broadcast %26 : vector<128x1xf32> to vector<128x256xf32>
    %31 = vector.broadcast %29 : vector<1x256xf32> to vector<128x256xf32>
    %32 = arith.addf %30, %31 : vector<128x256xf32>
    %cst_27 = arith.constant 2.000000e+00 : f32
    %33 = vector.broadcast %cst_27 : f32 to vector<128x256xf32>
    %34 = arith.mulf %33, %23 : vector<128x256xf32>
    %35 = arith.subf %32, %34 : vector<128x256xf32>
    %cst_28 = arith.constant 0.000000e+00 : f32
    %36 = vector.broadcast %cst_28 : f32 to vector<128x256xf32>
    %37 = arith.maximumf %35, %36 : vector<128x256xf32>
    %c128_i32 = arith.constant 128 : i32
    %38 = arith.muli %arg0, %c128_i32 : i32
    %39 = tpu.iota {dimensions = array<i32: 0>} : vector<128x256xi32>
    %40 = vector.broadcast %38 : i32 to vector<128x256xi32>
    %41 = arith.addi %40, %39 : vector<128x256xi32>
    %42 = tpu.iota {dimensions = array<i32: 1>} : vector<128x256xi32>
    %cst_29 = arith.constant 1.000000e+00 : f32
    %43 = vector.broadcast %cst_29 : f32 to vector<128x256xf32>
    %44 = arith.cmpf olt, %37, %43 : vector<128x256xf32>
    %45 = arith.cmpi ne, %41, %42 : vector<128x256xi32>
    %46 = arith.andi %44, %45 : vector<128x256xi1>
    %c200_i32 = arith.constant 200 : i32
    %47 = vector.broadcast %c200_i32 : i32 to vector<128x256xi32>
    %48 = arith.cmpi slt, %42, %47 : vector<128x256xi32>
    %49 = arith.andi %46, %48 : vector<128x256xi1>
    %cst_30 = arith.constant -1.000000e+01 : f32
    %50 = vector.broadcast %cst_30 : f32 to vector<128x256xf32>
    %51 = arith.mulf %50, %37 : vector<128x256xf32>
    %52 = math.exp %51 : vector<128x256xf32>
    %cst_31 = arith.constant 0.000000e+00 : f32
    %53 = vector.broadcast %cst_31 : f32 to vector<128x256xf32>
    %54 = arith.select %49, %52, %53 : vector<128x256xi1>, vector<128x256xf32>
    %55 = arith.extui %49 : vector<128x256xi1> to vector<128x256xi32>
    %56 = arith.sitofp %55 : vector<128x256xi32> to vector<128x256xf32>
    %cst_32 = arith.constant dense<0.000000e+00> : vector<128xf32>
    %57 = vector.multi_reduction <add>, %56, %cst_32 [1] : vector<128x256xf32> to vector<128xf32>
    %58 = vector.shape_cast %57 : vector<128xf32> to vector<128x1xf32>
    %cst_33 = arith.constant dense<0.000000e+00> : vector<128x32xf32>
    %59 = tpu.matmul %54, %17, %cst_33 {dimension_numbers = #tpu.dot_dimension_numbers<[1], [0], [0], [1], [0, 0, 1, 1], [], []>} : vector<128x256xf32>, vector<256x32xf32>, vector<128x32xf32> -> vector<128x32xf32>
    %cst_34 = arith.constant 1.000000e+00 : f32
    %60 = vector.broadcast %cst_34 : f32 to vector<128x1xf32>
    %61 = arith.maximumf %58, %60 : vector<128x1xf32>
    %62 = tpu.reciprocal %61 {approx = true} : vector<128x1xf32> -> vector<128x1xf32>
    %63 = vector.broadcast %62 : vector<128x1xf32> to vector<128x32xf32>
    %64 = arith.mulf %59, %63 : vector<128x32xf32>
    %cst_35 = arith.constant 0.000000e+00 : f32
    %cst_36 = arith.constant -3.000000e+38 : f32
    %65 = vector.broadcast %cst_35 : f32 to vector<128x256xf32>
    %66 = vector.broadcast %cst_36 : f32 to vector<128x256xf32>
    %67 = arith.select %49, %65, %66 : vector<128x256xi1>, vector<128x256xf32>
    %68 = vector.extract_strided_slice %22 {offsets = [0, 0], sizes = [1, 256], strides = [1, 1]} : vector<32x256xf32> to vector<1x256xf32>
    %69 = vector.broadcast %68 : vector<1x256xf32> to vector<128x256xf32>
    %70 = arith.mulf %54, %69 : vector<128x256xf32>
    %71 = arith.addf %70, %67 : vector<128x256xf32>
    %cst_37 = arith.constant dense<0xFF800000> : vector<128xf32>
    %72 = vector.multi_reduction <maximumf>, %71, %cst_37 [1] : vector<128x256xf32> to vector<128xf32>
    %73 = vector.shape_cast %72 : vector<128xf32> to vector<128x1xf32>
    %c0_38 = arith.constant 0 : index
    %c0_39 = arith.constant 0 : index
    %74 = vector.load %arg34[%c0_38, %c0_39] : memref<128x32xf32, #tpu.memory_space<vmem>>, vector<128x1xf32>
    tpu.vector_store %arg34[%c0_38, %c0_39], %73 {strides = array<i32>} : memref<128x32xf32, #tpu.memory_space<vmem>>, vector<128x1xf32>,
    %75 = vector.extract_strided_slice %22 {offsets = [1, 0], sizes = [1, 256], strides = [1, 1]} : vector<32x256xf32> to vector<1x256xf32>
    %76 = vector.broadcast %75 : vector<1x256xf32> to vector<128x256xf32>
    %77 = arith.mulf %54, %76 : vector<128x256xf32>
    %78 = arith.addf %77, %67 : vector<128x256xf32>
    %cst_40 = arith.constant dense<0xFF800000> : vector<128xf32>
    %79 = vector.multi_reduction <maximumf>, %78, %cst_40 [1] : vector<128x256xf32> to vector<128xf32>
    %80 = vector.shape_cast %79 : vector<128xf32> to vector<128x1xf32>
    %c0_41 = arith.constant 0 : index
    %c1 = arith.constant 1 : index
    %81 = vector.load %arg34[%c0_41, %c1] : memref<128x32xf32, #tpu.memory_space<vmem>>, vector<128x1xf32>
    tpu.vector_store %arg34[%c0_41, %c1], %80 {strides = array<i32>} : memref<128x32xf32, #tpu.memory_space<vmem>>, vector<128x1xf32>,
    %82 = vector.extract_strided_slice %22 {offsets = [2, 0], sizes = [1, 256], strides = [1, 1]} : vector<32x256xf32> to vector<1x256xf32>
    %83 = vector.broadcast %82 : vector<1x256xf32> to vector<128x256xf32>
    %84 = arith.mulf %54, %83 : vector<128x256xf32>
    %85 = arith.addf %84, %67 : vector<128x256xf32>
    %cst_42 = arith.constant dense<0xFF800000> : vector<128xf32>
    %86 = vector.multi_reduction <maximumf>, %85, %cst_42 [1] : vector<128x256xf32> to vector<128xf32>
    %87 = vector.shape_cast %86 : vector<128xf32> to vector<128x1xf32>
    %c0_43 = arith.constant 0 : index
    %c2 = arith.constant 2 : index
    %88 = vector.load %arg34[%c0_43, %c2] : memref<128x32xf32, #tpu.memory_space<vmem>>, vector<128x1xf32>
    tpu.vector_store %arg34[%c0_43, %c2], %87 {strides = array<i32>} : memref<128x32xf32, #tpu.memory_space<vmem>>, vector<128x1xf32>,
    %89 = vector.extract_strided_slice %22 {offsets = [3, 0], sizes = [1, 256], strides = [1, 1]} : vector<32x256xf32> to vector<1x256xf32>
    %90 = vector.broadcast %89 : vector<1x256xf32> to vector<128x256xf32>
    %91 = arith.mulf %54, %90 : vector<128x256xf32>
    %92 = arith.addf %91, %67 : vector<128x256xf32>
    %cst_44 = arith.constant dense<0xFF800000> : vector<128xf32>
    %93 = vector.multi_reduction <maximumf>, %92, %cst_44 [1] : vector<128x256xf32> to vector<128xf32>
    %94 = vector.shape_cast %93 : vector<128xf32> to vector<128x1xf32>
    %c0_45 = arith.constant 0 : index
    %c3 = arith.constant 3 : index
    %95 = vector.load %arg34[%c0_45, %c3] : memref<128x32xf32, #tpu.memory_space<vmem>>, vector<128x1xf32>
    tpu.vector_store %arg34[%c0_45, %c3], %94 {strides = array<i32>} : memref<128x32xf32, #tpu.memory_space<vmem>>, vector<128x1xf32>,
    %96 = vector.extract_strided_slice %22 {offsets = [4, 0], sizes = [1, 256], strides = [1, 1]} : vector<32x256xf32> to vector<1x256xf32>
    %97 = vector.broadcast %96 : vector<1x256xf32> to vector<128x256xf32>
    %98 = arith.mulf %54, %97 : vector<128x256xf32>
    %99 = arith.addf %98, %67 : vector<128x256xf32>
    %cst_46 = arith.constant dense<0xFF800000> : vector<128xf32>
    %100 = vector.multi_reduction <maximumf>, %99, %cst_46 [1] : vector<128x256xf32> to vector<128xf32>
    %101 = vector.shape_cast %100 : vector<128xf32> to vector<128x1xf32>
    %c0_47 = arith.constant 0 : index
    %c4 = arith.constant 4 : index
    %102 = vector.load %arg34[%c0_47, %c4] : memref<128x32xf32, #tpu.memory_space<vmem>>, vector<128x1xf32>
    tpu.vector_store %arg34[%c0_47, %c4], %101 {strides = array<i32>} : memref<128x32xf32, #tpu.memory_space<vmem>>, vector<128x1xf32>,
    %103 = vector.extract_strided_slice %22 {offsets = [5, 0], sizes = [1, 256], strides = [1, 1]} : vector<32x256xf32> to vector<1x256xf32>
    %104 = vector.broadcast %103 : vector<1x256xf32> to vector<128x256xf32>
    %105 = arith.mulf %54, %104 : vector<128x256xf32>
    %106 = arith.addf %105, %67 : vector<128x256xf32>
    %cst_48 = arith.constant dense<0xFF800000> : vector<128xf32>
    %107 = vector.multi_reduction <maximumf>, %106, %cst_48 [1] : vector<128x256xf32> to vector<128xf32>
    %108 = vector.shape_cast %107 : vector<128xf32> to vector<128x1xf32>
    %c0_49 = arith.constant 0 : index
    %c5 = arith.constant 5 : index
    %109 = vector.load %arg34[%c0_49, %c5] : memref<128x32xf32, #tpu.memory_space<vmem>>, vector<128x1xf32>
    tpu.vector_store %arg34[%c0_49, %c5], %108 {strides = array<i32>} : memref<128x32xf32, #tpu.memory_space<vmem>>, vector<128x1xf32>,
    %110 = vector.extract_strided_slice %22 {offsets = [6, 0], sizes = [1, 256], strides = [1, 1]} : vector<32x256xf32> to vector<1x256xf32>
    %111 = vector.broadcast %110 : vector<1x256xf32> to vector<128x256xf32>
    %112 = arith.mulf %54, %111 : vector<128x256xf32>
    %113 = arith.addf %112, %67 : vector<128x256xf32>
    %cst_50 = arith.constant dense<0xFF800000> : vector<128xf32>
    %114 = vector.multi_reduction <maximumf>, %113, %cst_50 [1] : vector<128x256xf32> to vector<128xf32>
    %115 = vector.shape_cast %114 : vector<128xf32> to vector<128x1xf32>
    %c0_51 = arith.constant 0 : index
    %c6 = arith.constant 6 : index
    %116 = vector.load %arg34[%c0_51, %c6] : memref<128x32xf32, #tpu.memory_space<vmem>>, vector<128x1xf32>
    tpu.vector_store %arg34[%c0_51, %c6], %115 {strides = array<i32>} : memref<128x32xf32, #tpu.memory_space<vmem>>, vector<128x1xf32>,
    %117 = vector.extract_strided_slice %22 {offsets = [7, 0], sizes = [1, 256], strides = [1, 1]} : vector<32x256xf32> to vector<1x256xf32>
    %118 = vector.broadcast %117 : vector<1x256xf32> to vector<128x256xf32>
    %119 = arith.mulf %54, %118 : vector<128x256xf32>
    %120 = arith.addf %119, %67 : vector<128x256xf32>
    %cst_52 = arith.constant dense<0xFF800000> : vector<128xf32>
    %121 = vector.multi_reduction <maximumf>, %120, %cst_52 [1] : vector<128x256xf32> to vector<128xf32>
    %122 = vector.shape_cast %121 : vector<128xf32> to vector<128x1xf32>
    %c0_53 = arith.constant 0 : index
    %c7 = arith.constant 7 : index
    %123 = vector.load %arg34[%c0_53, %c7] : memref<128x32xf32, #tpu.memory_space<vmem>>, vector<128x1xf32>
    tpu.vector_store %arg34[%c0_53, %c7], %122 {strides = array<i32>} : memref<128x32xf32, #tpu.memory_space<vmem>>, vector<128x1xf32>,
    %124 = vector.extract_strided_slice %22 {offsets = [8, 0], sizes = [1, 256], strides = [1, 1]} : vector<32x256xf32> to vector<1x256xf32>
    %125 = vector.broadcast %124 : vector<1x256xf32> to vector<128x256xf32>
    %126 = arith.mulf %54, %125 : vector<128x256xf32>
    %127 = arith.addf %126, %67 : vector<128x256xf32>
    %cst_54 = arith.constant dense<0xFF800000> : vector<128xf32>
    %128 = vector.multi_reduction <maximumf>, %127, %cst_54 [1] : vector<128x256xf32> to vector<128xf32>
    %129 = vector.shape_cast %128 : vector<128xf32> to vector<128x1xf32>
    %c0_55 = arith.constant 0 : index
    %c8 = arith.constant 8 : index
    %130 = vector.load %arg34[%c0_55, %c8] : memref<128x32xf32, #tpu.memory_space<vmem>>, vector<128x1xf32>
    tpu.vector_store %arg34[%c0_55, %c8], %129 {strides = array<i32>} : memref<128x32xf32, #tpu.memory_space<vmem>>, vector<128x1xf32>,
    %131 = vector.extract_strided_slice %22 {offsets = [9, 0], sizes = [1, 256], strides = [1, 1]} : vector<32x256xf32> to vector<1x256xf32>
    %132 = vector.broadcast %131 : vector<1x256xf32> to vector<128x256xf32>
    %133 = arith.mulf %54, %132 : vector<128x256xf32>
    %134 = arith.addf %133, %67 : vector<128x256xf32>
    %cst_56 = arith.constant dense<0xFF800000> : vector<128xf32>
    %135 = vector.multi_reduction <maximumf>, %134, %cst_56 [1] : vector<128x256xf32> to vector<128xf32>
    %136 = vector.shape_cast %135 : vector<128xf32> to vector<128x1xf32>
    %c0_57 = arith.constant 0 : index
    %c9 = arith.constant 9 : index
    %137 = vector.load %arg34[%c0_57, %c9] : memref<128x32xf32, #tpu.memory_space<vmem>>, vector<128x1xf32>
    tpu.vector_store %arg34[%c0_57, %c9], %136 {strides = array<i32>} : memref<128x32xf32, #tpu.memory_space<vmem>>, vector<128x1xf32>,
    %138 = vector.extract_strided_slice %22 {offsets = [10, 0], sizes = [1, 256], strides = [1, 1]} : vector<32x256xf32> to vector<1x256xf32>
    %139 = vector.broadcast %138 : vector<1x256xf32> to vector<128x256xf32>
    %140 = arith.mulf %54, %139 : vector<128x256xf32>
    %141 = arith.addf %140, %67 : vector<128x256xf32>
    %cst_58 = arith.constant dense<0xFF800000> : vector<128xf32>
    %142 = vector.multi_reduction <maximumf>, %141, %cst_58 [1] : vector<128x256xf32> to vector<128xf32>
    %143 = vector.shape_cast %142 : vector<128xf32> to vector<128x1xf32>
    %c0_59 = arith.constant 0 : index
    %c10 = arith.constant 10 : index
    %144 = vector.load %arg34[%c0_59, %c10] : memref<128x32xf32, #tpu.memory_space<vmem>>, vector<128x1xf32>
    tpu.vector_store %arg34[%c0_59, %c10], %143 {strides = array<i32>} : memref<128x32xf32, #tpu.memory_space<vmem>>, vector<128x1xf32>,
    %145 = vector.extract_strided_slice %22 {offsets = [11, 0], sizes = [1, 256], strides = [1, 1]} : vector<32x256xf32> to vector<1x256xf32>
    %146 = vector.broadcast %145 : vector<1x256xf32> to vector<128x256xf32>
    %147 = arith.mulf %54, %146 : vector<128x256xf32>
    %148 = arith.addf %147, %67 : vector<128x256xf32>
    %cst_60 = arith.constant dense<0xFF800000> : vector<128xf32>
    %149 = vector.multi_reduction <maximumf>, %148, %cst_60 [1] : vector<128x256xf32> to vector<128xf32>
    %150 = vector.shape_cast %149 : vector<128xf32> to vector<128x1xf32>
    %c0_61 = arith.constant 0 : index
    %c11 = arith.constant 11 : index
    %151 = vector.load %arg34[%c0_61, %c11] : memref<128x32xf32, #tpu.memory_space<vmem>>, vector<128x1xf32>
    tpu.vector_store %arg34[%c0_61, %c11], %150 {strides = array<i32>} : memref<128x32xf32, #tpu.memory_space<vmem>>, vector<128x1xf32>,
    %152 = vector.extract_strided_slice %22 {offsets = [12, 0], sizes = [1, 256], strides = [1, 1]} : vector<32x256xf32> to vector<1x256xf32>
    %153 = vector.broadcast %152 : vector<1x256xf32> to vector<128x256xf32>
    %154 = arith.mulf %54, %153 : vector<128x256xf32>
    %155 = arith.addf %154, %67 : vector<128x256xf32>
    %cst_62 = arith.constant dense<0xFF800000> : vector<128xf32>
    %156 = vector.multi_reduction <maximumf>, %155, %cst_62 [1] : vector<128x256xf32> to vector<128xf32>
    %157 = vector.shape_cast %156 : vector<128xf32> to vector<128x1xf32>
    %c0_63 = arith.constant 0 : index
    %c12 = arith.constant 12 : index
    %158 = vector.load %arg34[%c0_63, %c12] : memref<128x32xf32, #tpu.memory_space<vmem>>, vector<128x1xf32>
    tpu.vector_store %arg34[%c0_63, %c12], %157 {strides = array<i32>} : memref<128x32xf32, #tpu.memory_space<vmem>>, vector<128x1xf32>,
    %159 = vector.extract_strided_slice %22 {offsets = [13, 0], sizes = [1, 256], strides = [1, 1]} : vector<32x256xf32> to vector<1x256xf32>
    %160 = vector.broadcast %159 : vector<1x256xf32> to vector<128x256xf32>
    %161 = arith.mulf %54, %160 : vector<128x256xf32>
    %162 = arith.addf %161, %67 : vector<128x256xf32>
    %cst_64 = arith.constant dense<0xFF800000> : vector<128xf32>
    %163 = vector.multi_reduction <maximumf>, %162, %cst_64 [1] : vector<128x256xf32> to vector<128xf32>
    %164 = vector.shape_cast %163 : vector<128xf32> to vector<128x1xf32>
    %c0_65 = arith.constant 0 : index
    %c13 = arith.constant 13 : index
    %165 = vector.load %arg34[%c0_65, %c13] : memref<128x32xf32, #tpu.memory_space<vmem>>, vector<128x1xf32>
    tpu.vector_store %arg34[%c0_65, %c13], %164 {strides = array<i32>} : memref<128x32xf32, #tpu.memory_space<vmem>>, vector<128x1xf32>,
    %166 = vector.extract_strided_slice %22 {offsets = [14, 0], sizes = [1, 256], strides = [1, 1]} : vector<32x256xf32> to vector<1x256xf32>
    %167 = vector.broadcast %166 : vector<1x256xf32> to vector<128x256xf32>
    %168 = arith.mulf %54, %167 : vector<128x256xf32>
    %169 = arith.addf %168, %67 : vector<128x256xf32>
    %cst_66 = arith.constant dense<0xFF800000> : vector<128xf32>
    %170 = vector.multi_reduction <maximumf>, %169, %cst_66 [1] : vector<128x256xf32> to vector<128xf32>
    %171 = vector.shape_cast %170 : vector<128xf32> to vector<128x1xf32>
    %c0_67 = arith.constant 0 : index
    %c14 = arith.constant 14 : index
    %172 = vector.load %arg34[%c0_67, %c14] : memref<128x32xf32, #tpu.memory_space<vmem>>, vector<128x1xf32>
    tpu.vector_store %arg34[%c0_67, %c14], %171 {strides = array<i32>} : memref<128x32xf32, #tpu.memory_space<vmem>>, vector<128x1xf32>,
    %173 = vector.extract_strided_slice %22 {offsets = [15, 0], sizes = [1, 256], strides = [1, 1]} : vector<32x256xf32> to vector<1x256xf32>
    %174 = vector.broadcast %173 : vector<1x256xf32> to vector<128x256xf32>
    %175 = arith.mulf %54, %174 : vector<128x256xf32>
    %176 = arith.addf %175, %67 : vector<128x256xf32>
    %cst_68 = arith.constant dense<0xFF800000> : vector<128xf32>
    %177 = vector.multi_reduction <maximumf>, %176, %cst_68 [1] : vector<128x256xf32> to vector<128xf32>
    %178 = vector.shape_cast %177 : vector<128xf32> to vector<128x1xf32>
    %c0_69 = arith.constant 0 : index
    %c15 = arith.constant 15 : index
    %179 = vector.load %arg34[%c0_69, %c15] : memref<128x32xf32, #tpu.memory_space<vmem>>, vector<128x1xf32>
    tpu.vector_store %arg34[%c0_69, %c15], %178 {strides = array<i32>} : memref<128x32xf32, #tpu.memory_space<vmem>>, vector<128x1xf32>,
    %180 = vector.extract_strided_slice %22 {offsets = [16, 0], sizes = [1, 256], strides = [1, 1]} : vector<32x256xf32> to vector<1x256xf32>
    %181 = vector.broadcast %180 : vector<1x256xf32> to vector<128x256xf32>
    %182 = arith.mulf %54, %181 : vector<128x256xf32>
    %183 = arith.addf %182, %67 : vector<128x256xf32>
    %cst_70 = arith.constant dense<0xFF800000> : vector<128xf32>
    %184 = vector.multi_reduction <maximumf>, %183, %cst_70 [1] : vector<128x256xf32> to vector<128xf32>
    %185 = vector.shape_cast %184 : vector<128xf32> to vector<128x1xf32>
    %c0_71 = arith.constant 0 : index
    %c16 = arith.constant 16 : index
    %186 = vector.load %arg34[%c0_71, %c16] : memref<128x32xf32, #tpu.memory_space<vmem>>, vector<128x1xf32>
    tpu.vector_store %arg34[%c0_71, %c16], %185 {strides = array<i32>} : memref<128x32xf32, #tpu.memory_space<vmem>>, vector<128x1xf32>,
    %187 = vector.extract_strided_slice %22 {offsets = [17, 0], sizes = [1, 256], strides = [1, 1]} : vector<32x256xf32> to vector<1x256xf32>
    %188 = vector.broadcast %187 : vector<1x256xf32> to vector<128x256xf32>
    %189 = arith.mulf %54, %188 : vector<128x256xf32>
    %190 = arith.addf %189, %67 : vector<128x256xf32>
    %cst_72 = arith.constant dense<0xFF800000> : vector<128xf32>
    %191 = vector.multi_reduction <maximumf>, %190, %cst_72 [1] : vector<128x256xf32> to vector<128xf32>
    %192 = vector.shape_cast %191 : vector<128xf32> to vector<128x1xf32>
    %c0_73 = arith.constant 0 : index
    %c17 = arith.constant 17 : index
    %193 = vector.load %arg34[%c0_73, %c17] : memref<128x32xf32, #tpu.memory_space<vmem>>, vector<128x1xf32>
    tpu.vector_store %arg34[%c0_73, %c17], %192 {strides = array<i32>} : memref<128x32xf32, #tpu.memory_space<vmem>>, vector<128x1xf32>,
    %194 = vector.extract_strided_slice %22 {offsets = [18, 0], sizes = [1, 256], strides = [1, 1]} : vector<32x256xf32> to vector<1x256xf32>
    %195 = vector.broadcast %194 : vector<1x256xf32> to vector<128x256xf32>
    %196 = arith.mulf %54, %195 : vector<128x256xf32>
    %197 = arith.addf %196, %67 : vector<128x256xf32>
    %cst_74 = arith.constant dense<0xFF800000> : vector<128xf32>
    %198 = vector.multi_reduction <maximumf>, %197, %cst_74 [1] : vector<128x256xf32> to vector<128xf32>
    %199 = vector.shape_cast %198 : vector<128xf32> to vector<128x1xf32>
    %c0_75 = arith.constant 0 : index
    %c18 = arith.constant 18 : index
    %200 = vector.load %arg34[%c0_75, %c18] : memref<128x32xf32, #tpu.memory_space<vmem>>, vector<128x1xf32>
    tpu.vector_store %arg34[%c0_75, %c18], %199 {strides = array<i32>} : memref<128x32xf32, #tpu.memory_space<vmem>>, vector<128x1xf32>,
    %201 = vector.extract_strided_slice %22 {offsets = [19, 0], sizes = [1, 256], strides = [1, 1]} : vector<32x256xf32> to vector<1x256xf32>
    %202 = vector.broadcast %201 : vector<1x256xf32> to vector<128x256xf32>
    %203 = arith.mulf %54, %202 : vector<128x256xf32>
    %204 = arith.addf %203, %67 : vector<128x256xf32>
    %cst_76 = arith.constant dense<0xFF800000> : vector<128xf32>
    %205 = vector.multi_reduction <maximumf>, %204, %cst_76 [1] : vector<128x256xf32> to vector<128xf32>
    %206 = vector.shape_cast %205 : vector<128xf32> to vector<128x1xf32>
    %c0_77 = arith.constant 0 : index
    %c19 = arith.constant 19 : index
    %207 = vector.load %arg34[%c0_77, %c19] : memref<128x32xf32, #tpu.memory_space<vmem>>, vector<128x1xf32>
    tpu.vector_store %arg34[%c0_77, %c19], %206 {strides = array<i32>} : memref<128x32xf32, #tpu.memory_space<vmem>>, vector<128x1xf32>,
    %208 = vector.extract_strided_slice %22 {offsets = [20, 0], sizes = [1, 256], strides = [1, 1]} : vector<32x256xf32> to vector<1x256xf32>
    %209 = vector.broadcast %208 : vector<1x256xf32> to vector<128x256xf32>
    %210 = arith.mulf %54, %209 : vector<128x256xf32>
    %211 = arith.addf %210, %67 : vector<128x256xf32>
    %cst_78 = arith.constant dense<0xFF800000> : vector<128xf32>
    %212 = vector.multi_reduction <maximumf>, %211, %cst_78 [1] : vector<128x256xf32> to vector<128xf32>
    %213 = vector.shape_cast %212 : vector<128xf32> to vector<128x1xf32>
    %c0_79 = arith.constant 0 : index
    %c20 = arith.constant 20 : index
    %214 = vector.load %arg34[%c0_79, %c20] : memref<128x32xf32, #tpu.memory_space<vmem>>, vector<128x1xf32>
    tpu.vector_store %arg34[%c0_79, %c20], %213 {strides = array<i32>} : memref<128x32xf32, #tpu.memory_space<vmem>>, vector<128x1xf32>,
    %215 = vector.extract_strided_slice %22 {offsets = [21, 0], sizes = [1, 256], strides = [1, 1]} : vector<32x256xf32> to vector<1x256xf32>
    %216 = vector.broadcast %215 : vector<1x256xf32> to vector<128x256xf32>
    %217 = arith.mulf %54, %216 : vector<128x256xf32>
    %218 = arith.addf %217, %67 : vector<128x256xf32>
    %cst_80 = arith.constant dense<0xFF800000> : vector<128xf32>
    %219 = vector.multi_reduction <maximumf>, %218, %cst_80 [1] : vector<128x256xf32> to vector<128xf32>
    %220 = vector.shape_cast %219 : vector<128xf32> to vector<128x1xf32>
    %c0_81 = arith.constant 0 : index
    %c21 = arith.constant 21 : index
    %221 = vector.load %arg34[%c0_81, %c21] : memref<128x32xf32, #tpu.memory_space<vmem>>, vector<128x1xf32>
    tpu.vector_store %arg34[%c0_81, %c21], %220 {strides = array<i32>} : memref<128x32xf32, #tpu.memory_space<vmem>>, vector<128x1xf32>,
    %222 = vector.extract_strided_slice %22 {offsets = [22, 0], sizes = [1, 256], strides = [1, 1]} : vector<32x256xf32> to vector<1x256xf32>
    %223 = vector.broadcast %222 : vector<1x256xf32> to vector<128x256xf32>
    %224 = arith.mulf %54, %223 : vector<128x256xf32>
    %225 = arith.addf %224, %67 : vector<128x256xf32>
    %cst_82 = arith.constant dense<0xFF800000> : vector<128xf32>
    %226 = vector.multi_reduction <maximumf>, %225, %cst_82 [1] : vector<128x256xf32> to vector<128xf32>
    %227 = vector.shape_cast %226 : vector<128xf32> to vector<128x1xf32>
    %c0_83 = arith.constant 0 : index
    %c22 = arith.constant 22 : index
    %228 = vector.load %arg34[%c0_83, %c22] : memref<128x32xf32, #tpu.memory_space<vmem>>, vector<128x1xf32>
    tpu.vector_store %arg34[%c0_83, %c22], %227 {strides = array<i32>} : memref<128x32xf32, #tpu.memory_space<vmem>>, vector<128x1xf32>,
    %229 = vector.extract_strided_slice %22 {offsets = [23, 0], sizes = [1, 256], strides = [1, 1]} : vector<32x256xf32> to vector<1x256xf32>
    %230 = vector.broadcast %229 : vector<1x256xf32> to vector<128x256xf32>
    %231 = arith.mulf %54, %230 : vector<128x256xf32>
    %232 = arith.addf %231, %67 : vector<128x256xf32>
    %cst_84 = arith.constant dense<0xFF800000> : vector<128xf32>
    %233 = vector.multi_reduction <maximumf>, %232, %cst_84 [1] : vector<128x256xf32> to vector<128xf32>
    %234 = vector.shape_cast %233 : vector<128xf32> to vector<128x1xf32>
    %c0_85 = arith.constant 0 : index
    %c23 = arith.constant 23 : index
    %235 = vector.load %arg34[%c0_85, %c23] : memref<128x32xf32, #tpu.memory_space<vmem>>, vector<128x1xf32>
    tpu.vector_store %arg34[%c0_85, %c23], %234 {strides = array<i32>} : memref<128x32xf32, #tpu.memory_space<vmem>>, vector<128x1xf32>,
    %236 = vector.extract_strided_slice %22 {offsets = [24, 0], sizes = [1, 256], strides = [1, 1]} : vector<32x256xf32> to vector<1x256xf32>
    %237 = vector.broadcast %236 : vector<1x256xf32> to vector<128x256xf32>
    %238 = arith.mulf %54, %237 : vector<128x256xf32>
    %239 = arith.addf %238, %67 : vector<128x256xf32>
    %cst_86 = arith.constant dense<0xFF800000> : vector<128xf32>
    %240 = vector.multi_reduction <maximumf>, %239, %cst_86 [1] : vector<128x256xf32> to vector<128xf32>
    %241 = vector.shape_cast %240 : vector<128xf32> to vector<128x1xf32>
    %c0_87 = arith.constant 0 : index
    %c24 = arith.constant 24 : index
    %242 = vector.load %arg34[%c0_87, %c24] : memref<128x32xf32, #tpu.memory_space<vmem>>, vector<128x1xf32>
    tpu.vector_store %arg34[%c0_87, %c24], %241 {strides = array<i32>} : memref<128x32xf32, #tpu.memory_space<vmem>>, vector<128x1xf32>,
    %243 = vector.extract_strided_slice %22 {offsets = [25, 0], sizes = [1, 256], strides = [1, 1]} : vector<32x256xf32> to vector<1x256xf32>
    %244 = vector.broadcast %243 : vector<1x256xf32> to vector<128x256xf32>
    %245 = arith.mulf %54, %244 : vector<128x256xf32>
    %246 = arith.addf %245, %67 : vector<128x256xf32>
    %cst_88 = arith.constant dense<0xFF800000> : vector<128xf32>
    %247 = vector.multi_reduction <maximumf>, %246, %cst_88 [1] : vector<128x256xf32> to vector<128xf32>
    %248 = vector.shape_cast %247 : vector<128xf32> to vector<128x1xf32>
    %c0_89 = arith.constant 0 : index
    %c25 = arith.constant 25 : index
    %249 = vector.load %arg34[%c0_89, %c25] : memref<128x32xf32, #tpu.memory_space<vmem>>, vector<128x1xf32>
    tpu.vector_store %arg34[%c0_89, %c25], %248 {strides = array<i32>} : memref<128x32xf32, #tpu.memory_space<vmem>>, vector<128x1xf32>,
    %250 = vector.extract_strided_slice %22 {offsets = [26, 0], sizes = [1, 256], strides = [1, 1]} : vector<32x256xf32> to vector<1x256xf32>
    %251 = vector.broadcast %250 : vector<1x256xf32> to vector<128x256xf32>
    %252 = arith.mulf %54, %251 : vector<128x256xf32>
    %253 = arith.addf %252, %67 : vector<128x256xf32>
    %cst_90 = arith.constant dense<0xFF800000> : vector<128xf32>
    %254 = vector.multi_reduction <maximumf>, %253, %cst_90 [1] : vector<128x256xf32> to vector<128xf32>
    %255 = vector.shape_cast %254 : vector<128xf32> to vector<128x1xf32>
    %c0_91 = arith.constant 0 : index
    %c26 = arith.constant 26 : index
    %256 = vector.load %arg34[%c0_91, %c26] : memref<128x32xf32, #tpu.memory_space<vmem>>, vector<128x1xf32>
    tpu.vector_store %arg34[%c0_91, %c26], %255 {strides = array<i32>} : memref<128x32xf32, #tpu.memory_space<vmem>>, vector<128x1xf32>,
    %257 = vector.extract_strided_slice %22 {offsets = [27, 0], sizes = [1, 256], strides = [1, 1]} : vector<32x256xf32> to vector<1x256xf32>
    %258 = vector.broadcast %257 : vector<1x256xf32> to vector<128x256xf32>
    %259 = arith.mulf %54, %258 : vector<128x256xf32>
    %260 = arith.addf %259, %67 : vector<128x256xf32>
    %cst_92 = arith.constant dense<0xFF800000> : vector<128xf32>
    %261 = vector.multi_reduction <maximumf>, %260, %cst_92 [1] : vector<128x256xf32> to vector<128xf32>
    %262 = vector.shape_cast %261 : vector<128xf32> to vector<128x1xf32>
    %c0_93 = arith.constant 0 : index
    %c27 = arith.constant 27 : index
    %263 = vector.load %arg34[%c0_93, %c27] : memref<128x32xf32, #tpu.memory_space<vmem>>, vector<128x1xf32>
    tpu.vector_store %arg34[%c0_93, %c27], %262 {strides = array<i32>} : memref<128x32xf32, #tpu.memory_space<vmem>>, vector<128x1xf32>,
    %264 = vector.extract_strided_slice %22 {offsets = [28, 0], sizes = [1, 256], strides = [1, 1]} : vector<32x256xf32> to vector<1x256xf32>
    %265 = vector.broadcast %264 : vector<1x256xf32> to vector<128x256xf32>
    %266 = arith.mulf %54, %265 : vector<128x256xf32>
    %267 = arith.addf %266, %67 : vector<128x256xf32>
    %cst_94 = arith.constant dense<0xFF800000> : vector<128xf32>
    %268 = vector.multi_reduction <maximumf>, %267, %cst_94 [1] : vector<128x256xf32> to vector<128xf32>
    %269 = vector.shape_cast %268 : vector<128xf32> to vector<128x1xf32>
    %c0_95 = arith.constant 0 : index
    %c28 = arith.constant 28 : index
    %270 = vector.load %arg34[%c0_95, %c28] : memref<128x32xf32, #tpu.memory_space<vmem>>, vector<128x1xf32>
    tpu.vector_store %arg34[%c0_95, %c28], %269 {strides = array<i32>} : memref<128x32xf32, #tpu.memory_space<vmem>>, vector<128x1xf32>,
    %271 = vector.extract_strided_slice %22 {offsets = [29, 0], sizes = [1, 256], strides = [1, 1]} : vector<32x256xf32> to vector<1x256xf32>
    %272 = vector.broadcast %271 : vector<1x256xf32> to vector<128x256xf32>
    %273 = arith.mulf %54, %272 : vector<128x256xf32>
    %274 = arith.addf %273, %67 : vector<128x256xf32>
    %cst_96 = arith.constant dense<0xFF800000> : vector<128xf32>
    %275 = vector.multi_reduction <maximumf>, %274, %cst_96 [1] : vector<128x256xf32> to vector<128xf32>
    %276 = vector.shape_cast %275 : vector<128xf32> to vector<128x1xf32>
    %c0_97 = arith.constant 0 : index
    %c29 = arith.constant 29 : index
    %277 = vector.load %arg34[%c0_97, %c29] : memref<128x32xf32, #tpu.memory_space<vmem>>, vector<128x1xf32>
    tpu.vector_store %arg34[%c0_97, %c29], %276 {strides = array<i32>} : memref<128x32xf32, #tpu.memory_space<vmem>>, vector<128x1xf32>,
    %278 = vector.extract_strided_slice %22 {offsets = [30, 0], sizes = [1, 256], strides = [1, 1]} : vector<32x256xf32> to vector<1x256xf32>
    %279 = vector.broadcast %278 : vector<1x256xf32> to vector<128x256xf32>
    %280 = arith.mulf %54, %279 : vector<128x256xf32>
    %281 = arith.addf %280, %67 : vector<128x256xf32>
    %cst_98 = arith.constant dense<0xFF800000> : vector<128xf32>
    %282 = vector.multi_reduction <maximumf>, %281, %cst_98 [1] : vector<128x256xf32> to vector<128xf32>
    %283 = vector.shape_cast %282 : vector<128xf32> to vector<128x1xf32>
    %c0_99 = arith.constant 0 : index
    %c30 = arith.constant 30 : index
    %284 = vector.load %arg34[%c0_99, %c30] : memref<128x32xf32, #tpu.memory_space<vmem>>, vector<128x1xf32>
    tpu.vector_store %arg34[%c0_99, %c30], %283 {strides = array<i32>} : memref<128x32xf32, #tpu.memory_space<vmem>>, vector<128x1xf32>,
    %285 = vector.extract_strided_slice %22 {offsets = [31, 0], sizes = [1, 256], strides = [1, 1]} : vector<32x256xf32> to vector<1x256xf32>
    %286 = vector.broadcast %285 : vector<1x256xf32> to vector<128x256xf32>
    %287 = arith.mulf %54, %286 : vector<128x256xf32>
    %288 = arith.addf %287, %67 : vector<128x256xf32>
    %cst_100 = arith.constant dense<0xFF800000> : vector<128xf32>
    %289 = vector.multi_reduction <maximumf>, %288, %cst_100 [1] : vector<128x256xf32> to vector<128xf32>
    %290 = vector.shape_cast %289 : vector<128xf32> to vector<128x1xf32>
    %c0_101 = arith.constant 0 : index
    %c31 = arith.constant 31 : index
    %291 = vector.load %arg34[%c0_101, %c31] : memref<128x32xf32, #tpu.memory_space<vmem>>, vector<128x1xf32>
    tpu.vector_store %arg34[%c0_101, %c31], %290 {strides = array<i32>} : memref<128x32xf32, #tpu.memory_space<vmem>>, vector<128x1xf32>,
    %cst_102 = arith.constant 0.000000e+00 : f32
    %292 = vector.broadcast %cst_102 : f32 to vector<128x1xf32>
    %293 = arith.cmpf ogt, %58, %292 : vector<128x1xf32>
    %c0_103 = arith.constant 0 : index
    %c0_104 = arith.constant 0 : index
    %294 = vector.load %arg34[%c0_103, %c0_104] : memref<128x32xf32, #tpu.memory_space<vmem>>, vector<128x32xf32>
    %cst_105 = arith.constant 0.000000e+00 : f32
    %295 = vector.shape_cast %293 : vector<128x1xi1> to vector<128x1xi1>
    %296 = vector.broadcast %295 : vector<128x1xi1> to vector<128x32xi1>
    %297 = vector.broadcast %cst_105 : f32 to vector<128x32xf32>
    %298 = arith.select %296, %294, %297 : vector<128x32xi1>, vector<128x32xf32>
    %c0_106 = arith.constant 0 : index
    %c0_107 = arith.constant 0 : index
    %299 = vector.load %arg12[%c0_106, %c0_107] : memref<12x256xf32, #tpu.memory_space<vmem>>, vector<12x256xf32>
    %cst_108 = arith.constant dense<0.000000e+00> : vector<128x256xf32>
    %300 = tpu.matmul %0, %299, %cst_108 {dimension_numbers = #tpu.dot_dimension_numbers<[1], [0], [0], [1], [0, 0, 1, 1], [], []>} : vector<128x12xf32>, vector<12x256xf32>, vector<128x256xf32> -> vector<128x256xf32>
    %c0_109 = arith.constant 0 : index
    %c0_110 = arith.constant 0 : index
    %301 = vector.load %arg13[%c0_109, %c0_110] : memref<32x256xf32, #tpu.memory_space<vmem>>, vector<32x256xf32>
    %cst_111 = arith.constant dense<0.000000e+00> : vector<128x256xf32>
    %302 = tpu.matmul %64, %301, %cst_111 {dimension_numbers = #tpu.dot_dimension_numbers<[1], [0], [0], [1], [0, 0, 1, 1], [], []>} : vector<128x32xf32>, vector<32x256xf32>, vector<128x256xf32> -> vector<128x256xf32>
    %303 = arith.addf %300, %302 : vector<128x256xf32>
    %c0_112 = arith.constant 0 : index
    %c0_113 = arith.constant 0 : index
    %304 = vector.load %arg14[%c0_112, %c0_113] : memref<32x256xf32, #tpu.memory_space<vmem>>, vector<32x256xf32>
    %cst_114 = arith.constant dense<0.000000e+00> : vector<128x256xf32>
    %305 = tpu.matmul %298, %304, %cst_114 {dimension_numbers = #tpu.dot_dimension_numbers<[1], [0], [0], [1], [0, 0, 1, 1], [], []>} : vector<128x32xf32>, vector<32x256xf32>, vector<128x256xf32> -> vector<128x256xf32>
    %306 = arith.addf %303, %305 : vector<128x256xf32>
    %c0_115 = arith.constant 0 : index
    %c0_116 = arith.constant 0 : index
    %307 = vector.load %arg15[%c0_115, %c0_116] : memref<1x256xf32, #tpu.memory_space<vmem>>, vector<1x256xf32>
    %308 = vector.broadcast %307 : vector<1x256xf32> to vector<128x256xf32>
    %309 = arith.addf %306, %308 : vector<128x256xf32>
    %cst_117 = arith.constant 0.000000e+00 : f32
    %310 = vector.broadcast %cst_117 : f32 to vector<128x256xf32>
    %311 = arith.cmpf oge, %309, %310 : vector<128x256xf32>
    %cst_118 = arith.constant 0.00999999977 : f32
    %312 = vector.broadcast %cst_118 : f32 to vector<128x256xf32>
    %313 = arith.mulf %312, %309 : vector<128x256xf32>
    %314 = arith.select %311, %309, %313 : vector<128x256xi1>, vector<128x256xf32>
    %c0_119 = arith.constant 0 : index
    %c0_120 = arith.constant 0 : index
    %315 = vector.load %arg16[%c0_119, %c0_120] : memref<256x64xf32, #tpu.memory_space<vmem>>, vector<256x64xf32>
    %cst_121 = arith.constant dense<0.000000e+00> : vector<128x64xf32>
    %316 = tpu.matmul %314, %315, %cst_121 {dimension_numbers = #tpu.dot_dimension_numbers<[1], [0], [0], [1], [0, 0, 1, 1], [], []>} : vector<128x256xf32>, vector<256x64xf32>, vector<128x64xf32> -> vector<128x64xf32>
    %c0_122 = arith.constant 0 : index
    %c0_123 = arith.constant 0 : index
    %317 = vector.load %arg17[%c0_122, %c0_123] : memref<1x64xf32, #tpu.memory_space<vmem>>, vector<1x64xf32>
    %318 = vector.broadcast %317 : vector<1x64xf32> to vector<128x64xf32>
    %319 = arith.addf %316, %318 : vector<128x64xf32>
    %320 = vector.extract_strided_slice %319 {offsets = [0, 0], sizes = [128, 32], strides = [1, 1]} : vector<128x64xf32> to vector<128x32xf32>
    %cst_124 = arith.constant 0.000000e+00 : f32
    %321 = vector.broadcast %cst_124 : f32 to vector<128x32xf32>
    %322 = arith.cmpf oge, %320, %321 : vector<128x32xf32>
    %cst_125 = arith.constant 0.00999999977 : f32
    %323 = vector.broadcast %cst_125 : f32 to vector<128x32xf32>
    %324 = arith.mulf %323, %320 : vector<128x32xf32>
    %325 = arith.select %322, %320, %324 : vector<128x32xi1>, vector<128x32xf32>
    %c0_126 = arith.constant 0 : index
    %c0_127 = arith.constant 0 : index
    %326 = vector.load %arg18[%c0_126, %c0_127] : memref<32x32xf32, #tpu.memory_space<vmem>>, vector<32x32xf32>
    %cst_128 = arith.constant dense<0.000000e+00> : vector<128x32xf32>
    %327 = tpu.matmul %325, %326, %cst_128 {dimension_numbers = #tpu.dot_dimension_numbers<[1], [0], [0], [1], [0, 0, 1, 1], [], []>} : vector<128x32xf32>, vector<32x32xf32>, vector<128x32xf32> -> vector<128x32xf32>
    %c0_129 = arith.constant 0 : index
    %c0_130 = arith.constant 0 : index
    %328 = vector.load %arg19[%c0_129, %c0_130] : memref<1x32xf32, #tpu.memory_space<vmem>>, vector<1x32xf32>
    %329 = vector.broadcast %328 : vector<1x32xf32> to vector<128x32xf32>
    %330 = arith.addf %327, %329 : vector<128x32xf32>
    %cst_131 = arith.constant 0.000000e+00 : f32
    %331 = vector.broadcast %cst_131 : f32 to vector<128x32xf32>
    %332 = arith.cmpf oge, %330, %331 : vector<128x32xf32>
    %cst_132 = arith.constant 0.00999999977 : f32
    %333 = vector.broadcast %cst_132 : f32 to vector<128x32xf32>
    %334 = arith.mulf %333, %330 : vector<128x32xf32>
    %335 = arith.select %332, %330, %334 : vector<128x32xi1>, vector<128x32xf32>
    %c0_133 = arith.constant 0 : index
    %c0_134 = arith.constant 0 : index
    %336 = vector.load %arg20[%c0_133, %c0_134] : memref<32x32xf32, #tpu.memory_space<vmem>>, vector<32x32xf32>
    %cst_135 = arith.constant dense<0.000000e+00> : vector<128x32xf32>
    %337 = tpu.matmul %335, %336, %cst_135 {dimension_numbers = #tpu.dot_dimension_numbers<[1], [0], [0], [1], [0, 0, 1, 1], [], []>} : vector<128x32xf32>, vector<32x32xf32>, vector<128x32xf32> -> vector<128x32xf32>
    %c0_136 = arith.constant 0 : index
    %c0_137 = arith.constant 0 : index
    %338 = vector.load %arg21[%c0_136, %c0_137] : memref<1x32xf32, #tpu.memory_space<vmem>>, vector<1x32xf32>
    %339 = vector.broadcast %338 : vector<1x32xf32> to vector<128x32xf32>
    %340 = arith.addf %337, %339 : vector<128x32xf32>
    %cst_138 = arith.constant 0.000000e+00 : f32
    %341 = vector.broadcast %cst_138 : f32 to vector<128x32xf32>
    %342 = arith.cmpf oge, %340, %341 : vector<128x32xf32>
    %cst_139 = arith.constant 0.00999999977 : f32
    %343 = vector.broadcast %cst_139 : f32 to vector<128x32xf32>
    %344 = arith.mulf %343, %340 : vector<128x32xf32>
    %345 = arith.select %342, %340, %344 : vector<128x32xi1>, vector<128x32xf32>
    %c0_140 = arith.constant 0 : index
    %c0_141 = arith.constant 0 : index
    %346 = vector.load %arg22[%c0_140, %c0_141] : memref<32x128xf32, #tpu.memory_space<vmem>>, vector<32x128xf32>
    %cst_142 = arith.constant dense<0.000000e+00> : vector<128x128xf32>
    %347 = tpu.matmul %345, %346, %cst_142 {dimension_numbers = #tpu.dot_dimension_numbers<[1], [0], [0], [1], [0, 0, 1, 1], [], []>} : vector<128x32xf32>, vector<32x128xf32>, vector<128x128xf32> -> vector<128x128xf32>
    %c0_143 = arith.constant 0 : index
    %c0_144 = arith.constant 0 : index
    %348 = vector.load %arg23[%c0_143, %c0_144] : memref<1x128xf32, #tpu.memory_space<vmem>>, vector<1x128xf32>
    %349 = vector.broadcast %348 : vector<1x128xf32> to vector<128x128xf32>
    %350 = arith.addf %347, %349 : vector<128x128xf32>
    %351 = vector.extract_strided_slice %319 {offsets = [0, 32], sizes = [128, 32], strides = [1, 1]} : vector<128x64xf32> to vector<128x32xf32>
    %c0_145 = arith.constant 0 : index
    %c0_146 = arith.constant 0 : index
    %352 = vector.load %arg24[%c0_145, %c0_146] : memref<128x32xf32, #tpu.memory_space<vmem>>, vector<128x32xf32>
    %cst_147 = arith.constant dense<0.000000e+00> : vector<128x32xf32>
    %353 = tpu.matmul %350, %352, %cst_147 {dimension_numbers = #tpu.dot_dimension_numbers<[1], [0], [0], [1], [0, 0, 1, 1], [], []>} : vector<128x128xf32>, vector<128x32xf32>, vector<128x32xf32> -> vector<128x32xf32>
    %354 = arith.addf %351, %353 : vector<128x32xf32>
    %cst_148 = arith.constant 0.000000e+00 : f32
    %355 = vector.broadcast %cst_148 : f32 to vector<128x32xf32>
    %356 = arith.cmpf oge, %354, %355 : vector<128x32xf32>
    %cst_149 = arith.constant 0.00999999977 : f32
    %357 = vector.broadcast %cst_149 : f32 to vector<128x32xf32>
    %358 = arith.mulf %357, %354 : vector<128x32xf32>
    %359 = arith.select %356, %354, %358 : vector<128x32xi1>, vector<128x32xf32>
    %c0_150 = arith.constant 0 : index
    %c0_151 = arith.constant 0 : index
    %360 = vector.load %arg25[%c0_150, %c0_151] : memref<32x32xf32, #tpu.memory_space<vmem>>, vector<32x32xf32>
    %cst_152 = arith.constant dense<0.000000e+00> : vector<128x32xf32>
    %361 = tpu.matmul %359, %360, %cst_152 {dimension_numbers = #tpu.dot_dimension_numbers<[1], [0], [0], [1], [0, 0, 1, 1], [], []>} : vector<128x32xf32>, vector<32x32xf32>, vector<128x32xf32> -> vector<128x32xf32>
    %c0_153 = arith.constant 0 : index
    %c0_154 = arith.constant 0 : index
    %362 = vector.load %arg26[%c0_153, %c0_154] : memref<1x32xf32, #tpu.memory_space<vmem>>, vector<1x32xf32>
    %363 = vector.broadcast %362 : vector<1x32xf32> to vector<128x32xf32>
    %364 = arith.addf %361, %363 : vector<128x32xf32>
    %cst_155 = arith.constant 0.000000e+00 : f32
    %365 = vector.broadcast %cst_155 : f32 to vector<128x32xf32>
    %366 = arith.cmpf oge, %364, %365 : vector<128x32xf32>
    %cst_156 = arith.constant 0.00999999977 : f32
    %367 = vector.broadcast %cst_156 : f32 to vector<128x32xf32>
    %368 = arith.mulf %367, %364 : vector<128x32xf32>
    %369 = arith.select %366, %364, %368 : vector<128x32xi1>, vector<128x32xf32>
    %c0_157 = arith.constant 0 : index
    %c0_158 = arith.constant 0 : index
    %370 = vector.load %arg27[%c0_157, %c0_158] : memref<32x32xf32, #tpu.memory_space<vmem>>, vector<32x32xf32>
    %cst_159 = arith.constant dense<0.000000e+00> : vector<128x32xf32>
    %371 = tpu.matmul %369, %370, %cst_159 {dimension_numbers = #tpu.dot_dimension_numbers<[1], [0], [0], [1], [0, 0, 1, 1], [], []>} : vector<128x32xf32>, vector<32x32xf32>, vector<128x32xf32> -> vector<128x32xf32>
    %c0_160 = arith.constant 0 : index
    %c0_161 = arith.constant 0 : index
    %372 = vector.load %arg28[%c0_160, %c0_161] : memref<1x32xf32, #tpu.memory_space<vmem>>, vector<1x32xf32>
    %373 = vector.broadcast %372 : vector<1x32xf32> to vector<128x32xf32>
    %374 = arith.addf %371, %373 : vector<128x32xf32>
    %cst_162 = arith.constant 0.000000e+00 : f32
    %375 = vector.broadcast %cst_162 : f32 to vector<128x32xf32>
    %376 = arith.cmpf oge, %374, %375 : vector<128x32xf32>
    %cst_163 = arith.constant 0.00999999977 : f32
    %377 = vector.broadcast %cst_163 : f32 to vector<128x32xf32>
    %378 = arith.mulf %377, %374 : vector<128x32xf32>
    %379 = arith.select %376, %374, %378 : vector<128x32xi1>, vector<128x32xf32>
    %c0_164 = arith.constant 0 : index
    %c0_165 = arith.constant 0 : index
    %380 = vector.load %arg29[%c0_164, %c0_165] : memref<32x128xf32, #tpu.memory_space<vmem>>, vector<32x128xf32>
    %cst_166 = arith.constant dense<0.000000e+00> : vector<128x128xf32>
    %381 = tpu.matmul %379, %380, %cst_166 {dimension_numbers = #tpu.dot_dimension_numbers<[1], [0], [0], [1], [0, 0, 1, 1], [], []>} : vector<128x32xf32>, vector<32x128xf32>, vector<128x128xf32> -> vector<128x128xf32>
    %c0_167 = arith.constant 0 : index
    %c0_168 = arith.constant 0 : index
    %382 = vector.load %arg30[%c0_167, %c0_168] : memref<1x128xf32, #tpu.memory_space<vmem>>, vector<1x128xf32>
    %383 = vector.broadcast %382 : vector<1x128xf32> to vector<128x128xf32>
    %384 = arith.addf %381, %383 : vector<128x128xf32>
    %c0_169 = arith.constant 0 : index
    %c0_170 = arith.constant 0 : index
    %385 = vector.load %arg31[%c0_169, %c0_170] : memref<128x128xf32, #tpu.memory_space<vmem>>, vector<128x128xf32>
    tpu.vector_store %arg31[%c0_169, %c0_170], %350 {strides = array<i32>} : memref<128x128xf32, #tpu.memory_space<vmem>>, vector<128x128xf32>,
    %c0_171 = arith.constant 0 : index
    %c0_172 = arith.constant 0 : index
    %386 = vector.load %arg32[%c0_171, %c0_172] : memref<128x128xf32, #tpu.memory_space<vmem>>, vector<128x128xf32>
    tpu.vector_store %arg32[%c0_171, %c0_172], %384 {strides = array<i32>} : memref<128x128xf32, #tpu.memory_space<vmem>>, vector<128x128xf32>,
    %387 = arith.extui %49 : vector<128x256xi1> to vector<128x256xi8>
    %c0_173 = arith.constant 0 : index
    %c0_174 = arith.constant 0 : index
    %388 = vector.load %arg33[%c0_173, %c0_174] : memref<128x256xi8, #tpu.memory_space<vmem>>, vector<128x256xi8>
    tpu.vector_store %arg33[%c0_173, %c0_174], %387 {strides = array<i32>} : memref<128x256xi8, #tpu.memory_space<vmem>>, vector<128x256xi8>,
    return
  }
  func.func @transform_0(%arg0: i32) -> (i32, i32) {
    %c0_i32 = arith.constant 0 : i32
    %c0_i32_0 = arith.constant 0 : i32
    return %arg0, %c0_i32 : i32, i32
  }
  func.func @transform_1(%arg0: i32) -> (i32, i32) {
    %c0_i32 = arith.constant 0 : i32
    %c0_i32_0 = arith.constant 0 : i32
    %c0_i32_1 = arith.constant 0 : i32
    return %c0_i32, %c0_i32_0 : i32, i32
  }
  func.func @transform_2(%arg0: i32) -> (i32, i32) {
    %c0_i32 = arith.constant 0 : i32
    %c0_i32_0 = arith.constant 0 : i32
    %c0_i32_1 = arith.constant 0 : i32
    return %c0_i32, %c0_i32_0 : i32, i32
  }
  func.func @transform_3(%arg0: i32) -> (i32, i32) {
    %c0_i32 = arith.constant 0 : i32
    %c0_i32_0 = arith.constant 0 : i32
    %c0_i32_1 = arith.constant 0 : i32
    return %c0_i32, %c0_i32_0 : i32, i32
  }
  func.func @transform_4(%arg0: i32) -> (i32, i32) {
    %c0_i32 = arith.constant 0 : i32
    %c0_i32_0 = arith.constant 0 : i32
    %c0_i32_1 = arith.constant 0 : i32
    return %c0_i32, %c0_i32_0 : i32, i32
  }
  func.func @transform_5(%arg0: i32) -> (i32, i32) {
    %c0_i32 = arith.constant 0 : i32
    %c0_i32_0 = arith.constant 0 : i32
    %c0_i32_1 = arith.constant 0 : i32
    return %c0_i32, %c0_i32_0 : i32, i32
  }
  func.func @transform_6(%arg0: i32) -> (i32, i32) {
    %c0_i32 = arith.constant 0 : i32
    %c0_i32_0 = arith.constant 0 : i32
    %c0_i32_1 = arith.constant 0 : i32
    return %c0_i32, %c0_i32_0 : i32, i32
  }
  func.func @transform_7(%arg0: i32) -> (i32, i32) {
    %c0_i32 = arith.constant 0 : i32
    %c0_i32_0 = arith.constant 0 : i32
    %c0_i32_1 = arith.constant 0 : i32
    return %c0_i32, %c0_i32_0 : i32, i32
  }
  func.func @transform_8(%arg0: i32) -> (i32, i32) {
    %c0_i32 = arith.constant 0 : i32
    %c0_i32_0 = arith.constant 0 : i32
    %c0_i32_1 = arith.constant 0 : i32
    return %c0_i32, %c0_i32_0 : i32, i32
  }
  func.func @transform_9(%arg0: i32) -> (i32, i32) {
    %c0_i32 = arith.constant 0 : i32
    %c0_i32_0 = arith.constant 0 : i32
    %c0_i32_1 = arith.constant 0 : i32
    return %c0_i32, %c0_i32_0 : i32, i32
  }
  func.func @transform_10(%arg0: i32) -> (i32, i32) {
    %c0_i32 = arith.constant 0 : i32
    %c0_i32_0 = arith.constant 0 : i32
    %c0_i32_1 = arith.constant 0 : i32
    return %c0_i32, %c0_i32_0 : i32, i32
  }
  func.func @transform_11(%arg0: i32) -> (i32, i32) {
    %c0_i32 = arith.constant 0 : i32
    %c0_i32_0 = arith.constant 0 : i32
    %c0_i32_1 = arith.constant 0 : i32
    return %c0_i32, %c0_i32_0 : i32, i32
  }
  func.func @transform_12(%arg0: i32) -> (i32, i32) {
    %c0_i32 = arith.constant 0 : i32
    %c0_i32_0 = arith.constant 0 : i32
    %c0_i32_1 = arith.constant 0 : i32
    return %c0_i32, %c0_i32_0 : i32, i32
  }
  func.func @transform_13(%arg0: i32) -> (i32, i32) {
    %c0_i32 = arith.constant 0 : i32
    %c0_i32_0 = arith.constant 0 : i32
    %c0_i32_1 = arith.constant 0 : i32
    return %c0_i32, %c0_i32_0 : i32, i32
  }
  func.func @transform_14(%arg0: i32) -> (i32, i32) {
    %c0_i32 = arith.constant 0 : i32
    %c0_i32_0 = arith.constant 0 : i32
    %c0_i32_1 = arith.constant 0 : i32
    return %c0_i32, %c0_i32_0 : i32, i32
  }
  func.func @transform_15(%arg0: i32) -> (i32, i32) {
    %c0_i32 = arith.constant 0 : i32
    %c0_i32_0 = arith.constant 0 : i32
    %c0_i32_1 = arith.constant 0 : i32
    return %c0_i32, %c0_i32_0 : i32, i32
  }
  func.func @transform_16(%arg0: i32) -> (i32, i32) {
    %c0_i32 = arith.constant 0 : i32
    %c0_i32_0 = arith.constant 0 : i32
    %c0_i32_1 = arith.constant 0 : i32
    return %c0_i32, %c0_i32_0 : i32, i32
  }
  func.func @transform_17(%arg0: i32) -> (i32, i32) {
    %c0_i32 = arith.constant 0 : i32
    %c0_i32_0 = arith.constant 0 : i32
    %c0_i32_1 = arith.constant 0 : i32
    return %c0_i32, %c0_i32_0 : i32, i32
  }
  func.func @transform_18(%arg0: i32) -> (i32, i32) {
    %c0_i32 = arith.constant 0 : i32
    %c0_i32_0 = arith.constant 0 : i32
    %c0_i32_1 = arith.constant 0 : i32
    return %c0_i32, %c0_i32_0 : i32, i32
  }
  func.func @transform_19(%arg0: i32) -> (i32, i32) {
    %c0_i32 = arith.constant 0 : i32
    %c0_i32_0 = arith.constant 0 : i32
    %c0_i32_1 = arith.constant 0 : i32
    return %c0_i32, %c0_i32_0 : i32, i32
  }
  func.func @transform_20(%arg0: i32) -> (i32, i32) {
    %c0_i32 = arith.constant 0 : i32
    %c0_i32_0 = arith.constant 0 : i32
    %c0_i32_1 = arith.constant 0 : i32
    return %c0_i32, %c0_i32_0 : i32, i32
  }
  func.func @transform_21(%arg0: i32) -> (i32, i32) {
    %c0_i32 = arith.constant 0 : i32
    %c0_i32_0 = arith.constant 0 : i32
    %c0_i32_1 = arith.constant 0 : i32
    return %c0_i32, %c0_i32_0 : i32, i32
  }
  func.func @transform_22(%arg0: i32) -> (i32, i32) {
    %c0_i32 = arith.constant 0 : i32
    %c0_i32_0 = arith.constant 0 : i32
    %c0_i32_1 = arith.constant 0 : i32
    return %c0_i32, %c0_i32_0 : i32, i32
  }
  func.func @transform_23(%arg0: i32) -> (i32, i32) {
    %c0_i32 = arith.constant 0 : i32
    %c0_i32_0 = arith.constant 0 : i32
    %c0_i32_1 = arith.constant 0 : i32
    return %c0_i32, %c0_i32_0 : i32, i32
  }
  func.func @transform_24(%arg0: i32) -> (i32, i32) {
    %c0_i32 = arith.constant 0 : i32
    %c0_i32_0 = arith.constant 0 : i32
    %c0_i32_1 = arith.constant 0 : i32
    return %c0_i32, %c0_i32_0 : i32, i32
  }
  func.func @transform_25(%arg0: i32) -> (i32, i32) {
    %c0_i32 = arith.constant 0 : i32
    %c0_i32_0 = arith.constant 0 : i32
    %c0_i32_1 = arith.constant 0 : i32
    return %c0_i32, %c0_i32_0 : i32, i32
  }
  func.func @transform_26(%arg0: i32) -> (i32, i32) {
    %c0_i32 = arith.constant 0 : i32
    %c0_i32_0 = arith.constant 0 : i32
    %c0_i32_1 = arith.constant 0 : i32
    return %c0_i32, %c0_i32_0 : i32, i32
  }
  func.func @transform_27(%arg0: i32) -> (i32, i32) {
    %c0_i32 = arith.constant 0 : i32
    %c0_i32_0 = arith.constant 0 : i32
    %c0_i32_1 = arith.constant 0 : i32
    return %c0_i32, %c0_i32_0 : i32, i32
  }
  func.func @transform_28(%arg0: i32) -> (i32, i32) {
    %c0_i32 = arith.constant 0 : i32
    %c0_i32_0 = arith.constant 0 : i32
    %c0_i32_1 = arith.constant 0 : i32
    return %c0_i32, %c0_i32_0 : i32, i32
  }
  func.func @transform_29(%arg0: i32) -> (i32, i32) {
    %c0_i32 = arith.constant 0 : i32
    %c0_i32_0 = arith.constant 0 : i32
    %c0_i32_1 = arith.constant 0 : i32
    return %c0_i32, %c0_i32_0 : i32, i32
  }
  func.func @transform_30(%arg0: i32) -> (i32, i32) {
    %c0_i32 = arith.constant 0 : i32
    %c0_i32_0 = arith.constant 0 : i32
    return %arg0, %c0_i32 : i32, i32
  }
  func.func @transform_31(%arg0: i32) -> (i32, i32) {
    %c0_i32 = arith.constant 0 : i32
    %c0_i32_0 = arith.constant 0 : i32
    return %arg0, %c0_i32 : i32, i32
  }
  func.func @transform_32(%arg0: i32) -> (i32, i32) {
    %c0_i32 = arith.constant 0 : i32
    %c0_i32_0 = arith.constant 0 : i32
    return %arg0, %c0_i32 : i32, i32
  }
}

</mosaic_0001>

<llo_original>
// kernel: tpu_custom_call.1
$region0: #{tpu_custom_call.1}
  #allocation0 [shape = 'u32[]', space=smem, size = 0x4, offset = 0x4, fixed_abs, tag = 'smem constant byte address 0x4 - core index']
  #allocation1 [shape = 'u32[72,128]{1,0:T(1,128)}', space=vmem, size = 0x9000, scoped, tag = 'internal scratch']
  #allocation2 [shape = 'f32[128,32]{1,0:T(8,128)}', space=vmem, size = 0x10000, scoped, tag = 'scratch operand']
  %s0 = inlined_call_operand.smem [shape: u32[33], index: -1, kind: input, shape index: {}]
  %s1 = sld [smem:[%s0]]
  %s2 = scalar_lea.smem %s0, 1
  %s3 = sld [smem:[%s2]]
  %s4 = scalar_lea.smem %s0, 2
  %s5 = sld [smem:[%s4]]
  %s6 = scalar_lea.smem %s0, 3
  %s7 = sld [smem:[%s6]]
  %s8 = scalar_lea.smem %s0, 4
  %s9 = sld [smem:[%s8]]
  %s10 = scalar_lea.smem %s0, 5
  %s11 = sld [smem:[%s10]]
  %s12 = scalar_lea.smem %s0, 6
  %s13 = sld [smem:[%s12]]
  %s14 = scalar_lea.smem %s0, 7
  %s15 = sld [smem:[%s14]]
  %s16 = scalar_lea.smem %s0, 8
  %s17 = sld [smem:[%s16]]
  %s18 = scalar_lea.smem %s0, 9
  %s19 = sld [smem:[%s18]]
  %s20 = scalar_lea.smem %s0, 10
  %s21 = sld [smem:[%s20]]
  %s22 = scalar_lea.smem %s0, 11
  %s23 = sld [smem:[%s22]]
  %s24 = scalar_lea.smem %s0, 12
  %s25 = sld [smem:[%s24]]
  %s26 = scalar_lea.smem %s0, 13
  %s27 = sld [smem:[%s26]]
  %s28 = scalar_lea.smem %s0, 14
  %s29 = sld [smem:[%s28]]
  %s30 = scalar_lea.smem %s0, 15
  %s31 = sld [smem:[%s30]]
  %s32 = scalar_lea.smem %s0, 16
  %s33 = sld [smem:[%s32]]
  %s34 = scalar_lea.smem %s0, 17
  %s35 = sld [smem:[%s34]]
  %s36 = scalar_lea.smem %s0, 18
  %s37 = sld [smem:[%s36]]
  %s38 = scalar_lea.smem %s0, 19
  %s39 = sld [smem:[%s38]]
  %s40 = scalar_lea.smem %s0, 20
  %s41 = sld [smem:[%s40]]
  %s42 = scalar_lea.smem %s0, 21
  %s43 = sld [smem:[%s42]]
  %s44 = scalar_lea.smem %s0, 22
  %s45 = sld [smem:[%s44]]
  %s46 = scalar_lea.smem %s0, 23
  %s47 = sld [smem:[%s46]]
  %s48 = scalar_lea.smem %s0, 24
  %s49 = sld [smem:[%s48]]
  %s50 = scalar_lea.smem %s0, 25
  %s51 = sld [smem:[%s50]]
  %s52 = scalar_lea.smem %s0, 26
  %s53 = sld [smem:[%s52]]
  %s54 = scalar_lea.smem %s0, 27
  %s55 = sld [smem:[%s54]]
  %s56 = scalar_lea.smem %s0, 28
  %s57 = sld [smem:[%s56]]
  %s58 = scalar_lea.smem %s0, 29
  %s59 = sld [smem:[%s58]]
  %s60 = scalar_lea.smem %s0, 30
  %s61 = sld [smem:[%s60]]
  %s62 = scalar_lea.smem %s0, 31
  %s63 = sld [smem:[%s62]]
  %s64 = scalar_lea.smem %s0, 32
  %s65 = sld [smem:[%s64]]
  %66 = xla_tuple %s61, %s63, %s65
  %s67 = sld [smem:[#allocation0]]
  $region169: #{tpu_custom_call.1} parent=0
    _
  %s69 = ssub.s32 1, %s67
  %s70 = scalar_select 0, %s69, %s67
  $region1: #{tpu_custom_call.1} parent=0
    #allocation3 [shape = 'u8[131072]{0}', space=vmem, size = 0x20000, scoped, tag = 'output window, operand 0']
    #allocation4 [shape = 's32[2]{0}', space=sflag, size = 0x8, scoped, tag = 'scoped memory for tpu_custom_call.1']
    #allocation5 [shape = 'u8[131072]{0}', space=vmem, size = 0x20000, scoped, tag = 'output window, operand 1']
    #allocation6 [shape = 's32[2]{0}', space=sflag, size = 0x8, scoped, tag = 'scoped memory for tpu_custom_call.1']
    #allocation7 [shape = 'u8[65536]{0}', space=vmem, size = 0x10000, scoped, tag = 'output window, operand 2']
    %71 = vsyncpa [#allocation4], 0
    %s72 = scalar_lea.sflag [#allocation4], 1
    %73 = vsyncpa %s72, 0
    %74 = vsyncpa [#allocation6], 0
    %s75 = scalar_lea.sflag [#allocation6], 1
    %76 = vsyncpa %s75, 0
    loop: start=0, step=1, limit=4
    $region2: #{tpu_custom_call.1} parent=1 // loop_pre_header
      _
    $region3: #{tpu_custom_call.1} parent=1 // loop_header
      %s78 = sphi 0, %s82
      %p79 = scmp.ge.s32.totalorder %s78, 4
      %s88 = sphi 0, %s90
      %s91 = sphi 0, %s88
      %s92 = sphi 0, %s91
      %s108 = sphi 0, %s92
      %s112 = sphi 0, %s112
      %s114 = sphi 0, %s112
      %s115 = sphi 0, %s114
      %s129 = sphi 0, %s115
      %s133 = sphi 0, %s133
      %s135 = sphi 0, %s133
      %s136 = sphi 0, %s135
      %s150 = sphi 0, %s136
      %s154 = sphi 0, %s154
      %s156 = sphi 0, %s154
      %s157 = sphi 0, %s156
      %s171 = sphi 0, %s157
      %s175 = sphi 0, %s175
      %s177 = sphi 0, %s175
      %s178 = sphi 0, %s177
      %s192 = sphi 0, %s178
      %s196 = sphi 0, %s196
      %s198 = sphi 0, %s196
      %s199 = sphi 0, %s198
      %s213 = sphi 0, %s199
      %s217 = sphi 0, %s217
      %s219 = sphi 0, %s217
      %s220 = sphi 0, %s219
      %s234 = sphi 0, %s220
      %s238 = sphi 0, %s238
      %s240 = sphi 0, %s238
      %s241 = sphi 0, %s240
      %s255 = sphi 0, %s241
      %s259 = sphi 0, %s259
      %s261 = sphi 0, %s259
      %s262 = sphi 0, %s261
      %s276 = sphi 0, %s262
      %s280 = sphi 0, %s280
      %s282 = sphi 0, %s280
      %s283 = sphi 0, %s282
      %s297 = sphi 0, %s283
      %s301 = sphi 0, %s301
      %s303 = sphi 0, %s301
      %s304 = sphi 0, %s303
      %s318 = sphi 0, %s304
      %s322 = sphi 0, %s322
      %s324 = sphi 0, %s322
      %s325 = sphi 0, %s324
      %s339 = sphi 0, %s325
      %s343 = sphi 0, %s343
      %s345 = sphi 0, %s343
      %s346 = sphi 0, %s345
      %s360 = sphi 0, %s346
      %s364 = sphi 0, %s364
      %s366 = sphi 0, %s364
      %s367 = sphi 0, %s366
      %s381 = sphi 0, %s367
      %s385 = sphi 0, %s385
      %s387 = sphi 0, %s385
      %s388 = sphi 0, %s387
      %s402 = sphi 0, %s388
      %s406 = sphi 0, %s406
      %s408 = sphi 0, %s406
      %s409 = sphi 0, %s408
      %s423 = sphi 0, %s409
      %s427 = sphi 0, %s427
      %s429 = sphi 0, %s427
      %s430 = sphi 0, %s429
      %s444 = sphi 0, %s430
      %s448 = sphi 0, %s448
      %s450 = sphi 0, %s448
      %s451 = sphi 0, %s450
      %s465 = sphi 0, %s451
      %s469 = sphi 0, %s469
      %s471 = sphi 0, %s469
      %s472 = sphi 0, %s471
      %s486 = sphi 0, %s472
      %s490 = sphi 0, %s490
      %s492 = sphi 0, %s490
      %s493 = sphi 0, %s492
      %s507 = sphi 0, %s493
      %s511 = sphi 0, %s511
      %s513 = sphi 0, %s511
      %s514 = sphi 0, %s513
      %s528 = sphi 0, %s514
      %s532 = sphi 0, %s532
      %s534 = sphi 0, %s532
      %s535 = sphi 0, %s534
      %s549 = sphi 0, %s535
      %s553 = sphi 0, %s553
      %s555 = sphi 0, %s553
      %s556 = sphi 0, %s555
      %s570 = sphi 0, %s556
      %s574 = sphi 0, %s574
      %s576 = sphi 0, %s574
      %s577 = sphi 0, %s576
      %s591 = sphi 0, %s577
      %s595 = sphi 0, %s595
      %s597 = sphi 0, %s595
      %s598 = sphi 0, %s597
      %s612 = sphi 0, %s598
      %s616 = sphi 0, %s616
      %s618 = sphi 0, %s616
      %s619 = sphi 0, %s618
      %s633 = sphi 0, %s619
      %s637 = sphi 0, %s637
      %s639 = sphi 0, %s637
      %s640 = sphi 0, %s639
      %s654 = sphi 0, %s640
      %s658 = sphi 0, %s658
      %s660 = sphi 0, %s658
      %s661 = sphi 0, %s660
      %s675 = sphi 0, %s661
      %s679 = sphi 0, %s679
      %s681 = sphi 0, %s679
      %s682 = sphi 0, %s681
      %s696 = sphi 0, %s682
      %s700 = sphi 0, %s700
      %s702 = sphi 0, %s700
      %s703 = sphi 0, %s702
      %s717 = sphi 0, %s703
      %s723 = sphi 0, %s725
      %s726 = sphi 0, %s723
      %s727 = sphi 0, %s726
      %s743 = sphi 0, %s727
      %s749 = sphi 0, %s751
      %s752 = sphi 0, %s749
      %s753 = sphi 0, %s752
      %s769 = sphi 0, %s753
      %s775 = sphi 0, %s777
      %s778 = sphi 0, %s775
      %s779 = sphi 0, %s778
      %s795 = sphi 0, %s779
    $region4: #{tpu_custom_call.1} parent=1 // loop_header_branch
      %81 = sbr.rel (%p79) target = $region8
    $region5: #{tpu_custom_call.1} parent=1 // loop_body
      %s83 = ssub.s32 %s78, 1
      %s84 = ssub.s32 %s78, 2
      %s85 = sadd.s32 %s78, 1
      %s86 = ssub.s32 %s78, %s85
      %p87 = scmp.eq.s32.totalorder %s86, 0
      %s89 = sadd.s32 %s88, 1
      %s90 = scalar_select %p87, %s88, %s89
      %p93 = pneg %p87
      %p94 = scmp.eq.s32.totalorder %s78, 1
      %p95 = por %p93, %p94
      %p96 = scmp.ne.s32.totalorder %s88, %s91
      %p97 = scmp.eq.s32.totalorder %s78, 0
      %p98 = por %p96, %p97
      %p99 = scmp.ne.s32.totalorder %s88, %s91
      %p100 = scmp.eq.s32.totalorder %s83, 1
      %p101 = por %p99, %p100
      %p102 = scmp.ne.s32.totalorder %s91, %s92
      %p103 = scmp.eq.s32.totalorder %s83, 0
      %p104 = por %p102, %p103
      %p105 = scmp.ne.s32.totalorder %s91, %s92
      %p106 = scmp.eq.s32.totalorder %s84, 1
      %p107 = por %p105, %p106
      %p109 = scmp.ne.s32.totalorder %s92, %s108
      %p110 = scmp.eq.s32.totalorder %s84, 0
      %p111 = por %p109, %p110
      %s113 = sadd.s32 %s112, 1
      %p116 = scmp.eq.s32.totalorder %s78, 1
      %p117 = scmp.ne.s32.totalorder %s112, %s114
      %p118 = scmp.eq.s32.totalorder %s78, 0
      %p119 = por %p117, %p118
      %p120 = scmp.ne.s32.totalorder %s112, %s114
      %p121 = scmp.eq.s32.totalorder %s83, 1
      %p122 = por %p120, %p121
      %p123 = scmp.ne.s32.totalorder %s114, %s115
      %p124 = scmp.eq.s32.totalorder %s83, 0
      %p125 = por %p123, %p124
      %p126 = scmp.ne.s32.totalorder %s114, %s115
      %p127 = scmp.eq.s32.totalorder %s84, 1
      %p128 = por %p126, %p127
      %p130 = scmp.ne.s32.totalorder %s115, %s129
      %p131 = scmp.eq.s32.totalorder %s84, 0
      %p132 = por %p130, %p131
      %s134 = sadd.s32 %s133, 1
      %p137 = scmp.eq.s32.totalorder %s78, 1
      %p138 = scmp.ne.s32.totalorder %s133, %s135
      %p139 = scmp.eq.s32.totalorder %s78, 0
      %p140 = por %p138, %p139
      %p141 = scmp.ne.s32.totalorder %s133, %s135
      %p142 = scmp.eq.s32.totalorder %s83, 1
      %p143 = por %p141, %p142
      %p144 = scmp.ne.s32.totalorder %s135, %s136
      %p145 = scmp.eq.s32.totalorder %s83, 0
      %p146 = por %p144, %p145
      %p147 = scmp.ne.s32.totalorder %s135, %s136
      %p148 = scmp.eq.s32.totalorder %s84, 1
      %p149 = por %p147, %p148
      %p151 = scmp.ne.s32.totalorder %s136, %s150
      %p152 = scmp.eq.s32.totalorder %s84, 0
      %p153 = por %p151, %p152
      %s155 = sadd.s32 %s154, 1
      %p158 = scmp.eq.s32.totalorder %s78, 1
      %p159 = scmp.ne.s32.totalorder %s154, %s156
      %p160 = scmp.eq.s32.totalorder %s78, 0
      %p161 = por %p159, %p160
      %p162 = scmp.ne.s32.totalorder %s154, %s156
      %p163 = scmp.eq.s32.totalorder %s83, 1
      %p164 = por %p162, %p163
      %p165 = scmp.ne.s32.totalorder %s156, %s157
      %p166 = scmp.eq.s32.totalorder %s83, 0
      %p167 = por %p165, %p166
      %p168 = scmp.ne.s32.totalorder %s156, %s157
      %p169 = scmp.eq.s32.totalorder %s84, 1
      %p170 = por %p168, %p169
      %p172 = scmp.ne.s32.totalorder %s157, %s171
      %p173 = scmp.eq.s32.totalorder %s84, 0
      %p174 = por %p172, %p173
      %s176 = sadd.s32 %s175, 1
      %p179 = scmp.eq.s32.totalorder %s78, 1
      %p180 = scmp.ne.s32.totalorder %s175, %s177
      %p181 = scmp.eq.s32.totalorder %s78, 0
      %p182 = por %p180, %p181
      %p183 = scmp.ne.s32.totalorder %s175, %s177
      %p184 = scmp.eq.s32.totalorder %s83, 1
      %p185 = por %p183, %p184
      %p186 = scmp.ne.s32.totalorder %s177, %s178
      %p187 = scmp.eq.s32.totalorder %s83, 0
      %p188 = por %p186, %p187
      %p189 = scmp.ne.s32.totalorder %s177, %s178
      %p190 = scmp.eq.s32.totalorder %s84, 1
      %p191 = por %p189, %p190
      %p193 = scmp.ne.s32.totalorder %s178, %s192
      %p194 = scmp.eq.s32.totalorder %s84, 0
      %p195 = por %p193, %p194
      %s197 = sadd.s32 %s196, 1
      %p200 = scmp.eq.s32.totalorder %s78, 1
      %p201 = scmp.ne.s32.totalorder %s196, %s198
      %p202 = scmp.eq.s32.totalorder %s78, 0
      %p203 = por %p201, %p202
      %p204 = scmp.ne.s32.totalorder %s196, %s198
      %p205 = scmp.eq.s32.totalorder %s83, 1
      %p206 = por %p204, %p205
      %p207 = scmp.ne.s32.totalorder %s198, %s199
      %p208 = scmp.eq.s32.totalorder %s83, 0
      %p209 = por %p207, %p208
      %p210 = scmp.ne.s32.totalorder %s198, %s199
      %p211 = scmp.eq.s32.totalorder %s84, 1
      %p212 = por %p210, %p211
      %p214 = scmp.ne.s32.totalorder %s199, %s213
      %p215 = scmp.eq.s32.totalorder %s84, 0
      %p216 = por %p214, %p215
      %s218 = sadd.s32 %s217, 1
      %p221 = scmp.eq.s32.totalorder %s78, 1
      %p222 = scmp.ne.s32.totalorder %s217, %s219
      %p223 = scmp.eq.s32.totalorder %s78, 0
      %p224 = por %p222, %p223
      %p225 = scmp.ne.s32.totalorder %s217, %s219
      %p226 = scmp.eq.s32.totalorder %s83, 1
      %p227 = por %p225, %p226
      %p228 = scmp.ne.s32.totalorder %s219, %s220
      %p229 = scmp.eq.s32.totalorder %s83, 0
      %p230 = por %p228, %p229
      %p231 = scmp.ne.s32.totalorder %s219, %s220
      %p232 = scmp.eq.s32.totalorder %s84, 1
      %p233 = por %p231, %p232
      %p235 = scmp.ne.s32.totalorder %s220, %s234
      %p236 = scmp.eq.s32.totalorder %s84, 0
      %p237 = por %p235, %p236
      %s239 = sadd.s32 %s238, 1
      %p242 = scmp.eq.s32.totalorder %s78, 1
      %p243 = scmp.ne.s32.totalorder %s238, %s240
      %p244 = scmp.eq.s32.totalorder %s78, 0
      %p245 = por %p243, %p244
      %p246 = scmp.ne.s32.totalorder %s238, %s240
      %p247 = scmp.eq.s32.totalorder %s83, 1
      %p248 = por %p246, %p247
      %p249 = scmp.ne.s32.totalorder %s240, %s241
      %p250 = scmp.eq.s32.totalorder %s83, 0
      %p251 = por %p249, %p250
      %p252 = scmp.ne.s32.totalorder %s240, %s241
      %p253 = scmp.eq.s32.totalorder %s84, 1
      %p254 = por %p252, %p253
      %p256 = scmp.ne.s32.totalorder %s241, %s255
      %p257 = scmp.eq.s32.totalorder %s84, 0
      %p258 = por %p256, %p257
      %s260 = sadd.s32 %s259, 1
      %p263 = scmp.eq.s32.totalorder %s78, 1
      %p264 = scmp.ne.s32.totalorder %s259, %s261
      %p265 = scmp.eq.s32.totalorder %s78, 0
      %p266 = por %p264, %p265
      %p267 = scmp.ne.s32.totalorder %s259, %s261
      %p268 = scmp.eq.s32.totalorder %s83, 1
      %p269 = por %p267, %p268
      %p270 = scmp.ne.s32.totalorder %s261, %s262
      %p271 = scmp.eq.s32.totalorder %s83, 0
      %p272 = por %p270, %p271
      %p273 = scmp.ne.s32.totalorder %s261, %s262
      %p274 = scmp.eq.s32.totalorder %s84, 1
      %p275 = por %p273, %p274
      %p277 = scmp.ne.s32.totalorder %s262, %s276
      %p278 = scmp.eq.s32.totalorder %s84, 0
      %p279 = por %p277, %p278
      %s281 = sadd.s32 %s280, 1
      %p284 = scmp.eq.s32.totalorder %s78, 1
      %p285 = scmp.ne.s32.totalorder %s280, %s282
      %p286 = scmp.eq.s32.totalorder %s78, 0
      %p287 = por %p285, %p286
      %p288 = scmp.ne.s32.totalorder %s280, %s282
      %p289 = scmp.eq.s32.totalorder %s83, 1
      %p290 = por %p288, %p289
      %p291 = scmp.ne.s32.totalorder %s282, %s283
      %p292 = scmp.eq.s32.totalorder %s83, 0
      %p293 = por %p291, %p292
      %p294 = scmp.ne.s32.totalorder %s282, %s283
      %p295 = scmp.eq.s32.totalorder %s84, 1
      %p296 = por %p294, %p295
      %p298 = scmp.ne.s32.totalorder %s283, %s297
      %p299 = scmp.eq.s32.totalorder %s84, 0
      %p300 = por %p298, %p299
      %s302 = sadd.s32 %s301, 1
      %p305 = scmp.eq.s32.totalorder %s78, 1
      %p306 = scmp.ne.s32.totalorder %s301, %s303
      %p307 = scmp.eq.s32.totalorder %s78, 0
      %p308 = por %p306, %p307
      %p309 = scmp.ne.s32.totalorder %s301, %s303
      %p310 = scmp.eq.s32.totalorder %s83, 1
      %p311 = por %p309, %p310
      %p312 = scmp.ne.s32.totalorder %s303, %s304
      %p313 = scmp.eq.s32.totalorder %s83, 0
      %p314 = por %p312, %p313
      %p315 = scmp.ne.s32.totalorder %s303, %s304
      %p316 = scmp.eq.s32.totalorder %s84, 1
      %p317 = por %p315, %p316
      %p319 = scmp.ne.s32.totalorder %s304, %s318
      %p320 = scmp.eq.s32.totalorder %s84, 0
      %p321 = por %p319, %p320
      %s323 = sadd.s32 %s322, 1
      %p326 = scmp.eq.s32.totalorder %s78, 1
      %p327 = scmp.ne.s32.totalorder %s322, %s324
      %p328 = scmp.eq.s32.totalorder %s78, 0
      %p329 = por %p327, %p328
      %p330 = scmp.ne.s32.totalorder %s322, %s324
      %p331 = scmp.eq.s32.totalorder %s83, 1
      %p332 = por %p330, %p331
      %p333 = scmp.ne.s32.totalorder %s324, %s325
      %p334 = scmp.eq.s32.totalorder %s83, 0
      %p335 = por %p333, %p334
      %p336 = scmp.ne.s32.totalorder %s324, %s325
      %p337 = scmp.eq.s32.totalorder %s84, 1
      %p338 = por %p336, %p337
      %p340 = scmp.ne.s32.totalorder %s325, %s339
      %p341 = scmp.eq.s32.totalorder %s84, 0
      %p342 = por %p340, %p341
      %s344 = sadd.s32 %s343, 1
      %p347 = scmp.eq.s32.totalorder %s78, 1
      %p348 = scmp.ne.s32.totalorder %s343, %s345
      %p349 = scmp.eq.s32.totalorder %s78, 0
      %p350 = por %p348, %p349
      %p351 = scmp.ne.s32.totalorder %s343, %s345
      %p352 = scmp.eq.s32.totalorder %s83, 1
      %p353 = por %p351, %p352
      %p354 = scmp.ne.s32.totalorder %s345, %s346
      %p355 = scmp.eq.s32.totalorder %s83, 0
      %p356 = por %p354, %p355
      %p357 = scmp.ne.s32.totalorder %s345, %s346
      %p358 = scmp.eq.s32.totalorder %s84, 1
      %p359 = por %p357, %p358
      %p361 = scmp.ne.s32.totalorder %s346, %s360
      %p362 = scmp.eq.s32.totalorder %s84, 0
      %p363 = por %p361, %p362
      %s365 = sadd.s32 %s364, 1
      %p368 = scmp.eq.s32.totalorder %s78, 1
      %p369 = scmp.ne.s32.totalorder %s364, %s366
      %p370 = scmp.eq.s32.totalorder %s78, 0
      %p371 = por %p369, %p370
      %p372 = scmp.ne.s32.totalorder %s364, %s366
      %p373 = scmp.eq.s32.totalorder %s83, 1
      %p374 = por %p372, %p373
      %p375 = scmp.ne.s32.totalorder %s366, %s367
      %p376 = scmp.eq.s32.totalorder %s83, 0
      %p377 = por %p375, %p376
      %p378 = scmp.ne.s32.totalorder %s366, %s367
      %p379 = scmp.eq.s32.totalorder %s84, 1
      %p380 = por %p378, %p379
      %p382 = scmp.ne.s32.totalorder %s367, %s381
      %p383 = scmp.eq.s32.totalorder %s84, 0
      %p384 = por %p382, %p383
      %s386 = sadd.s32 %s385, 1
      %p389 = scmp.eq.s32.totalorder %s78, 1
      %p390 = scmp.ne.s32.totalorder %s385, %s387
      %p391 = scmp.eq.s32.totalorder %s78, 0
      %p392 = por %p390, %p391
      %p393 = scmp.ne.s32.totalorder %s385, %s387
      %p394 = scmp.eq.s32.totalorder %s83, 1
      %p395 = por %p393, %p394
      %p396 = scmp.ne.s32.totalorder %s387, %s388
      %p397 = scmp.eq.s32.totalorder %s83, 0
      %p398 = por %p396, %p397
      %p399 = scmp.ne.s32.totalorder %s387, %s388
      %p400 = scmp.eq.s32.totalorder %s84, 1
      %p401 = por %p399, %p400
      %p403 = scmp.ne.s32.totalorder %s388, %s402
      %p404 = scmp.eq.s32.totalorder %s84, 0
      %p405 = por %p403, %p404
      %s407 = sadd.s32 %s406, 1
      %p410 = scmp.eq.s32.totalorder %s78, 1
      %p411 = scmp.ne.s32.totalorder %s406, %s408
      %p412 = scmp.eq.s32.totalorder %s78, 0
      %p413 = por %p411, %p412
      %p414 = scmp.ne.s32.totalorder %s406, %s408
      %p415 = scmp.eq.s32.totalorder %s83, 1
      %p416 = por %p414, %p415
      %p417 = scmp.ne.s32.totalorder %s408, %s409
      %p418 = scmp.eq.s32.totalorder %s83, 0
      %p419 = por %p417, %p418
      %p420 = scmp.ne.s32.totalorder %s408, %s409
      %p421 = scmp.eq.s32.totalorder %s84, 1
      %p422 = por %p420, %p421
      %p424 = scmp.ne.s32.totalorder %s409, %s423
      %p425 = scmp.eq.s32.totalorder %s84, 0
      %p426 = por %p424, %p425
      %s428 = sadd.s32 %s427, 1
      %p431 = scmp.eq.s32.totalorder %s78, 1
      %p432 = scmp.ne.s32.totalorder %s427, %s429
      %p433 = scmp.eq.s32.totalorder %s78, 0
      %p434 = por %p432, %p433
      %p435 = scmp.ne.s32.totalorder %s427, %s429
      %p436 = scmp.eq.s32.totalorder %s83, 1
      %p437 = por %p435, %p436
      %p438 = scmp.ne.s32.totalorder %s429, %s430
      %p439 = scmp.eq.s32.totalorder %s83, 0
      %p440 = por %p438, %p439
      %p441 = scmp.ne.s32.totalorder %s429, %s430
      %p442 = scmp.eq.s32.totalorder %s84, 1
      %p443 = por %p441, %p442
      %p445 = scmp.ne.s32.totalorder %s430, %s444
      %p446 = scmp.eq.s32.totalorder %s84, 0
      %p447 = por %p445, %p446
      %s449 = sadd.s32 %s448, 1
      %p452 = scmp.eq.s32.totalorder %s78, 1
      %p453 = scmp.ne.s32.totalorder %s448, %s450
      %p454 = scmp.eq.s32.totalorder %s78, 0
      %p455 = por %p453, %p454
      %p456 = scmp.ne.s32.totalorder %s448, %s450
      %p457 = scmp.eq.s32.totalorder %s83, 1
      %p458 = por %p456, %p457
      %p459 = scmp.ne.s32.totalorder %s450, %s451
      %p460 = scmp.eq.s32.totalorder %s83, 0
      %p461 = por %p459, %p460
      %p462 = scmp.ne.s32.totalorder %s450, %s451
      %p463 = scmp.eq.s32.totalorder %s84, 1
      %p464 = por %p462, %p463
      %p466 = scmp.ne.s32.totalorder %s451, %s465
      %p467 = scmp.eq.s32.totalorder %s84, 0
      %p468 = por %p466, %p467
      %s470 = sadd.s32 %s469, 1
      %p473 = scmp.eq.s32.totalorder %s78, 1
      %p474 = scmp.ne.s32.totalorder %s469, %s471
      %p475 = scmp.eq.s32.totalorder %s78, 0
      %p476 = por %p474, %p475
      %p477 = scmp.ne.s32.totalorder %s469, %s471
      %p478 = scmp.eq.s32.totalorder %s83, 1
      %p479 = por %p477, %p478
      %p480 = scmp.ne.s32.totalorder %s471, %s472
      %p481 = scmp.eq.s32.totalorder %s83, 0
      %p482 = por %p480, %p481
      %p483 = scmp.ne.s32.totalorder %s471, %s472
      %p484 = scmp.eq.s32.totalorder %s84, 1
      %p485 = por %p483, %p484
      %p487 = scmp.ne.s32.totalorder %s472, %s486
      %p488 = scmp.eq.s32.totalorder %s84, 0
      %p489 = por %p487, %p488
      %s491 = sadd.s32 %s490, 1
      %p494 = scmp.eq.s32.totalorder %s78, 1
      %p495 = scmp.ne.s32.totalorder %s490, %s492
      %p496 = scmp.eq.s32.totalorder %s78, 0
      %p497 = por %p495, %p496
      %p498 = scmp.ne.s32.totalorder %s490, %s492
      %p499 = scmp.eq.s32.totalorder %s83, 1
      %p500 = por %p498, %p499
      %p501 = scmp.ne.s32.totalorder %s492, %s493
      %p502 = scmp.eq.s32.totalorder %s83, 0
      %p503 = por %p501, %p502
      %p504 = scmp.ne.s32.totalorder %s492, %s493
      %p505 = scmp.eq.s32.totalorder %s84, 1
      %p506 = por %p504, %p505
      %p508 = scmp.ne.s32.totalorder %s493, %s507
      %p509 = scmp.eq.s32.totalorder %s84, 0
      %p510 = por %p508, %p509
      %s512 = sadd.s32 %s511, 1
      %p515 = scmp.eq.s32.totalorder %s78, 1
      %p516 = scmp.ne.s32.totalorder %s511, %s513
      %p517 = scmp.eq.s32.totalorder %s78, 0
      %p518 = por %p516, %p517
      %p519 = scmp.ne.s32.totalorder %s511, %s513
      %p520 = scmp.eq.s32.totalorder %s83, 1
      %p521 = por %p519, %p520
      %p522 = scmp.ne.s32.totalorder %s513, %s514
      %p523 = scmp.eq.s32.totalorder %s83, 0
      %p524 = por %p522, %p523
      %p525 = scmp.ne.s32.totalorder %s513, %s514
      %p526 = scmp.eq.s32.totalorder %s84, 1
      %p527 = por %p525, %p526
      %p529 = scmp.ne.s32.totalorder %s514, %s528
      %p530 = scmp.eq.s32.totalorder %s84, 0
      %p531 = por %p529, %p530
      %s533 = sadd.s32 %s532, 1
      %p536 = scmp.eq.s32.totalorder %s78, 1
      %p537 = scmp.ne.s32.totalorder %s532, %s534
      %p538 = scmp.eq.s32.totalorder %s78, 0
      %p539 = por %p537, %p538
      %p540 = scmp.ne.s32.totalorder %s532, %s534
      %p541 = scmp.eq.s32.totalorder %s83, 1
      %p542 = por %p540, %p541
      %p543 = scmp.ne.s32.totalorder %s534, %s535
      %p544 = scmp.eq.s32.totalorder %s83, 0
      %p545 = por %p543, %p544
      %p546 = scmp.ne.s32.totalorder %s534, %s535
      %p547 = scmp.eq.s32.totalorder %s84, 1
      %p548 = por %p546, %p547
      %p550 = scmp.ne.s32.totalorder %s535, %s549
      %p551 = scmp.eq.s32.totalorder %s84, 0
      %p552 = por %p550, %p551
      %s554 = sadd.s32 %s553, 1
      %p557 = scmp.eq.s32.totalorder %s78, 1
      %p558 = scmp.ne.s32.totalorder %s553, %s555
      %p559 = scmp.eq.s32.totalorder %s78, 0
      %p560 = por %p558, %p559
      %p561 = scmp.ne.s32.totalorder %s553, %s555
      %p562 = scmp.eq.s32.totalorder %s83, 1
      %p563 = por %p561, %p562
      %p564 = scmp.ne.s32.totalorder %s555, %s556
      %p565 = scmp.eq.s32.totalorder %s83, 0
      %p566 = por %p564, %p565
      %p567 = scmp.ne.s32.totalorder %s555, %s556
      %p568 = scmp.eq.s32.totalorder %s84, 1
      %p569 = por %p567, %p568
      %p571 = scmp.ne.s32.totalorder %s556, %s570
      %p572 = scmp.eq.s32.totalorder %s84, 0
      %p573 = por %p571, %p572
      %s575 = sadd.s32 %s574, 1
      %p578 = scmp.eq.s32.totalorder %s78, 1
      %p579 = scmp.ne.s32.totalorder %s574, %s576
      %p580 = scmp.eq.s32.totalorder %s78, 0
      %p581 = por %p579, %p580
      %p582 = scmp.ne.s32.totalorder %s574, %s576
      %p583 = scmp.eq.s32.totalorder %s83, 1
      %p584 = por %p582, %p583
      %p585 = scmp.ne.s32.totalorder %s576, %s577
      %p586 = scmp.eq.s32.totalorder %s83, 0
      %p587 = por %p585, %p586
      %p588 = scmp.ne.s32.totalorder %s576, %s577
      %p589 = scmp.eq.s32.totalorder %s84, 1
      %p590 = por %p588, %p589
      %p592 = scmp.ne.s32.totalorder %s577, %s591
      %p593 = scmp.eq.s32.totalorder %s84, 0
      %p594 = por %p592, %p593
      %s596 = sadd.s32 %s595, 1
      %p599 = scmp.eq.s32.totalorder %s78, 1
      %p600 = scmp.ne.s32.totalorder %s595, %s597
      %p601 = scmp.eq.s32.totalorder %s78, 0
      %p602 = por %p600, %p601
      %p603 = scmp.ne.s32.totalorder %s595, %s597
      %p604 = scmp.eq.s32.totalorder %s83, 1
      %p605 = por %p603, %p604
      %p606 = scmp.ne.s32.totalorder %s597, %s598
      %p607 = scmp.eq.s32.totalorder %s83, 0
      %p608 = por %p606, %p607
      %p609 = scmp.ne.s32.totalorder %s597, %s598
      %p610 = scmp.eq.s32.totalorder %s84, 1
      %p611 = por %p609, %p610
      %p613 = scmp.ne.s32.totalorder %s598, %s612
      %p614 = scmp.eq.s32.totalorder %s84, 0
      %p615 = por %p613, %p614
      %s617 = sadd.s32 %s616, 1
      %p620 = scmp.eq.s32.totalorder %s78, 1
      %p621 = scmp.ne.s32.totalorder %s616, %s618
      %p622 = scmp.eq.s32.totalorder %s78, 0
      %p623 = por %p621, %p622
      %p624 = scmp.ne.s32.totalorder %s616, %s618
      %p625 = scmp.eq.s32.totalorder %s83, 1
      %p626 = por %p624, %p625
      %p627 = scmp.ne.s32.totalorder %s618, %s619
      %p628 = scmp.eq.s32.totalorder %s83, 0
      %p629 = por %p627, %p628
      %p630 = scmp.ne.s32.totalorder %s618, %s619
      %p631 = scmp.eq.s32.totalorder %s84, 1
      %p632 = por %p630, %p631
      %p634 = scmp.ne.s32.totalorder %s619, %s633
      %p635 = scmp.eq.s32.totalorder %s84, 0
      %p636 = por %p634, %p635
      %s638 = sadd.s32 %s637, 1
      %p641 = scmp.eq.s32.totalorder %s78, 1
      %p642 = scmp.ne.s32.totalorder %s637, %s639
      %p643 = scmp.eq.s32.totalorder %s78, 0
      %p644 = por %p642, %p643
      %p645 = scmp.ne.s32.totalorder %s637, %s639
      %p646 = scmp.eq.s32.totalorder %s83, 1
      %p647 = por %p645, %p646
      %p648 = scmp.ne.s32.totalorder %s639, %s640
      %p649 = scmp.eq.s32.totalorder %s83, 0
      %p650 = por %p648, %p649
      %p651 = scmp.ne.s32.totalorder %s639, %s640
      %p652 = scmp.eq.s32.totalorder %s84, 1
      %p653 = por %p651, %p652
      %p655 = scmp.ne.s32.totalorder %s640, %s654
      %p656 = scmp.eq.s32.totalorder %s84, 0
      %p657 = por %p655, %p656
      %s659 = sadd.s32 %s658, 1
      %p662 = scmp.eq.s32.totalorder %s78, 1
      %p663 = scmp.ne.s32.totalorder %s658, %s660
      %p664 = scmp.eq.s32.totalorder %s78, 0
      %p665 = por %p663, %p664
      %p666 = scmp.ne.s32.totalorder %s658, %s660
      %p667 = scmp.eq.s32.totalorder %s83, 1
      %p668 = por %p666, %p667
      %p669 = scmp.ne.s32.totalorder %s660, %s661
      %p670 = scmp.eq.s32.totalorder %s83, 0
      %p671 = por %p669, %p670
      %p672 = scmp.ne.s32.totalorder %s660, %s661
      %p673 = scmp.eq.s32.totalorder %s84, 1
      %p674 = por %p672, %p673
      %p676 = scmp.ne.s32.totalorder %s661, %s675
      %p677 = scmp.eq.s32.totalorder %s84, 0
      %p678 = por %p676, %p677
      %s680 = sadd.s32 %s679, 1
      %p683 = scmp.eq.s32.totalorder %s78, 1
      %p684 = scmp.ne.s32.totalorder %s679, %s681
      %p685 = scmp.eq.s32.totalorder %s78, 0
      %p686 = por %p684, %p685
      %p687 = scmp.ne.s32.totalorder %s679, %s681
      %p688 = scmp.eq.s32.totalorder %s83, 1
      %p689 = por %p687, %p688
      %p690 = scmp.ne.s32.totalorder %s681, %s682
      %p691 = scmp.eq.s32.totalorder %s83, 0
      %p692 = por %p690, %p691
      %p693 = scmp.ne.s32.totalorder %s681, %s682
      %p694 = scmp.eq.s32.totalorder %s84, 1
      %p695 = por %p693, %p694
      %p697 = scmp.ne.s32.totalorder %s682, %s696
      %p698 = scmp.eq.s32.totalorder %s84, 0
      %p699 = por %p697, %p698
      %s701 = sadd.s32 %s700, 1
      %p704 = scmp.eq.s32.totalorder %s78, 1
      %p705 = scmp.ne.s32.totalorder %s700, %s702
      %p706 = scmp.eq.s32.totalorder %s78, 0
      %p707 = por %p705, %p706
      %p708 = scmp.ne.s32.totalorder %s700, %s702
      %p709 = scmp.eq.s32.totalorder %s83, 1
      %p710 = por %p708, %p709
      %p711 = scmp.ne.s32.totalorder %s702, %s703
      %p712 = scmp.eq.s32.totalorder %s83, 0
      %p713 = por %p711, %p712
      %p714 = scmp.ne.s32.totalorder %s702, %s703
      %p715 = scmp.eq.s32.totalorder %s84, 1
      %p716 = por %p714, %p715
      %p718 = scmp.ne.s32.totalorder %s703, %s717
      %p719 = scmp.eq.s32.totalorder %s84, 0
      %p720 = por %p718, %p719
      %s721 = ssub.s32 %s78, %s85
      %p722 = scmp.eq.s32.totalorder %s721, 0
      %s724 = sadd.s32 %s723, 1
      %s725 = scalar_select %p722, %s723, %s724
      %p728 = pneg %p722
      %p729 = scmp.eq.s32.totalorder %s78, 1
      %p730 = por %p728, %p729
      %p731 = scmp.ne.s32.totalorder %s723, %s726
      %p732 = scmp.eq.s32.totalorder %s78, 0
      %p733 = por %p731, %p732
      %p734 = scmp.ne.s32.totalorder %s723, %s726
      %p735 = scmp.eq.s32.totalorder %s83, 1
      %p736 = por %p734, %p735
      %p737 = scmp.ne.s32.totalorder %s726, %s727
      %p738 = scmp.eq.s32.totalorder %s83, 0
      %p739 = por %p737, %p738
      %p740 = scmp.ne.s32.totalorder %s726, %s727
      %p741 = scmp.eq.s32.totalorder %s84, 1
      %p742 = por %p740, %p741
      %p744 = scmp.ne.s32.totalorder %s727, %s743
      %p745 = scmp.eq.s32.totalorder %s84, 0
      %p746 = por %p744, %p745
      %s747 = ssub.s32 %s78, %s85
      %p748 = scmp.eq.s32.totalorder %s747, 0
      %s750 = sadd.s32 %s749, 1
      %s751 = scalar_select %p748, %s749, %s750
      %p754 = pneg %p748
      %p755 = scmp.eq.s32.totalorder %s78, 1
      %p756 = por %p754, %p755
      %p757 = scmp.ne.s32.totalorder %s749, %s752
      %p758 = scmp.eq.s32.totalorder %s78, 0
      %p759 = por %p757, %p758
      %p760 = scmp.ne.s32.totalorder %s749, %s752
      %p761 = scmp.eq.s32.totalorder %s83, 1
      %p762 = por %p760, %p761
      %p763 = scmp.ne.s32.totalorder %s752, %s753
      %p764 = scmp.eq.s32.totalorder %s83, 0
      %p765 = por %p763, %p764
      %p766 = scmp.ne.s32.totalorder %s752, %s753
      %p767 = scmp.eq.s32.totalorder %s84, 1
      %p768 = por %p766, %p767
      %p770 = scmp.ne.s32.totalorder %s753, %s769
      %p771 = scmp.eq.s32.totalorder %s84, 0
      %p772 = por %p770, %p771
      %s773 = ssub.s32 %s78, %s85
      %p774 = scmp.eq.s32.totalorder %s773, 0
      %s776 = sadd.s32 %s775, 1
      %s777 = scalar_select %p774, %s775, %s776
      %p780 = pneg %p774
      %p781 = scmp.eq.s32.totalorder %s78, 1
      %p782 = por %p780, %p781
      %p783 = scmp.ne.s32.totalorder %s775, %s778
      %p784 = scmp.eq.s32.totalorder %s78, 0
      %p785 = por %p783, %p784
      %p786 = scmp.ne.s32.totalorder %s775, %s778
      %p787 = scmp.eq.s32.totalorder %s83, 1
      %p788 = por %p786, %p787
      %p789 = scmp.ne.s32.totalorder %s778, %s779
      %p790 = scmp.eq.s32.totalorder %s83, 0
      %p791 = por %p789, %p790
      %p792 = scmp.ne.s32.totalorder %s778, %s779
      %p793 = scmp.eq.s32.totalorder %s84, 1
      %p794 = por %p792, %p793
      %p796 = scmp.ne.s32.totalorder %s779, %s795
      %p797 = scmp.eq.s32.totalorder %s84, 0
      %p798 = por %p796, %p797
      %p799 = scmp.le.s32.totalorder 1, %s78
      %p800 = scmp.lt.s32.totalorder %s78, 3
      %p801 = pnand %p799, %p800
      %p802 = pneg %p801
      // Predicated region
      $region9: #{tpu_custom_call.1} parent=5 // pred_check
        _
      $region10: #{tpu_custom_call.1} parent=5 // pred_check_branch
        %804 = sbr.rel (%p801) target = $region12
      $region11: #{tpu_custom_call.1} parent=5 // pred_region
        %s805 = ssub.s32 %s78, 1
        // Predicated region
        $region13: #{tpu_custom_call.1} parent=11 // pred_check
          %p806 = pneg %p125
        $region14: #{tpu_custom_call.1} parent=11 // pred_check_branch
          %808 = sbr.rel (%p806) target = $region16
        $region15: #{tpu_custom_call.1} parent=11 // pred_region
          _
        $region16: #{tpu_custom_call.1} parent=11 // pred_fallthru
          _
        // Predicated region
        $region17: #{tpu_custom_call.1} parent=11 // pred_check
          %p809 = pneg %p146
        $region18: #{tpu_custom_call.1} parent=11 // pred_check_branch
          %811 = sbr.rel (%p809) target = $region20
        $region19: #{tpu_custom_call.1} parent=11 // pred_region
          _
        $region20: #{tpu_custom_call.1} parent=11 // pred_fallthru
          _
        // Predicated region
        $region21: #{tpu_custom_call.1} parent=11 // pred_check
          %p812 = pneg %p167
        $region22: #{tpu_custom_call.1} parent=11 // pred_check_branch
          %814 = sbr.rel (%p812) target = $region24
        $region23: #{tpu_custom_call.1} parent=11 // pred_region
          _
        $region24: #{tpu_custom_call.1} parent=11 // pred_fallthru
          _
        // Predicated region
        $region25: #{tpu_custom_call.1} parent=11 // pred_check
          %p815 = pneg %p188
        $region26: #{tpu_custom_call.1} parent=11 // pred_check_branch
          %817 = sbr.rel (%p815) target = $region28
        $region27: #{tpu_custom_call.1} parent=11 // pred_region
          _
        $region28: #{tpu_custom_call.1} parent=11 // pred_fallthru
          _
        // Predicated region
        $region29: #{tpu_custom_call.1} parent=11 // pred_check
          %p818 = pneg %p209
        $region30: #{tpu_custom_call.1} parent=11 // pred_check_branch
          %820 = sbr.rel (%p818) target = $region32
        $region31: #{tpu_custom_call.1} parent=11 // pred_region
          _
        $region32: #{tpu_custom_call.1} parent=11 // pred_fallthru
          _
        // Predicated region
        $region33: #{tpu_custom_call.1} parent=11 // pred_check
          %p821 = pneg %p230
        $region34: #{tpu_custom_call.1} parent=11 // pred_check_branch
          %823 = sbr.rel (%p821) target = $region36
        $region35: #{tpu_custom_call.1} parent=11 // pred_region
          _
        $region36: #{tpu_custom_call.1} parent=11 // pred_fallthru
          _
        // Predicated region
        $region37: #{tpu_custom_call.1} parent=11 // pred_check
          %p824 = pneg %p251
        $region38: #{tpu_custom_call.1} parent=11 // pred_check_branch
          %826 = sbr.rel (%p824) target = $region40
        $region39: #{tpu_custom_call.1} parent=11 // pred_region
          _
        $region40: #{tpu_custom_call.1} parent=11 // pred_fallthru
          _
        // Predicated region
        $region41: #{tpu_custom_call.1} parent=11 // pred_check
          %p827 = pneg %p272
        $region42: #{tpu_custom_call.1} parent=11 // pred_check_branch
          %829 = sbr.rel (%p827) target = $region44
        $region43: #{tpu_custom_call.1} parent=11 // pred_region
          _
        $region44: #{tpu_custom_call.1} parent=11 // pred_fallthru
          _
        // Predicated region
        $region45: #{tpu_custom_call.1} parent=11 // pred_check
          %p830 = pneg %p293
        $region46: #{tpu_custom_call.1} parent=11 // pred_check_branch
          %832 = sbr.rel (%p830) target = $region48
        $region47: #{tpu_custom_call.1} parent=11 // pred_region
          _
        $region48: #{tpu_custom_call.1} parent=11 // pred_fallthru
          _
        // Predicated region
        $region49: #{tpu_custom_call.1} parent=11 // pred_check
          %p833 = pneg %p314
        $region50: #{tpu_custom_call.1} parent=11 // pred_check_branch
          %835 = sbr.rel (%p833) target = $region52
        $region51: #{tpu_custom_call.1} parent=11 // pred_region
          _
        $region52: #{tpu_custom_call.1} parent=11 // pred_fallthru
          _
        // Predicated region
        $region53: #{tpu_custom_call.1} parent=11 // pred_check
          %p836 = pneg %p335
        $region54: #{tpu_custom_call.1} parent=11 // pred_check_branch
          %838 = sbr.rel (%p836) target = $region56
        $region55: #{tpu_custom_call.1} parent=11 // pred_region
          _
        $region56: #{tpu_custom_call.1} parent=11 // pred_fallthru
          _
        // Predicated region
        $region57: #{tpu_custom_call.1} parent=11 // pred_check
          %p839 = pneg %p356
        $region58: #{tpu_custom_call.1} parent=11 // pred_check_branch
          %841 = sbr.rel (%p839) target = $region60
        $region59: #{tpu_custom_call.1} parent=11 // pred_region
          _
        $region60: #{tpu_custom_call.1} parent=11 // pred_fallthru
          _
        // Predicated region
        $region61: #{tpu_custom_call.1} parent=11 // pred_check
          %p842 = pneg %p377
        $region62: #{tpu_custom_call.1} parent=11 // pred_check_branch
          %844 = sbr.rel (%p842) target = $region64
        $region63: #{tpu_custom_call.1} parent=11 // pred_region
          _
        $region64: #{tpu_custom_call.1} parent=11 // pred_fallthru
          _
        // Predicated region
        $region65: #{tpu_custom_call.1} parent=11 // pred_check
          %p845 = pneg %p398
        $region66: #{tpu_custom_call.1} parent=11 // pred_check_branch
          %847 = sbr.rel (%p845) target = $region68
        $region67: #{tpu_custom_call.1} parent=11 // pred_region
          _
        $region68: #{tpu_custom_call.1} parent=11 // pred_fallthru
          _
        // Predicated region
        $region69: #{tpu_custom_call.1} parent=11 // pred_check
          %p848 = pneg %p419
        $region70: #{tpu_custom_call.1} parent=11 // pred_check_branch
          %850 = sbr.rel (%p848) target = $region72
        $region71: #{tpu_custom_call.1} parent=11 // pred_region
          _
        $region72: #{tpu_custom_call.1} parent=11 // pred_fallthru
          _
        // Predicated region
        $region73: #{tpu_custom_call.1} parent=11 // pred_check
          %p851 = pneg %p440
        $region74: #{tpu_custom_call.1} parent=11 // pred_check_branch
          %853 = sbr.rel (%p851) target = $region76
        $region75: #{tpu_custom_call.1} parent=11 // pred_region
          _
        $region76: #{tpu_custom_call.1} parent=11 // pred_fallthru
          _
        // Predicated region
        $region77: #{tpu_custom_call.1} parent=11 // pred_check
          %p854 = pneg %p461
        $region78: #{tpu_custom_call.1} parent=11 // pred_check_branch
          %856 = sbr.rel (%p854) target = $region80
        $region79: #{tpu_custom_call.1} parent=11 // pred_region
          _
        $region80: #{tpu_custom_call.1} parent=11 // pred_fallthru
          _
        // Predicated region
        $region81: #{tpu_custom_call.1} parent=11 // pred_check
          %p857 = pneg %p482
        $region82: #{tpu_custom_call.1} parent=11 // pred_check_branch
          %859 = sbr.rel (%p857) target = $region84
        $region83: #{tpu_custom_call.1} parent=11 // pred_region
          _
        $region84: #{tpu_custom_call.1} parent=11 // pred_fallthru
          _
        // Predicated region
        $region85: #{tpu_custom_call.1} parent=11 // pred_check
          %p860 = pneg %p503
        $region86: #{tpu_custom_call.1} parent=11 // pred_check_branch
          %862 = sbr.rel (%p860) target = $region88
        $region87: #{tpu_custom_call.1} parent=11 // pred_region
          _
        $region88: #{tpu_custom_call.1} parent=11 // pred_fallthru
          _
        // Predicated region
        $region89: #{tpu_custom_call.1} parent=11 // pred_check
          %p863 = pneg %p524
        $region90: #{tpu_custom_call.1} parent=11 // pred_check_branch
          %865 = sbr.rel (%p863) target = $region92
        $region91: #{tpu_custom_call.1} parent=11 // pred_region
          _
        $region92: #{tpu_custom_call.1} parent=11 // pred_fallthru
          _
        // Predicated region
        $region93: #{tpu_custom_call.1} parent=11 // pred_check
          %p866 = pneg %p545
        $region94: #{tpu_custom_call.1} parent=11 // pred_check_branch
          %868 = sbr.rel (%p866) target = $region96
        $region95: #{tpu_custom_call.1} parent=11 // pred_region
          _
        $region96: #{tpu_custom_call.1} parent=11 // pred_fallthru
          _
        // Predicated region
        $region97: #{tpu_custom_call.1} parent=11 // pred_check
          %p869 = pneg %p566
        $region98: #{tpu_custom_call.1} parent=11 // pred_check_branch
          %871 = sbr.rel (%p869) target = $region100
        $region99: #{tpu_custom_call.1} parent=11 // pred_region
          _
        $region100: #{tpu_custom_call.1} parent=11 // pred_fallthru
          _
        // Predicated region
        $region101: #{tpu_custom_call.1} parent=11 // pred_check
          %p872 = pneg %p587
        $region102: #{tpu_custom_call.1} parent=11 // pred_check_branch
          %874 = sbr.rel (%p872) target = $region104
        $region103: #{tpu_custom_call.1} parent=11 // pred_region
          _
        $region104: #{tpu_custom_call.1} parent=11 // pred_fallthru
          _
        // Predicated region
        $region105: #{tpu_custom_call.1} parent=11 // pred_check
          %p875 = pneg %p608
        $region106: #{tpu_custom_call.1} parent=11 // pred_check_branch
          %877 = sbr.rel (%p875) target = $region108
        $region107: #{tpu_custom_call.1} parent=11 // pred_region
          _
        $region108: #{tpu_custom_call.1} parent=11 // pred_fallthru
          _
        // Predicated region
        $region109: #{tpu_custom_call.1} parent=11 // pred_check
          %p878 = pneg %p629
        $region110: #{tpu_custom_call.1} parent=11 // pred_check_branch
          %880 = sbr.rel (%p878) target = $region112
        $region111: #{tpu_custom_call.1} parent=11 // pred_region
          _
        $region112: #{tpu_custom_call.1} parent=11 // pred_fallthru
          _
        // Predicated region
        $region113: #{tpu_custom_call.1} parent=11 // pred_check
          %p881 = pneg %p650
        $region114: #{tpu_custom_call.1} parent=11 // pred_check_branch
          %883 = sbr.rel (%p881) target = $region116
        $region115: #{tpu_custom_call.1} parent=11 // pred_region
          _
        $region116: #{tpu_custom_call.1} parent=11 // pred_fallthru
          _
        // Predicated region
        $region117: #{tpu_custom_call.1} parent=11 // pred_check
          %p884 = pneg %p671
        $region118: #{tpu_custom_call.1} parent=11 // pred_check_branch
          %886 = sbr.rel (%p884) target = $region120
        $region119: #{tpu_custom_call.1} parent=11 // pred_region
          _
        $region120: #{tpu_custom_call.1} parent=11 // pred_fallthru
          _
        // Predicated region
        $region121: #{tpu_custom_call.1} parent=11 // pred_check
          %p887 = pneg %p692
        $region122: #{tpu_custom_call.1} parent=11 // pred_check_branch
          %889 = sbr.rel (%p887) target = $region124
        $region123: #{tpu_custom_call.1} parent=11 // pred_region
          _
        $region124: #{tpu_custom_call.1} parent=11 // pred_fallthru
          _
        // Predicated region
        $region125: #{tpu_custom_call.1} parent=11 // pred_check
          %p890 = pneg %p713
        $region126: #{tpu_custom_call.1} parent=11 // pred_check_branch
          %892 = sbr.rel (%p890) target = $region128
        $region127: #{tpu_custom_call.1} parent=11 // pred_region
          _
        $region128: #{tpu_custom_call.1} parent=11 // pred_fallthru
          _
      $region12: #{tpu_custom_call.1} parent=5 // pred_fallthru
        _
      %p893 = scmp.lt.s32.totalorder %s78, 2
      // Predicated region
      $region129: #{tpu_custom_call.1} parent=5 // pred_check
        %p894 = pneg %p893
      $region130: #{tpu_custom_call.1} parent=5 // pred_check_branch
        %896 = sbr.rel (%p894) target = $region132
      $region131: #{tpu_custom_call.1} parent=5 // pred_region
        // Predicated region
        $region133: #{tpu_custom_call.1} parent=131 // pred_check
          %p897 = pneg %p98
        $region134: #{tpu_custom_call.1} parent=131 // pred_check_branch
          %899 = sbr.rel (%p897) target = $region136
        $region135: #{tpu_custom_call.1} parent=131 // pred_region
          %s900 = smul.u32 16, %s78
          %p901 = scmp.lt.s32.totalorder %s900, 31
          %s902 = scalar_select %p901, %s900, 31
          %s903 = smul.addr %s902, 8
          %s904 = scalar_lea.vmem %s1, %s903
          %s905 = smul.u32 16, %s78
        $region136: #{tpu_custom_call.1} parent=131 // pred_fallthru
          _
      $region132: #{tpu_custom_call.1} parent=5 // pred_fallthru
        _
      %p906 = scmp.le.s32.totalorder 1, %s78
      %p907 = scmp.lt.s32.totalorder %s78, 3
      %p908 = pnand %p906, %p907
      %p909 = pneg %p908
      // Predicated region
      $region137: #{tpu_custom_call.1} parent=5 // pred_check
        _
      $region138: #{tpu_custom_call.1} parent=5 // pred_check_branch
        %911 = sbr.rel (%p908) target = $region140
      $region139: #{tpu_custom_call.1} parent=5 // pred_region
        %s912 = ssub.s32 %s78, 1
        %s913 = smul.u32 16, %s83
        %p914 = scmp.lt.s32.totalorder %s913, 31
        %s915 = scalar_select %p914, %s913, 31
        %s916 = smul.addr %s915, 8
        %s917 = scalar_lea.vmem %s1, %s916
        %p918 = pneg %p104
        %p919 = pneg %p101
        %p920 = pneg %p125
        %p921 = pneg %p122
        %p922 = pneg %p146
        %p923 = pneg %p143
        %p924 = pneg %p167
        %p925 = pneg %p164
        %p926 = pneg %p188
        %p927 = pneg %p185
        %p928 = pneg %p209
        %p929 = pneg %p206
        %p930 = pneg %p230
        %p931 = pneg %p227
        %p932 = pneg %p251
        %p933 = pneg %p248
        %p934 = pneg %p272
        %p935 = pneg %p269
        %p936 = pneg %p293
        %p937 = pneg %p290
        %p938 = pneg %p314
        %p939 = pneg %p311
        %p940 = pneg %p335
        %p941 = pneg %p332
        %p942 = pneg %p356
        %p943 = pneg %p353
        %p944 = pneg %p377
        %p945 = pneg %p374
        %p946 = pneg %p398
        %p947 = pneg %p395
        %p948 = pneg %p419
        %p949 = pneg %p416
        %p950 = pneg %p440
        %p951 = pneg %p437
        %p952 = pneg %p461
        %p953 = pneg %p458
        %p954 = pneg %p482
        %p955 = pneg %p479
        %p956 = pneg %p503
        %p957 = pneg %p500
        %p958 = pneg %p524
        %p959 = pneg %p521
        %p960 = pneg %p545
        %p961 = pneg %p542
        %p962 = pneg %p566
        %p963 = pneg %p563
        %p964 = pneg %p587
        %p965 = pneg %p584
        %p966 = pneg %p608
        %p967 = pneg %p605
        %p968 = pneg %p629
        %p969 = pneg %p626
        %p970 = pneg %p650
        %p971 = pneg %p647
        %p972 = pneg %p671
        %p973 = pneg %p668
        %p974 = pneg %p692
        %p975 = pneg %p689
        %p976 = pneg %p713
        %p977 = pneg %p710
        %p978 = pneg %p739
        %p979 = pneg %p736
        %s980 = sand.u32 %s726, 1
        %s981 = scalar_lea.sflag [#allocation4], %s980
        %s982 = sand.u32 %s726, 1
        %s983 = smul.addr %s982, 128
        %s984 = scalar_lea.vmem [#allocation3], %s983
        %p985 = pneg %p765
        %p986 = pneg %p762
        %s987 = sand.u32 %s83, 1
        %s988 = scalar_lea.sflag [#allocation6], %s987
        %s989 = sand.u32 %s752, 1
        %s990 = smul.addr %s989, 128
        %s991 = scalar_lea.vmem [#allocation5], %s990
        %p992 = pneg %p791
        %p993 = pneg %p788
        %s994 = sand.u32 %s83, 1
        %s995 = scalar_lea.sflag [#allocation6], %s994
        %s996 = sand.u32 %s778, 1
        %s997 = smul.addr %s996, 64
        %s998 = scalar_lea.vmem [#allocation7], %s997
        %s999 = smul.u32 16, %s83
        %p1000 = scmp.lt.s32.totalorder %s999, 31
        %s1001 = scalar_select %p1000, %s999, 31
        %s1002 = smul.addr %s1001, 8
        %s1003 = scalar_lea.vmem %s1, %s1002
        %s1004 = smul.u32 16, %s83
        %s1005 = smul.u32 16, %s83
        %s1006 = smul.u32 16, %s83
        %s1007 = smul.u32 4, %s83
        %v1010 = vld [vmem:[%s1003] sm:$0xff]
        %v1011 = vld [vmem:[%s1003 + $0x8] sm:$0xff]
        %v1012 = vld [vmem:[%s1003 + $0x10] sm:$0xff]
        %v1013 = vld [vmem:[%s1003 + $0x18] sm:$0xff]
        %v1014 = vld [vmem:[%s1003 + $0x20] sm:$0xff]
        %v1015 = vld [vmem:[%s1003 + $0x28] sm:$0xff]
        %v1016 = vld [vmem:[%s1003 + $0x30] sm:$0xff]
        %v1017 = vld [vmem:[%s1003 + $0x38] sm:$0xff]
        %v1018 = vld [vmem:[%s1003 + $0x40] sm:$0xff]
        %v1019 = vld [vmem:[%s1003 + $0x48] sm:$0xff]
        %v1020 = vld [vmem:[%s1003 + $0x50] sm:$0xff]
        %v1021 = vld [vmem:[%s1003 + $0x58] sm:$0xff]
        %v1022 = vld [vmem:[%s1003 + $0x60] sm:$0xff]
        %v1023 = vld [vmem:[%s1003 + $0x68] sm:$0xff]
        %v1024 = vld [vmem:[%s1003 + $0x70] sm:$0xff]
        %v1025 = vld [vmem:[%s1003 + $0x78] sm:$0xff]
        %v1026 = vld [vmem:[%s3] sm:$0xff]
        %v1027 = vld [vmem:[%s3 + $0x8] sm:$0xff]
        %v1028 = vld [vmem:[%s3 + $0x10] sm:$0xff]
        %v1029 = vld [vmem:[%s3 + $0x18] sm:$0xff]
        %v1030 = vld [vmem:[%s3 + $0x20] sm:$0xff]
        %v1031 = vld [vmem:[%s3 + $0x28] sm:$0xff]
        %v1032 = vld [vmem:[%s3 + $0x30] sm:$0xff]
        %v1033 = vld [vmem:[%s3 + $0x38] sm:$0xff]
        %v1034 = vld [vmem:[%s3 + $0x40] sm:$0xff]
        %v1035 = vld [vmem:[%s3 + $0x48] sm:$0xff]
        %v1036 = vld [vmem:[%s3 + $0x50] sm:$0xff]
        %v1037 = vld [vmem:[%s3 + $0x58] sm:$0xff]
        %v1038 = vld [vmem:[%s3 + $0x60] sm:$0xff]
        %v1039 = vld [vmem:[%s3 + $0x68] sm:$0xff]
        %v1040 = vld [vmem:[%s3 + $0x70] sm:$0xff]
        %v1041 = vld [vmem:[%s3 + $0x78] sm:$0xff]
        %v1042 = vld [vmem:[%s3 + $0x80] sm:$0xff]
        %v1043 = vld [vmem:[%s3 + $0x88] sm:$0xff]
        %v1044 = vld [vmem:[%s3 + $0x90] sm:$0xff]
        %v1045 = vld [vmem:[%s3 + $0x98] sm:$0xff]
        %v1046 = vld [vmem:[%s3 + $0xa0] sm:$0xff]
        %v1047 = vld [vmem:[%s3 + $0xa8] sm:$0xff]
        %v1048 = vld [vmem:[%s3 + $0xb0] sm:$0xff]
        %v1049 = vld [vmem:[%s3 + $0xb8] sm:$0xff]
        %v1050 = vld [vmem:[%s3 + $0xc0] sm:$0xff]
        %v1051 = vld [vmem:[%s3 + $0xc8] sm:$0xff]
        %v1052 = vld [vmem:[%s3 + $0xd0] sm:$0xff]
        %v1053 = vld [vmem:[%s3 + $0xd8] sm:$0xff]
        %v1054 = vld [vmem:[%s3 + $0xe0] sm:$0xff]
        %v1055 = vld [vmem:[%s3 + $0xe8] sm:$0xff]
        %v1056 = vld [vmem:[%s3 + $0xf0] sm:$0xff]
        %v1057 = vld [vmem:[%s3 + $0xf8] sm:$0xff]
        %v1058 = vld [vmem:[%s5] sm:$0xff]
        %v1059 = vld [vmem:[%s5 + $0x8] sm:$0xff]
        %v1060 = vld [vmem:[%s5 + $0x10] sm:$0xf]
        %v1061 = vld [vmem:[%s5 + $0x18] sm:$0xf]
        %v1062 = vld [vmem:[%s7] sm:$0xff]
        %v1063 = vld [vmem:[%s7 + $0x8] sm:$0xf]
        %v1064 = vld [vmem:[%s9] sm:$0x1]
        %v1066 = vperm.slane %v1064, 0
        %vm1068 = vcmask 97280
        %v1070 = vsel %vm1068, %v1010, 0
        %v1073 = vsel %vm1068, %v1011, 0
        %v1076 = vsel %vm1068, %v1012, 0
        %v1079 = vsel %vm1068, %v1013, 0
        %v1082 = vsel %vm1068, %v1014, 0
        %v1085 = vsel %vm1068, %v1015, 0
        %v1088 = vsel %vm1068, %v1016, 0
        %v1091 = vsel %vm1068, %v1017, 0
        %v1094 = vsel %vm1068, %v1018, 0
        %v1097 = vsel %vm1068, %v1019, 0
        %v1100 = vsel %vm1068, %v1020, 0
        %v1103 = vsel %vm1068, %v1021, 0
        %v1106 = vsel %vm1068, %v1022, 0
        %v1109 = vsel %vm1068, %v1023, 0
        %v1112 = vsel %vm1068, %v1024, 0
        %v1115 = vsel %vm1068, %v1025, 0
        %vm1117 = vcmask 1043456
        %v1119 = vsel %vm1117, %v1063, 0
        %1121 = vmatpush.msra.mxu0 0.0
        %1122 = vmatpush.msra.mxu0 0.0
        %1123 = vmatpush.msra.mxu0 0.0
        %1124 = vmatpush.msra.mxu0 0.0
        %1125 = vmatpush.msra.mxu0 0.0
        %1126 = vmatpush.msra.mxu0 0.0
        %1127 = vmatpush.msra.mxu0 0.0
        %1128 = vmatpush.msra.mxu0 0.0
        %1129 = vmatpush.msra.mxu0 0.0
        %1130 = vmatpush.msra.mxu0 0.0
        %1131 = vmatpush.msra.mxu0 0.0
        %1132 = vmatpush.msra.mxu0 0.0
        %1133 = vmatpush.msra.mxu0 0.0
        %1134 = vmatpush.msra.mxu0 0.0
        %1135 = vmatpush.msra.mxu0 %v1119
        %1136 = vmatpush.msra.mxu0 %v1062
        %1137 = vmatmul.f32.gmra.mxu0 %v1070
        %v1138 = vpop.f32.mrf.mxu0
        %v1139 = vadd.f32 %v1066, %v1138
        %1140 = vmatmul.f32.gmra.mxu0 %v1073
        %v1141 = vpop.f32.mrf.mxu0
        %v1142 = vadd.f32 %v1066, %v1141
        %1143 = vmatmul.f32.gmra.mxu0 %v1076
        %v1144 = vpop.f32.mrf.mxu0
        %v1145 = vadd.f32 %v1066, %v1144
        %1146 = vmatmul.f32.gmra.mxu0 %v1079
        %v1147 = vpop.f32.mrf.mxu0
        %v1148 = vadd.f32 %v1066, %v1147
        %1149 = vmatmul.f32.gmra.mxu0 %v1082
        %v1150 = vpop.f32.mrf.mxu0
        %v1151 = vadd.f32 %v1066, %v1150
        %1152 = vmatmul.f32.gmra.mxu0 %v1085
        %v1153 = vpop.f32.mrf.mxu0
        %v1154 = vadd.f32 %v1066, %v1153
        %1155 = vmatmul.f32.gmra.mxu0 %v1088
        %v1156 = vpop.f32.mrf.mxu0
        %v1157 = vadd.f32 %v1066, %v1156
        %1158 = vmatmul.f32.gmra.mxu0 %v1091
        %v1159 = vpop.f32.mrf.mxu0
        %v1160 = vadd.f32 %v1066, %v1159
        %1161 = vmatmul.f32.gmra.mxu0 %v1094
        %v1162 = vpop.f32.mrf.mxu0
        %v1163 = vadd.f32 %v1066, %v1162
        %1164 = vmatmul.f32.gmra.mxu0 %v1097
        %v1165 = vpop.f32.mrf.mxu0
        %v1166 = vadd.f32 %v1066, %v1165
        %1167 = vmatmul.f32.gmra.mxu0 %v1100
        %v1168 = vpop.f32.mrf.mxu0
        %v1169 = vadd.f32 %v1066, %v1168
        %1170 = vmatmul.f32.gmra.mxu0 %v1103
        %v1171 = vpop.f32.mrf.mxu0
        %v1172 = vadd.f32 %v1066, %v1171
        %1173 = vmatmul.f32.gmra.mxu0 %v1106
        %v1174 = vpop.f32.mrf.mxu0
        %v1175 = vadd.f32 %v1066, %v1174
        %1176 = vmatmul.f32.gmra.mxu0 %v1109
        %v1177 = vpop.f32.mrf.mxu0
        %v1178 = vadd.f32 %v1066, %v1177
        %1179 = vmatmul.f32.gmra.mxu0 %v1112
        %v1180 = vpop.f32.mrf.mxu0
        %v1181 = vadd.f32 %v1066, %v1180
        %1182 = vmatmul.f32.gmra.mxu0 %v1115
        %v1183 = vpop.f32.mrf.mxu0
        %v1184 = vadd.f32 %v1066, %v1183
        %1185 = vdwg.mxu0
        %v1186 = vld [vmem:[%s11] sm:$0x3]
        %v1187 = vld [vmem:[%s13] sm:$0x3]
        %1189 = vset.pattern.permute.xlu0 0
        %1190 = vperm.xlu0 %1189, %v1187
        %v1191 = vpop.permute.xlu0 %1190
        %v1194 = vsel %vm1068, %v1186, 0
        %v1197 = vsel %vm1117, %v1060, 0
        %v1200 = vsel %vm1117, %v1061, 0
        %1202 = vmatpush.msra.mxu0 0.0
        %1203 = vmatpush.msra.mxu0 0.0
        %1204 = vmatpush.msra.mxu0 0.0
        %1205 = vmatpush.msra.mxu0 0.0
        %1206 = vmatpush.msra.mxu0 0.0
        %1207 = vmatpush.msra.mxu0 0.0
        %1208 = vmatpush.msra.mxu0 0.0
        %1209 = vmatpush.msra.mxu0 0.0
        %1210 = vmatpush.msra.mxu0 0.0
        %1211 = vmatpush.msra.mxu0 0.0
        %1212 = vmatpush.msra.mxu0 0.0
        %1213 = vmatpush.msra.mxu0 0.0
        %1214 = vmatpush.msra.mxu0 0.0
        %1215 = vmatpush.msra.mxu0 0.0
        %1216 = vmatpush.msra.mxu0 %v1197
        %1217 = vmatpush.msra.mxu0 %v1058
        %1218 = vmatmul.f32.gmra.mxu0 %v1194
        %v1219 = vpop.f32.mrf.mxu0
        %v1220 = vadd.f32 %v1191, %v1219
        %1221 = vdwg.mxu0
        %1222 = vmatpush.msra.mxu0 0.0
        %1223 = vmatpush.msra.mxu0 0.0
        %1224 = vmatpush.msra.mxu0 0.0
        %1225 = vmatpush.msra.mxu0 0.0
        %1226 = vmatpush.msra.mxu0 0.0
        %1227 = vmatpush.msra.mxu0 0.0
        %1228 = vmatpush.msra.mxu0 0.0
        %1229 = vmatpush.msra.mxu0 0.0
        %1230 = vmatpush.msra.mxu0 0.0
        %1231 = vmatpush.msra.mxu0 0.0
        %1232 = vmatpush.msra.mxu0 0.0
        %1233 = vmatpush.msra.mxu0 0.0
        %1234 = vmatpush.msra.mxu0 0.0
        %1235 = vmatpush.msra.mxu0 0.0
        %1236 = vmatpush.msra.mxu0 %v1200
        %1237 = vmatpush.msra.mxu0 %v1059
        %1238 = vmatmul.f32.gmra.mxu0 %v1194
        %v1239 = vpop.f32.mrf.mxu0
        %v1240 = vadd.f32 %v1191, %v1239
        %1241 = vdwg.mxu0
        %v1242 = vld [vmem:[%s15] sm:$0xff]
        %v1243 = vld [vmem:[%s15 + $0x8] sm:$0xf]
        %v1244 = vld [vmem:[%s17] sm:$0x1]
        %v1246 = vperm.slane %v1244, 0
        %v1249 = vsel %vm1068, %v1026, 0
        %v1252 = vsel %vm1068, %v1027, 0
        %v1255 = vsel %vm1068, %v1028, 0
        %v1258 = vsel %vm1068, %v1029, 0
        %v1261 = vsel %vm1068, %v1030, 0
        %v1264 = vsel %vm1068, %v1031, 0
        %v1267 = vsel %vm1068, %v1032, 0
        %v1270 = vsel %vm1068, %v1033, 0
        %v1273 = vsel %vm1068, %v1034, 0
        %v1276 = vsel %vm1068, %v1035, 0
        %v1279 = vsel %vm1068, %v1036, 0
        %v1282 = vsel %vm1068, %v1037, 0
        %v1285 = vsel %vm1068, %v1038, 0
        %v1288 = vsel %vm1068, %v1039, 0
        %v1291 = vsel %vm1068, %v1040, 0
        %v1294 = vsel %vm1068, %v1041, 0
        %v1297 = vsel %vm1068, %v1042, 0
        %v1300 = vsel %vm1068, %v1043, 0
        %v1303 = vsel %vm1068, %v1044, 0
        %v1306 = vsel %vm1068, %v1045, 0
        %v1309 = vsel %vm1068, %v1046, 0
        %v1312 = vsel %vm1068, %v1047, 0
        %v1315 = vsel %vm1068, %v1048, 0
        %v1318 = vsel %vm1068, %v1049, 0
        %v1321 = vsel %vm1068, %v1050, 0
        %v1324 = vsel %vm1068, %v1051, 0
        %v1327 = vsel %vm1068, %v1052, 0
        %v1330 = vsel %vm1068, %v1053, 0
        %v1333 = vsel %vm1068, %v1054, 0
        %v1336 = vsel %vm1068, %v1055, 0
        %v1339 = vsel %vm1068, %v1056, 0
        %v1342 = vsel %vm1068, %v1057, 0
        %v1345 = vsel %vm1117, %v1243, 0
        %1347 = vmatpush.msra.mxu0 0.0
        %1348 = vmatpush.msra.mxu0 0.0
        %1349 = vmatpush.msra.mxu0 0.0
        %1350 = vmatpush.msra.mxu0 0.0
        %1351 = vmatpush.msra.mxu0 0.0
        %1352 = vmatpush.msra.mxu0 0.0
        %1353 = vmatpush.msra.mxu0 0.0
        %1354 = vmatpush.msra.mxu0 0.0
        %1355 = vmatpush.msra.mxu0 0.0
        %1356 = vmatpush.msra.mxu0 0.0
        %1357 = vmatpush.msra.mxu0 0.0
        %1358 = vmatpush.msra.mxu0 0.0
        %1359 = vmatpush.msra.mxu0 0.0
        %1360 = vmatpush.msra.mxu0 0.0
        %1361 = vmatpush.msra.mxu0 %v1345
        %1362 = vmatpush.msra.mxu0 %v1242
        %1363 = vmatmul.f32.gmra.mxu0 %v1249
        %v1364 = vpop.f32.mrf.mxu0
        %v1365 = vadd.f32 %v1246, %v1364
        %1366 = vmatmul.f32.gmra.mxu0 %v1252
        %v1367 = vpop.f32.mrf.mxu0
        %v1368 = vadd.f32 %v1246, %v1367
        %1369 = vmatmul.f32.gmra.mxu0 %v1255
        %v1370 = vpop.f32.mrf.mxu0
        %v1371 = vadd.f32 %v1246, %v1370
        %1372 = vmatmul.f32.gmra.mxu0 %v1258
        %v1373 = vpop.f32.mrf.mxu0
        %v1374 = vadd.f32 %v1246, %v1373
        %1375 = vmatmul.f32.gmra.mxu0 %v1261
        %v1376 = vpop.f32.mrf.mxu0
        %v1377 = vadd.f32 %v1246, %v1376
        %1378 = vmatmul.f32.gmra.mxu0 %v1264
        %v1379 = vpop.f32.mrf.mxu0
        %v1380 = vadd.f32 %v1246, %v1379
        %1381 = vmatmul.f32.gmra.mxu0 %v1267
        %v1382 = vpop.f32.mrf.mxu0
        %v1383 = vadd.f32 %v1246, %v1382
        %1384 = vmatmul.f32.gmra.mxu0 %v1270
        %v1385 = vpop.f32.mrf.mxu0
        %v1386 = vadd.f32 %v1246, %v1385
        %1387 = vmatmul.f32.gmra.mxu0 %v1273
        %v1388 = vpop.f32.mrf.mxu0
        %v1389 = vadd.f32 %v1246, %v1388
        %1390 = vmatmul.f32.gmra.mxu0 %v1276
        %v1391 = vpop.f32.mrf.mxu0
        %v1392 = vadd.f32 %v1246, %v1391
        %1393 = vmatmul.f32.gmra.mxu0 %v1279
        %v1394 = vpop.f32.mrf.mxu0
        %v1395 = vadd.f32 %v1246, %v1394
        %1396 = vmatmul.f32.gmra.mxu0 %v1282
        %v1397 = vpop.f32.mrf.mxu0
        %v1398 = vadd.f32 %v1246, %v1397
        %1399 = vmatmul.f32.gmra.mxu0 %v1285
        %v1400 = vpop.f32.mrf.mxu0
        %v1401 = vadd.f32 %v1246, %v1400
        %1402 = vmatmul.f32.gmra.mxu0 %v1288
        %v1403 = vpop.f32.mrf.mxu0
        %v1404 = vadd.f32 %v1246, %v1403
        %1405 = vmatmul.f32.gmra.mxu0 %v1291
        %v1406 = vpop.f32.mrf.mxu0
        %v1407 = vadd.f32 %v1246, %v1406
        %1408 = vmatmul.f32.gmra.mxu0 %v1294
        %v1409 = vpop.f32.mrf.mxu0
        %v1410 = vadd.f32 %v1246, %v1409
        %1411 = vmatmul.f32.gmra.mxu0 %v1297
        %v1412 = vpop.f32.mrf.mxu0
        %v1413 = vadd.f32 %v1246, %v1412
        %1414 = vmatmul.f32.gmra.mxu0 %v1300
        %v1415 = vpop.f32.mrf.mxu0
        %v1416 = vadd.f32 %v1246, %v1415
        %1417 = vmatmul.f32.gmra.mxu0 %v1303
        %v1418 = vpop.f32.mrf.mxu0
        %v1419 = vadd.f32 %v1246, %v1418
        %1420 = vmatmul.f32.gmra.mxu0 %v1306
        %v1421 = vpop.f32.mrf.mxu0
        %v1422 = vadd.f32 %v1246, %v1421
        %1423 = vmatmul.f32.gmra.mxu0 %v1309
        %v1424 = vpop.f32.mrf.mxu0
        %v1425 = vadd.f32 %v1246, %v1424
        %1426 = vmatmul.f32.gmra.mxu0 %v1312
        %v1427 = vpop.f32.mrf.mxu0
        %v1428 = vadd.f32 %v1246, %v1427
        %1429 = vmatmul.f32.gmra.mxu0 %v1315
        %v1430 = vpop.f32.mrf.mxu0
        %v1431 = vadd.f32 %v1246, %v1430
        %1432 = vmatmul.f32.gmra.mxu0 %v1318
        %v1433 = vpop.f32.mrf.mxu0
        %v1434 = vadd.f32 %v1246, %v1433
        %1435 = vmatmul.f32.gmra.mxu0 %v1321
        %v1436 = vpop.f32.mrf.mxu0
        %v1437 = vadd.f32 %v1246, %v1436
        %1438 = vmatmul.f32.gmra.mxu0 %v1324
        %v1439 = vpop.f32.mrf.mxu0
        %v1440 = vadd.f32 %v1246, %v1439
        %1441 = vmatmul.f32.gmra.mxu0 %v1327
        %v1442 = vpop.f32.mrf.mxu0
        %v1443 = vadd.f32 %v1246, %v1442
        %1444 = vmatmul.f32.gmra.mxu0 %v1330
        %v1445 = vpop.f32.mrf.mxu0
        %v1446 = vadd.f32 %v1246, %v1445
        %1447 = vmatmul.f32.gmra.mxu0 %v1333
        %v1448 = vpop.f32.mrf.mxu0
        %v1449 = vadd.f32 %v1246, %v1448
        %1450 = vmatmul.f32.gmra.mxu0 %v1336
        %v1451 = vpop.f32.mrf.mxu0
        %v1452 = vadd.f32 %v1246, %v1451
        %1453 = vmatmul.f32.gmra.mxu0 %v1339
        %v1454 = vpop.f32.mrf.mxu0
        %v1455 = vadd.f32 %v1246, %v1454
        %1456 = vmatmul.f32.gmra.mxu0 %v1342
        %v1457 = vpop.f32.mrf.mxu0
        %v1458 = vadd.f32 %v1246, %v1457
        %1459 = vdwg.mxu0
        %v1460 = vld [vmem:[%s19] sm:$0xff]
        %v1461 = vld [vmem:[%s19 + $0x8] sm:$0xff]
        %v1462 = vld [vmem:[%s19 + $0x10] sm:$0xff]
        %v1463 = vld [vmem:[%s19 + $0x18] sm:$0xff]
        %v1464 = vld [vmem:[%s21] sm:$0xff]
        %v1465 = vld [vmem:[%s21 + $0x8] sm:$0xff]
        %v1466 = vld [vmem:[%s21 + $0x10] sm:$0xff]
        %v1467 = vld [vmem:[%s21 + $0x18] sm:$0xff]
        %1469 = vset.pattern.permute.xlu0 0
        %1470 = vperm.xlu0 %1469, %v1464
        %v1471 = vpop.permute.xlu0 %1470
        %1474 = vset.pattern.permute.xlu0 0
        %1475 = vperm.xlu0 %1474, %v1465
        %v1476 = vpop.permute.xlu0 %1475
        %1479 = vset.pattern.permute.xlu0 0
        %1480 = vperm.xlu0 %1479, %v1466
        %v1481 = vpop.permute.xlu0 %1480
        %1484 = vset.pattern.permute.xlu0 0
        %1485 = vperm.xlu0 %1484, %v1467
        %v1486 = vpop.permute.xlu0 %1485
        %v1489 = vsel %vm1068, %v1460, 0
        %v1492 = vsel %vm1068, %v1461, 0
        %v1495 = vsel %vm1068, %v1462, 0
        %v1498 = vsel %vm1068, %v1463, 0
        %1500 = vmatpush.msra.mxu0 0.0
        %1501 = vmatpush.msra.mxu0 0.0
        %1502 = vmatpush.msra.mxu0 0.0
        %1503 = vmatpush.msra.mxu0 0.0
        %1504 = vmatpush.msra.mxu0 0.0
        %1505 = vmatpush.msra.mxu0 0.0
        %1506 = vmatpush.msra.mxu0 0.0
        %1507 = vmatpush.msra.mxu0 0.0
        %1508 = vmatpush.msra.mxu0 0.0
        %1509 = vmatpush.msra.mxu0 0.0
        %1510 = vmatpush.msra.mxu0 0.0
        %1511 = vmatpush.msra.mxu0 0.0
        %1512 = vmatpush.msra.mxu0 0.0
        %1513 = vmatpush.msra.mxu0 0.0
        %1514 = vmatpush.msra.mxu0 %v1197
        %1515 = vmatpush.msra.mxu0 %v1058
        %1516 = vmatmul.f32.gmra.mxu0 %v1489
        %v1517 = vpop.f32.mrf.mxu0
        %v1518 = vadd.f32 %v1471, %v1517
        %1519 = vmatmul.f32.gmra.mxu0 %v1492
        %v1520 = vpop.f32.mrf.mxu0
        %v1521 = vadd.f32 %v1476, %v1520
        %1522 = vmatmul.f32.gmra.mxu0 %v1495
        %v1523 = vpop.f32.mrf.mxu0
        %v1524 = vadd.f32 %v1481, %v1523
        %1525 = vmatmul.f32.gmra.mxu0 %v1498
        %v1526 = vpop.f32.mrf.mxu0
        %v1527 = vadd.f32 %v1486, %v1526
        %1528 = vdwg.mxu0
        %1529 = vmatpush.msra.mxu0 0.0
        %1530 = vmatpush.msra.mxu0 0.0
        %1531 = vmatpush.msra.mxu0 0.0
        %1532 = vmatpush.msra.mxu0 0.0
        %1533 = vmatpush.msra.mxu0 0.0
        %1534 = vmatpush.msra.mxu0 0.0
        %1535 = vmatpush.msra.mxu0 0.0
        %1536 = vmatpush.msra.mxu0 0.0
        %1537 = vmatpush.msra.mxu0 0.0
        %1538 = vmatpush.msra.mxu0 0.0
        %1539 = vmatpush.msra.mxu0 0.0
        %1540 = vmatpush.msra.mxu0 0.0
        %1541 = vmatpush.msra.mxu0 0.0
        %1542 = vmatpush.msra.mxu0 0.0
        %1543 = vmatpush.msra.mxu0 %v1200
        %1544 = vmatpush.msra.mxu0 %v1059
        %1545 = vmatmul.f32.gmra.mxu0 %v1489
        %v1546 = vpop.f32.mrf.mxu0
        %v1547 = vadd.f32 %v1471, %v1546
        %1548 = vmatmul.f32.gmra.mxu0 %v1492
        %v1549 = vpop.f32.mrf.mxu0
        %v1550 = vadd.f32 %v1476, %v1549
        %1551 = vmatmul.f32.gmra.mxu0 %v1495
        %v1552 = vpop.f32.mrf.mxu0
        %v1553 = vadd.f32 %v1481, %v1552
        %1554 = vmatmul.f32.gmra.mxu0 %v1498
        %v1555 = vpop.f32.mrf.mxu0
        %v1556 = vadd.f32 %v1486, %v1555
        %1557 = vdwg.mxu0
        %vm1558 = vcmask 15360
        %v1560 = vsel %vm1558, %v1139, 0
        %v1563 = vsel %vm1558, %v1142, 0
        %v1566 = vsel %vm1558, %v1145, 0
        %v1569 = vsel %vm1558, %v1148, 0
        %v1572 = vsel %vm1558, %v1151, 0
        %v1575 = vsel %vm1558, %v1154, 0
        %v1578 = vsel %vm1558, %v1157, 0
        %v1581 = vsel %vm1558, %v1160, 0
        %v1584 = vsel %vm1558, %v1163, 0
        %v1587 = vsel %vm1558, %v1166, 0
        %v1590 = vsel %vm1558, %v1169, 0
        %v1593 = vsel %vm1558, %v1172, 0
        %v1596 = vsel %vm1558, %v1175, 0
        %v1599 = vsel %vm1558, %v1178, 0
        %v1602 = vsel %vm1558, %v1181, 0
        %v1605 = vsel %vm1558, %v1184, 0
        %vm1607 = vcmask 1041408
        %v1609 = vsel %vm1607, %v1220, 0
        %v1612 = vsel %vm1607, %v1240, 0
        %1614 = vmatpush.msra.mxu0 0.0
        %1615 = vmatpush.msra.mxu0 0.0
        %1616 = vmatpush.msra.mxu0 0.0
        %1617 = vmatpush.msra.mxu0 0.0
        %1618 = vmatpush.msra.mxu0 0.0
        %1619 = vmatpush.msra.mxu0 0.0
        %1620 = vmatpush.msra.mxu0 0.0
        %1621 = vmatpush.msra.mxu0 0.0
        %1622 = vmatpush.msra.mxu0 0.0
        %1623 = vmatpush.msra.mxu0 0.0
        %1624 = vmatpush.msra.mxu0 0.0
        %1625 = vmatpush.msra.mxu0 0.0
        %1626 = vmatpush.msra.mxu0 0.0
        %1627 = vmatpush.msra.mxu0 0.0
        %1628 = vmatpush.msra.mxu0 0.0
        %1629 = vmatpush.msra.mxu0 %v1609
        %1630 = vmatmul.f32.gmra.mxu0 %v1560
        %v1631 = vpop.f32.mrf.mxu0
        %v1632 = vadd.f32 0.0, %v1631
        %1633 = vmatmul.f32.gmra.mxu0 %v1563
        %v1634 = vpop.f32.mrf.mxu0
        %v1635 = vadd.f32 0.0, %v1634
        %1636 = vmatmul.f32.gmra.mxu0 %v1566
        %v1637 = vpop.f32.mrf.mxu0
        %v1638 = vadd.f32 0.0, %v1637
        %1639 = vmatmul.f32.gmra.mxu0 %v1569
        %v1640 = vpop.f32.mrf.mxu0
        %v1641 = vadd.f32 0.0, %v1640
        %1642 = vmatmul.f32.gmra.mxu0 %v1572
        %v1643 = vpop.f32.mrf.mxu0
        %v1644 = vadd.f32 0.0, %v1643
        %1645 = vmatmul.f32.gmra.mxu0 %v1575
        %v1646 = vpop.f32.mrf.mxu0
        %v1647 = vadd.f32 0.0, %v1646
        %1648 = vmatmul.f32.gmra.mxu0 %v1578
        %v1649 = vpop.f32.mrf.mxu0
        %v1650 = vadd.f32 0.0, %v1649
        %1651 = vmatmul.f32.gmra.mxu0 %v1581
        %v1652 = vpop.f32.mrf.mxu0
        %v1653 = vadd.f32 0.0, %v1652
        %1654 = vmatmul.f32.gmra.mxu0 %v1584
        %v1655 = vpop.f32.mrf.mxu0
        %v1656 = vadd.f32 0.0, %v1655
        %1657 = vmatmul.f32.gmra.mxu0 %v1587
        %v1658 = vpop.f32.mrf.mxu0
        %v1659 = vadd.f32 0.0, %v1658
        %1660 = vmatmul.f32.gmra.mxu0 %v1590
        %v1661 = vpop.f32.mrf.mxu0
        %v1662 = vadd.f32 0.0, %v1661
        %1663 = vmatmul.f32.gmra.mxu0 %v1593
        %v1664 = vpop.f32.mrf.mxu0
        %v1665 = vadd.f32 0.0, %v1664
        %1666 = vmatmul.f32.gmra.mxu0 %v1596
        %v1667 = vpop.f32.mrf.mxu0
        %v1668 = vadd.f32 0.0, %v1667
        %1669 = vmatmul.f32.gmra.mxu0 %v1599
        %v1670 = vpop.f32.mrf.mxu0
        %v1671 = vadd.f32 0.0, %v1670
        %1672 = vmatmul.f32.gmra.mxu0 %v1602
        %v1673 = vpop.f32.mrf.mxu0
        %v1674 = vadd.f32 0.0, %v1673
        %1675 = vmatmul.f32.gmra.mxu0 %v1605
        %v1676 = vpop.f32.mrf.mxu0
        %v1677 = vadd.f32 0.0, %v1676
        %1678 = vdwg.mxu0
        %1679 = vmatpush.msra.mxu0 0.0
        %1680 = vmatpush.msra.mxu0 0.0
        %1681 = vmatpush.msra.mxu0 0.0
        %1682 = vmatpush.msra.mxu0 0.0
        %1683 = vmatpush.msra.mxu0 0.0
        %1684 = vmatpush.msra.mxu0 0.0
        %1685 = vmatpush.msra.mxu0 0.0
        %1686 = vmatpush.msra.mxu0 0.0
        %1687 = vmatpush.msra.mxu0 0.0
        %1688 = vmatpush.msra.mxu0 0.0
        %1689 = vmatpush.msra.mxu0 0.0
        %1690 = vmatpush.msra.mxu0 0.0
        %1691 = vmatpush.msra.mxu0 0.0
        %1692 = vmatpush.msra.mxu0 0.0
        %1693 = vmatpush.msra.mxu0 0.0
        %1694 = vmatpush.msra.mxu0 %v1612
        %1695 = vmatmul.f32.gmra.mxu0 %v1560
        %v1696 = vpop.f32.mrf.mxu0
        %v1697 = vadd.f32 0.0, %v1696
        %1698 = vmatmul.f32.gmra.mxu0 %v1563
        %v1699 = vpop.f32.mrf.mxu0
        %v1700 = vadd.f32 0.0, %v1699
        %1701 = vmatmul.f32.gmra.mxu0 %v1566
        %v1702 = vpop.f32.mrf.mxu0
        %v1703 = vadd.f32 0.0, %v1702
        %1704 = vmatmul.f32.gmra.mxu0 %v1569
        %v1705 = vpop.f32.mrf.mxu0
        %v1706 = vadd.f32 0.0, %v1705
        %1707 = vmatmul.f32.gmra.mxu0 %v1572
        %v1708 = vpop.f32.mrf.mxu0
        %v1709 = vadd.f32 0.0, %v1708
        %1710 = vmatmul.f32.gmra.mxu0 %v1575
        %v1711 = vpop.f32.mrf.mxu0
        %v1712 = vadd.f32 0.0, %v1711
        %1713 = vmatmul.f32.gmra.mxu0 %v1578
        %v1714 = vpop.f32.mrf.mxu0
        %v1715 = vadd.f32 0.0, %v1714
        %1716 = vmatmul.f32.gmra.mxu0 %v1581
        %v1717 = vpop.f32.mrf.mxu0
        %v1718 = vadd.f32 0.0, %v1717
        %1719 = vmatmul.f32.gmra.mxu0 %v1584
        %v1720 = vpop.f32.mrf.mxu0
        %v1721 = vadd.f32 0.0, %v1720
        %1722 = vmatmul.f32.gmra.mxu0 %v1587
        %v1723 = vpop.f32.mrf.mxu0
        %v1724 = vadd.f32 0.0, %v1723
        %1725 = vmatmul.f32.gmra.mxu0 %v1590
        %v1726 = vpop.f32.mrf.mxu0
        %v1727 = vadd.f32 0.0, %v1726
        %1728 = vmatmul.f32.gmra.mxu0 %v1593
        %v1729 = vpop.f32.mrf.mxu0
        %v1730 = vadd.f32 0.0, %v1729
        %1731 = vmatmul.f32.gmra.mxu0 %v1596
        %v1732 = vpop.f32.mrf.mxu0
        %v1733 = vadd.f32 0.0, %v1732
        %1734 = vmatmul.f32.gmra.mxu0 %v1599
        %v1735 = vpop.f32.mrf.mxu0
        %v1736 = vadd.f32 0.0, %v1735
        %1737 = vmatmul.f32.gmra.mxu0 %v1602
        %v1738 = vpop.f32.mrf.mxu0
        %v1739 = vadd.f32 0.0, %v1738
        %1740 = vmatmul.f32.gmra.mxu0 %v1605
        %v1741 = vpop.f32.mrf.mxu0
        %v1742 = vadd.f32 0.0, %v1741
        %1743 = vdwg.mxu0
        %v1744 = vmul.f32 %v1139, %v1139
        %v1745 = vmul.f32 %v1142, %v1142
        %v1746 = vmul.f32 %v1145, %v1145
        %v1747 = vmul.f32 %v1148, %v1148
        %v1748 = vmul.f32 %v1151, %v1151
        %v1749 = vmul.f32 %v1154, %v1154
        %v1750 = vmul.f32 %v1157, %v1157
        %v1751 = vmul.f32 %v1160, %v1160
        %v1752 = vmul.f32 %v1163, %v1163
        %v1753 = vmul.f32 %v1166, %v1166
        %v1754 = vmul.f32 %v1169, %v1169
        %v1755 = vmul.f32 %v1172, %v1172
        %v1756 = vmul.f32 %v1175, %v1175
        %v1757 = vmul.f32 %v1178, %v1178
        %v1758 = vmul.f32 %v1181, %v1181
        %v1759 = vmul.f32 %v1184, %v1184
        %v1760 = vsel %vm1558, %v1744, 0.0
        %1761 = vadd.xlane.f32.xlu0 %v1760
        %v1762 = vpop.xlane.xlu0 %1761
        %v1763 = vsel %vm1558, %v1745, 0.0
        %1764 = vadd.xlane.f32.xlu0 %v1763
        %v1765 = vpop.xlane.xlu0 %1764
        %v1766 = vsel %vm1558, %v1746, 0.0
        %1767 = vadd.xlane.f32.xlu0 %v1766
        %v1768 = vpop.xlane.xlu0 %1767
        %v1769 = vsel %vm1558, %v1747, 0.0
        %1770 = vadd.xlane.f32.xlu0 %v1769
        %v1771 = vpop.xlane.xlu0 %1770
        %v1772 = vsel %vm1558, %v1748, 0.0
        %1773 = vadd.xlane.f32.xlu0 %v1772
        %v1774 = vpop.xlane.xlu0 %1773
        %v1775 = vsel %vm1558, %v1749, 0.0
        %1776 = vadd.xlane.f32.xlu0 %v1775
        %v1777 = vpop.xlane.xlu0 %1776
        %v1778 = vsel %vm1558, %v1750, 0.0
        %1779 = vadd.xlane.f32.xlu0 %v1778
        %v1780 = vpop.xlane.xlu0 %1779
        %v1781 = vsel %vm1558, %v1751, 0.0
        %1782 = vadd.xlane.f32.xlu0 %v1781
        %v1783 = vpop.xlane.xlu0 %1782
        %v1784 = vsel %vm1558, %v1752, 0.0
        %1785 = vadd.xlane.f32.xlu0 %v1784
        %v1786 = vpop.xlane.xlu0 %1785
        %v1787 = vsel %vm1558, %v1753, 0.0
        %1788 = vadd.xlane.f32.xlu0 %v1787
        %v1789 = vpop.xlane.xlu0 %1788
        %v1790 = vsel %vm1558, %v1754, 0.0
        %1791 = vadd.xlane.f32.xlu0 %v1790
        %v1792 = vpop.xlane.xlu0 %1791
        %v1793 = vsel %vm1558, %v1755, 0.0
        %1794 = vadd.xlane.f32.xlu0 %v1793
        %v1795 = vpop.xlane.xlu0 %1794
        %v1796 = vsel %vm1558, %v1756, 0.0
        %1797 = vadd.xlane.f32.xlu0 %v1796
        %v1798 = vpop.xlane.xlu0 %1797
        %v1799 = vsel %vm1558, %v1757, 0.0
        %1800 = vadd.xlane.f32.xlu0 %v1799
        %v1801 = vpop.xlane.xlu0 %1800
        %v1802 = vsel %vm1558, %v1758, 0.0
        %1803 = vadd.xlane.f32.xlu0 %v1802
        %v1804 = vpop.xlane.xlu0 %1803
        %v1805 = vsel %vm1558, %v1759, 0.0
        %1806 = vadd.xlane.f32.xlu0 %v1805
        %v1807 = vpop.xlane.xlu0 %1806
        %v1808 = vmul.f32 %v1220, %v1220
        %v1809 = vmul.f32 %v1240, %v1240
        %v1810 = vsel %vm1607, %v1808, 0.0
        %v1811 = vrot.slane %v1810, 4
        %v1812 = vadd.f32 %v1810, %v1811
        %v1813 = vrot.slane %v1812, 2
        %v1814 = vadd.f32 %v1812, %v1813
        %v1815 = vrot.slane %v1814, 1
        %v1816 = vadd.f32 %v1814, %v1815
        %v1817 = vsel %vm1607, %v1809, 0.0
        %v1818 = vrot.slane %v1817, 4
        %v1819 = vadd.f32 %v1817, %v1818
        %v1820 = vrot.slane %v1819, 2
        %v1821 = vadd.f32 %v1819, %v1820
        %v1822 = vrot.slane %v1821, 1
        %v1823 = vadd.f32 %v1821, %v1822
        %v1824 = vadd.f32 %v1762, %v1816
        %v1825 = vadd.f32 %v1762, %v1823
        %v1826 = vadd.f32 %v1765, %v1816
        %v1827 = vadd.f32 %v1765, %v1823
        %v1828 = vadd.f32 %v1768, %v1816
        %v1829 = vadd.f32 %v1768, %v1823
        %v1830 = vadd.f32 %v1771, %v1816
        %v1831 = vadd.f32 %v1771, %v1823
        %v1832 = vadd.f32 %v1774, %v1816
        %v1833 = vadd.f32 %v1774, %v1823
        %v1834 = vadd.f32 %v1777, %v1816
        %v1835 = vadd.f32 %v1777, %v1823
        %v1836 = vadd.f32 %v1780, %v1816
        %v1837 = vadd.f32 %v1780, %v1823
        %v1838 = vadd.f32 %v1783, %v1816
        %v1839 = vadd.f32 %v1783, %v1823
        %v1840 = vadd.f32 %v1786, %v1816
        %v1841 = vadd.f32 %v1786, %v1823
        %v1842 = vadd.f32 %v1789, %v1816
        %v1843 = vadd.f32 %v1789, %v1823
        %v1844 = vadd.f32 %v1792, %v1816
        %v1845 = vadd.f32 %v1792, %v1823
        %v1846 = vadd.f32 %v1795, %v1816
        %v1847 = vadd.f32 %v1795, %v1823
        %v1848 = vadd.f32 %v1798, %v1816
        %v1849 = vadd.f32 %v1798, %v1823
        %v1850 = vadd.f32 %v1801, %v1816
        %v1851 = vadd.f32 %v1801, %v1823
        %v1852 = vadd.f32 %v1804, %v1816
        %v1853 = vadd.f32 %v1804, %v1823
        %v1854 = vadd.f32 %v1807, %v1816
        %v1855 = vadd.f32 %v1807, %v1823
        %v1856 = vmul.f32 %v1632, 2.0
        %v1857 = vmul.f32 %v1697, 2.0
        %v1858 = vmul.f32 %v1635, 2.0
        %v1859 = vmul.f32 %v1700, 2.0
        %v1860 = vmul.f32 %v1638, 2.0
        %v1861 = vmul.f32 %v1703, 2.0
        %v1862 = vmul.f32 %v1641, 2.0
        %v1863 = vmul.f32 %v1706, 2.0
        %v1864 = vmul.f32 %v1644, 2.0
        %v1865 = vmul.f32 %v1709, 2.0
        %v1866 = vmul.f32 %v1647, 2.0
        %v1867 = vmul.f32 %v1712, 2.0
        %v1868 = vmul.f32 %v1650, 2.0
        %v1869 = vmul.f32 %v1715, 2.0
        %v1870 = vmul.f32 %v1653, 2.0
        %v1871 = vmul.f32 %v1718, 2.0
        %v1872 = vmul.f32 %v1656, 2.0
        %v1873 = vmul.f32 %v1721, 2.0
        %v1874 = vmul.f32 %v1659, 2.0
        %v1875 = vmul.f32 %v1724, 2.0
        %v1876 = vmul.f32 %v1662, 2.0
        %v1877 = vmul.f32 %v1727, 2.0
        %v1878 = vmul.f32 %v1665, 2.0
        %v1879 = vmul.f32 %v1730, 2.0
        %v1880 = vmul.f32 %v1668, 2.0
        %v1881 = vmul.f32 %v1733, 2.0
        %v1882 = vmul.f32 %v1671, 2.0
        %v1883 = vmul.f32 %v1736, 2.0
        %v1884 = vmul.f32 %v1674, 2.0
        %v1885 = vmul.f32 %v1739, 2.0
        %v1886 = vmul.f32 %v1677, 2.0
        %v1887 = vmul.f32 %v1742, 2.0
        %v1888 = vsub.f32 %v1824, %v1856
        %v1889 = vsub.f32 %v1825, %v1857
        %v1890 = vsub.f32 %v1826, %v1858
        %v1891 = vsub.f32 %v1827, %v1859
        %v1892 = vsub.f32 %v1828, %v1860
        %v1893 = vsub.f32 %v1829, %v1861
        %v1894 = vsub.f32 %v1830, %v1862
        %v1895 = vsub.f32 %v1831, %v1863
        %v1896 = vsub.f32 %v1832, %v1864
        %v1897 = vsub.f32 %v1833, %v1865
        %v1898 = vsub.f32 %v1834, %v1866
        %v1899 = vsub.f32 %v1835, %v1867
        %v1900 = vsub.f32 %v1836, %v1868
        %v1901 = vsub.f32 %v1837, %v1869
        %v1902 = vsub.f32 %v1838, %v1870
        %v1903 = vsub.f32 %v1839, %v1871
        %v1904 = vsub.f32 %v1840, %v1872
        %v1905 = vsub.f32 %v1841, %v1873
        %v1906 = vsub.f32 %v1842, %v1874
        %v1907 = vsub.f32 %v1843, %v1875
        %v1908 = vsub.f32 %v1844, %v1876
        %v1909 = vsub.f32 %v1845, %v1877
        %v1910 = vsub.f32 %v1846, %v1878
        %v1911 = vsub.f32 %v1847, %v1879
        %v1912 = vsub.f32 %v1848, %v1880
        %v1913 = vsub.f32 %v1849, %v1881
        %v1914 = vsub.f32 %v1850, %v1882
        %v1915 = vsub.f32 %v1851, %v1883
        %v1916 = vsub.f32 %v1852, %v1884
        %v1917 = vsub.f32 %v1853, %v1885
        %v1918 = vsub.f32 %v1854, %v1886
        %v1919 = vsub.f32 %v1855, %v1887
        %v1920 = vmax.f32 %v1888, 0.0
        %v1921 = vmax.f32 %v1889, 0.0
        %v1922 = vmax.f32 %v1890, 0.0
        %v1923 = vmax.f32 %v1891, 0.0
        %v1924 = vmax.f32 %v1892, 0.0
        %v1925 = vmax.f32 %v1893, 0.0
        %v1926 = vmax.f32 %v1894, 0.0
        %v1927 = vmax.f32 %v1895, 0.0
        %v1928 = vmax.f32 %v1896, 0.0
        %v1929 = vmax.f32 %v1897, 0.0
        %v1930 = vmax.f32 %v1898, 0.0
        %v1931 = vmax.f32 %v1899, 0.0
        %v1932 = vmax.f32 %v1900, 0.0
        %v1933 = vmax.f32 %v1901, 0.0
        %v1934 = vmax.f32 %v1902, 0.0
        %v1935 = vmax.f32 %v1903, 0.0
        %v1936 = vmax.f32 %v1904, 0.0
        %v1937 = vmax.f32 %v1905, 0.0
        %v1938 = vmax.f32 %v1906, 0.0
        %v1939 = vmax.f32 %v1907, 0.0
        %v1940 = vmax.f32 %v1908, 0.0
        %v1941 = vmax.f32 %v1909, 0.0
        %v1942 = vmax.f32 %v1910, 0.0
        %v1943 = vmax.f32 %v1911, 0.0
        %v1944 = vmax.f32 %v1912, 0.0
        %v1945 = vmax.f32 %v1913, 0.0
        %v1946 = vmax.f32 %v1914, 0.0
        %v1947 = vmax.f32 %v1915, 0.0
        %v1948 = vmax.f32 %v1916, 0.0
        %v1949 = vmax.f32 %v1917, 0.0
        %v1950 = vmax.f32 %v1918, 0.0
        %v1951 = vmax.f32 %v1919, 0.0
        %s1952 = smul.u32 %s83, 128
        %v1953 = vlaneseq
        %v1954 = vshrl.u32 %v1953, 7
        %v1955 = vadd.s32 %v1954, 8
        %v1956 = vadd.s32 %v1954, 16
        %v1957 = vadd.s32 %v1954, 24
        %v1958 = vadd.s32 %v1954, 32
        %v1959 = vadd.s32 %v1954, 40
        %v1960 = vadd.s32 %v1954, 48
        %v1961 = vadd.s32 %v1954, 56
        %v1962 = vadd.s32 %v1954, 64
        %v1963 = vadd.s32 %v1954, 72
        %v1964 = vadd.s32 %v1954, 80
        %v1965 = vadd.s32 %v1954, 88
        %v1966 = vadd.s32 %v1954, 96
        %v1967 = vadd.s32 %v1954, 104
        %v1968 = vadd.s32 %v1954, 112
        %v1969 = vadd.s32 %v1954, 120
        %v1970 = vstv %s1952
        %v1971 = vadd.s32 %v1970, %v1954
        %v1972 = vadd.s32 %v1970, %v1955
        %v1973 = vadd.s32 %v1970, %v1956
        %v1974 = vadd.s32 %v1970, %v1957
        %v1975 = vadd.s32 %v1970, %v1958
        %v1976 = vadd.s32 %v1970, %v1959
        %v1977 = vadd.s32 %v1970, %v1960
        %v1978 = vadd.s32 %v1970, %v1961
        %v1979 = vadd.s32 %v1970, %v1962
        %v1980 = vadd.s32 %v1970, %v1963
        %v1981 = vadd.s32 %v1970, %v1964
        %v1982 = vadd.s32 %v1970, %v1965
        %v1983 = vadd.s32 %v1970, %v1966
        %v1984 = vadd.s32 %v1970, %v1967
        %v1985 = vadd.s32 %v1970, %v1968
        %v1986 = vadd.s32 %v1970, %v1969
        %v1987 = vlaneseq
        %v1988 = vand.u32 %v1987, 127
        %v1989 = vadd.s32 %v1988, 128
        %vm1990 = vcmp.lt.f32.partialorder %v1920, 1.0
        %vm1991 = vcmp.lt.f32.partialorder %v1921, 1.0
        %vm1992 = vcmp.lt.f32.partialorder %v1922, 1.0
        %vm1993 = vcmp.lt.f32.partialorder %v1923, 1.0
        %vm1994 = vcmp.lt.f32.partialorder %v1924, 1.0
        %vm1995 = vcmp.lt.f32.partialorder %v1925, 1.0
        %vm1996 = vcmp.lt.f32.partialorder %v1926, 1.0
        %vm1997 = vcmp.lt.f32.partialorder %v1927, 1.0
        %vm1998 = vcmp.lt.f32.partialorder %v1928, 1.0
        %vm1999 = vcmp.lt.f32.partialorder %v1929, 1.0
        %vm2000 = vcmp.lt.f32.partialorder %v1930, 1.0
        %vm2001 = vcmp.lt.f32.partialorder %v1931, 1.0
        %vm2002 = vcmp.lt.f32.partialorder %v1932, 1.0
        %vm2003 = vcmp.lt.f32.partialorder %v1933, 1.0
        %vm2004 = vcmp.lt.f32.partialorder %v1934, 1.0
        %vm2005 = vcmp.lt.f32.partialorder %v1935, 1.0
        %vm2006 = vcmp.lt.f32.partialorder %v1936, 1.0
        %vm2007 = vcmp.lt.f32.partialorder %v1937, 1.0
        %vm2008 = vcmp.lt.f32.partialorder %v1938, 1.0
        %vm2009 = vcmp.lt.f32.partialorder %v1939, 1.0
        %vm2010 = vcmp.lt.f32.partialorder %v1940, 1.0
        %vm2011 = vcmp.lt.f32.partialorder %v1941, 1.0
        %vm2012 = vcmp.lt.f32.partialorder %v1942, 1.0
        %vm2013 = vcmp.lt.f32.partialorder %v1943, 1.0
        %vm2014 = vcmp.lt.f32.partialorder %v1944, 1.0
        %vm2015 = vcmp.lt.f32.partialorder %v1945, 1.0
        %vm2016 = vcmp.lt.f32.partialorder %v1946, 1.0
        %vm2017 = vcmp.lt.f32.partialorder %v1947, 1.0
        %vm2018 = vcmp.lt.f32.partialorder %v1948, 1.0
        %vm2019 = vcmp.lt.f32.partialorder %v1949, 1.0
        %vm2020 = vcmp.lt.f32.partialorder %v1950, 1.0
        %vm2021 = vcmp.lt.f32.partialorder %v1951, 1.0
        %vm2022 = vcmp.ne.s32.totalorder %v1971, %v1988
        %vm2023 = vcmp.ne.s32.totalorder %v1971, %v1989
        %vm2024 = vcmp.ne.s32.totalorder %v1972, %v1988
        %vm2025 = vcmp.ne.s32.totalorder %v1972, %v1989
        %vm2026 = vcmp.ne.s32.totalorder %v1973, %v1988
        %vm2027 = vcmp.ne.s32.totalorder %v1973, %v1989
        %vm2028 = vcmp.ne.s32.totalorder %v1974, %v1988
        %vm2029 = vcmp.ne.s32.totalorder %v1974, %v1989
        %vm2030 = vcmp.ne.s32.totalorder %v1975, %v1988
        %vm2031 = vcmp.ne.s32.totalorder %v1975, %v1989
        %vm2032 = vcmp.ne.s32.totalorder %v1976, %v1988
        %vm2033 = vcmp.ne.s32.totalorder %v1976, %v1989
        %vm2034 = vcmp.ne.s32.totalorder %v1977, %v1988
        %vm2035 = vcmp.ne.s32.totalorder %v1977, %v1989
        %vm2036 = vcmp.ne.s32.totalorder %v1978, %v1988
        %vm2037 = vcmp.ne.s32.totalorder %v1978, %v1989
        %vm2038 = vcmp.ne.s32.totalorder %v1979, %v1988
        %vm2039 = vcmp.ne.s32.totalorder %v1979, %v1989
        %vm2040 = vcmp.ne.s32.totalorder %v1980, %v1988
        %vm2041 = vcmp.ne.s32.totalorder %v1980, %v1989
        %vm2042 = vcmp.ne.s32.totalorder %v1981, %v1988
        %vm2043 = vcmp.ne.s32.totalorder %v1981, %v1989
        %vm2044 = vcmp.ne.s32.totalorder %v1982, %v1988
        %vm2045 = vcmp.ne.s32.totalorder %v1982, %v1989
        %vm2046 = vcmp.ne.s32.totalorder %v1983, %v1988
        %vm2047 = vcmp.ne.s32.totalorder %v1983, %v1989
        %vm2048 = vcmp.ne.s32.totalorder %v1984, %v1988
        %vm2049 = vcmp.ne.s32.totalorder %v1984, %v1989
        %vm2050 = vcmp.ne.s32.totalorder %v1985, %v1988
        %vm2051 = vcmp.ne.s32.totalorder %v1985, %v1989
        %vm2052 = vcmp.ne.s32.totalorder %v1986, %v1988
        %vm2053 = vcmp.ne.s32.totalorder %v1986, %v1989
        %vm2054 = vmand %vm1990, %vm2022
        %vm2055 = vmand %vm1991, %vm2023
        %vm2056 = vmand %vm1992, %vm2024
        %vm2057 = vmand %vm1993, %vm2025
        %vm2058 = vmand %vm1994, %vm2026
        %vm2059 = vmand %vm1995, %vm2027
        %vm2060 = vmand %vm1996, %vm2028
        %vm2061 = vmand %vm1997, %vm2029
        %vm2062 = vmand %vm1998, %vm2030
        %vm2063 = vmand %vm1999, %vm2031
        %vm2064 = vmand %vm2000, %vm2032
        %vm2065 = vmand %vm2001, %vm2033
        %vm2066 = vmand %vm2002, %vm2034
        %vm2067 = vmand %vm2003, %vm2035
        %vm2068 = vmand %vm2004, %vm2036
        %vm2069 = vmand %vm2005, %vm2037
        %vm2070 = vmand %vm2006, %vm2038
        %vm2071 = vmand %vm2007, %vm2039
        %vm2072 = vmand %vm2008, %vm2040
        %vm2073 = vmand %vm2009, %vm2041
        %vm2074 = vmand %vm2010, %vm2042
        %vm2075 = vmand %vm2011, %vm2043
        %vm2076 = vmand %vm2012, %vm2044
        %vm2077 = vmand %vm2013, %vm2045
        %vm2078 = vmand %vm2014, %vm2046
        %vm2079 = vmand %vm2015, %vm2047
        %vm2080 = vmand %vm2016, %vm2048
        %vm2081 = vmand %vm2017, %vm2049
        %vm2082 = vmand %vm2018, %vm2050
        %vm2083 = vmand %vm2019, %vm2051
        %vm2084 = vmand %vm2020, %vm2052
        %vm2085 = vmand %vm2021, %vm2053
        %vm2086 = vcmp.lt.s32.totalorder %v1988, 200
        %vm2087 = vcmp.lt.s32.totalorder %v1989, 200
        %vm2088 = vmand %vm2054, %vm2086
        %vm2089 = vmand %vm2055, %vm2087
        %vm2090 = vmand %vm2056, %vm2086
        %vm2091 = vmand %vm2057, %vm2087
        %vm2092 = vmand %vm2058, %vm2086
        %vm2093 = vmand %vm2059, %vm2087
        %vm2094 = vmand %vm2060, %vm2086
        %vm2095 = vmand %vm2061, %vm2087
        %vm2096 = vmand %vm2062, %vm2086
        %vm2097 = vmand %vm2063, %vm2087
        %vm2098 = vmand %vm2064, %vm2086
        %vm2099 = vmand %vm2065, %vm2087
        %vm2100 = vmand %vm2066, %vm2086
        %vm2101 = vmand %vm2067, %vm2087
        %vm2102 = vmand %vm2068, %vm2086
        %vm2103 = vmand %vm2069, %vm2087
        %vm2104 = vmand %vm2070, %vm2086
        %vm2105 = vmand %vm2071, %vm2087
        %vm2106 = vmand %vm2072, %vm2086
        %vm2107 = vmand %vm2073, %vm2087
        %vm2108 = vmand %vm2074, %vm2086
        %vm2109 = vmand %vm2075, %vm2087
        %vm2110 = vmand %vm2076, %vm2086
        %vm2111 = vmand %vm2077, %vm2087
        %vm2112 = vmand %vm2078, %vm2086
        %vm2113 = vmand %vm2079, %vm2087
        %vm2114 = vmand %vm2080, %vm2086
        %vm2115 = vmand %vm2081, %vm2087
        %vm2116 = vmand %vm2082, %vm2086
        %vm2117 = vmand %vm2083, %vm2087
        %vm2118 = vmand %vm2084, %vm2086
        %vm2119 = vmand %vm2085, %vm2087
        %v2120 = vmul.f32 %v1920, -10.0
        %v2121 = vmul.f32 %v1921, -10.0
        %v2122 = vmul.f32 %v1922, -10.0
        %v2123 = vmul.f32 %v1923, -10.0
        %v2124 = vmul.f32 %v1924, -10.0
        %v2125 = vmul.f32 %v1925, -10.0
        %v2126 = vmul.f32 %v1926, -10.0
        %v2127 = vmul.f32 %v1927, -10.0
        %v2128 = vmul.f32 %v1928, -10.0
        %v2129 = vmul.f32 %v1929, -10.0
        %v2130 = vmul.f32 %v1930, -10.0
        %v2131 = vmul.f32 %v1931, -10.0
        %v2132 = vmul.f32 %v1932, -10.0
        %v2133 = vmul.f32 %v1933, -10.0
        %v2134 = vmul.f32 %v1934, -10.0
        %v2135 = vmul.f32 %v1935, -10.0
        %v2136 = vmul.f32 %v1936, -10.0
        %v2137 = vmul.f32 %v1937, -10.0
        %v2138 = vmul.f32 %v1938, -10.0
        %v2139 = vmul.f32 %v1939, -10.0
        %v2140 = vmul.f32 %v1940, -10.0
        %v2141 = vmul.f32 %v1941, -10.0
        %v2142 = vmul.f32 %v1942, -10.0
        %v2143 = vmul.f32 %v1943, -10.0
        %v2144 = vmul.f32 %v1944, -10.0
        %v2145 = vmul.f32 %v1945, -10.0
        %v2146 = vmul.f32 %v1946, -10.0
        %v2147 = vmul.f32 %v1947, -10.0
        %v2148 = vmul.f32 %v1948, -10.0
        %v2149 = vmul.f32 %v1949, -10.0
        %v2150 = vmul.f32 %v1950, -10.0
        %v2151 = vmul.f32 %v1951, -10.0
        %v2152 = vmul.f32 %v2120, 1.442695
        %v2153 = vpow.pop %v2152
        %v2154 = vmul.f32 %v2121, 1.442695
        %v2155 = vpow.pop %v2154
        %v2156 = vmul.f32 %v2122, 1.442695
        %v2157 = vpow.pop %v2156
        %v2158 = vmul.f32 %v2123, 1.442695
        %v2159 = vpow.pop %v2158
        %v2160 = vmul.f32 %v2124, 1.442695
        %v2161 = vpow.pop %v2160
        %v2162 = vmul.f32 %v2125, 1.442695
        %v2163 = vpow.pop %v2162
        %v2164 = vmul.f32 %v2126, 1.442695
        %v2165 = vpow.pop %v2164
        %v2166 = vmul.f32 %v2127, 1.442695
        %v2167 = vpow.pop %v2166
        %v2168 = vmul.f32 %v2128, 1.442695
        %v2169 = vpow.pop %v2168
        %v2170 = vmul.f32 %v2129, 1.442695
        %v2171 = vpow.pop %v2170
        %v2172 = vmul.f32 %v2130, 1.442695
        %v2173 = vpow.pop %v2172
        %v2174 = vmul.f32 %v2131, 1.442695
        %v2175 = vpow.pop %v2174
        %v2176 = vmul.f32 %v2132, 1.442695
        %v2177 = vpow.pop %v2176
        %v2178 = vmul.f32 %v2133, 1.442695
        %v2179 = vpow.pop %v2178
        %v2180 = vmul.f32 %v2134, 1.442695
        %v2181 = vpow.pop %v2180
        %v2182 = vmul.f32 %v2135, 1.442695
        %v2183 = vpow.pop %v2182
        %v2184 = vmul.f32 %v2136, 1.442695
        %v2185 = vpow.pop %v2184
        %v2186 = vmul.f32 %v2137, 1.442695
        %v2187 = vpow.pop %v2186
        %v2188 = vmul.f32 %v2138, 1.442695
        %v2189 = vpow.pop %v2188
        %v2190 = vmul.f32 %v2139, 1.442695
        %v2191 = vpow.pop %v2190
        %v2192 = vmul.f32 %v2140, 1.442695
        %v2193 = vpow.pop %v2192
        %v2194 = vmul.f32 %v2141, 1.442695
        %v2195 = vpow.pop %v2194
        %v2196 = vmul.f32 %v2142, 1.442695
        %v2197 = vpow.pop %v2196
        %v2198 = vmul.f32 %v2143, 1.442695
        %v2199 = vpow.pop %v2198
        %v2200 = vmul.f32 %v2144, 1.442695
        %v2201 = vpow.pop %v2200
        %v2202 = vmul.f32 %v2145, 1.442695
        %v2203 = vpow.pop %v2202
        %v2204 = vmul.f32 %v2146, 1.442695
        %v2205 = vpow.pop %v2204
        %v2206 = vmul.f32 %v2147, 1.442695
        %v2207 = vpow.pop %v2206
        %v2208 = vmul.f32 %v2148, 1.442695
        %v2209 = vpow.pop %v2208
        %v2210 = vmul.f32 %v2149, 1.442695
        %v2211 = vpow.pop %v2210
        %v2212 = vmul.f32 %v2150, 1.442695
        %v2213 = vpow.pop %v2212
        %v2214 = vmul.f32 %v2151, 1.442695
        %v2215 = vpow.pop %v2214
        %v2216 = vsel %vm2088, %v2153, 0.0
        %v2217 = vsel %vm2089, %v2155, 0.0
        %v2218 = vsel %vm2090, %v2157, 0.0
        %v2219 = vsel %vm2091, %v2159, 0.0
        %v2220 = vsel %vm2092, %v2161, 0.0
        %v2221 = vsel %vm2093, %v2163, 0.0
        %v2222 = vsel %vm2094, %v2165, 0.0
        %v2223 = vsel %vm2095, %v2167, 0.0
        %v2224 = vsel %vm2096, %v2169, 0.0
        %v2225 = vsel %vm2097, %v2171, 0.0
        %v2226 = vsel %vm2098, %v2173, 0.0
        %v2227 = vsel %vm2099, %v2175, 0.0
        %v2228 = vsel %vm2100, %v2177, 0.0
        %v2229 = vsel %vm2101, %v2179, 0.0
        %v2230 = vsel %vm2102, %v2181, 0.0
        %v2231 = vsel %vm2103, %v2183, 0.0
        %v2232 = vsel %vm2104, %v2185, 0.0
        %v2233 = vsel %vm2105, %v2187, 0.0
        %v2234 = vsel %vm2106, %v2189, 0.0
        %v2235 = vsel %vm2107, %v2191, 0.0
        %v2236 = vsel %vm2108, %v2193, 0.0
        %v2237 = vsel %vm2109, %v2195, 0.0
        %v2238 = vsel %vm2110, %v2197, 0.0
        %v2239 = vsel %vm2111, %v2199, 0.0
        %v2240 = vsel %vm2112, %v2201, 0.0
        %v2241 = vsel %vm2113, %v2203, 0.0
        %v2242 = vsel %vm2114, %v2205, 0.0
        %v2243 = vsel %vm2115, %v2207, 0.0
        %v2244 = vsel %vm2116, %v2209, 0.0
        %v2245 = vsel %vm2117, %v2211, 0.0
        %v2246 = vsel %vm2118, %v2213, 0.0
        %v2247 = vsel %vm2119, %v2215, 0.0
        %v2248 = vsel %vm2088, 1, 0
        %v2249 = vsel %vm2089, 1, 0
        %v2250 = vsel %vm2090, 1, 0
        %v2251 = vsel %vm2091, 1, 0
        %v2252 = vsel %vm2092, 1, 0
        %v2253 = vsel %vm2093, 1, 0
        %v2254 = vsel %vm2094, 1, 0
        %v2255 = vsel %vm2095, 1, 0
        %v2256 = vsel %vm2096, 1, 0
        %v2257 = vsel %vm2097, 1, 0
        %v2258 = vsel %vm2098, 1, 0
        %v2259 = vsel %vm2099, 1, 0
        %v2260 = vsel %vm2100, 1, 0
        %v2261 = vsel %vm2101, 1, 0
        %v2262 = vsel %vm2102, 1, 0
        %v2263 = vsel %vm2103, 1, 0
        %v2264 = vsel %vm2104, 1, 0
        %v2265 = vsel %vm2105, 1, 0
        %v2266 = vsel %vm2106, 1, 0
        %v2267 = vsel %vm2107, 1, 0
        %v2268 = vsel %vm2108, 1, 0
        %v2269 = vsel %vm2109, 1, 0
        %v2270 = vsel %vm2110, 1, 0
        %v2271 = vsel %vm2111, 1, 0
        %v2272 = vsel %vm2112, 1, 0
        %v2273 = vsel %vm2113, 1, 0
        %v2274 = vsel %vm2114, 1, 0
        %v2275 = vsel %vm2115, 1, 0
        %v2276 = vsel %vm2116, 1, 0
        %v2277 = vsel %vm2117, 1, 0
        %v2278 = vsel %vm2118, 1, 0
        %v2279 = vsel %vm2119, 1, 0
        %v2280 = vcvt.s32.f32 %v2248
        %v2281 = vcvt.s32.f32 %v2249
        %v2282 = vcvt.s32.f32 %v2250
        %v2283 = vcvt.s32.f32 %v2251
        %v2284 = vcvt.s32.f32 %v2252
        %v2285 = vcvt.s32.f32 %v2253
        %v2286 = vcvt.s32.f32 %v2254
        %v2287 = vcvt.s32.f32 %v2255
        %v2288 = vcvt.s32.f32 %v2256
        %v2289 = vcvt.s32.f32 %v2257
        %v2290 = vcvt.s32.f32 %v2258
        %v2291 = vcvt.s32.f32 %v2259
        %v2292 = vcvt.s32.f32 %v2260
        %v2293 = vcvt.s32.f32 %v2261
        %v2294 = vcvt.s32.f32 %v2262
        %v2295 = vcvt.s32.f32 %v2263
        %v2296 = vcvt.s32.f32 %v2264
        %v2297 = vcvt.s32.f32 %v2265
        %v2298 = vcvt.s32.f32 %v2266
        %v2299 = vcvt.s32.f32 %v2267
        %v2300 = vcvt.s32.f32 %v2268
        %v2301 = vcvt.s32.f32 %v2269
        %v2302 = vcvt.s32.f32 %v2270
        %v2303 = vcvt.s32.f32 %v2271
        %v2304 = vcvt.s32.f32 %v2272
        %v2305 = vcvt.s32.f32 %v2273
        %v2306 = vcvt.s32.f32 %v2274
        %v2307 = vcvt.s32.f32 %v2275
        %v2308 = vcvt.s32.f32 %v2276
        %v2309 = vcvt.s32.f32 %v2277
        %v2310 = vcvt.s32.f32 %v2278
        %v2311 = vcvt.s32.f32 %v2279
        %v2312 = vadd.f32 %v2280, %v2281
        %2313 = vadd.xlane.f32.xlu0 %v2312
        %v2314 = vpop.xlane.xlu0 %2313
        %v2315 = vadd.f32 %v2282, %v2283
        %2316 = vadd.xlane.f32.xlu0 %v2315
        %v2317 = vpop.xlane.xlu0 %2316
        %v2318 = vadd.f32 %v2284, %v2285
        %2319 = vadd.xlane.f32.xlu0 %v2318
        %v2320 = vpop.xlane.xlu0 %2319
        %v2321 = vadd.f32 %v2286, %v2287
        %2322 = vadd.xlane.f32.xlu0 %v2321
        %v2323 = vpop.xlane.xlu0 %2322
        %v2324 = vadd.f32 %v2288, %v2289
        %2325 = vadd.xlane.f32.xlu0 %v2324
        %v2326 = vpop.xlane.xlu0 %2325
        %v2327 = vadd.f32 %v2290, %v2291
        %2328 = vadd.xlane.f32.xlu0 %v2327
        %v2329 = vpop.xlane.xlu0 %2328
        %v2330 = vadd.f32 %v2292, %v2293
        %2331 = vadd.xlane.f32.xlu0 %v2330
        %v2332 = vpop.xlane.xlu0 %2331
        %v2333 = vadd.f32 %v2294, %v2295
        %2334 = vadd.xlane.f32.xlu0 %v2333
        %v2335 = vpop.xlane.xlu0 %2334
        %v2336 = vadd.f32 %v2296, %v2297
        %2337 = vadd.xlane.f32.xlu0 %v2336
        %v2338 = vpop.xlane.xlu0 %2337
        %v2339 = vadd.f32 %v2298, %v2299
        %2340 = vadd.xlane.f32.xlu0 %v2339
        %v2341 = vpop.xlane.xlu0 %2340
        %v2342 = vadd.f32 %v2300, %v2301
        %2343 = vadd.xlane.f32.xlu0 %v2342
        %v2344 = vpop.xlane.xlu0 %2343
        %v2345 = vadd.f32 %v2302, %v2303
        %2346 = vadd.xlane.f32.xlu0 %v2345
        %v2347 = vpop.xlane.xlu0 %2346
        %v2348 = vadd.f32 %v2304, %v2305
        %2349 = vadd.xlane.f32.xlu0 %v2348
        %v2350 = vpop.xlane.xlu0 %2349
        %v2351 = vadd.f32 %v2306, %v2307
        %2352 = vadd.xlane.f32.xlu0 %v2351
        %v2353 = vpop.xlane.xlu0 %2352
        %v2354 = vadd.f32 %v2308, %v2309
        %2355 = vadd.xlane.f32.xlu0 %v2354
        %v2356 = vpop.xlane.xlu0 %2355
        %v2357 = vadd.f32 %v2310, %v2311
        %2358 = vadd.xlane.f32.xlu0 %v2357
        %v2359 = vpop.xlane.xlu0 %2358
        %2360 = vmatpush.msra.mxu0 %v1410
        %2361 = vmatpush.msra.mxu0 %v1407
        %2362 = vmatpush.msra.mxu0 %v1404
        %2363 = vmatpush.msra.mxu0 %v1401
        %2364 = vmatpush.msra.mxu0 %v1398
        %2365 = vmatpush.msra.mxu0 %v1395
        %2366 = vmatpush.msra.mxu0 %v1392
        %2367 = vmatpush.msra.mxu0 %v1389
        %2368 = vmatpush.msra.mxu0 %v1386
        %2369 = vmatpush.msra.mxu0 %v1383
        %2370 = vmatpush.msra.mxu0 %v1380
        %2371 = vmatpush.msra.mxu0 %v1377
        %2372 = vmatpush.msra.mxu0 %v1374
        %2373 = vmatpush.msra.mxu0 %v1371
        %2374 = vmatpush.msra.mxu0 %v1368
        %2375 = vmatpush.msra.mxu0 %v1365
        %2376 = vmatmul.f32.gmra.mxu0 %v2216
        %v2377 = vpop.f32.mrf.mxu0
        %v2378 = vadd.f32 0.0, %v2377
        %2379 = vmatmul.f32.gmra.mxu0 %v2218
        %v2380 = vpop.f32.mrf.mxu0
        %v2381 = vadd.f32 0.0, %v2380
        %2382 = vmatmul.f32.gmra.mxu0 %v2220
        %v2383 = vpop.f32.mrf.mxu0
        %v2384 = vadd.f32 0.0, %v2383
        %2385 = vmatmul.f32.gmra.mxu0 %v2222
        %v2386 = vpop.f32.mrf.mxu0
        %v2387 = vadd.f32 0.0, %v2386
        %2388 = vmatmul.f32.gmra.mxu0 %v2224
        %v2389 = vpop.f32.mrf.mxu0
        %v2390 = vadd.f32 0.0, %v2389
        %2391 = vmatmul.f32.gmra.mxu0 %v2226
        %v2392 = vpop.f32.mrf.mxu0
        %v2393 = vadd.f32 0.0, %v2392
        %2394 = vmatmul.f32.gmra.mxu0 %v2228
        %v2395 = vpop.f32.mrf.mxu0
        %v2396 = vadd.f32 0.0, %v2395
        %2397 = vmatmul.f32.gmra.mxu0 %v2230
        %v2398 = vpop.f32.mrf.mxu0
        %v2399 = vadd.f32 0.0, %v2398
        %2400 = vmatmul.f32.gmra.mxu0 %v2232
        %v2401 = vpop.f32.mrf.mxu0
        %v2402 = vadd.f32 0.0, %v2401
        %2403 = vmatmul.f32.gmra.mxu0 %v2234
        %v2404 = vpop.f32.mrf.mxu0
        %v2405 = vadd.f32 0.0, %v2404
        %2406 = vmatmul.f32.gmra.mxu0 %v2236
        %v2407 = vpop.f32.mrf.mxu0
        %v2408 = vadd.f32 0.0, %v2407
        %2409 = vmatmul.f32.gmra.mxu0 %v2238
        %v2410 = vpop.f32.mrf.mxu0
        %v2411 = vadd.f32 0.0, %v2410
        %2412 = vmatmul.f32.gmra.mxu0 %v2240
        %v2413 = vpop.f32.mrf.mxu0
        %v2414 = vadd.f32 0.0, %v2413
        %2415 = vmatmul.f32.gmra.mxu0 %v2242
        %v2416 = vpop.f32.mrf.mxu0
        %v2417 = vadd.f32 0.0, %v2416
        %2418 = vmatmul.f32.gmra.mxu0 %v2244
        %v2419 = vpop.f32.mrf.mxu0
        %v2420 = vadd.f32 0.0, %v2419
        %2421 = vmatmul.f32.gmra.mxu0 %v2246
        %v2422 = vpop.f32.mrf.mxu0
        %v2423 = vadd.f32 0.0, %v2422
        %2424 = vdwg.mxu0
        %2425 = vmatpush.msra.mxu0 %v1458
        %2426 = vmatpush.msra.mxu0 %v1455
        %2427 = vmatpush.msra.mxu0 %v1452
        %2428 = vmatpush.msra.mxu0 %v1449
        %2429 = vmatpush.msra.mxu0 %v1446
        %2430 = vmatpush.msra.mxu0 %v1443
        %2431 = vmatpush.msra.mxu0 %v1440
        %2432 = vmatpush.msra.mxu0 %v1437
        %2433 = vmatpush.msra.mxu0 %v1434
        %2434 = vmatpush.msra.mxu0 %v1431
        %2435 = vmatpush.msra.mxu0 %v1428
        %2436 = vmatpush.msra.mxu0 %v1425
        %2437 = vmatpush.msra.mxu0 %v1422
        %2438 = vmatpush.msra.mxu0 %v1419
        %2439 = vmatpush.msra.mxu0 %v1416
        %2440 = vmatpush.msra.mxu0 %v1413
        %2441 = vmatmul.f32.gmra.mxu0 %v2217
        %v2442 = vpop.f32.mrf.mxu0
        %v2443 = vadd.f32 %v2378, %v2442
        %2444 = vmatmul.f32.gmra.mxu0 %v2219
        %v2445 = vpop.f32.mrf.mxu0
        %v2446 = vadd.f32 %v2381, %v2445
        %2447 = vmatmul.f32.gmra.mxu0 %v2221
        %v2448 = vpop.f32.mrf.mxu0
        %v2449 = vadd.f32 %v2384, %v2448
        %2450 = vmatmul.f32.gmra.mxu0 %v2223
        %v2451 = vpop.f32.mrf.mxu0
        %v2452 = vadd.f32 %v2387, %v2451
        %2453 = vmatmul.f32.gmra.mxu0 %v2225
        %v2454 = vpop.f32.mrf.mxu0
        %v2455 = vadd.f32 %v2390, %v2454
        %2456 = vmatmul.f32.gmra.mxu0 %v2227
        %v2457 = vpop.f32.mrf.mxu0
        %v2458 = vadd.f32 %v2393, %v2457
        %2459 = vmatmul.f32.gmra.mxu0 %v2229
        %v2460 = vpop.f32.mrf.mxu0
        %v2461 = vadd.f32 %v2396, %v2460
        %2462 = vmatmul.f32.gmra.mxu0 %v2231
        %v2463 = vpop.f32.mrf.mxu0
        %v2464 = vadd.f32 %v2399, %v2463
        %2465 = vmatmul.f32.gmra.mxu0 %v2233
        %v2466 = vpop.f32.mrf.mxu0
        %v2467 = vadd.f32 %v2402, %v2466
        %2468 = vmatmul.f32.gmra.mxu0 %v2235
        %v2469 = vpop.f32.mrf.mxu0
        %v2470 = vadd.f32 %v2405, %v2469
        %2471 = vmatmul.f32.gmra.mxu0 %v2237
        %v2472 = vpop.f32.mrf.mxu0
        %v2473 = vadd.f32 %v2408, %v2472
        %2474 = vmatmul.f32.gmra.mxu0 %v2239
        %v2475 = vpop.f32.mrf.mxu0
        %v2476 = vadd.f32 %v2411, %v2475
        %2477 = vmatmul.f32.gmra.mxu0 %v2241
        %v2478 = vpop.f32.mrf.mxu0
        %v2479 = vadd.f32 %v2414, %v2478
        %2480 = vmatmul.f32.gmra.mxu0 %v2243
        %v2481 = vpop.f32.mrf.mxu0
        %v2482 = vadd.f32 %v2417, %v2481
        %2483 = vmatmul.f32.gmra.mxu0 %v2245
        %v2484 = vpop.f32.mrf.mxu0
        %v2485 = vadd.f32 %v2420, %v2484
        %2486 = vmatmul.f32.gmra.mxu0 %v2247
        %v2487 = vpop.f32.mrf.mxu0
        %v2488 = vadd.f32 %v2423, %v2487
        %2489 = vdwg.mxu0
        %v2490 = vmax.f32 %v2314, 1.0
        %v2491 = vmax.f32 %v2317, 1.0
        %v2492 = vmax.f32 %v2320, 1.0
        %v2493 = vmax.f32 %v2323, 1.0
        %v2494 = vmax.f32 %v2326, 1.0
        %v2495 = vmax.f32 %v2329, 1.0
        %v2496 = vmax.f32 %v2332, 1.0
        %v2497 = vmax.f32 %v2335, 1.0
        %v2498 = vmax.f32 %v2338, 1.0
        %v2499 = vmax.f32 %v2341, 1.0
        %v2500 = vmax.f32 %v2344, 1.0
        %v2501 = vmax.f32 %v2347, 1.0
        %v2502 = vmax.f32 %v2350, 1.0
        %v2503 = vmax.f32 %v2353, 1.0
        %v2504 = vmax.f32 %v2356, 1.0
        %v2505 = vmax.f32 %v2359, 1.0
        %v2506 = vrcp.pop %v2490
        %v2507 = vrcp.pop %v2491
        %v2508 = vrcp.pop %v2492
        %v2509 = vrcp.pop %v2493
        %v2510 = vrcp.pop %v2494
        %v2511 = vrcp.pop %v2495
        %v2512 = vrcp.pop %v2496
        %v2513 = vrcp.pop %v2497
        %v2514 = vrcp.pop %v2498
        %v2515 = vrcp.pop %v2499
        %v2516 = vrcp.pop %v2500
        %v2517 = vrcp.pop %v2501
        %v2518 = vrcp.pop %v2502
        %v2519 = vrcp.pop %v2503
        %v2520 = vrcp.pop %v2504
        %v2521 = vrcp.pop %v2505
        %v2522 = vmul.f32 %v2443, %v2506
        %v2523 = vmul.f32 %v2446, %v2507
        %v2524 = vmul.f32 %v2449, %v2508
        %v2525 = vmul.f32 %v2452, %v2509
        %v2526 = vmul.f32 %v2455, %v2510
        %v2527 = vmul.f32 %v2458, %v2511
        %v2528 = vmul.f32 %v2461, %v2512
        %v2529 = vmul.f32 %v2464, %v2513
        %v2530 = vmul.f32 %v2467, %v2514
        %v2531 = vmul.f32 %v2470, %v2515
        %v2532 = vmul.f32 %v2473, %v2516
        %v2533 = vmul.f32 %v2476, %v2517
        %v2534 = vmul.f32 %v2479, %v2518
        %v2535 = vmul.f32 %v2482, %v2519
        %v2536 = vmul.f32 %v2485, %v2520
        %v2537 = vmul.f32 %v2488, %v2521
        %v2538 = vsel %vm2088, 0.0, -3e+38
        %v2539 = vsel %vm2089, 0.0, -3e+38
        %v2540 = vsel %vm2090, 0.0, -3e+38
        %v2541 = vsel %vm2091, 0.0, -3e+38
        %v2542 = vsel %vm2092, 0.0, -3e+38
        %v2543 = vsel %vm2093, 0.0, -3e+38
        %v2544 = vsel %vm2094, 0.0, -3e+38
        %v2545 = vsel %vm2095, 0.0, -3e+38
        %v2546 = vsel %vm2096, 0.0, -3e+38
        %v2547 = vsel %vm2097, 0.0, -3e+38
        %v2548 = vsel %vm2098, 0.0, -3e+38
        %v2549 = vsel %vm2099, 0.0, -3e+38
        %v2550 = vsel %vm2100, 0.0, -3e+38
        %v2551 = vsel %vm2101, 0.0, -3e+38
        %v2552 = vsel %vm2102, 0.0, -3e+38
        %v2553 = vsel %vm2103, 0.0, -3e+38
        %v2554 = vsel %vm2104, 0.0, -3e+38
        %v2555 = vsel %vm2105, 0.0, -3e+38
        %v2556 = vsel %vm2106, 0.0, -3e+38
        %v2557 = vsel %vm2107, 0.0, -3e+38
        %v2558 = vsel %vm2108, 0.0, -3e+38
        %v2559 = vsel %vm2109, 0.0, -3e+38
        %v2560 = vsel %vm2110, 0.0, -3e+38
        %v2561 = vsel %vm2111, 0.0, -3e+38
        %v2562 = vsel %vm2112, 0.0, -3e+38
        %v2563 = vsel %vm2113, 0.0, -3e+38
        %v2564 = vsel %vm2114, 0.0, -3e+38
        %v2565 = vsel %vm2115, 0.0, -3e+38
        %v2566 = vsel %vm2116, 0.0, -3e+38
        %v2567 = vsel %vm2117, 0.0, -3e+38
        %v2568 = vsel %vm2118, 0.0, -3e+38
        %v2569 = vsel %vm2119, 0.0, -3e+38
        %v2570 = vperm.slane %v1518, 0
        %v2571 = vperm.slane %v1547, 0
        %v2572 = vmul.f32 %v2216, %v2570
        %v2573 = vmul.f32 %v2217, %v2571
        %v2574 = vmul.f32 %v2218, %v2570
        %v2575 = vmul.f32 %v2219, %v2571
        %v2576 = vmul.f32 %v2220, %v2570
        %v2577 = vmul.f32 %v2221, %v2571
        %v2578 = vmul.f32 %v2222, %v2570
        %v2579 = vmul.f32 %v2223, %v2571
        %v2580 = vmul.f32 %v2224, %v2570
        %v2581 = vmul.f32 %v2225, %v2571
        %v2582 = vmul.f32 %v2226, %v2570
        %v2583 = vmul.f32 %v2227, %v2571
        %v2584 = vmul.f32 %v2228, %v2570
        %v2585 = vmul.f32 %v2229, %v2571
        %v2586 = vmul.f32 %v2230, %v2570
        %v2587 = vmul.f32 %v2231, %v2571
        %v2588 = vmul.f32 %v2232, %v2570
        %v2589 = vmul.f32 %v2233, %v2571
        %v2590 = vmul.f32 %v2234, %v2570
        %v2591 = vmul.f32 %v2235, %v2571
        %v2592 = vmul.f32 %v2236, %v2570
        %v2593 = vmul.f32 %v2237, %v2571
        %v2594 = vmul.f32 %v2238, %v2570
        %v2595 = vmul.f32 %v2239, %v2571
        %v2596 = vmul.f32 %v2240, %v2570
        %v2597 = vmul.f32 %v2241, %v2571
        %v2598 = vmul.f32 %v2242, %v2570
        %v2599 = vmul.f32 %v2243, %v2571
        %v2600 = vmul.f32 %v2244, %v2570
        %v2601 = vmul.f32 %v2245, %v2571
        %v2602 = vmul.f32 %v2246, %v2570
        %v2603 = vmul.f32 %v2247, %v2571
        %v2604 = vadd.f32 %v2572, %v2538
        %v2605 = vadd.f32 %v2573, %v2539
        %v2606 = vadd.f32 %v2574, %v2540
        %v2607 = vadd.f32 %v2575, %v2541
        %v2608 = vadd.f32 %v2576, %v2542
        %v2609 = vadd.f32 %v2577, %v2543
        %v2610 = vadd.f32 %v2578, %v2544
        %v2611 = vadd.f32 %v2579, %v2545
        %v2612 = vadd.f32 %v2580, %v2546
        %v2613 = vadd.f32 %v2581, %v2547
        %v2614 = vadd.f32 %v2582, %v2548
        %v2615 = vadd.f32 %v2583, %v2549
        %v2616 = vadd.f32 %v2584, %v2550
        %v2617 = vadd.f32 %v2585, %v2551
        %v2618 = vadd.f32 %v2586, %v2552
        %v2619 = vadd.f32 %v2587, %v2553
        %v2620 = vadd.f32 %v2588, %v2554
        %v2621 = vadd.f32 %v2589, %v2555
        %v2622 = vadd.f32 %v2590, %v2556
        %v2623 = vadd.f32 %v2591, %v2557
        %v2624 = vadd.f32 %v2592, %v2558
        %v2625 = vadd.f32 %v2593, %v2559
        %v2626 = vadd.f32 %v2594, %v2560
        %v2627 = vadd.f32 %v2595, %v2561
        %v2628 = vadd.f32 %v2596, %v2562
        %v2629 = vadd.f32 %v2597, %v2563
        %v2630 = vadd.f32 %v2598, %v2564
        %v2631 = vadd.f32 %v2599, %v2565
        %v2632 = vadd.f32 %v2600, %v2566
        %v2633 = vadd.f32 %v2601, %v2567
        %v2634 = vadd.f32 %v2602, %v2568
        %v2635 = vadd.f32 %v2603, %v2569
        %v2636 = vmax.f32 %v2604, %v2605
        %2637 = vmax.xlane.f32.xlu0 %v2636
        %v2638 = vpop.xlane.xlu0 %2637
        %v2639 = vmax.f32 %v2606, %v2607
        %2640 = vmax.xlane.f32.xlu0 %v2639
        %v2641 = vpop.xlane.xlu0 %2640
        %v2642 = vmax.f32 %v2608, %v2609
        %2643 = vmax.xlane.f32.xlu0 %v2642
        %v2644 = vpop.xlane.xlu0 %2643
        %v2645 = vmax.f32 %v2610, %v2611
        %2646 = vmax.xlane.f32.xlu0 %v2645
        %v2647 = vpop.xlane.xlu0 %2646
        %v2648 = vmax.f32 %v2612, %v2613
        %2649 = vmax.xlane.f32.xlu0 %v2648
        %v2650 = vpop.xlane.xlu0 %2649
        %v2651 = vmax.f32 %v2614, %v2615
        %2652 = vmax.xlane.f32.xlu0 %v2651
        %v2653 = vpop.xlane.xlu0 %2652
        %v2654 = vmax.f32 %v2616, %v2617
        %2655 = vmax.xlane.f32.xlu0 %v2654
        %v2656 = vpop.xlane.xlu0 %2655
        %v2657 = vmax.f32 %v2618, %v2619
        %2658 = vmax.xlane.f32.xlu0 %v2657
        %v2659 = vpop.xlane.xlu0 %2658
        %v2660 = vmax.f32 %v2620, %v2621
        %2661 = vmax.xlane.f32.xlu0 %v2660
        %v2662 = vpop.xlane.xlu0 %2661
        %v2663 = vmax.f32 %v2622, %v2623
        %2664 = vmax.xlane.f32.xlu0 %v2663
        %v2665 = vpop.xlane.xlu0 %2664
        %v2666 = vmax.f32 %v2624, %v2625
        %2667 = vmax.xlane.f32.xlu0 %v2666
        %v2668 = vpop.xlane.xlu0 %2667
        %v2669 = vmax.f32 %v2626, %v2627
        %2670 = vmax.xlane.f32.xlu0 %v2669
        %v2671 = vpop.xlane.xlu0 %2670
        %v2672 = vmax.f32 %v2628, %v2629
        %2673 = vmax.xlane.f32.xlu0 %v2672
        %v2674 = vpop.xlane.xlu0 %2673
        %v2675 = vmax.f32 %v2630, %v2631
        %2676 = vmax.xlane.f32.xlu0 %v2675
        %v2677 = vpop.xlane.xlu0 %2676
        %v2678 = vmax.f32 %v2632, %v2633
        %2679 = vmax.xlane.f32.xlu0 %v2678
        %v2680 = vpop.xlane.xlu0 %2679
        %v2681 = vmax.f32 %v2634, %v2635
        %2682 = vmax.xlane.f32.xlu0 %v2681
        %v2683 = vpop.xlane.xlu0 %2682
        %vm2684 = vcmask 7168
        %2685 = vst.msk [vmem:[#allocation2] sm:$0xff] %vm2684, %v2638
        %2686 = vst.msk [vmem:[#allocation2 + $0x8] sm:$0xff] %vm2684, %v2641
        %2687 = vst.msk [vmem:[#allocation2 + $0x10] sm:$0xff] %vm2684, %v2644
        %2688 = vst.msk [vmem:[#allocation2 + $0x18] sm:$0xff] %vm2684, %v2647
        %2689 = vst.msk [vmem:[#allocation2 + $0x20] sm:$0xff] %vm2684, %v2650
        %2690 = vst.msk [vmem:[#allocation2 + $0x28] sm:$0xff] %vm2684, %v2653
        %2691 = vst.msk [vmem:[#allocation2 + $0x30] sm:$0xff] %vm2684, %v2656
        %2692 = vst.msk [vmem:[#allocation2 + $0x38] sm:$0xff] %vm2684, %v2659
        %2693 = vst.msk [vmem:[#allocation2 + $0x40] sm:$0xff] %vm2684, %v2662
        %2694 = vst.msk [vmem:[#allocation2 + $0x48] sm:$0xff] %vm2684, %v2665
        %2695 = vst.msk [vmem:[#allocation2 + $0x50] sm:$0xff] %vm2684, %v2668
        %2696 = vst.msk [vmem:[#allocation2 + $0x58] sm:$0xff] %vm2684, %v2671
        %2697 = vst.msk [vmem:[#allocation2 + $0x60] sm:$0xff] %vm2684, %v2674
        %2698 = vst.msk [vmem:[#allocation2 + $0x68] sm:$0xff] %vm2684, %v2677
        %2699 = vst.msk [vmem:[#allocation2 + $0x70] sm:$0xff] %vm2684, %v2680
        %2700 = vst.msk [vmem:[#allocation2 + $0x78] sm:$0xff] %vm2684, %v2683
        %v2701 = vperm.slane %v1518, 1
        %v2702 = vperm.slane %v1547, 1
        %v2703 = vmul.f32 %v2216, %v2701
        %v2704 = vmul.f32 %v2217, %v2702
        %v2705 = vmul.f32 %v2218, %v2701
        %v2706 = vmul.f32 %v2219, %v2702
        %v2707 = vmul.f32 %v2220, %v2701
        %v2708 = vmul.f32 %v2221, %v2702
        %v2709 = vmul.f32 %v2222, %v2701
        %v2710 = vmul.f32 %v2223, %v2702
        %v2711 = vmul.f32 %v2224, %v2701
        %v2712 = vmul.f32 %v2225, %v2702
        %v2713 = vmul.f32 %v2226, %v2701
        %v2714 = vmul.f32 %v2227, %v2702
        %v2715 = vmul.f32 %v2228, %v2701
        %v2716 = vmul.f32 %v2229, %v2702
        %v2717 = vmul.f32 %v2230, %v2701
        %v2718 = vmul.f32 %v2231, %v2702
        %v2719 = vmul.f32 %v2232, %v2701
        %v2720 = vmul.f32 %v2233, %v2702
        %v2721 = vmul.f32 %v2234, %v2701
        %v2722 = vmul.f32 %v2235, %v2702
        %v2723 = vmul.f32 %v2236, %v2701
        %v2724 = vmul.f32 %v2237, %v2702
        %v2725 = vmul.f32 %v2238, %v2701
        %v2726 = vmul.f32 %v2239, %v2702
        %v2727 = vmul.f32 %v2240, %v2701
        %v2728 = vmul.f32 %v2241, %v2702
        %v2729 = vmul.f32 %v2242, %v2701
        %v2730 = vmul.f32 %v2243, %v2702
        %v2731 = vmul.f32 %v2244, %v2701
        %v2732 = vmul.f32 %v2245, %v2702
        %v2733 = vmul.f32 %v2246, %v2701
        %v2734 = vmul.f32 %v2247, %v2702
        %v2735 = vadd.f32 %v2703, %v2538
        %v2736 = vadd.f32 %v2704, %v2539
        %v2737 = vadd.f32 %v2705, %v2540
        %v2738 = vadd.f32 %v2706, %v2541
        %v2739 = vadd.f32 %v2707, %v2542
        %v2740 = vadd.f32 %v2708, %v2543
        %v2741 = vadd.f32 %v2709, %v2544
        %v2742 = vadd.f32 %v2710, %v2545
        %v2743 = vadd.f32 %v2711, %v2546
        %v2744 = vadd.f32 %v2712, %v2547
        %v2745 = vadd.f32 %v2713, %v2548
        %v2746 = vadd.f32 %v2714, %v2549
        %v2747 = vadd.f32 %v2715, %v2550
        %v2748 = vadd.f32 %v2716, %v2551
        %v2749 = vadd.f32 %v2717, %v2552
        %v2750 = vadd.f32 %v2718, %v2553
        %v2751 = vadd.f32 %v2719, %v2554
        %v2752 = vadd.f32 %v2720, %v2555
        %v2753 = vadd.f32 %v2721, %v2556
        %v2754 = vadd.f32 %v2722, %v2557
        %v2755 = vadd.f32 %v2723, %v2558
        %v2756 = vadd.f32 %v2724, %v2559
        %v2757 = vadd.f32 %v2725, %v2560
        %v2758 = vadd.f32 %v2726, %v2561
        %v2759 = vadd.f32 %v2727, %v2562
        %v2760 = vadd.f32 %v2728, %v2563
        %v2761 = vadd.f32 %v2729, %v2564
        %v2762 = vadd.f32 %v2730, %v2565
        %v2763 = vadd.f32 %v2731, %v2566
        %v2764 = vadd.f32 %v2732, %v2567
        %v2765 = vadd.f32 %v2733, %v2568
        %v2766 = vadd.f32 %v2734, %v2569
        %v2767 = vmax.f32 %v2735, %v2736
        %2768 = vmax.xlane.f32.xlu0 %v2767
        %v2769 = vpop.xlane.xlu0 %2768
        %v2770 = vmax.f32 %v2737, %v2738
        %2771 = vmax.xlane.f32.xlu0 %v2770
        %v2772 = vpop.xlane.xlu0 %2771
        %v2773 = vmax.f32 %v2739, %v2740
        %2774 = vmax.xlane.f32.xlu0 %v2773
        %v2775 = vpop.xlane.xlu0 %2774
        %v2776 = vmax.f32 %v2741, %v2742
        %2777 = vmax.xlane.f32.xlu0 %v2776
        %v2778 = vpop.xlane.xlu0 %2777
        %v2779 = vmax.f32 %v2743, %v2744
        %2780 = vmax.xlane.f32.xlu0 %v2779
        %v2781 = vpop.xlane.xlu0 %2780
        %v2782 = vmax.f32 %v2745, %v2746
        %2783 = vmax.xlane.f32.xlu0 %v2782
        %v2784 = vpop.xlane.xlu0 %2783
        %v2785 = vmax.f32 %v2747, %v2748
        %2786 = vmax.xlane.f32.xlu0 %v2785
        %v2787 = vpop.xlane.xlu0 %2786
        %v2788 = vmax.f32 %v2749, %v2750
        %2789 = vmax.xlane.f32.xlu0 %v2788
        %v2790 = vpop.xlane.xlu0 %2789
        %v2791 = vmax.f32 %v2751, %v2752
        %2792 = vmax.xlane.f32.xlu0 %v2791
        %v2793 = vpop.xlane.xlu0 %2792
        %v2794 = vmax.f32 %v2753, %v2754
        %2795 = vmax.xlane.f32.xlu0 %v2794
        %v2796 = vpop.xlane.xlu0 %2795
        %v2797 = vmax.f32 %v2755, %v2756
        %2798 = vmax.xlane.f32.xlu0 %v2797
        %v2799 = vpop.xlane.xlu0 %2798
        %v2800 = vmax.f32 %v2757, %v2758
        %2801 = vmax.xlane.f32.xlu0 %v2800
        %v2802 = vpop.xlane.xlu0 %2801
        %v2803 = vmax.f32 %v2759, %v2760
        %2804 = vmax.xlane.f32.xlu0 %v2803
        %v2805 = vpop.xlane.xlu0 %2804
        %v2806 = vmax.f32 %v2761, %v2762
        %2807 = vmax.xlane.f32.xlu0 %v2806
        %v2808 = vpop.xlane.xlu0 %2807
        %v2809 = vmax.f32 %v2763, %v2764
        %2810 = vmax.xlane.f32.xlu0 %v2809
        %v2811 = vpop.xlane.xlu0 %2810
        %v2812 = vmax.f32 %v2765, %v2766
        %2813 = vmax.xlane.f32.xlu0 %v2812
        %v2814 = vpop.xlane.xlu0 %2813
        %vm2815 = vcmask 15368
        %2816 = vst.msk [vmem:[#allocation2] sm:$0xff] %vm2815, %v2769
        %2817 = vst.msk [vmem:[#allocation2 + $0x8] sm:$0xff] %vm2815, %v2772
        %2818 = vst.msk [vmem:[#allocation2 + $0x10] sm:$0xff] %vm2815, %v2775
        %2819 = vst.msk [vmem:[#allocation2 + $0x18] sm:$0xff] %vm2815, %v2778
        %2820 = vst.msk [vmem:[#allocation2 + $0x20] sm:$0xff] %vm2815, %v2781
        %2821 = vst.msk [vmem:[#allocation2 + $0x28] sm:$0xff] %vm2815, %v2784
        %2822 = vst.msk [vmem:[#allocation2 + $0x30] sm:$0xff] %vm2815, %v2787
        %2823 = vst.msk [vmem:[#allocation2 + $0x38] sm:$0xff] %vm2815, %v2790
        %2824 = vst.msk [vmem:[#allocation2 + $0x40] sm:$0xff] %vm2815, %v2793
        %2825 = vst.msk [vmem:[#allocation2 + $0x48] sm:$0xff] %vm2815, %v2796
        %2826 = vst.msk [vmem:[#allocation2 + $0x50] sm:$0xff] %vm2815, %v2799
        %2827 = vst.msk [vmem:[#allocation2 + $0x58] sm:$0xff] %vm2815, %v2802
        %2828 = vst.msk [vmem:[#allocation2 + $0x60] sm:$0xff] %vm2815, %v2805
        %2829 = vst.msk [vmem:[#allocation2 + $0x68] sm:$0xff] %vm2815, %v2808
        %2830 = vst.msk [vmem:[#allocation2 + $0x70] sm:$0xff] %vm2815, %v2811
        %2831 = vst.msk [vmem:[#allocation2 + $0x78] sm:$0xff] %vm2815, %v2814
        %v2832 = vperm.slane %v1518, 2
        %v2833 = vperm.slane %v1547, 2
        %v2834 = vmul.f32 %v2216, %v2832
        %v2835 = vmul.f32 %v2217, %v2833
        %v2836 = vmul.f32 %v2218, %v2832
        %v2837 = vmul.f32 %v2219, %v2833
        %v2838 = vmul.f32 %v2220, %v2832
        %v2839 = vmul.f32 %v2221, %v2833
        %v2840 = vmul.f32 %v2222, %v2832
        %v2841 = vmul.f32 %v2223, %v2833
        %v2842 = vmul.f32 %v2224, %v2832
        %v2843 = vmul.f32 %v2225, %v2833
        %v2844 = vmul.f32 %v2226, %v2832
        %v2845 = vmul.f32 %v2227, %v2833
        %v2846 = vmul.f32 %v2228, %v2832
        %v2847 = vmul.f32 %v2229, %v2833
        %v2848 = vmul.f32 %v2230, %v2832
        %v2849 = vmul.f32 %v2231, %v2833
        %v2850 = vmul.f32 %v2232, %v2832
        %v2851 = vmul.f32 %v2233, %v2833
        %v2852 = vmul.f32 %v2234, %v2832
        %v2853 = vmul.f32 %v2235, %v2833
        %v2854 = vmul.f32 %v2236, %v2832
        %v2855 = vmul.f32 %v2237, %v2833
        %v2856 = vmul.f32 %v2238, %v2832
        %v2857 = vmul.f32 %v2239, %v2833
        %v2858 = vmul.f32 %v2240, %v2832
        %v2859 = vmul.f32 %v2241, %v2833
        %v2860 = vmul.f32 %v2242, %v2832
        %v2861 = vmul.f32 %v2243, %v2833
        %v2862 = vmul.f32 %v2244, %v2832
        %v2863 = vmul.f32 %v2245, %v2833
        %v2864 = vmul.f32 %v2246, %v2832
        %v2865 = vmul.f32 %v2247, %v2833
        %v2866 = vadd.f32 %v2834, %v2538
        %v2867 = vadd.f32 %v2835, %v2539
        %v2868 = vadd.f32 %v2836, %v2540
        %v2869 = vadd.f32 %v2837, %v2541
        %v2870 = vadd.f32 %v2838, %v2542
        %v2871 = vadd.f32 %v2839, %v2543
        %v2872 = vadd.f32 %v2840, %v2544
        %v2873 = vadd.f32 %v2841, %v2545
        %v2874 = vadd.f32 %v2842, %v2546
        %v2875 = vadd.f32 %v2843, %v2547
        %v2876 = vadd.f32 %v2844, %v2548
        %v2877 = vadd.f32 %v2845, %v2549
        %v2878 = vadd.f32 %v2846, %v2550
        %v2879 = vadd.f32 %v2847, %v2551
        %v2880 = vadd.f32 %v2848, %v2552
        %v2881 = vadd.f32 %v2849, %v2553
        %v2882 = vadd.f32 %v2850, %v2554
        %v2883 = vadd.f32 %v2851, %v2555
        %v2884 = vadd.f32 %v2852, %v2556
        %v2885 = vadd.f32 %v2853, %v2557
        %v2886 = vadd.f32 %v2854, %v2558
        %v2887 = vadd.f32 %v2855, %v2559
        %v2888 = vadd.f32 %v2856, %v2560
        %v2889 = vadd.f32 %v2857, %v2561
        %v2890 = vadd.f32 %v2858, %v2562
        %v2891 = vadd.f32 %v2859, %v2563
        %v2892 = vadd.f32 %v2860, %v2564
        %v2893 = vadd.f32 %v2861, %v2565
        %v2894 = vadd.f32 %v2862, %v2566
        %v2895 = vadd.f32 %v2863, %v2567
        %v2896 = vadd.f32 %v2864, %v2568
        %v2897 = vadd.f32 %v2865, %v2569
        %v2898 = vmax.f32 %v2866, %v2867
        %2899 = vmax.xlane.f32.xlu0 %v2898
        %v2900 = vpop.xlane.xlu0 %2899
        %v2901 = vmax.f32 %v2868, %v2869
        %2902 = vmax.xlane.f32.xlu0 %v2901
        %v2903 = vpop.xlane.xlu0 %2902
        %v2904 = vmax.f32 %v2870, %v2871
        %2905 = vmax.xlane.f32.xlu0 %v2904
        %v2906 = vpop.xlane.xlu0 %2905
        %v2907 = vmax.f32 %v2872, %v2873
        %2908 = vmax.xlane.f32.xlu0 %v2907
        %v2909 = vpop.xlane.xlu0 %2908
        %v2910 = vmax.f32 %v2874, %v2875
        %2911 = vmax.xlane.f32.xlu0 %v2910
        %v2912 = vpop.xlane.xlu0 %2911
        %v2913 = vmax.f32 %v2876, %v2877
        %2914 = vmax.xlane.f32.xlu0 %v2913
        %v2915 = vpop.xlane.xlu0 %2914
        %v2916 = vmax.f32 %v2878, %v2879
        %2917 = vmax.xlane.f32.xlu0 %v2916
        %v2918 = vpop.xlane.xlu0 %2917
        %v2919 = vmax.f32 %v2880, %v2881
        %2920 = vmax.xlane.f32.xlu0 %v2919
        %v2921 = vpop.xlane.xlu0 %2920
        %v2922 = vmax.f32 %v2882, %v2883
        %2923 = vmax.xlane.f32.xlu0 %v2922
        %v2924 = vpop.xlane.xlu0 %2923
        %v2925 = vmax.f32 %v2884, %v2885
        %2926 = vmax.xlane.f32.xlu0 %v2925
        %v2927 = vpop.xlane.xlu0 %2926
        %v2928 = vmax.f32 %v2886, %v2887
        %2929 = vmax.xlane.f32.xlu0 %v2928
        %v2930 = vpop.xlane.xlu0 %2929
        %v2931 = vmax.f32 %v2888, %v2889
        %2932 = vmax.xlane.f32.xlu0 %v2931
        %v2933 = vpop.xlane.xlu0 %2932
        %v2934 = vmax.f32 %v2890, %v2891
        %2935 = vmax.xlane.f32.xlu0 %v2934
        %v2936 = vpop.xlane.xlu0 %2935
        %v2937 = vmax.f32 %v2892, %v2893
        %2938 = vmax.xlane.f32.xlu0 %v2937
        %v2939 = vpop.xlane.xlu0 %2938
        %v2940 = vmax.f32 %v2894, %v2895
        %2941 = vmax.xlane.f32.xlu0 %v2940
        %v2942 = vpop.xlane.xlu0 %2941
        %v2943 = vmax.f32 %v2896, %v2897
        %2944 = vmax.xlane.f32.xlu0 %v2943
        %v2945 = vpop.xlane.xlu0 %2944
        %vm2946 = vcmask 23568
        %2947 = vst.msk [vmem:[#allocation2] sm:$0xff] %vm2946, %v2900
        %2948 = vst.msk [vmem:[#allocation2 + $0x8] sm:$0xff] %vm2946, %v2903
        %2949 = vst.msk [vmem:[#allocation2 + $0x10] sm:$0xff] %vm2946, %v2906
        %2950 = vst.msk [vmem:[#allocation2 + $0x18] sm:$0xff] %vm2946, %v2909
        %2951 = vst.msk [vmem:[#allocation2 + $0x20] sm:$0xff] %vm2946, %v2912
        %2952 = vst.msk [vmem:[#allocation2 + $0x28] sm:$0xff] %vm2946, %v2915
        %2953 = vst.msk [vmem:[#allocation2 + $0x30] sm:$0xff] %vm2946, %v2918
        %2954 = vst.msk [vmem:[#allocation2 + $0x38] sm:$0xff] %vm2946, %v2921
        %2955 = vst.msk [vmem:[#allocation2 + $0x40] sm:$0xff] %vm2946, %v2924
        %2956 = vst.msk [vmem:[#allocation2 + $0x48] sm:$0xff] %vm2946, %v2927
        %2957 = vst.msk [vmem:[#allocation2 + $0x50] sm:$0xff] %vm2946, %v2930
        %2958 = vst.msk [vmem:[#allocation2 + $0x58] sm:$0xff] %vm2946, %v2933
        %2959 = vst.msk [vmem:[#allocation2 + $0x60] sm:$0xff] %vm2946, %v2936
        %2960 = vst.msk [vmem:[#allocation2 + $0x68] sm:$0xff] %vm2946, %v2939
        %2961 = vst.msk [vmem:[#allocation2 + $0x70] sm:$0xff] %vm2946, %v2942
        %2962 = vst.msk [vmem:[#allocation2 + $0x78] sm:$0xff] %vm2946, %v2945
        %v2963 = vperm.slane %v1518, 3
        %v2964 = vperm.slane %v1547, 3
        %v2965 = vmul.f32 %v2216, %v2963
        %v2966 = vmul.f32 %v2217, %v2964
        %v2967 = vmul.f32 %v2218, %v2963
        %v2968 = vmul.f32 %v2219, %v2964
        %v2969 = vmul.f32 %v2220, %v2963
        %v2970 = vmul.f32 %v2221, %v2964
        %v2971 = vmul.f32 %v2222, %v2963
        %v2972 = vmul.f32 %v2223, %v2964
        %v2973 = vmul.f32 %v2224, %v2963
        %v2974 = vmul.f32 %v2225, %v2964
        %v2975 = vmul.f32 %v2226, %v2963
        %v2976 = vmul.f32 %v2227, %v2964
        %v2977 = vmul.f32 %v2228, %v2963
        %v2978 = vmul.f32 %v2229, %v2964
        %v2979 = vmul.f32 %v2230, %v2963
        %v2980 = vmul.f32 %v2231, %v2964
        %v2981 = vmul.f32 %v2232, %v2963
        %v2982 = vmul.f32 %v2233, %v2964
        %v2983 = vmul.f32 %v2234, %v2963
        %v2984 = vmul.f32 %v2235, %v2964
        %v2985 = vmul.f32 %v2236, %v2963
        %v2986 = vmul.f32 %v2237, %v2964
        %v2987 = vmul.f32 %v2238, %v2963
        %v2988 = vmul.f32 %v2239, %v2964
        %v2989 = vmul.f32 %v2240, %v2963
        %v2990 = vmul.f32 %v2241, %v2964
        %v2991 = vmul.f32 %v2242, %v2963
        %v2992 = vmul.f32 %v2243, %v2964
        %v2993 = vmul.f32 %v2244, %v2963
        %v2994 = vmul.f32 %v2245, %v2964
        %v2995 = vmul.f32 %v2246, %v2963
        %v2996 = vmul.f32 %v2247, %v2964
        %v2997 = vadd.f32 %v2965, %v2538
        %v2998 = vadd.f32 %v2966, %v2539
        %v2999 = vadd.f32 %v2967, %v2540
        %v3000 = vadd.f32 %v2968, %v2541
        %v3001 = vadd.f32 %v2969, %v2542
        %v3002 = vadd.f32 %v2970, %v2543
        %v3003 = vadd.f32 %v2971, %v2544
        %v3004 = vadd.f32 %v2972, %v2545
        %v3005 = vadd.f32 %v2973, %v2546
        %v3006 = vadd.f32 %v2974, %v2547
        %v3007 = vadd.f32 %v2975, %v2548
        %v3008 = vadd.f32 %v2976, %v2549
        %v3009 = vadd.f32 %v2977, %v2550
        %v3010 = vadd.f32 %v2978, %v2551
        %v3011 = vadd.f32 %v2979, %v2552
        %v3012 = vadd.f32 %v2980, %v2553
        %v3013 = vadd.f32 %v2981, %v2554
        %v3014 = vadd.f32 %v2982, %v2555
        %v3015 = vadd.f32 %v2983, %v2556
        %v3016 = vadd.f32 %v2984, %v2557
        %v3017 = vadd.f32 %v2985, %v2558
        %v3018 = vadd.f32 %v2986, %v2559
        %v3019 = vadd.f32 %v2987, %v2560
        %v3020 = vadd.f32 %v2988, %v2561
        %v3021 = vadd.f32 %v2989, %v2562
        %v3022 = vadd.f32 %v2990, %v2563
        %v3023 = vadd.f32 %v2991, %v2564
        %v3024 = vadd.f32 %v2992, %v2565
        %v3025 = vadd.f32 %v2993, %v2566
        %v3026 = vadd.f32 %v2994, %v2567
        %v3027 = vadd.f32 %v2995, %v2568
        %v3028 = vadd.f32 %v2996, %v2569
        %v3029 = vmax.f32 %v2997, %v2998
        %3030 = vmax.xlane.f32.xlu0 %v3029
        %v3031 = vpop.xlane.xlu0 %3030
        %v3032 = vmax.f32 %v2999, %v3000
        %3033 = vmax.xlane.f32.xlu0 %v3032
        %v3034 = vpop.xlane.xlu0 %3033
        %v3035 = vmax.f32 %v3001, %v3002
        %3036 = vmax.xlane.f32.xlu0 %v3035
        %v3037 = vpop.xlane.xlu0 %3036
        %v3038 = vmax.f32 %v3003, %v3004
        %3039 = vmax.xlane.f32.xlu0 %v3038
        %v3040 = vpop.xlane.xlu0 %3039
        %v3041 = vmax.f32 %v3005, %v3006
        %3042 = vmax.xlane.f32.xlu0 %v3041
        %v3043 = vpop.xlane.xlu0 %3042
        %v3044 = vmax.f32 %v3007, %v3008
        %3045 = vmax.xlane.f32.xlu0 %v3044
        %v3046 = vpop.xlane.xlu0 %3045
        %v3047 = vmax.f32 %v3009, %v3010
        %3048 = vmax.xlane.f32.xlu0 %v3047
        %v3049 = vpop.xlane.xlu0 %3048
        %v3050 = vmax.f32 %v3011, %v3012
        %3051 = vmax.xlane.f32.xlu0 %v3050
        %v3052 = vpop.xlane.xlu0 %3051
        %v3053 = vmax.f32 %v3013, %v3014
        %3054 = vmax.xlane.f32.xlu0 %v3053
        %v3055 = vpop.xlane.xlu0 %3054
        %v3056 = vmax.f32 %v3015, %v3016
        %3057 = vmax.xlane.f32.xlu0 %v3056
        %v3058 = vpop.xlane.xlu0 %3057
        %v3059 = vmax.f32 %v3017, %v3018
        %3060 = vmax.xlane.f32.xlu0 %v3059
        %v3061 = vpop.xlane.xlu0 %3060
        %v3062 = vmax.f32 %v3019, %v3020
        %3063 = vmax.xlane.f32.xlu0 %v3062
        %v3064 = vpop.xlane.xlu0 %3063
        %v3065 = vmax.f32 %v3021, %v3022
        %3066 = vmax.xlane.f32.xlu0 %v3065
        %v3067 = vpop.xlane.xlu0 %3066
        %v3068 = vmax.f32 %v3023, %v3024
        %3069 = vmax.xlane.f32.xlu0 %v3068
        %v3070 = vpop.xlane.xlu0 %3069
        %v3071 = vmax.f32 %v3025, %v3026
        %3072 = vmax.xlane.f32.xlu0 %v3071
        %v3073 = vpop.xlane.xlu0 %3072
        %v3074 = vmax.f32 %v3027, %v3028
        %3075 = vmax.xlane.f32.xlu0 %v3074
        %v3076 = vpop.xlane.xlu0 %3075
        %vm3077 = vcmask 31768
        %3078 = vst.msk [vmem:[#allocation2] sm:$0xff] %vm3077, %v3031
        %3079 = vst.msk [vmem:[#allocation2 + $0x8] sm:$0xff] %vm3077, %v3034
        %3080 = vst.msk [vmem:[#allocation2 + $0x10] sm:$0xff] %vm3077, %v3037
        %3081 = vst.msk [vmem:[#allocation2 + $0x18] sm:$0xff] %vm3077, %v3040
        %3082 = vst.msk [vmem:[#allocation2 + $0x20] sm:$0xff] %vm3077, %v3043
        %3083 = vst.msk [vmem:[#allocation2 + $0x28] sm:$0xff] %vm3077, %v3046
        %3084 = vst.msk [vmem:[#allocation2 + $0x30] sm:$0xff] %vm3077, %v3049
        %3085 = vst.msk [vmem:[#allocation2 + $0x38] sm:$0xff] %vm3077, %v3052
        %3086 = vst.msk [vmem:[#allocation2 + $0x40] sm:$0xff] %vm3077, %v3055
        %3087 = vst.msk [vmem:[#allocation2 + $0x48] sm:$0xff] %vm3077, %v3058
        %3088 = vst.msk [vmem:[#allocation2 + $0x50] sm:$0xff] %vm3077, %v3061
        %3089 = vst.msk [vmem:[#allocation2 + $0x58] sm:$0xff] %vm3077, %v3064
        %3090 = vst.msk [vmem:[#allocation2 + $0x60] sm:$0xff] %vm3077, %v3067
        %3091 = vst.msk [vmem:[#allocation2 + $0x68] sm:$0xff] %vm3077, %v3070
        %3092 = vst.msk [vmem:[#allocation2 + $0x70] sm:$0xff] %vm3077, %v3073
        %3093 = vst.msk [vmem:[#allocation2 + $0x78] sm:$0xff] %vm3077, %v3076
        %v3094 = vperm.slane %v1518, 4
        %v3095 = vperm.slane %v1547, 4
        %v3096 = vmul.f32 %v2216, %v3094
        %v3097 = vmul.f32 %v2217, %v3095
        %v3098 = vmul.f32 %v2218, %v3094
        %v3099 = vmul.f32 %v2219, %v3095
        %v3100 = vmul.f32 %v2220, %v3094
        %v3101 = vmul.f32 %v2221, %v3095
        %v3102 = vmul.f32 %v2222, %v3094
        %v3103 = vmul.f32 %v2223, %v3095
        %v3104 = vmul.f32 %v2224, %v3094
        %v3105 = vmul.f32 %v2225, %v3095
        %v3106 = vmul.f32 %v2226, %v3094
        %v3107 = vmul.f32 %v2227, %v3095
        %v3108 = vmul.f32 %v2228, %v3094
        %v3109 = vmul.f32 %v2229, %v3095
        %v3110 = vmul.f32 %v2230, %v3094
        %v3111 = vmul.f32 %v2231, %v3095
        %v3112 = vmul.f32 %v2232, %v3094
        %v3113 = vmul.f32 %v2233, %v3095
        %v3114 = vmul.f32 %v2234, %v3094
        %v3115 = vmul.f32 %v2235, %v3095
        %v3116 = vmul.f32 %v2236, %v3094
        %v3117 = vmul.f32 %v2237, %v3095
        %v3118 = vmul.f32 %v2238, %v3094
        %v3119 = vmul.f32 %v2239, %v3095
        %v3120 = vmul.f32 %v2240, %v3094
        %v3121 = vmul.f32 %v2241, %v3095
        %v3122 = vmul.f32 %v2242, %v3094
        %v3123 = vmul.f32 %v2243, %v3095
        %v3124 = vmul.f32 %v2244, %v3094
        %v3125 = vmul.f32 %v2245, %v3095
        %v3126 = vmul.f32 %v2246, %v3094
        %v3127 = vmul.f32 %v2247, %v3095
        %v3128 = vadd.f32 %v3096, %v2538
        %v3129 = vadd.f32 %v3097, %v2539
        %v3130 = vadd.f32 %v3098, %v2540
        %v3131 = vadd.f32 %v3099, %v2541
        %v3132 = vadd.f32 %v3100, %v2542
        %v3133 = vadd.f32 %v3101, %v2543
        %v3134 = vadd.f32 %v3102, %v2544
        %v3135 = vadd.f32 %v3103, %v2545
        %v3136 = vadd.f32 %v3104, %v2546
        %v3137 = vadd.f32 %v3105, %v2547
        %v3138 = vadd.f32 %v3106, %v2548
        %v3139 = vadd.f32 %v3107, %v2549
        %v3140 = vadd.f32 %v3108, %v2550
        %v3141 = vadd.f32 %v3109, %v2551
        %v3142 = vadd.f32 %v3110, %v2552
        %v3143 = vadd.f32 %v3111, %v2553
        %v3144 = vadd.f32 %v3112, %v2554
        %v3145 = vadd.f32 %v3113, %v2555
        %v3146 = vadd.f32 %v3114, %v2556
        %v3147 = vadd.f32 %v3115, %v2557
        %v3148 = vadd.f32 %v3116, %v2558
        %v3149 = vadd.f32 %v3117, %v2559
        %v3150 = vadd.f32 %v3118, %v2560
        %v3151 = vadd.f32 %v3119, %v2561
        %v3152 = vadd.f32 %v3120, %v2562
        %v3153 = vadd.f32 %v3121, %v2563
        %v3154 = vadd.f32 %v3122, %v2564
        %v3155 = vadd.f32 %v3123, %v2565
        %v3156 = vadd.f32 %v3124, %v2566
        %v3157 = vadd.f32 %v3125, %v2567
        %v3158 = vadd.f32 %v3126, %v2568
        %v3159 = vadd.f32 %v3127, %v2569
        %v3160 = vmax.f32 %v3128, %v3129
        %3161 = vmax.xlane.f32.xlu0 %v3160
        %v3162 = vpop.xlane.xlu0 %3161
        %v3163 = vmax.f32 %v3130, %v3131
        %3164 = vmax.xlane.f32.xlu0 %v3163
        %v3165 = vpop.xlane.xlu0 %3164
        %v3166 = vmax.f32 %v3132, %v3133
        %3167 = vmax.xlane.f32.xlu0 %v3166
        %v3168 = vpop.xlane.xlu0 %3167
        %v3169 = vmax.f32 %v3134, %v3135
        %3170 = vmax.xlane.f32.xlu0 %v3169
        %v3171 = vpop.xlane.xlu0 %3170
        %v3172 = vmax.f32 %v3136, %v3137
        %3173 = vmax.xlane.f32.xlu0 %v3172
        %v3174 = vpop.xlane.xlu0 %3173
        %v3175 = vmax.f32 %v3138, %v3139
        %3176 = vmax.xlane.f32.xlu0 %v3175
        %v3177 = vpop.xlane.xlu0 %3176
        %v3178 = vmax.f32 %v3140, %v3141
        %3179 = vmax.xlane.f32.xlu0 %v3178
        %v3180 = vpop.xlane.xlu0 %3179
        %v3181 = vmax.f32 %v3142, %v3143
        %3182 = vmax.xlane.f32.xlu0 %v3181
        %v3183 = vpop.xlane.xlu0 %3182
        %v3184 = vmax.f32 %v3144, %v3145
        %3185 = vmax.xlane.f32.xlu0 %v3184
        %v3186 = vpop.xlane.xlu0 %3185
        %v3187 = vmax.f32 %v3146, %v3147
        %3188 = vmax.xlane.f32.xlu0 %v3187
        %v3189 = vpop.xlane.xlu0 %3188
        %v3190 = vmax.f32 %v3148, %v3149
        %3191 = vmax.xlane.f32.xlu0 %v3190
        %v3192 = vpop.xlane.xlu0 %3191
        %v3193 = vmax.f32 %v3150, %v3151
        %3194 = vmax.xlane.f32.xlu0 %v3193
        %v3195 = vpop.xlane.xlu0 %3194
        %v3196 = vmax.f32 %v3152, %v3153
        %3197 = vmax.xlane.f32.xlu0 %v3196
        %v3198 = vpop.xlane.xlu0 %3197
        %v3199 = vmax.f32 %v3154, %v3155
        %3200 = vmax.xlane.f32.xlu0 %v3199
        %v3201 = vpop.xlane.xlu0 %3200
        %v3202 = vmax.f32 %v3156, %v3157
        %3203 = vmax.xlane.f32.xlu0 %v3202
        %v3204 = vpop.xlane.xlu0 %3203
        %v3205 = vmax.f32 %v3158, %v3159
        %3206 = vmax.xlane.f32.xlu0 %v3205
        %v3207 = vpop.xlane.xlu0 %3206
        %vm3208 = vcmask 39968
        %3209 = vst.msk [vmem:[#allocation2] sm:$0xff] %vm3208, %v3162
        %3210 = vst.msk [vmem:[#allocation2 + $0x8] sm:$0xff] %vm3208, %v3165
        %3211 = vst.msk [vmem:[#allocation2 + $0x10] sm:$0xff] %vm3208, %v3168
        %3212 = vst.msk [vmem:[#allocation2 + $0x18] sm:$0xff] %vm3208, %v3171
        %3213 = vst.msk [vmem:[#allocation2 + $0x20] sm:$0xff] %vm3208, %v3174
        %3214 = vst.msk [vmem:[#allocation2 + $0x28] sm:$0xff] %vm3208, %v3177
        %3215 = vst.msk [vmem:[#allocation2 + $0x30] sm:$0xff] %vm3208, %v3180
        %3216 = vst.msk [vmem:[#allocation2 + $0x38] sm:$0xff] %vm3208, %v3183
        %3217 = vst.msk [vmem:[#allocation2 + $0x40] sm:$0xff] %vm3208, %v3186
        %3218 = vst.msk [vmem:[#allocation2 + $0x48] sm:$0xff] %vm3208, %v3189
        %3219 = vst.msk [vmem:[#allocation2 + $0x50] sm:$0xff] %vm3208, %v3192
        %3220 = vst.msk [vmem:[#allocation2 + $0x58] sm:$0xff] %vm3208, %v3195
        %3221 = vst.msk [vmem:[#allocation2 + $0x60] sm:$0xff] %vm3208, %v3198
        %3222 = vst.msk [vmem:[#allocation2 + $0x68] sm:$0xff] %vm3208, %v3201
        %3223 = vst.msk [vmem:[#allocation2 + $0x70] sm:$0xff] %vm3208, %v3204
        %3224 = vst.msk [vmem:[#allocation2 + $0x78] sm:$0xff] %vm3208, %v3207
        %v3225 = vperm.slane %v1518, 5
        %v3226 = vperm.slane %v1547, 5
        %v3227 = vmul.f32 %v2216, %v3225
        %v3228 = vmul.f32 %v2217, %v3226
        %v3229 = vmul.f32 %v2218, %v3225
        %v3230 = vmul.f32 %v2219, %v3226
        %v3231 = vmul.f32 %v2220, %v3225
        %v3232 = vmul.f32 %v2221, %v3226
        %v3233 = vmul.f32 %v2222, %v3225
        %v3234 = vmul.f32 %v2223, %v3226
        %v3235 = vmul.f32 %v2224, %v3225
        %v3236 = vmul.f32 %v2225, %v3226
        %v3237 = vmul.f32 %v2226, %v3225
        %v3238 = vmul.f32 %v2227, %v3226
        %v3239 = vmul.f32 %v2228, %v3225
        %v3240 = vmul.f32 %v2229, %v3226
        %v3241 = vmul.f32 %v2230, %v3225
        %v3242 = vmul.f32 %v2231, %v3226
        %v3243 = vmul.f32 %v2232, %v3225
        %v3244 = vmul.f32 %v2233, %v3226
        %v3245 = vmul.f32 %v2234, %v3225
        %v3246 = vmul.f32 %v2235, %v3226
        %v3247 = vmul.f32 %v2236, %v3225
        %v3248 = vmul.f32 %v2237, %v3226
        %v3249 = vmul.f32 %v2238, %v3225
        %v3250 = vmul.f32 %v2239, %v3226
        %v3251 = vmul.f32 %v2240, %v3225
        %v3252 = vmul.f32 %v2241, %v3226
        %v3253 = vmul.f32 %v2242, %v3225
        %v3254 = vmul.f32 %v2243, %v3226
        %v3255 = vmul.f32 %v2244, %v3225
        %v3256 = vmul.f32 %v2245, %v3226
        %v3257 = vmul.f32 %v2246, %v3225
        %v3258 = vmul.f32 %v2247, %v3226
        %v3259 = vadd.f32 %v3227, %v2538
        %v3260 = vadd.f32 %v3228, %v2539
        %v3261 = vadd.f32 %v3229, %v2540
        %v3262 = vadd.f32 %v3230, %v2541
        %v3263 = vadd.f32 %v3231, %v2542
        %v3264 = vadd.f32 %v3232, %v2543
        %v3265 = vadd.f32 %v3233, %v2544
        %v3266 = vadd.f32 %v3234, %v2545
        %v3267 = vadd.f32 %v3235, %v2546
        %v3268 = vadd.f32 %v3236, %v2547
        %v3269 = vadd.f32 %v3237, %v2548
        %v3270 = vadd.f32 %v3238, %v2549
        %v3271 = vadd.f32 %v3239, %v2550
        %v3272 = vadd.f32 %v3240, %v2551
        %v3273 = vadd.f32 %v3241, %v2552
        %v3274 = vadd.f32 %v3242, %v2553
        %v3275 = vadd.f32 %v3243, %v2554
        %v3276 = vadd.f32 %v3244, %v2555
        %v3277 = vadd.f32 %v3245, %v2556
        %v3278 = vadd.f32 %v3246, %v2557
        %v3279 = vadd.f32 %v3247, %v2558
        %v3280 = vadd.f32 %v3248, %v2559
        %v3281 = vadd.f32 %v3249, %v2560
        %v3282 = vadd.f32 %v3250, %v2561
        %v3283 = vadd.f32 %v3251, %v2562
        %v3284 = vadd.f32 %v3252, %v2563
        %v3285 = vadd.f32 %v3253, %v2564
        %v3286 = vadd.f32 %v3254, %v2565
        %v3287 = vadd.f32 %v3255, %v2566
        %v3288 = vadd.f32 %v3256, %v2567
        %v3289 = vadd.f32 %v3257, %v2568
        %v3290 = vadd.f32 %v3258, %v2569
        %v3291 = vmax.f32 %v3259, %v3260
        %3292 = vmax.xlane.f32.xlu0 %v3291
        %v3293 = vpop.xlane.xlu0 %3292
        %v3294 = vmax.f32 %v3261, %v3262
        %3295 = vmax.xlane.f32.xlu0 %v3294
        %v3296 = vpop.xlane.xlu0 %3295
        %v3297 = vmax.f32 %v3263, %v3264
        %3298 = vmax.xlane.f32.xlu0 %v3297
        %v3299 = vpop.xlane.xlu0 %3298
        %v3300 = vmax.f32 %v3265, %v3266
        %3301 = vmax.xlane.f32.xlu0 %v3300
        %v3302 = vpop.xlane.xlu0 %3301
        %v3303 = vmax.f32 %v3267, %v3268
        %3304 = vmax.xlane.f32.xlu0 %v3303
        %v3305 = vpop.xlane.xlu0 %3304
        %v3306 = vmax.f32 %v3269, %v3270
        %3307 = vmax.xlane.f32.xlu0 %v3306
        %v3308 = vpop.xlane.xlu0 %3307
        %v3309 = vmax.f32 %v3271, %v3272
        %3310 = vmax.xlane.f32.xlu0 %v3309
        %v3311 = vpop.xlane.xlu0 %3310
        %v3312 = vmax.f32 %v3273, %v3274
        %3313 = vmax.xlane.f32.xlu0 %v3312
        %v3314 = vpop.xlane.xlu0 %3313
        %v3315 = vmax.f32 %v3275, %v3276
        %3316 = vmax.xlane.f32.xlu0 %v3315
        %v3317 = vpop.xlane.xlu0 %3316
        %v3318 = vmax.f32 %v3277, %v3278
        %3319 = vmax.xlane.f32.xlu0 %v3318
        %v3320 = vpop.xlane.xlu0 %3319
        %v3321 = vmax.f32 %v3279, %v3280
        %3322 = vmax.xlane.f32.xlu0 %v3321
        %v3323 = vpop.xlane.xlu0 %3322
        %v3324 = vmax.f32 %v3281, %v3282
        %3325 = vmax.xlane.f32.xlu0 %v3324
        %v3326 = vpop.xlane.xlu0 %3325
        %v3327 = vmax.f32 %v3283, %v3284
        %3328 = vmax.xlane.f32.xlu0 %v3327
        %v3329 = vpop.xlane.xlu0 %3328
        %v3330 = vmax.f32 %v3285, %v3286
        %3331 = vmax.xlane.f32.xlu0 %v3330
        %v3332 = vpop.xlane.xlu0 %3331
        %v3333 = vmax.f32 %v3287, %v3288
        %3334 = vmax.xlane.f32.xlu0 %v3333
        %v3335 = vpop.xlane.xlu0 %3334
        %v3336 = vmax.f32 %v3289, %v3290
        %3337 = vmax.xlane.f32.xlu0 %v3336
        %v3338 = vpop.xlane.xlu0 %3337
        %vm3339 = vcmask 48168
        %3340 = vst.msk [vmem:[#allocation2] sm:$0xff] %vm3339, %v3293
        %3341 = vst.msk [vmem:[#allocation2 + $0x8] sm:$0xff] %vm3339, %v3296
        %3342 = vst.msk [vmem:[#allocation2 + $0x10] sm:$0xff] %vm3339, %v3299
        %3343 = vst.msk [vmem:[#allocation2 + $0x18] sm:$0xff] %vm3339, %v3302
        %3344 = vst.msk [vmem:[#allocation2 + $0x20] sm:$0xff] %vm3339, %v3305
        %3345 = vst.msk [vmem:[#allocation2 + $0x28] sm:$0xff] %vm3339, %v3308
        %3346 = vst.msk [vmem:[#allocation2 + $0x30] sm:$0xff] %vm3339, %v3311
        %3347 = vst.msk [vmem:[#allocation2 + $0x38] sm:$0xff] %vm3339, %v3314
        %3348 = vst.msk [vmem:[#allocation2 + $0x40] sm:$0xff] %vm3339, %v3317
        %3349 = vst.msk [vmem:[#allocation2 + $0x48] sm:$0xff] %vm3339, %v3320
        %3350 = vst.msk [vmem:[#allocation2 + $0x50] sm:$0xff] %vm3339, %v3323
        %3351 = vst.msk [vmem:[#allocation2 + $0x58] sm:$0xff] %vm3339, %v3326
        %3352 = vst.msk [vmem:[#allocation2 + $0x60] sm:$0xff] %vm3339, %v3329
        %3353 = vst.msk [vmem:[#allocation2 + $0x68] sm:$0xff] %vm3339, %v3332
        %3354 = vst.msk [vmem:[#allocation2 + $0x70] sm:$0xff] %vm3339, %v3335
        %3355 = vst.msk [vmem:[#allocation2 + $0x78] sm:$0xff] %vm3339, %v3338
        %v3356 = vperm.slane %v1518, 6
        %v3357 = vperm.slane %v1547, 6
        %v3358 = vmul.f32 %v2216, %v3356
        %v3359 = vmul.f32 %v2217, %v3357
        %v3360 = vmul.f32 %v2218, %v3356
        %v3361 = vmul.f32 %v2219, %v3357
        %v3362 = vmul.f32 %v2220, %v3356
        %v3363 = vmul.f32 %v2221, %v3357
        %v3364 = vmul.f32 %v2222, %v3356
        %v3365 = vmul.f32 %v2223, %v3357
        %v3366 = vmul.f32 %v2224, %v3356
        %v3367 = vmul.f32 %v2225, %v3357
        %v3368 = vmul.f32 %v2226, %v3356
        %v3369 = vmul.f32 %v2227, %v3357
        %v3370 = vmul.f32 %v2228, %v3356
        %v3371 = vmul.f32 %v2229, %v3357
        %v3372 = vmul.f32 %v2230, %v3356
        %v3373 = vmul.f32 %v2231, %v3357
        %v3374 = vmul.f32 %v2232, %v3356
        %v3375 = vmul.f32 %v2233, %v3357
        %v3376 = vmul.f32 %v2234, %v3356
        %v3377 = vmul.f32 %v2235, %v3357
        %v3378 = vmul.f32 %v2236, %v3356
        %v3379 = vmul.f32 %v2237, %v3357
        %v3380 = vmul.f32 %v2238, %v3356
        %v3381 = vmul.f32 %v2239, %v3357
        %v3382 = vmul.f32 %v2240, %v3356
        %v3383 = vmul.f32 %v2241, %v3357
        %v3384 = vmul.f32 %v2242, %v3356
        %v3385 = vmul.f32 %v2243, %v3357
        %v3386 = vmul.f32 %v2244, %v3356
        %v3387 = vmul.f32 %v2245, %v3357
        %v3388 = vmul.f32 %v2246, %v3356
        %v3389 = vmul.f32 %v2247, %v3357
        %v3390 = vadd.f32 %v3358, %v2538
        %v3391 = vadd.f32 %v3359, %v2539
        %v3392 = vadd.f32 %v3360, %v2540
        %v3393 = vadd.f32 %v3361, %v2541
        %v3394 = vadd.f32 %v3362, %v2542
        %v3395 = vadd.f32 %v3363, %v2543
        %v3396 = vadd.f32 %v3364, %v2544
        %v3397 = vadd.f32 %v3365, %v2545
        %v3398 = vadd.f32 %v3366, %v2546
        %v3399 = vadd.f32 %v3367, %v2547
        %v3400 = vadd.f32 %v3368, %v2548
        %v3401 = vadd.f32 %v3369, %v2549
        %v3402 = vadd.f32 %v3370, %v2550
        %v3403 = vadd.f32 %v3371, %v2551
        %v3404 = vadd.f32 %v3372, %v2552
        %v3405 = vadd.f32 %v3373, %v2553
        %v3406 = vadd.f32 %v3374, %v2554
        %v3407 = vadd.f32 %v3375, %v2555
        %v3408 = vadd.f32 %v3376, %v2556
        %v3409 = vadd.f32 %v3377, %v2557
        %v3410 = vadd.f32 %v3378, %v2558
        %v3411 = vadd.f32 %v3379, %v2559
        %v3412 = vadd.f32 %v3380, %v2560
        %v3413 = vadd.f32 %v3381, %v2561
        %v3414 = vadd.f32 %v3382, %v2562
        %v3415 = vadd.f32 %v3383, %v2563
        %v3416 = vadd.f32 %v3384, %v2564
        %v3417 = vadd.f32 %v3385, %v2565
        %v3418 = vadd.f32 %v3386, %v2566
        %v3419 = vadd.f32 %v3387, %v2567
        %v3420 = vadd.f32 %v3388, %v2568
        %v3421 = vadd.f32 %v3389, %v2569
        %v3422 = vmax.f32 %v3390, %v3391
        %3423 = vmax.xlane.f32.xlu0 %v3422
        %v3424 = vpop.xlane.xlu0 %3423
        %v3425 = vmax.f32 %v3392, %v3393
        %3426 = vmax.xlane.f32.xlu0 %v3425
        %v3427 = vpop.xlane.xlu0 %3426
        %v3428 = vmax.f32 %v3394, %v3395
        %3429 = vmax.xlane.f32.xlu0 %v3428
        %v3430 = vpop.xlane.xlu0 %3429
        %v3431 = vmax.f32 %v3396, %v3397
        %3432 = vmax.xlane.f32.xlu0 %v3431
        %v3433 = vpop.xlane.xlu0 %3432
        %v3434 = vmax.f32 %v3398, %v3399
        %3435 = vmax.xlane.f32.xlu0 %v3434
        %v3436 = vpop.xlane.xlu0 %3435
        %v3437 = vmax.f32 %v3400, %v3401
        %3438 = vmax.xlane.f32.xlu0 %v3437
        %v3439 = vpop.xlane.xlu0 %3438
        %v3440 = vmax.f32 %v3402, %v3403
        %3441 = vmax.xlane.f32.xlu0 %v3440
        %v3442 = vpop.xlane.xlu0 %3441
        %v3443 = vmax.f32 %v3404, %v3405
        %3444 = vmax.xlane.f32.xlu0 %v3443
        %v3445 = vpop.xlane.xlu0 %3444
        %v3446 = vmax.f32 %v3406, %v3407
        %3447 = vmax.xlane.f32.xlu0 %v3446
        %v3448 = vpop.xlane.xlu0 %3447
        %v3449 = vmax.f32 %v3408, %v3409
        %3450 = vmax.xlane.f32.xlu0 %v3449
        %v3451 = vpop.xlane.xlu0 %3450
        %v3452 = vmax.f32 %v3410, %v3411
        %3453 = vmax.xlane.f32.xlu0 %v3452
        %v3454 = vpop.xlane.xlu0 %3453
        %v3455 = vmax.f32 %v3412, %v3413
        %3456 = vmax.xlane.f32.xlu0 %v3455
        %v3457 = vpop.xlane.xlu0 %3456
        %v3458 = vmax.f32 %v3414, %v3415
        %3459 = vmax.xlane.f32.xlu0 %v3458
        %v3460 = vpop.xlane.xlu0 %3459
        %v3461 = vmax.f32 %v3416, %v3417
        %3462 = vmax.xlane.f32.xlu0 %v3461
        %v3463 = vpop.xlane.xlu0 %3462
        %v3464 = vmax.f32 %v3418, %v3419
        %3465 = vmax.xlane.f32.xlu0 %v3464
        %v3466 = vpop.xlane.xlu0 %3465
        %v3467 = vmax.f32 %v3420, %v3421
        %3468 = vmax.xlane.f32.xlu0 %v3467
        %v3469 = vpop.xlane.xlu0 %3468
        %vm3470 = vcmask 56368
        %3471 = vst.msk [vmem:[#allocation2] sm:$0xff] %vm3470, %v3424
        %3472 = vst.msk [vmem:[#allocation2 + $0x8] sm:$0xff] %vm3470, %v3427
        %3473 = vst.msk [vmem:[#allocation2 + $0x10] sm:$0xff] %vm3470, %v3430
        %3474 = vst.msk [vmem:[#allocation2 + $0x18] sm:$0xff] %vm3470, %v3433
        %3475 = vst.msk [vmem:[#allocation2 + $0x20] sm:$0xff] %vm3470, %v3436
        %3476 = vst.msk [vmem:[#allocation2 + $0x28] sm:$0xff] %vm3470, %v3439
        %3477 = vst.msk [vmem:[#allocation2 + $0x30] sm:$0xff] %vm3470, %v3442
        %3478 = vst.msk [vmem:[#allocation2 + $0x38] sm:$0xff] %vm3470, %v3445
        %3479 = vst.msk [vmem:[#allocation2 + $0x40] sm:$0xff] %vm3470, %v3448
        %3480 = vst.msk [vmem:[#allocation2 + $0x48] sm:$0xff] %vm3470, %v3451
        %3481 = vst.msk [vmem:[#allocation2 + $0x50] sm:$0xff] %vm3470, %v3454
        %3482 = vst.msk [vmem:[#allocation2 + $0x58] sm:$0xff] %vm3470, %v3457
        %3483 = vst.msk [vmem:[#allocation2 + $0x60] sm:$0xff] %vm3470, %v3460
        %3484 = vst.msk [vmem:[#allocation2 + $0x68] sm:$0xff] %vm3470, %v3463
        %3485 = vst.msk [vmem:[#allocation2 + $0x70] sm:$0xff] %vm3470, %v3466
        %3486 = vst.msk [vmem:[#allocation2 + $0x78] sm:$0xff] %vm3470, %v3469
        %v3487 = vperm.slane %v1518, 7
        %v3488 = vperm.slane %v1547, 7
        %v3489 = vmul.f32 %v2216, %v3487
        %v3490 = vmul.f32 %v2217, %v3488
        %v3491 = vmul.f32 %v2218, %v3487
        %v3492 = vmul.f32 %v2219, %v3488
        %v3493 = vmul.f32 %v2220, %v3487
        %v3494 = vmul.f32 %v2221, %v3488
        %v3495 = vmul.f32 %v2222, %v3487
        %v3496 = vmul.f32 %v2223, %v3488
        %v3497 = vmul.f32 %v2224, %v3487
        %v3498 = vmul.f32 %v2225, %v3488
        %v3499 = vmul.f32 %v2226, %v3487
        %v3500 = vmul.f32 %v2227, %v3488
        %v3501 = vmul.f32 %v2228, %v3487
        %v3502 = vmul.f32 %v2229, %v3488
        %v3503 = vmul.f32 %v2230, %v3487
        %v3504 = vmul.f32 %v2231, %v3488
        %v3505 = vmul.f32 %v2232, %v3487
        %v3506 = vmul.f32 %v2233, %v3488
        %v3507 = vmul.f32 %v2234, %v3487
        %v3508 = vmul.f32 %v2235, %v3488
        %v3509 = vmul.f32 %v2236, %v3487
        %v3510 = vmul.f32 %v2237, %v3488
        %v3511 = vmul.f32 %v2238, %v3487
        %v3512 = vmul.f32 %v2239, %v3488
        %v3513 = vmul.f32 %v2240, %v3487
        %v3514 = vmul.f32 %v2241, %v3488
        %v3515 = vmul.f32 %v2242, %v3487
        %v3516 = vmul.f32 %v2243, %v3488
        %v3517 = vmul.f32 %v2244, %v3487
        %v3518 = vmul.f32 %v2245, %v3488
        %v3519 = vmul.f32 %v2246, %v3487
        %v3520 = vmul.f32 %v2247, %v3488
        %v3521 = vadd.f32 %v3489, %v2538
        %v3522 = vadd.f32 %v3490, %v2539
        %v3523 = vadd.f32 %v3491, %v2540
        %v3524 = vadd.f32 %v3492, %v2541
        %v3525 = vadd.f32 %v3493, %v2542
        %v3526 = vadd.f32 %v3494, %v2543
        %v3527 = vadd.f32 %v3495, %v2544
        %v3528 = vadd.f32 %v3496, %v2545
        %v3529 = vadd.f32 %v3497, %v2546
        %v3530 = vadd.f32 %v3498, %v2547
        %v3531 = vadd.f32 %v3499, %v2548
        %v3532 = vadd.f32 %v3500, %v2549
        %v3533 = vadd.f32 %v3501, %v2550
        %v3534 = vadd.f32 %v3502, %v2551
        %v3535 = vadd.f32 %v3503, %v2552
        %v3536 = vadd.f32 %v3504, %v2553
        %v3537 = vadd.f32 %v3505, %v2554
        %v3538 = vadd.f32 %v3506, %v2555
        %v3539 = vadd.f32 %v3507, %v2556
        %v3540 = vadd.f32 %v3508, %v2557
        %v3541 = vadd.f32 %v3509, %v2558
        %v3542 = vadd.f32 %v3510, %v2559
        %v3543 = vadd.f32 %v3511, %v2560
        %v3544 = vadd.f32 %v3512, %v2561
        %v3545 = vadd.f32 %v3513, %v2562
        %v3546 = vadd.f32 %v3514, %v2563
        %v3547 = vadd.f32 %v3515, %v2564
        %v3548 = vadd.f32 %v3516, %v2565
        %v3549 = vadd.f32 %v3517, %v2566
        %v3550 = vadd.f32 %v3518, %v2567
        %v3551 = vadd.f32 %v3519, %v2568
        %v3552 = vadd.f32 %v3520, %v2569
        %v3553 = vmax.f32 %v3521, %v3522
        %3554 = vmax.xlane.f32.xlu0 %v3553
        %v3555 = vpop.xlane.xlu0 %3554
        %v3556 = vmax.f32 %v3523, %v3524
        %3557 = vmax.xlane.f32.xlu0 %v3556
        %v3558 = vpop.xlane.xlu0 %3557
        %v3559 = vmax.f32 %v3525, %v3526
        %3560 = vmax.xlane.f32.xlu0 %v3559
        %v3561 = vpop.xlane.xlu0 %3560
        %v3562 = vmax.f32 %v3527, %v3528
        %3563 = vmax.xlane.f32.xlu0 %v3562
        %v3564 = vpop.xlane.xlu0 %3563
        %v3565 = vmax.f32 %v3529, %v3530
        %3566 = vmax.xlane.f32.xlu0 %v3565
        %v3567 = vpop.xlane.xlu0 %3566
        %v3568 = vmax.f32 %v3531, %v3532
        %3569 = vmax.xlane.f32.xlu0 %v3568
        %v3570 = vpop.xlane.xlu0 %3569
        %v3571 = vmax.f32 %v3533, %v3534
        %3572 = vmax.xlane.f32.xlu0 %v3571
        %v3573 = vpop.xlane.xlu0 %3572
        %v3574 = vmax.f32 %v3535, %v3536
        %3575 = vmax.xlane.f32.xlu0 %v3574
        %v3576 = vpop.xlane.xlu0 %3575
        %v3577 = vmax.f32 %v3537, %v3538
        %3578 = vmax.xlane.f32.xlu0 %v3577
        %v3579 = vpop.xlane.xlu0 %3578
        %v3580 = vmax.f32 %v3539, %v3540
        %3581 = vmax.xlane.f32.xlu0 %v3580
        %v3582 = vpop.xlane.xlu0 %3581
        %v3583 = vmax.f32 %v3541, %v3542
        %3584 = vmax.xlane.f32.xlu0 %v3583
        %v3585 = vpop.xlane.xlu0 %3584
        %v3586 = vmax.f32 %v3543, %v3544
        %3587 = vmax.xlane.f32.xlu0 %v3586
        %v3588 = vpop.xlane.xlu0 %3587
        %v3589 = vmax.f32 %v3545, %v3546
        %3590 = vmax.xlane.f32.xlu0 %v3589
        %v3591 = vpop.xlane.xlu0 %3590
        %v3592 = vmax.f32 %v3547, %v3548
        %3593 = vmax.xlane.f32.xlu0 %v3592
        %v3594 = vpop.xlane.xlu0 %3593
        %v3595 = vmax.f32 %v3549, %v3550
        %3596 = vmax.xlane.f32.xlu0 %v3595
        %v3597 = vpop.xlane.xlu0 %3596
        %v3598 = vmax.f32 %v3551, %v3552
        %3599 = vmax.xlane.f32.xlu0 %v3598
        %v3600 = vpop.xlane.xlu0 %3599
        %vm3601 = vcmask 64568
        %3602 = vst.msk [vmem:[#allocation2] sm:$0xff] %vm3601, %v3555
        %3603 = vst.msk [vmem:[#allocation2 + $0x8] sm:$0xff] %vm3601, %v3558
        %3604 = vst.msk [vmem:[#allocation2 + $0x10] sm:$0xff] %vm3601, %v3561
        %3605 = vst.msk [vmem:[#allocation2 + $0x18] sm:$0xff] %vm3601, %v3564
        %3606 = vst.msk [vmem:[#allocation2 + $0x20] sm:$0xff] %vm3601, %v3567
        %3607 = vst.msk [vmem:[#allocation2 + $0x28] sm:$0xff] %vm3601, %v3570
        %3608 = vst.msk [vmem:[#allocation2 + $0x30] sm:$0xff] %vm3601, %v3573
        %3609 = vst.msk [vmem:[#allocation2 + $0x38] sm:$0xff] %vm3601, %v3576
        %3610 = vst.msk [vmem:[#allocation2 + $0x40] sm:$0xff] %vm3601, %v3579
        %3611 = vst.msk [vmem:[#allocation2 + $0x48] sm:$0xff] %vm3601, %v3582
        %3612 = vst.msk [vmem:[#allocation2 + $0x50] sm:$0xff] %vm3601, %v3585
        %3613 = vst.msk [vmem:[#allocation2 + $0x58] sm:$0xff] %vm3601, %v3588
        %3614 = vst.msk [vmem:[#allocation2 + $0x60] sm:$0xff] %vm3601, %v3591
        %3615 = vst.msk [vmem:[#allocation2 + $0x68] sm:$0xff] %vm3601, %v3594
        %3616 = vst.msk [vmem:[#allocation2 + $0x70] sm:$0xff] %vm3601, %v3597
        %3617 = vst.msk [vmem:[#allocation2 + $0x78] sm:$0xff] %vm3601, %v3600
        %v3618 = vperm.slane %v1521, 0
        %v3619 = vperm.slane %v1550, 0
        %v3620 = vmul.f32 %v2216, %v3618
        %v3621 = vmul.f32 %v2217, %v3619
        %v3622 = vmul.f32 %v2218, %v3618
        %v3623 = vmul.f32 %v2219, %v3619
        %v3624 = vmul.f32 %v2220, %v3618
        %v3625 = vmul.f32 %v2221, %v3619
        %v3626 = vmul.f32 %v2222, %v3618
        %v3627 = vmul.f32 %v2223, %v3619
        %v3628 = vmul.f32 %v2224, %v3618
        %v3629 = vmul.f32 %v2225, %v3619
        %v3630 = vmul.f32 %v2226, %v3618
        %v3631 = vmul.f32 %v2227, %v3619
        %v3632 = vmul.f32 %v2228, %v3618
        %v3633 = vmul.f32 %v2229, %v3619
        %v3634 = vmul.f32 %v2230, %v3618
        %v3635 = vmul.f32 %v2231, %v3619
        %v3636 = vmul.f32 %v2232, %v3618
        %v3637 = vmul.f32 %v2233, %v3619
        %v3638 = vmul.f32 %v2234, %v3618
        %v3639 = vmul.f32 %v2235, %v3619
        %v3640 = vmul.f32 %v2236, %v3618
        %v3641 = vmul.f32 %v2237, %v3619
        %v3642 = vmul.f32 %v2238, %v3618
        %v3643 = vmul.f32 %v2239, %v3619
        %v3644 = vmul.f32 %v2240, %v3618
        %v3645 = vmul.f32 %v2241, %v3619
        %v3646 = vmul.f32 %v2242, %v3618
        %v3647 = vmul.f32 %v2243, %v3619
        %v3648 = vmul.f32 %v2244, %v3618
        %v3649 = vmul.f32 %v2245, %v3619
        %v3650 = vmul.f32 %v2246, %v3618
        %v3651 = vmul.f32 %v2247, %v3619
        %v3652 = vadd.f32 %v3620, %v2538
        %v3653 = vadd.f32 %v3621, %v2539
        %v3654 = vadd.f32 %v3622, %v2540
        %v3655 = vadd.f32 %v3623, %v2541
        %v3656 = vadd.f32 %v3624, %v2542
        %v3657 = vadd.f32 %v3625, %v2543
        %v3658 = vadd.f32 %v3626, %v2544
        %v3659 = vadd.f32 %v3627, %v2545
        %v3660 = vadd.f32 %v3628, %v2546
        %v3661 = vadd.f32 %v3629, %v2547
        %v3662 = vadd.f32 %v3630, %v2548
        %v3663 = vadd.f32 %v3631, %v2549
        %v3664 = vadd.f32 %v3632, %v2550
        %v3665 = vadd.f32 %v3633, %v2551
        %v3666 = vadd.f32 %v3634, %v2552
        %v3667 = vadd.f32 %v3635, %v2553
        %v3668 = vadd.f32 %v3636, %v2554
        %v3669 = vadd.f32 %v3637, %v2555
        %v3670 = vadd.f32 %v3638, %v2556
        %v3671 = vadd.f32 %v3639, %v2557
        %v3672 = vadd.f32 %v3640, %v2558
        %v3673 = vadd.f32 %v3641, %v2559
        %v3674 = vadd.f32 %v3642, %v2560
        %v3675 = vadd.f32 %v3643, %v2561
        %v3676 = vadd.f32 %v3644, %v2562
        %v3677 = vadd.f32 %v3645, %v2563
        %v3678 = vadd.f32 %v3646, %v2564
        %v3679 = vadd.f32 %v3647, %v2565
        %v3680 = vadd.f32 %v3648, %v2566
        %v3681 = vadd.f32 %v3649, %v2567
        %v3682 = vadd.f32 %v3650, %v2568
        %v3683 = vadd.f32 %v3651, %v2569
        %v3684 = vmax.f32 %v3652, %v3653
        %3685 = vmax.xlane.f32.xlu0 %v3684
        %v3686 = vpop.xlane.xlu0 %3685
        %v3687 = vmax.f32 %v3654, %v3655
        %3688 = vmax.xlane.f32.xlu0 %v3687
        %v3689 = vpop.xlane.xlu0 %3688
        %v3690 = vmax.f32 %v3656, %v3657
        %3691 = vmax.xlane.f32.xlu0 %v3690
        %v3692 = vpop.xlane.xlu0 %3691
        %v3693 = vmax.f32 %v3658, %v3659
        %3694 = vmax.xlane.f32.xlu0 %v3693
        %v3695 = vpop.xlane.xlu0 %3694
        %v3696 = vmax.f32 %v3660, %v3661
        %3697 = vmax.xlane.f32.xlu0 %v3696
        %v3698 = vpop.xlane.xlu0 %3697
        %v3699 = vmax.f32 %v3662, %v3663
        %3700 = vmax.xlane.f32.xlu0 %v3699
        %v3701 = vpop.xlane.xlu0 %3700
        %v3702 = vmax.f32 %v3664, %v3665
        %3703 = vmax.xlane.f32.xlu0 %v3702
        %v3704 = vpop.xlane.xlu0 %3703
        %v3705 = vmax.f32 %v3666, %v3667
        %3706 = vmax.xlane.f32.xlu0 %v3705
        %v3707 = vpop.xlane.xlu0 %3706
        %v3708 = vmax.f32 %v3668, %v3669
        %3709 = vmax.xlane.f32.xlu0 %v3708
        %v3710 = vpop.xlane.xlu0 %3709
        %v3711 = vmax.f32 %v3670, %v3671
        %3712 = vmax.xlane.f32.xlu0 %v3711
        %v3713 = vpop.xlane.xlu0 %3712
        %v3714 = vmax.f32 %v3672, %v3673
        %3715 = vmax.xlane.f32.xlu0 %v3714
        %v3716 = vpop.xlane.xlu0 %3715
        %v3717 = vmax.f32 %v3674, %v3675
        %3718 = vmax.xlane.f32.xlu0 %v3717
        %v3719 = vpop.xlane.xlu0 %3718
        %v3720 = vmax.f32 %v3676, %v3677
        %3721 = vmax.xlane.f32.xlu0 %v3720
        %v3722 = vpop.xlane.xlu0 %3721
        %v3723 = vmax.f32 %v3678, %v3679
        %3724 = vmax.xlane.f32.xlu0 %v3723
        %v3725 = vpop.xlane.xlu0 %3724
        %v3726 = vmax.f32 %v3680, %v3681
        %3727 = vmax.xlane.f32.xlu0 %v3726
        %v3728 = vpop.xlane.xlu0 %3727
        %v3729 = vmax.f32 %v3682, %v3683
        %3730 = vmax.xlane.f32.xlu0 %v3729
        %v3731 = vpop.xlane.xlu0 %3730
        %vm3732 = vcmask 72768
        %3733 = vst.msk [vmem:[#allocation2] sm:$0xff] %vm3732, %v3686
        %3734 = vst.msk [vmem:[#allocation2 + $0x8] sm:$0xff] %vm3732, %v3689
        %3735 = vst.msk [vmem:[#allocation2 + $0x10] sm:$0xff] %vm3732, %v3692
        %3736 = vst.msk [vmem:[#allocation2 + $0x18] sm:$0xff] %vm3732, %v3695
        %3737 = vst.msk [vmem:[#allocation2 + $0x20] sm:$0xff] %vm3732, %v3698
        %3738 = vst.msk [vmem:[#allocation2 + $0x28] sm:$0xff] %vm3732, %v3701
        %3739 = vst.msk [vmem:[#allocation2 + $0x30] sm:$0xff] %vm3732, %v3704
        %3740 = vst.msk [vmem:[#allocation2 + $0x38] sm:$0xff] %vm3732, %v3707
        %3741 = vst.msk [vmem:[#allocation2 + $0x40] sm:$0xff] %vm3732, %v3710
        %3742 = vst.msk [vmem:[#allocation2 + $0x48] sm:$0xff] %vm3732, %v3713
        %3743 = vst.msk [vmem:[#allocation2 + $0x50] sm:$0xff] %vm3732, %v3716
        %3744 = vst.msk [vmem:[#allocation2 + $0x58] sm:$0xff] %vm3732, %v3719
        %3745 = vst.msk [vmem:[#allocation2 + $0x60] sm:$0xff] %vm3732, %v3722
        %3746 = vst.msk [vmem:[#allocation2 + $0x68] sm:$0xff] %vm3732, %v3725
        %3747 = vst.msk [vmem:[#allocation2 + $0x70] sm:$0xff] %vm3732, %v3728
        %3748 = vst.msk [vmem:[#allocation2 + $0x78] sm:$0xff] %vm3732, %v3731
        %v3749 = vperm.slane %v1521, 1
        %v3750 = vperm.slane %v1550, 1
        %v3751 = vmul.f32 %v2216, %v3749
        %v3752 = vmul.f32 %v2217, %v3750
        %v3753 = vmul.f32 %v2218, %v3749
        %v3754 = vmul.f32 %v2219, %v3750
        %v3755 = vmul.f32 %v2220, %v3749
        %v3756 = vmul.f32 %v2221, %v3750
        %v3757 = vmul.f32 %v2222, %v3749
        %v3758 = vmul.f32 %v2223, %v3750
        %v3759 = vmul.f32 %v2224, %v3749
        %v3760 = vmul.f32 %v2225, %v3750
        %v3761 = vmul.f32 %v2226, %v3749
        %v3762 = vmul.f32 %v2227, %v3750
        %v3763 = vmul.f32 %v2228, %v3749
        %v3764 = vmul.f32 %v2229, %v3750
        %v3765 = vmul.f32 %v2230, %v3749
        %v3766 = vmul.f32 %v2231, %v3750
        %v3767 = vmul.f32 %v2232, %v3749
        %v3768 = vmul.f32 %v2233, %v3750
        %v3769 = vmul.f32 %v2234, %v3749
        %v3770 = vmul.f32 %v2235, %v3750
        %v3771 = vmul.f32 %v2236, %v3749
        %v3772 = vmul.f32 %v2237, %v3750
        %v3773 = vmul.f32 %v2238, %v3749
        %v3774 = vmul.f32 %v2239, %v3750
        %v3775 = vmul.f32 %v2240, %v3749
        %v3776 = vmul.f32 %v2241, %v3750
        %v3777 = vmul.f32 %v2242, %v3749
        %v3778 = vmul.f32 %v2243, %v3750
        %v3779 = vmul.f32 %v2244, %v3749
        %v3780 = vmul.f32 %v2245, %v3750
        %v3781 = vmul.f32 %v2246, %v3749
        %v3782 = vmul.f32 %v2247, %v3750
        %v3783 = vadd.f32 %v3751, %v2538
        %v3784 = vadd.f32 %v3752, %v2539
        %v3785 = vadd.f32 %v3753, %v2540
        %v3786 = vadd.f32 %v3754, %v2541
        %v3787 = vadd.f32 %v3755, %v2542
        %v3788 = vadd.f32 %v3756, %v2543
        %v3789 = vadd.f32 %v3757, %v2544
        %v3790 = vadd.f32 %v3758, %v2545
        %v3791 = vadd.f32 %v3759, %v2546
        %v3792 = vadd.f32 %v3760, %v2547
        %v3793 = vadd.f32 %v3761, %v2548
        %v3794 = vadd.f32 %v3762, %v2549
        %v3795 = vadd.f32 %v3763, %v2550
        %v3796 = vadd.f32 %v3764, %v2551
        %v3797 = vadd.f32 %v3765, %v2552
        %v3798 = vadd.f32 %v3766, %v2553
        %v3799 = vadd.f32 %v3767, %v2554
        %v3800 = vadd.f32 %v3768, %v2555
        %v3801 = vadd.f32 %v3769, %v2556
        %v3802 = vadd.f32 %v3770, %v2557
        %v3803 = vadd.f32 %v3771, %v2558
        %v3804 = vadd.f32 %v3772, %v2559
        %v3805 = vadd.f32 %v3773, %v2560
        %v3806 = vadd.f32 %v3774, %v2561
        %v3807 = vadd.f32 %v3775, %v2562
        %v3808 = vadd.f32 %v3776, %v2563
        %v3809 = vadd.f32 %v3777, %v2564
        %v3810 = vadd.f32 %v3778, %v2565
        %v3811 = vadd.f32 %v3779, %v2566
        %v3812 = vadd.f32 %v3780, %v2567
        %v3813 = vadd.f32 %v3781, %v2568
        %v3814 = vadd.f32 %v3782, %v2569
        %v3815 = vmax.f32 %v3783, %v3784
        %3816 = vmax.xlane.f32.xlu0 %v3815
        %v3817 = vpop.xlane.xlu0 %3816
        %v3818 = vmax.f32 %v3785, %v3786
        %3819 = vmax.xlane.f32.xlu0 %v3818
        %v3820 = vpop.xlane.xlu0 %3819
        %v3821 = vmax.f32 %v3787, %v3788
        %3822 = vmax.xlane.f32.xlu0 %v3821
        %v3823 = vpop.xlane.xlu0 %3822
        %v3824 = vmax.f32 %v3789, %v3790
        %3825 = vmax.xlane.f32.xlu0 %v3824
        %v3826 = vpop.xlane.xlu0 %3825
        %v3827 = vmax.f32 %v3791, %v3792
        %3828 = vmax.xlane.f32.xlu0 %v3827
        %v3829 = vpop.xlane.xlu0 %3828
        %v3830 = vmax.f32 %v3793, %v3794
        %3831 = vmax.xlane.f32.xlu0 %v3830
        %v3832 = vpop.xlane.xlu0 %3831
        %v3833 = vmax.f32 %v3795, %v3796
        %3834 = vmax.xlane.f32.xlu0 %v3833
        %v3835 = vpop.xlane.xlu0 %3834
        %v3836 = vmax.f32 %v3797, %v3798
        %3837 = vmax.xlane.f32.xlu0 %v3836
        %v3838 = vpop.xlane.xlu0 %3837
        %v3839 = vmax.f32 %v3799, %v3800
        %3840 = vmax.xlane.f32.xlu0 %v3839
        %v3841 = vpop.xlane.xlu0 %3840
        %v3842 = vmax.f32 %v3801, %v3802
        %3843 = vmax.xlane.f32.xlu0 %v3842
        %v3844 = vpop.xlane.xlu0 %3843
        %v3845 = vmax.f32 %v3803, %v3804
        %3846 = vmax.xlane.f32.xlu0 %v3845
        %v3847 = vpop.xlane.xlu0 %3846
        %v3848 = vmax.f32 %v3805, %v3806
        %3849 = vmax.xlane.f32.xlu0 %v3848
        %v3850 = vpop.xlane.xlu0 %3849
        %v3851 = vmax.f32 %v3807, %v3808
        %3852 = vmax.xlane.f32.xlu0 %v3851
        %v3853 = vpop.xlane.xlu0 %3852
        %v3854 = vmax.f32 %v3809, %v3810
        %3855 = vmax.xlane.f32.xlu0 %v3854
        %v3856 = vpop.xlane.xlu0 %3855
        %v3857 = vmax.f32 %v3811, %v3812
        %3858 = vmax.xlane.f32.xlu0 %v3857
        %v3859 = vpop.xlane.xlu0 %3858
        %v3860 = vmax.f32 %v3813, %v3814
        %3861 = vmax.xlane.f32.xlu0 %v3860
        %v3862 = vpop.xlane.xlu0 %3861
        %vm3863 = vcmask 80968
        %3864 = vst.msk [vmem:[#allocation2] sm:$0xff] %vm3863, %v3817
        %3865 = vst.msk [vmem:[#allocation2 + $0x8] sm:$0xff] %vm3863, %v3820
        %3866 = vst.msk [vmem:[#allocation2 + $0x10] sm:$0xff] %vm3863, %v3823
        %3867 = vst.msk [vmem:[#allocation2 + $0x18] sm:$0xff] %vm3863, %v3826
        %3868 = vst.msk [vmem:[#allocation2 + $0x20] sm:$0xff] %vm3863, %v3829
        %3869 = vst.msk [vmem:[#allocation2 + $0x28] sm:$0xff] %vm3863, %v3832
        %3870 = vst.msk [vmem:[#allocation2 + $0x30] sm:$0xff] %vm3863, %v3835
        %3871 = vst.msk [vmem:[#allocation2 + $0x38] sm:$0xff] %vm3863, %v3838
        %3872 = vst.msk [vmem:[#allocation2 + $0x40] sm:$0xff] %vm3863, %v3841
        %3873 = vst.msk [vmem:[#allocation2 + $0x48] sm:$0xff] %vm3863, %v3844
        %3874 = vst.msk [vmem:[#allocation2 + $0x50] sm:$0xff] %vm3863, %v3847
        %3875 = vst.msk [vmem:[#allocation2 + $0x58] sm:$0xff] %vm3863, %v3850
        %3876 = vst.msk [vmem:[#allocation2 + $0x60] sm:$0xff] %vm3863, %v3853
        %3877 = vst.msk [vmem:[#allocation2 + $0x68] sm:$0xff] %vm3863, %v3856
        %3878 = vst.msk [vmem:[#allocation2 + $0x70] sm:$0xff] %vm3863, %v3859
        %3879 = vst.msk [vmem:[#allocation2 + $0x78] sm:$0xff] %vm3863, %v3862
        %v3880 = vperm.slane %v1521, 2
        %v3881 = vperm.slane %v1550, 2
        %v3882 = vmul.f32 %v2216, %v3880
        %v3883 = vmul.f32 %v2217, %v3881
        %v3884 = vmul.f32 %v2218, %v3880
        %v3885 = vmul.f32 %v2219, %v3881
        %v3886 = vmul.f32 %v2220, %v3880
        %v3887 = vmul.f32 %v2221, %v3881
        %v3888 = vmul.f32 %v2222, %v3880
        %v3889 = vmul.f32 %v2223, %v3881
        %v3890 = vmul.f32 %v2224, %v3880
        %v3891 = vmul.f32 %v2225, %v3881
        %v3892 = vmul.f32 %v2226, %v3880
        %v3893 = vmul.f32 %v2227, %v3881
        %v3894 = vmul.f32 %v2228, %v3880
        %v3895 = vmul.f32 %v2229, %v3881
        %v3896 = vmul.f32 %v2230, %v3880
        %v3897 = vmul.f32 %v2231, %v3881
        %v3898 = vmul.f32 %v2232, %v3880
        %v3899 = vmul.f32 %v2233, %v3881
        %v3900 = vmul.f32 %v2234, %v3880
        %v3901 = vmul.f32 %v2235, %v3881
        %v3902 = vmul.f32 %v2236, %v3880
        %v3903 = vmul.f32 %v2237, %v3881
        %v3904 = vmul.f32 %v2238, %v3880
        %v3905 = vmul.f32 %v2239, %v3881
        %v3906 = vmul.f32 %v2240, %v3880
        %v3907 = vmul.f32 %v2241, %v3881
        %v3908 = vmul.f32 %v2242, %v3880
        %v3909 = vmul.f32 %v2243, %v3881
        %v3910 = vmul.f32 %v2244, %v3880
        %v3911 = vmul.f32 %v2245, %v3881
        %v3912 = vmul.f32 %v2246, %v3880
        %v3913 = vmul.f32 %v2247, %v3881
        %v3914 = vadd.f32 %v3882, %v2538
        %v3915 = vadd.f32 %v3883, %v2539
        %v3916 = vadd.f32 %v3884, %v2540
        %v3917 = vadd.f32 %v3885, %v2541
        %v3918 = vadd.f32 %v3886, %v2542
        %v3919 = vadd.f32 %v3887, %v2543
        %v3920 = vadd.f32 %v3888, %v2544
        %v3921 = vadd.f32 %v3889, %v2545
        %v3922 = vadd.f32 %v3890, %v2546
        %v3923 = vadd.f32 %v3891, %v2547
        %v3924 = vadd.f32 %v3892, %v2548
        %v3925 = vadd.f32 %v3893, %v2549
        %v3926 = vadd.f32 %v3894, %v2550
        %v3927 = vadd.f32 %v3895, %v2551
        %v3928 = vadd.f32 %v3896, %v2552
        %v3929 = vadd.f32 %v3897, %v2553
        %v3930 = vadd.f32 %v3898, %v2554
        %v3931 = vadd.f32 %v3899, %v2555
        %v3932 = vadd.f32 %v3900, %v2556
        %v3933 = vadd.f32 %v3901, %v2557
        %v3934 = vadd.f32 %v3902, %v2558
        %v3935 = vadd.f32 %v3903, %v2559
        %v3936 = vadd.f32 %v3904, %v2560
        %v3937 = vadd.f32 %v3905, %v2561
        %v3938 = vadd.f32 %v3906, %v2562
        %v3939 = vadd.f32 %v3907, %v2563
        %v3940 = vadd.f32 %v3908, %v2564
        %v3941 = vadd.f32 %v3909, %v2565
        %v3942 = vadd.f32 %v3910, %v2566
        %v3943 = vadd.f32 %v3911, %v2567
        %v3944 = vadd.f32 %v3912, %v2568
        %v3945 = vadd.f32 %v3913, %v2569
        %v3946 = vmax.f32 %v3914, %v3915
        %3947 = vmax.xlane.f32.xlu0 %v3946
        %v3948 = vpop.xlane.xlu0 %3947
        %v3949 = vmax.f32 %v3916, %v3917
        %3950 = vmax.xlane.f32.xlu0 %v3949
        %v3951 = vpop.xlane.xlu0 %3950
        %v3952 = vmax.f32 %v3918, %v3919
        %3953 = vmax.xlane.f32.xlu0 %v3952
        %v3954 = vpop.xlane.xlu0 %3953
        %v3955 = vmax.f32 %v3920, %v3921
        %3956 = vmax.xlane.f32.xlu0 %v3955
        %v3957 = vpop.xlane.xlu0 %3956
        %v3958 = vmax.f32 %v3922, %v3923
        %3959 = vmax.xlane.f32.xlu0 %v3958
        %v3960 = vpop.xlane.xlu0 %3959
        %v3961 = vmax.f32 %v3924, %v3925
        %3962 = vmax.xlane.f32.xlu0 %v3961
        %v3963 = vpop.xlane.xlu0 %3962
        %v3964 = vmax.f32 %v3926, %v3927
        %3965 = vmax.xlane.f32.xlu0 %v3964
        %v3966 = vpop.xlane.xlu0 %3965
        %v3967 = vmax.f32 %v3928, %v3929
        %3968 = vmax.xlane.f32.xlu0 %v3967
        %v3969 = vpop.xlane.xlu0 %3968
        %v3970 = vmax.f32 %v3930, %v3931
        %3971 = vmax.xlane.f32.xlu0 %v3970
        %v3972 = vpop.xlane.xlu0 %3971
        %v3973 = vmax.f32 %v3932, %v3933
        %3974 = vmax.xlane.f32.xlu0 %v3973
        %v3975 = vpop.xlane.xlu0 %3974
        %v3976 = vmax.f32 %v3934, %v3935
        %3977 = vmax.xlane.f32.xlu0 %v3976
        %v3978 = vpop.xlane.xlu0 %3977
        %v3979 = vmax.f32 %v3936, %v3937
        %3980 = vmax.xlane.f32.xlu0 %v3979
        %v3981 = vpop.xlane.xlu0 %3980
        %v3982 = vmax.f32 %v3938, %v3939
        %3983 = vmax.xlane.f32.xlu0 %v3982
        %v3984 = vpop.xlane.xlu0 %3983
        %v3985 = vmax.f32 %v3940, %v3941
        %3986 = vmax.xlane.f32.xlu0 %v3985
        %v3987 = vpop.xlane.xlu0 %3986
        %v3988 = vmax.f32 %v3942, %v3943
        %3989 = vmax.xlane.f32.xlu0 %v3988
        %v3990 = vpop.xlane.xlu0 %3989
        %v3991 = vmax.f32 %v3944, %v3945
        %3992 = vmax.xlane.f32.xlu0 %v3991
        %v3993 = vpop.xlane.xlu0 %3992
        %vm3994 = vcmask 89168
        %3995 = vst.msk [vmem:[#allocation2] sm:$0xff] %vm3994, %v3948
        %3996 = vst.msk [vmem:[#allocation2 + $0x8] sm:$0xff] %vm3994, %v3951
        %3997 = vst.msk [vmem:[#allocation2 + $0x10] sm:$0xff] %vm3994, %v3954
        %3998 = vst.msk [vmem:[#allocation2 + $0x18] sm:$0xff] %vm3994, %v3957
        %3999 = vst.msk [vmem:[#allocation2 + $0x20] sm:$0xff] %vm3994, %v3960
        %4000 = vst.msk [vmem:[#allocation2 + $0x28] sm:$0xff] %vm3994, %v3963
        %4001 = vst.msk [vmem:[#allocation2 + $0x30] sm:$0xff] %vm3994, %v3966
        %4002 = vst.msk [vmem:[#allocation2 + $0x38] sm:$0xff] %vm3994, %v3969
        %4003 = vst.msk [vmem:[#allocation2 + $0x40] sm:$0xff] %vm3994, %v3972
        %4004 = vst.msk [vmem:[#allocation2 + $0x48] sm:$0xff] %vm3994, %v3975
        %4005 = vst.msk [vmem:[#allocation2 + $0x50] sm:$0xff] %vm3994, %v3978
        %4006 = vst.msk [vmem:[#allocation2 + $0x58] sm:$0xff] %vm3994, %v3981
        %4007 = vst.msk [vmem:[#allocation2 + $0x60] sm:$0xff] %vm3994, %v3984
        %4008 = vst.msk [vmem:[#allocation2 + $0x68] sm:$0xff] %vm3994, %v3987
        %4009 = vst.msk [vmem:[#allocation2 + $0x70] sm:$0xff] %vm3994, %v3990
        %4010 = vst.msk [vmem:[#allocation2 + $0x78] sm:$0xff] %vm3994, %v3993
        %v4011 = vperm.slane %v1521, 3
        %v4012 = vperm.slane %v1550, 3
        %v4013 = vmul.f32 %v2216, %v4011
        %v4014 = vmul.f32 %v2217, %v4012
        %v4015 = vmul.f32 %v2218, %v4011
        %v4016 = vmul.f32 %v2219, %v4012
        %v4017 = vmul.f32 %v2220, %v4011
        %v4018 = vmul.f32 %v2221, %v4012
        %v4019 = vmul.f32 %v2222, %v4011
        %v4020 = vmul.f32 %v2223, %v4012
        %v4021 = vmul.f32 %v2224, %v4011
        %v4022 = vmul.f32 %v2225, %v4012
        %v4023 = vmul.f32 %v2226, %v4011
        %v4024 = vmul.f32 %v2227, %v4012
        %v4025 = vmul.f32 %v2228, %v4011
        %v4026 = vmul.f32 %v2229, %v4012
        %v4027 = vmul.f32 %v2230, %v4011
        %v4028 = vmul.f32 %v2231, %v4012
        %v4029 = vmul.f32 %v2232, %v4011
        %v4030 = vmul.f32 %v2233, %v4012
        %v4031 = vmul.f32 %v2234, %v4011
        %v4032 = vmul.f32 %v2235, %v4012
        %v4033 = vmul.f32 %v2236, %v4011
        %v4034 = vmul.f32 %v2237, %v4012
        %v4035 = vmul.f32 %v2238, %v4011
        %v4036 = vmul.f32 %v2239, %v4012
        %v4037 = vmul.f32 %v2240, %v4011
        %v4038 = vmul.f32 %v2241, %v4012
        %v4039 = vmul.f32 %v2242, %v4011
        %v4040 = vmul.f32 %v2243, %v4012
        %v4041 = vmul.f32 %v2244, %v4011
        %v4042 = vmul.f32 %v2245, %v4012
        %v4043 = vmul.f32 %v2246, %v4011
        %v4044 = vmul.f32 %v2247, %v4012
        %v4045 = vadd.f32 %v4013, %v2538
        %v4046 = vadd.f32 %v4014, %v2539
        %v4047 = vadd.f32 %v4015, %v2540
        %v4048 = vadd.f32 %v4016, %v2541
        %v4049 = vadd.f32 %v4017, %v2542
        %v4050 = vadd.f32 %v4018, %v2543
        %v4051 = vadd.f32 %v4019, %v2544
        %v4052 = vadd.f32 %v4020, %v2545
        %v4053 = vadd.f32 %v4021, %v2546
        %v4054 = vadd.f32 %v4022, %v2547
        %v4055 = vadd.f32 %v4023, %v2548
        %v4056 = vadd.f32 %v4024, %v2549
        %v4057 = vadd.f32 %v4025, %v2550
        %v4058 = vadd.f32 %v4026, %v2551
        %v4059 = vadd.f32 %v4027, %v2552
        %v4060 = vadd.f32 %v4028, %v2553
        %v4061 = vadd.f32 %v4029, %v2554
        %v4062 = vadd.f32 %v4030, %v2555
        %v4063 = vadd.f32 %v4031, %v2556
        %v4064 = vadd.f32 %v4032, %v2557
        %v4065 = vadd.f32 %v4033, %v2558
        %v4066 = vadd.f32 %v4034, %v2559
        %v4067 = vadd.f32 %v4035, %v2560
        %v4068 = vadd.f32 %v4036, %v2561
        %v4069 = vadd.f32 %v4037, %v2562
        %v4070 = vadd.f32 %v4038, %v2563
        %v4071 = vadd.f32 %v4039, %v2564
        %v4072 = vadd.f32 %v4040, %v2565
        %v4073 = vadd.f32 %v4041, %v2566
        %v4074 = vadd.f32 %v4042, %v2567
        %v4075 = vadd.f32 %v4043, %v2568
        %v4076 = vadd.f32 %v4044, %v2569
        %v4077 = vmax.f32 %v4045, %v4046
        %4078 = vmax.xlane.f32.xlu0 %v4077
        %v4079 = vpop.xlane.xlu0 %4078
        %v4080 = vmax.f32 %v4047, %v4048
        %4081 = vmax.xlane.f32.xlu0 %v4080
        %v4082 = vpop.xlane.xlu0 %4081
        %v4083 = vmax.f32 %v4049, %v4050
        %4084 = vmax.xlane.f32.xlu0 %v4083
        %v4085 = vpop.xlane.xlu0 %4084
        %v4086 = vmax.f32 %v4051, %v4052
        %4087 = vmax.xlane.f32.xlu0 %v4086
        %v4088 = vpop.xlane.xlu0 %4087
        %v4089 = vmax.f32 %v4053, %v4054
        %4090 = vmax.xlane.f32.xlu0 %v4089
        %v4091 = vpop.xlane.xlu0 %4090
        %v4092 = vmax.f32 %v4055, %v4056
        %4093 = vmax.xlane.f32.xlu0 %v4092
        %v4094 = vpop.xlane.xlu0 %4093
        %v4095 = vmax.f32 %v4057, %v4058
        %4096 = vmax.xlane.f32.xlu0 %v4095
        %v4097 = vpop.xlane.xlu0 %4096
        %v4098 = vmax.f32 %v4059, %v4060
        %4099 = vmax.xlane.f32.xlu0 %v4098
        %v4100 = vpop.xlane.xlu0 %4099
        %v4101 = vmax.f32 %v4061, %v4062
        %4102 = vmax.xlane.f32.xlu0 %v4101
        %v4103 = vpop.xlane.xlu0 %4102
        %v4104 = vmax.f32 %v4063, %v4064
        %4105 = vmax.xlane.f32.xlu0 %v4104
        %v4106 = vpop.xlane.xlu0 %4105
        %v4107 = vmax.f32 %v4065, %v4066
        %4108 = vmax.xlane.f32.xlu0 %v4107
        %v4109 = vpop.xlane.xlu0 %4108
        %v4110 = vmax.f32 %v4067, %v4068
        %4111 = vmax.xlane.f32.xlu0 %v4110
        %v4112 = vpop.xlane.xlu0 %4111
        %v4113 = vmax.f32 %v4069, %v4070
        %4114 = vmax.xlane.f32.xlu0 %v4113
        %v4115 = vpop.xlane.xlu0 %4114
        %v4116 = vmax.f32 %v4071, %v4072
        %4117 = vmax.xlane.f32.xlu0 %v4116
        %v4118 = vpop.xlane.xlu0 %4117
        %v4119 = vmax.f32 %v4073, %v4074
        %4120 = vmax.xlane.f32.xlu0 %v4119
        %v4121 = vpop.xlane.xlu0 %4120
        %v4122 = vmax.f32 %v4075, %v4076
        %4123 = vmax.xlane.f32.xlu0 %v4122
        %v4124 = vpop.xlane.xlu0 %4123
        %vm4125 = vcmask 97368
        %4126 = vst.msk [vmem:[#allocation2] sm:$0xff] %vm4125, %v4079
        %4127 = vst.msk [vmem:[#allocation2 + $0x8] sm:$0xff] %vm4125, %v4082
        %4128 = vst.msk [vmem:[#allocation2 + $0x10] sm:$0xff] %vm4125, %v4085
        %4129 = vst.msk [vmem:[#allocation2 + $0x18] sm:$0xff] %vm4125, %v4088
        %4130 = vst.msk [vmem:[#allocation2 + $0x20] sm:$0xff] %vm4125, %v4091
        %4131 = vst.msk [vmem:[#allocation2 + $0x28] sm:$0xff] %vm4125, %v4094
        %4132 = vst.msk [vmem:[#allocation2 + $0x30] sm:$0xff] %vm4125, %v4097
        %4133 = vst.msk [vmem:[#allocation2 + $0x38] sm:$0xff] %vm4125, %v4100
        %4134 = vst.msk [vmem:[#allocation2 + $0x40] sm:$0xff] %vm4125, %v4103
        %4135 = vst.msk [vmem:[#allocation2 + $0x48] sm:$0xff] %vm4125, %v4106
        %4136 = vst.msk [vmem:[#allocation2 + $0x50] sm:$0xff] %vm4125, %v4109
        %4137 = vst.msk [vmem:[#allocation2 + $0x58] sm:$0xff] %vm4125, %v4112
        %4138 = vst.msk [vmem:[#allocation2 + $0x60] sm:$0xff] %vm4125, %v4115
        %4139 = vst.msk [vmem:[#allocation2 + $0x68] sm:$0xff] %vm4125, %v4118
        %4140 = vst.msk [vmem:[#allocation2 + $0x70] sm:$0xff] %vm4125, %v4121
        %4141 = vst.msk [vmem:[#allocation2 + $0x78] sm:$0xff] %vm4125, %v4124
        %v4142 = vperm.slane %v1521, 4
        %v4143 = vperm.slane %v1550, 4
        %v4144 = vmul.f32 %v2216, %v4142
        %v4145 = vmul.f32 %v2217, %v4143
        %v4146 = vmul.f32 %v2218, %v4142
        %v4147 = vmul.f32 %v2219, %v4143
        %v4148 = vmul.f32 %v2220, %v4142
        %v4149 = vmul.f32 %v2221, %v4143
        %v4150 = vmul.f32 %v2222, %v4142
        %v4151 = vmul.f32 %v2223, %v4143
        %v4152 = vmul.f32 %v2224, %v4142
        %v4153 = vmul.f32 %v2225, %v4143
        %v4154 = vmul.f32 %v2226, %v4142
        %v4155 = vmul.f32 %v2227, %v4143
        %v4156 = vmul.f32 %v2228, %v4142
        %v4157 = vmul.f32 %v2229, %v4143
        %v4158 = vmul.f32 %v2230, %v4142
        %v4159 = vmul.f32 %v2231, %v4143
        %v4160 = vmul.f32 %v2232, %v4142
        %v4161 = vmul.f32 %v2233, %v4143
        %v4162 = vmul.f32 %v2234, %v4142
        %v4163 = vmul.f32 %v2235, %v4143
        %v4164 = vmul.f32 %v2236, %v4142
        %v4165 = vmul.f32 %v2237, %v4143
        %v4166 = vmul.f32 %v2238, %v4142
        %v4167 = vmul.f32 %v2239, %v4143
        %v4168 = vmul.f32 %v2240, %v4142
        %v4169 = vmul.f32 %v2241, %v4143
        %v4170 = vmul.f32 %v2242, %v4142
        %v4171 = vmul.f32 %v2243, %v4143
        %v4172 = vmul.f32 %v2244, %v4142
        %v4173 = vmul.f32 %v2245, %v4143
        %v4174 = vmul.f32 %v2246, %v4142
        %v4175 = vmul.f32 %v2247, %v4143
        %v4176 = vadd.f32 %v4144, %v2538
        %v4177 = vadd.f32 %v4145, %v2539
        %v4178 = vadd.f32 %v4146, %v2540
        %v4179 = vadd.f32 %v4147, %v2541
        %v4180 = vadd.f32 %v4148, %v2542
        %v4181 = vadd.f32 %v4149, %v2543
        %v4182 = vadd.f32 %v4150, %v2544
        %v4183 = vadd.f32 %v4151, %v2545
        %v4184 = vadd.f32 %v4152, %v2546
        %v4185 = vadd.f32 %v4153, %v2547
        %v4186 = vadd.f32 %v4154, %v2548
        %v4187 = vadd.f32 %v4155, %v2549
        %v4188 = vadd.f32 %v4156, %v2550
        %v4189 = vadd.f32 %v4157, %v2551
        %v4190 = vadd.f32 %v4158, %v2552
        %v4191 = vadd.f32 %v4159, %v2553
        %v4192 = vadd.f32 %v4160, %v2554
        %v4193 = vadd.f32 %v4161, %v2555
        %v4194 = vadd.f32 %v4162, %v2556
        %v4195 = vadd.f32 %v4163, %v2557
        %v4196 = vadd.f32 %v4164, %v2558
        %v4197 = vadd.f32 %v4165, %v2559
        %v4198 = vadd.f32 %v4166, %v2560
        %v4199 = vadd.f32 %v4167, %v2561
        %v4200 = vadd.f32 %v4168, %v2562
        %v4201 = vadd.f32 %v4169, %v2563
        %v4202 = vadd.f32 %v4170, %v2564
        %v4203 = vadd.f32 %v4171, %v2565
        %v4204 = vadd.f32 %v4172, %v2566
        %v4205 = vadd.f32 %v4173, %v2567
        %v4206 = vadd.f32 %v4174, %v2568
        %v4207 = vadd.f32 %v4175, %v2569
        %v4208 = vmax.f32 %v4176, %v4177
        %4209 = vmax.xlane.f32.xlu0 %v4208
        %v4210 = vpop.xlane.xlu0 %4209
        %v4211 = vmax.f32 %v4178, %v4179
        %4212 = vmax.xlane.f32.xlu0 %v4211
        %v4213 = vpop.xlane.xlu0 %4212
        %v4214 = vmax.f32 %v4180, %v4181
        %4215 = vmax.xlane.f32.xlu0 %v4214
        %v4216 = vpop.xlane.xlu0 %4215
        %v4217 = vmax.f32 %v4182, %v4183
        %4218 = vmax.xlane.f32.xlu0 %v4217
        %v4219 = vpop.xlane.xlu0 %4218
        %v4220 = vmax.f32 %v4184, %v4185
        %4221 = vmax.xlane.f32.xlu0 %v4220
        %v4222 = vpop.xlane.xlu0 %4221
        %v4223 = vmax.f32 %v4186, %v4187
        %4224 = vmax.xlane.f32.xlu0 %v4223
        %v4225 = vpop.xlane.xlu0 %4224
        %v4226 = vmax.f32 %v4188, %v4189
        %4227 = vmax.xlane.f32.xlu0 %v4226
        %v4228 = vpop.xlane.xlu0 %4227
        %v4229 = vmax.f32 %v4190, %v4191
        %4230 = vmax.xlane.f32.xlu0 %v4229
        %v4231 = vpop.xlane.xlu0 %4230
        %v4232 = vmax.f32 %v4192, %v4193
        %4233 = vmax.xlane.f32.xlu0 %v4232
        %v4234 = vpop.xlane.xlu0 %4233
        %v4235 = vmax.f32 %v4194, %v4195
        %4236 = vmax.xlane.f32.xlu0 %v4235
        %v4237 = vpop.xlane.xlu0 %4236
        %v4238 = vmax.f32 %v4196, %v4197
        %4239 = vmax.xlane.f32.xlu0 %v4238
        %v4240 = vpop.xlane.xlu0 %4239
        %v4241 = vmax.f32 %v4198, %v4199
        %4242 = vmax.xlane.f32.xlu0 %v4241
        %v4243 = vpop.xlane.xlu0 %4242
        %v4244 = vmax.f32 %v4200, %v4201
        %4245 = vmax.xlane.f32.xlu0 %v4244
        %v4246 = vpop.xlane.xlu0 %4245
        %v4247 = vmax.f32 %v4202, %v4203
        %4248 = vmax.xlane.f32.xlu0 %v4247
        %v4249 = vpop.xlane.xlu0 %4248
        %v4250 = vmax.f32 %v4204, %v4205
        %4251 = vmax.xlane.f32.xlu0 %v4250
        %v4252 = vpop.xlane.xlu0 %4251
        %v4253 = vmax.f32 %v4206, %v4207
        %4254 = vmax.xlane.f32.xlu0 %v4253
        %v4255 = vpop.xlane.xlu0 %4254
        %vm4256 = vcmask 105568
        %4257 = vst.msk [vmem:[#allocation2] sm:$0xff] %vm4256, %v4210
        %4258 = vst.msk [vmem:[#allocation2 + $0x8] sm:$0xff] %vm4256, %v4213
        %4259 = vst.msk [vmem:[#allocation2 + $0x10] sm:$0xff] %vm4256, %v4216
        %4260 = vst.msk [vmem:[#allocation2 + $0x18] sm:$0xff] %vm4256, %v4219
        %4261 = vst.msk [vmem:[#allocation2 + $0x20] sm:$0xff] %vm4256, %v4222
        %4262 = vst.msk [vmem:[#allocation2 + $0x28] sm:$0xff] %vm4256, %v4225
        %4263 = vst.msk [vmem:[#allocation2 + $0x30] sm:$0xff] %vm4256, %v4228
        %4264 = vst.msk [vmem:[#allocation2 + $0x38] sm:$0xff] %vm4256, %v4231
        %4265 = vst.msk [vmem:[#allocation2 + $0x40] sm:$0xff] %vm4256, %v4234
        %4266 = vst.msk [vmem:[#allocation2 + $0x48] sm:$0xff] %vm4256, %v4237
        %4267 = vst.msk [vmem:[#allocation2 + $0x50] sm:$0xff] %vm4256, %v4240
        %4268 = vst.msk [vmem:[#allocation2 + $0x58] sm:$0xff] %vm4256, %v4243
        %4269 = vst.msk [vmem:[#allocation2 + $0x60] sm:$0xff] %vm4256, %v4246
        %4270 = vst.msk [vmem:[#allocation2 + $0x68] sm:$0xff] %vm4256, %v4249
        %4271 = vst.msk [vmem:[#allocation2 + $0x70] sm:$0xff] %vm4256, %v4252
        %4272 = vst.msk [vmem:[#allocation2 + $0x78] sm:$0xff] %vm4256, %v4255
        %v4273 = vperm.slane %v1521, 5
        %v4274 = vperm.slane %v1550, 5
        %v4275 = vmul.f32 %v2216, %v4273
        %v4276 = vmul.f32 %v2217, %v4274
        %v4277 = vmul.f32 %v2218, %v4273
        %v4278 = vmul.f32 %v2219, %v4274
        %v4279 = vmul.f32 %v2220, %v4273
        %v4280 = vmul.f32 %v2221, %v4274
        %v4281 = vmul.f32 %v2222, %v4273
        %v4282 = vmul.f32 %v2223, %v4274
        %v4283 = vmul.f32 %v2224, %v4273
        %v4284 = vmul.f32 %v2225, %v4274
        %v4285 = vmul.f32 %v2226, %v4273
        %v4286 = vmul.f32 %v2227, %v4274
        %v4287 = vmul.f32 %v2228, %v4273
        %v4288 = vmul.f32 %v2229, %v4274
        %v4289 = vmul.f32 %v2230, %v4273
        %v4290 = vmul.f32 %v2231, %v4274
        %v4291 = vmul.f32 %v2232, %v4273
        %v4292 = vmul.f32 %v2233, %v4274
        %v4293 = vmul.f32 %v2234, %v4273
        %v4294 = vmul.f32 %v2235, %v4274
        %v4295 = vmul.f32 %v2236, %v4273
        %v4296 = vmul.f32 %v2237, %v4274
        %v4297 = vmul.f32 %v2238, %v4273
        %v4298 = vmul.f32 %v2239, %v4274
        %v4299 = vmul.f32 %v2240, %v4273
        %v4300 = vmul.f32 %v2241, %v4274
        %v4301 = vmul.f32 %v2242, %v4273
        %v4302 = vmul.f32 %v2243, %v4274
        %v4303 = vmul.f32 %v2244, %v4273
        %v4304 = vmul.f32 %v2245, %v4274
        %v4305 = vmul.f32 %v2246, %v4273
        %v4306 = vmul.f32 %v2247, %v4274
        %v4307 = vadd.f32 %v4275, %v2538
        %v4308 = vadd.f32 %v4276, %v2539
        %v4309 = vadd.f32 %v4277, %v2540
        %v4310 = vadd.f32 %v4278, %v2541
        %v4311 = vadd.f32 %v4279, %v2542
        %v4312 = vadd.f32 %v4280, %v2543
        %v4313 = vadd.f32 %v4281, %v2544
        %v4314 = vadd.f32 %v4282, %v2545
        %v4315 = vadd.f32 %v4283, %v2546
        %v4316 = vadd.f32 %v4284, %v2547
        %v4317 = vadd.f32 %v4285, %v2548
        %v4318 = vadd.f32 %v4286, %v2549
        %v4319 = vadd.f32 %v4287, %v2550
        %v4320 = vadd.f32 %v4288, %v2551
        %v4321 = vadd.f32 %v4289, %v2552
        %v4322 = vadd.f32 %v4290, %v2553
        %v4323 = vadd.f32 %v4291, %v2554
        %v4324 = vadd.f32 %v4292, %v2555
        %v4325 = vadd.f32 %v4293, %v2556
        %v4326 = vadd.f32 %v4294, %v2557
        %v4327 = vadd.f32 %v4295, %v2558
        %v4328 = vadd.f32 %v4296, %v2559
        %v4329 = vadd.f32 %v4297, %v2560
        %v4330 = vadd.f32 %v4298, %v2561
        %v4331 = vadd.f32 %v4299, %v2562
        %v4332 = vadd.f32 %v4300, %v2563
        %v4333 = vadd.f32 %v4301, %v2564
        %v4334 = vadd.f32 %v4302, %v2565
        %v4335 = vadd.f32 %v4303, %v2566
        %v4336 = vadd.f32 %v4304, %v2567
        %v4337 = vadd.f32 %v4305, %v2568
        %v4338 = vadd.f32 %v4306, %v2569
        %v4339 = vmax.f32 %v4307, %v4308
        %4340 = vmax.xlane.f32.xlu0 %v4339
        %v4341 = vpop.xlane.xlu0 %4340
        %v4342 = vmax.f32 %v4309, %v4310
        %4343 = vmax.xlane.f32.xlu0 %v4342
        %v4344 = vpop.xlane.xlu0 %4343
        %v4345 = vmax.f32 %v4311, %v4312
        %4346 = vmax.xlane.f32.xlu0 %v4345
        %v4347 = vpop.xlane.xlu0 %4346
        %v4348 = vmax.f32 %v4313, %v4314
        %4349 = vmax.xlane.f32.xlu0 %v4348
        %v4350 = vpop.xlane.xlu0 %4349
        %v4351 = vmax.f32 %v4315, %v4316
        %4352 = vmax.xlane.f32.xlu0 %v4351
        %v4353 = vpop.xlane.xlu0 %4352
        %v4354 = vmax.f32 %v4317, %v4318
        %4355 = vmax.xlane.f32.xlu0 %v4354
        %v4356 = vpop.xlane.xlu0 %4355
        %v4357 = vmax.f32 %v4319, %v4320
        %4358 = vmax.xlane.f32.xlu0 %v4357
        %v4359 = vpop.xlane.xlu0 %4358
        %v4360 = vmax.f32 %v4321, %v4322
        %4361 = vmax.xlane.f32.xlu0 %v4360
        %v4362 = vpop.xlane.xlu0 %4361
        %v4363 = vmax.f32 %v4323, %v4324
        %4364 = vmax.xlane.f32.xlu0 %v4363
        %v4365 = vpop.xlane.xlu0 %4364
        %v4366 = vmax.f32 %v4325, %v4326
        %4367 = vmax.xlane.f32.xlu0 %v4366
        %v4368 = vpop.xlane.xlu0 %4367
        %v4369 = vmax.f32 %v4327, %v4328
        %4370 = vmax.xlane.f32.xlu0 %v4369
        %v4371 = vpop.xlane.xlu0 %4370
        %v4372 = vmax.f32 %v4329, %v4330
        %4373 = vmax.xlane.f32.xlu0 %v4372
        %v4374 = vpop.xlane.xlu0 %4373
        %v4375 = vmax.f32 %v4331, %v4332
        %4376 = vmax.xlane.f32.xlu0 %v4375
        %v4377 = vpop.xlane.xlu0 %4376
        %v4378 = vmax.f32 %v4333, %v4334
        %4379 = vmax.xlane.f32.xlu0 %v4378
        %v4380 = vpop.xlane.xlu0 %4379
        %v4381 = vmax.f32 %v4335, %v4336
        %4382 = vmax.xlane.f32.xlu0 %v4381
        %v4383 = vpop.xlane.xlu0 %4382
        %v4384 = vmax.f32 %v4337, %v4338
        %4385 = vmax.xlane.f32.xlu0 %v4384
        %v4386 = vpop.xlane.xlu0 %4385
        %vm4387 = vcmask 113768
        %4388 = vst.msk [vmem:[#allocation2] sm:$0xff] %vm4387, %v4341
        %4389 = vst.msk [vmem:[#allocation2 + $0x8] sm:$0xff] %vm4387, %v4344
        %4390 = vst.msk [vmem:[#allocation2 + $0x10] sm:$0xff] %vm4387, %v4347
        %4391 = vst.msk [vmem:[#allocation2 + $0x18] sm:$0xff] %vm4387, %v4350
        %4392 = vst.msk [vmem:[#allocation2 + $0x20] sm:$0xff] %vm4387, %v4353
        %4393 = vst.msk [vmem:[#allocation2 + $0x28] sm:$0xff] %vm4387, %v4356
        %4394 = vst.msk [vmem:[#allocation2 + $0x30] sm:$0xff] %vm4387, %v4359
        %4395 = vst.msk [vmem:[#allocation2 + $0x38] sm:$0xff] %vm4387, %v4362
        %4396 = vst.msk [vmem:[#allocation2 + $0x40] sm:$0xff] %vm4387, %v4365
        %4397 = vst.msk [vmem:[#allocation2 + $0x48] sm:$0xff] %vm4387, %v4368
        %4398 = vst.msk [vmem:[#allocation2 + $0x50] sm:$0xff] %vm4387, %v4371
        %4399 = vst.msk [vmem:[#allocation2 + $0x58] sm:$0xff] %vm4387, %v4374
        %4400 = vst.msk [vmem:[#allocation2 + $0x60] sm:$0xff] %vm4387, %v4377
        %4401 = vst.msk [vmem:[#allocation2 + $0x68] sm:$0xff] %vm4387, %v4380
        %4402 = vst.msk [vmem:[#allocation2 + $0x70] sm:$0xff] %vm4387, %v4383
        %4403 = vst.msk [vmem:[#allocation2 + $0x78] sm:$0xff] %vm4387, %v4386
        %v4404 = vperm.slane %v1521, 6
        %v4405 = vperm.slane %v1550, 6
        %v4406 = vmul.f32 %v2216, %v4404
        %v4407 = vmul.f32 %v2217, %v4405
        %v4408 = vmul.f32 %v2218, %v4404
        %v4409 = vmul.f32 %v2219, %v4405
        %v4410 = vmul.f32 %v2220, %v4404
        %v4411 = vmul.f32 %v2221, %v4405
        %v4412 = vmul.f32 %v2222, %v4404
        %v4413 = vmul.f32 %v2223, %v4405
        %v4414 = vmul.f32 %v2224, %v4404
        %v4415 = vmul.f32 %v2225, %v4405
        %v4416 = vmul.f32 %v2226, %v4404
        %v4417 = vmul.f32 %v2227, %v4405
        %v4418 = vmul.f32 %v2228, %v4404
        %v4419 = vmul.f32 %v2229, %v4405
        %v4420 = vmul.f32 %v2230, %v4404
        %v4421 = vmul.f32 %v2231, %v4405
        %v4422 = vmul.f32 %v2232, %v4404
        %v4423 = vmul.f32 %v2233, %v4405
        %v4424 = vmul.f32 %v2234, %v4404
        %v4425 = vmul.f32 %v2235, %v4405
        %v4426 = vmul.f32 %v2236, %v4404
        %v4427 = vmul.f32 %v2237, %v4405
        %v4428 = vmul.f32 %v2238, %v4404
        %v4429 = vmul.f32 %v2239, %v4405
        %v4430 = vmul.f32 %v2240, %v4404
        %v4431 = vmul.f32 %v2241, %v4405
        %v4432 = vmul.f32 %v2242, %v4404
        %v4433 = vmul.f32 %v2243, %v4405
        %v4434 = vmul.f32 %v2244, %v4404
        %v4435 = vmul.f32 %v2245, %v4405
        %v4436 = vmul.f32 %v2246, %v4404
        %v4437 = vmul.f32 %v2247, %v4405
        %v4438 = vadd.f32 %v4406, %v2538
        %v4439 = vadd.f32 %v4407, %v2539
        %v4440 = vadd.f32 %v4408, %v2540
        %v4441 = vadd.f32 %v4409, %v2541
        %v4442 = vadd.f32 %v4410, %v2542
        %v4443 = vadd.f32 %v4411, %v2543
        %v4444 = vadd.f32 %v4412, %v2544
        %v4445 = vadd.f32 %v4413, %v2545
        %v4446 = vadd.f32 %v4414, %v2546
        %v4447 = vadd.f32 %v4415, %v2547
        %v4448 = vadd.f32 %v4416, %v2548
        %v4449 = vadd.f32 %v4417, %v2549
        %v4450 = vadd.f32 %v4418, %v2550
        %v4451 = vadd.f32 %v4419, %v2551
        %v4452 = vadd.f32 %v4420, %v2552
        %v4453 = vadd.f32 %v4421, %v2553
        %v4454 = vadd.f32 %v4422, %v2554
        %v4455 = vadd.f32 %v4423, %v2555
        %v4456 = vadd.f32 %v4424, %v2556
        %v4457 = vadd.f32 %v4425, %v2557
        %v4458 = vadd.f32 %v4426, %v2558
        %v4459 = vadd.f32 %v4427, %v2559
        %v4460 = vadd.f32 %v4428, %v2560
        %v4461 = vadd.f32 %v4429, %v2561
        %v4462 = vadd.f32 %v4430, %v2562
        %v4463 = vadd.f32 %v4431, %v2563
        %v4464 = vadd.f32 %v4432, %v2564
        %v4465 = vadd.f32 %v4433, %v2565
        %v4466 = vadd.f32 %v4434, %v2566
        %v4467 = vadd.f32 %v4435, %v2567
        %v4468 = vadd.f32 %v4436, %v2568
        %v4469 = vadd.f32 %v4437, %v2569
        %v4470 = vmax.f32 %v4438, %v4439
        %4471 = vmax.xlane.f32.xlu0 %v4470
        %v4472 = vpop.xlane.xlu0 %4471
        %v4473 = vmax.f32 %v4440, %v4441
        %4474 = vmax.xlane.f32.xlu0 %v4473
        %v4475 = vpop.xlane.xlu0 %4474
        %v4476 = vmax.f32 %v4442, %v4443
        %4477 = vmax.xlane.f32.xlu0 %v4476
        %v4478 = vpop.xlane.xlu0 %4477
        %v4479 = vmax.f32 %v4444, %v4445
        %4480 = vmax.xlane.f32.xlu0 %v4479
        %v4481 = vpop.xlane.xlu0 %4480
        %v4482 = vmax.f32 %v4446, %v4447
        %4483 = vmax.xlane.f32.xlu0 %v4482
        %v4484 = vpop.xlane.xlu0 %4483
        %v4485 = vmax.f32 %v4448, %v4449
        %4486 = vmax.xlane.f32.xlu0 %v4485
        %v4487 = vpop.xlane.xlu0 %4486
        %v4488 = vmax.f32 %v4450, %v4451
        %4489 = vmax.xlane.f32.xlu0 %v4488
        %v4490 = vpop.xlane.xlu0 %4489
        %v4491 = vmax.f32 %v4452, %v4453
        %4492 = vmax.xlane.f32.xlu0 %v4491
        %v4493 = vpop.xlane.xlu0 %4492
        %v4494 = vmax.f32 %v4454, %v4455
        %4495 = vmax.xlane.f32.xlu0 %v4494
        %v4496 = vpop.xlane.xlu0 %4495
        %v4497 = vmax.f32 %v4456, %v4457
        %4498 = vmax.xlane.f32.xlu0 %v4497
        %v4499 = vpop.xlane.xlu0 %4498
        %v4500 = vmax.f32 %v4458, %v4459
        %4501 = vmax.xlane.f32.xlu0 %v4500
        %v4502 = vpop.xlane.xlu0 %4501
        %v4503 = vmax.f32 %v4460, %v4461
        %4504 = vmax.xlane.f32.xlu0 %v4503
        %v4505 = vpop.xlane.xlu0 %4504
        %v4506 = vmax.f32 %v4462, %v4463
        %4507 = vmax.xlane.f32.xlu0 %v4506
        %v4508 = vpop.xlane.xlu0 %4507
        %v4509 = vmax.f32 %v4464, %v4465
        %4510 = vmax.xlane.f32.xlu0 %v4509
        %v4511 = vpop.xlane.xlu0 %4510
        %v4512 = vmax.f32 %v4466, %v4467
        %4513 = vmax.xlane.f32.xlu0 %v4512
        %v4514 = vpop.xlane.xlu0 %4513
        %v4515 = vmax.f32 %v4468, %v4469
        %4516 = vmax.xlane.f32.xlu0 %v4515
        %v4517 = vpop.xlane.xlu0 %4516
        %vm4518 = vcmask 121968
        %4519 = vst.msk [vmem:[#allocation2] sm:$0xff] %vm4518, %v4472
        %4520 = vst.msk [vmem:[#allocation2 + $0x8] sm:$0xff] %vm4518, %v4475
        %4521 = vst.msk [vmem:[#allocation2 + $0x10] sm:$0xff] %vm4518, %v4478
        %4522 = vst.msk [vmem:[#allocation2 + $0x18] sm:$0xff] %vm4518, %v4481
        %4523 = vst.msk [vmem:[#allocation2 + $0x20] sm:$0xff] %vm4518, %v4484
        %4524 = vst.msk [vmem:[#allocation2 + $0x28] sm:$0xff] %vm4518, %v4487
        %4525 = vst.msk [vmem:[#allocation2 + $0x30] sm:$0xff] %vm4518, %v4490
        %4526 = vst.msk [vmem:[#allocation2 + $0x38] sm:$0xff] %vm4518, %v4493
        %4527 = vst.msk [vmem:[#allocation2 + $0x40] sm:$0xff] %vm4518, %v4496
        %4528 = vst.msk [vmem:[#allocation2 + $0x48] sm:$0xff] %vm4518, %v4499
        %4529 = vst.msk [vmem:[#allocation2 + $0x50] sm:$0xff] %vm4518, %v4502
        %4530 = vst.msk [vmem:[#allocation2 + $0x58] sm:$0xff] %vm4518, %v4505
        %4531 = vst.msk [vmem:[#allocation2 + $0x60] sm:$0xff] %vm4518, %v4508
        %4532 = vst.msk [vmem:[#allocation2 + $0x68] sm:$0xff] %vm4518, %v4511
        %4533 = vst.msk [vmem:[#allocation2 + $0x70] sm:$0xff] %vm4518, %v4514
        %4534 = vst.msk [vmem:[#allocation2 + $0x78] sm:$0xff] %vm4518, %v4517
        %v4535 = vperm.slane %v1521, 7
        %v4536 = vperm.slane %v1550, 7
        %v4537 = vmul.f32 %v2216, %v4535
        %v4538 = vmul.f32 %v2217, %v4536
        %v4539 = vmul.f32 %v2218, %v4535
        %v4540 = vmul.f32 %v2219, %v4536
        %v4541 = vmul.f32 %v2220, %v4535
        %v4542 = vmul.f32 %v2221, %v4536
        %v4543 = vmul.f32 %v2222, %v4535
        %v4544 = vmul.f32 %v2223, %v4536
        %v4545 = vmul.f32 %v2224, %v4535
        %v4546 = vmul.f32 %v2225, %v4536
        %v4547 = vmul.f32 %v2226, %v4535
        %v4548 = vmul.f32 %v2227, %v4536
        %v4549 = vmul.f32 %v2228, %v4535
        %v4550 = vmul.f32 %v2229, %v4536
        %v4551 = vmul.f32 %v2230, %v4535
        %v4552 = vmul.f32 %v2231, %v4536
        %v4553 = vmul.f32 %v2232, %v4535
        %v4554 = vmul.f32 %v2233, %v4536
        %v4555 = vmul.f32 %v2234, %v4535
        %v4556 = vmul.f32 %v2235, %v4536
        %v4557 = vmul.f32 %v2236, %v4535
        %v4558 = vmul.f32 %v2237, %v4536
        %v4559 = vmul.f32 %v2238, %v4535
        %v4560 = vmul.f32 %v2239, %v4536
        %v4561 = vmul.f32 %v2240, %v4535
        %v4562 = vmul.f32 %v2241, %v4536
        %v4563 = vmul.f32 %v2242, %v4535
        %v4564 = vmul.f32 %v2243, %v4536
        %v4565 = vmul.f32 %v2244, %v4535
        %v4566 = vmul.f32 %v2245, %v4536
        %v4567 = vmul.f32 %v2246, %v4535
        %v4568 = vmul.f32 %v2247, %v4536
        %v4569 = vadd.f32 %v4537, %v2538
        %v4570 = vadd.f32 %v4538, %v2539
        %v4571 = vadd.f32 %v4539, %v2540
        %v4572 = vadd.f32 %v4540, %v2541
        %v4573 = vadd.f32 %v4541, %v2542
        %v4574 = vadd.f32 %v4542, %v2543
        %v4575 = vadd.f32 %v4543, %v2544
        %v4576 = vadd.f32 %v4544, %v2545
        %v4577 = vadd.f32 %v4545, %v2546
        %v4578 = vadd.f32 %v4546, %v2547
        %v4579 = vadd.f32 %v4547, %v2548
        %v4580 = vadd.f32 %v4548, %v2549
        %v4581 = vadd.f32 %v4549, %v2550
        %v4582 = vadd.f32 %v4550, %v2551
        %v4583 = vadd.f32 %v4551, %v2552
        %v4584 = vadd.f32 %v4552, %v2553
        %v4585 = vadd.f32 %v4553, %v2554
        %v4586 = vadd.f32 %v4554, %v2555
        %v4587 = vadd.f32 %v4555, %v2556
        %v4588 = vadd.f32 %v4556, %v2557
        %v4589 = vadd.f32 %v4557, %v2558
        %v4590 = vadd.f32 %v4558, %v2559
        %v4591 = vadd.f32 %v4559, %v2560
        %v4592 = vadd.f32 %v4560, %v2561
        %v4593 = vadd.f32 %v4561, %v2562
        %v4594 = vadd.f32 %v4562, %v2563
        %v4595 = vadd.f32 %v4563, %v2564
        %v4596 = vadd.f32 %v4564, %v2565
        %v4597 = vadd.f32 %v4565, %v2566
        %v4598 = vadd.f32 %v4566, %v2567
        %v4599 = vadd.f32 %v4567, %v2568
        %v4600 = vadd.f32 %v4568, %v2569
        %v4601 = vmax.f32 %v4569, %v4570
        %4602 = vmax.xlane.f32.xlu0 %v4601
        %v4603 = vpop.xlane.xlu0 %4602
        %v4604 = vmax.f32 %v4571, %v4572
        %4605 = vmax.xlane.f32.xlu0 %v4604
        %v4606 = vpop.xlane.xlu0 %4605
        %v4607 = vmax.f32 %v4573, %v4574
        %4608 = vmax.xlane.f32.xlu0 %v4607
        %v4609 = vpop.xlane.xlu0 %4608
        %v4610 = vmax.f32 %v4575, %v4576
        %4611 = vmax.xlane.f32.xlu0 %v4610
        %v4612 = vpop.xlane.xlu0 %4611
        %v4613 = vmax.f32 %v4577, %v4578
        %4614 = vmax.xlane.f32.xlu0 %v4613
        %v4615 = vpop.xlane.xlu0 %4614
        %v4616 = vmax.f32 %v4579, %v4580
        %4617 = vmax.xlane.f32.xlu0 %v4616
        %v4618 = vpop.xlane.xlu0 %4617
        %v4619 = vmax.f32 %v4581, %v4582
        %4620 = vmax.xlane.f32.xlu0 %v4619
        %v4621 = vpop.xlane.xlu0 %4620
        %v4622 = vmax.f32 %v4583, %v4584
        %4623 = vmax.xlane.f32.xlu0 %v4622
        %v4624 = vpop.xlane.xlu0 %4623
        %v4625 = vmax.f32 %v4585, %v4586
        %4626 = vmax.xlane.f32.xlu0 %v4625
        %v4627 = vpop.xlane.xlu0 %4626
        %v4628 = vmax.f32 %v4587, %v4588
        %4629 = vmax.xlane.f32.xlu0 %v4628
        %v4630 = vpop.xlane.xlu0 %4629
        %v4631 = vmax.f32 %v4589, %v4590
        %4632 = vmax.xlane.f32.xlu0 %v4631
        %v4633 = vpop.xlane.xlu0 %4632
        %v4634 = vmax.f32 %v4591, %v4592
        %4635 = vmax.xlane.f32.xlu0 %v4634
        %v4636 = vpop.xlane.xlu0 %4635
        %v4637 = vmax.f32 %v4593, %v4594
        %4638 = vmax.xlane.f32.xlu0 %v4637
        %v4639 = vpop.xlane.xlu0 %4638
        %v4640 = vmax.f32 %v4595, %v4596
        %4641 = vmax.xlane.f32.xlu0 %v4640
        %v4642 = vpop.xlane.xlu0 %4641
        %v4643 = vmax.f32 %v4597, %v4598
        %4644 = vmax.xlane.f32.xlu0 %v4643
        %v4645 = vpop.xlane.xlu0 %4644
        %v4646 = vmax.f32 %v4599, %v4600
        %4647 = vmax.xlane.f32.xlu0 %v4646
        %v4648 = vpop.xlane.xlu0 %4647
        %vm4649 = vcmask 130168
        %4650 = vst.msk [vmem:[#allocation2] sm:$0xff] %vm4649, %v4603
        %4651 = vst.msk [vmem:[#allocation2 + $0x8] sm:$0xff] %vm4649, %v4606
        %4652 = vst.msk [vmem:[#allocation2 + $0x10] sm:$0xff] %vm4649, %v4609
        %4653 = vst.msk [vmem:[#allocation2 + $0x18] sm:$0xff] %vm4649, %v4612
        %4654 = vst.msk [vmem:[#allocation2 + $0x20] sm:$0xff] %vm4649, %v4615
        %4655 = vst.msk [vmem:[#allocation2 + $0x28] sm:$0xff] %vm4649, %v4618
        %4656 = vst.msk [vmem:[#allocation2 + $0x30] sm:$0xff] %vm4649, %v4621
        %4657 = vst.msk [vmem:[#allocation2 + $0x38] sm:$0xff] %vm4649, %v4624
        %4658 = vst.msk [vmem:[#allocation2 + $0x40] sm:$0xff] %vm4649, %v4627
        %4659 = vst.msk [vmem:[#allocation2 + $0x48] sm:$0xff] %vm4649, %v4630
        %4660 = vst.msk [vmem:[#allocation2 + $0x50] sm:$0xff] %vm4649, %v4633
        %4661 = vst.msk [vmem:[#allocation2 + $0x58] sm:$0xff] %vm4649, %v4636
        %4662 = vst.msk [vmem:[#allocation2 + $0x60] sm:$0xff] %vm4649, %v4639
        %4663 = vst.msk [vmem:[#allocation2 + $0x68] sm:$0xff] %vm4649, %v4642
        %4664 = vst.msk [vmem:[#allocation2 + $0x70] sm:$0xff] %vm4649, %v4645
        %4665 = vst.msk [vmem:[#allocation2 + $0x78] sm:$0xff] %vm4649, %v4648
        %v4666 = vperm.slane %v1524, 0
        %v4667 = vperm.slane %v1553, 0
        %v4668 = vmul.f32 %v2216, %v4666
        %v4669 = vmul.f32 %v2217, %v4667
        %v4670 = vmul.f32 %v2218, %v4666
        %v4671 = vmul.f32 %v2219, %v4667
        %v4672 = vmul.f32 %v2220, %v4666
        %v4673 = vmul.f32 %v2221, %v4667
        %v4674 = vmul.f32 %v2222, %v4666
        %v4675 = vmul.f32 %v2223, %v4667
        %v4676 = vmul.f32 %v2224, %v4666
        %v4677 = vmul.f32 %v2225, %v4667
        %v4678 = vmul.f32 %v2226, %v4666
        %v4679 = vmul.f32 %v2227, %v4667
        %v4680 = vmul.f32 %v2228, %v4666
        %v4681 = vmul.f32 %v2229, %v4667
        %v4682 = vmul.f32 %v2230, %v4666
        %v4683 = vmul.f32 %v2231, %v4667
        %v4684 = vmul.f32 %v2232, %v4666
        %v4685 = vmul.f32 %v2233, %v4667
        %v4686 = vmul.f32 %v2234, %v4666
        %v4687 = vmul.f32 %v2235, %v4667
        %v4688 = vmul.f32 %v2236, %v4666
        %v4689 = vmul.f32 %v2237, %v4667
        %v4690 = vmul.f32 %v2238, %v4666
        %v4691 = vmul.f32 %v2239, %v4667
        %v4692 = vmul.f32 %v2240, %v4666
        %v4693 = vmul.f32 %v2241, %v4667
        %v4694 = vmul.f32 %v2242, %v4666
        %v4695 = vmul.f32 %v2243, %v4667
        %v4696 = vmul.f32 %v2244, %v4666
        %v4697 = vmul.f32 %v2245, %v4667
        %v4698 = vmul.f32 %v2246, %v4666
        %v4699 = vmul.f32 %v2247, %v4667
        %v4700 = vadd.f32 %v4668, %v2538
        %v4701 = vadd.f32 %v4669, %v2539
        %v4702 = vadd.f32 %v4670, %v2540
        %v4703 = vadd.f32 %v4671, %v2541
        %v4704 = vadd.f32 %v4672, %v2542
        %v4705 = vadd.f32 %v4673, %v2543
        %v4706 = vadd.f32 %v4674, %v2544
        %v4707 = vadd.f32 %v4675, %v2545
        %v4708 = vadd.f32 %v4676, %v2546
        %v4709 = vadd.f32 %v4677, %v2547
        %v4710 = vadd.f32 %v4678, %v2548
        %v4711 = vadd.f32 %v4679, %v2549
        %v4712 = vadd.f32 %v4680, %v2550
        %v4713 = vadd.f32 %v4681, %v2551
        %v4714 = vadd.f32 %v4682, %v2552
        %v4715 = vadd.f32 %v4683, %v2553
        %v4716 = vadd.f32 %v4684, %v2554
        %v4717 = vadd.f32 %v4685, %v2555
        %v4718 = vadd.f32 %v4686, %v2556
        %v4719 = vadd.f32 %v4687, %v2557
        %v4720 = vadd.f32 %v4688, %v2558
        %v4721 = vadd.f32 %v4689, %v2559
        %v4722 = vadd.f32 %v4690, %v2560
        %v4723 = vadd.f32 %v4691, %v2561
        %v4724 = vadd.f32 %v4692, %v2562
        %v4725 = vadd.f32 %v4693, %v2563
        %v4726 = vadd.f32 %v4694, %v2564
        %v4727 = vadd.f32 %v4695, %v2565
        %v4728 = vadd.f32 %v4696, %v2566
        %v4729 = vadd.f32 %v4697, %v2567
        %v4730 = vadd.f32 %v4698, %v2568
        %v4731 = vadd.f32 %v4699, %v2569
        %v4732 = vmax.f32 %v4700, %v4701
        %4733 = vmax.xlane.f32.xlu0 %v4732
        %v4734 = vpop.xlane.xlu0 %4733
        %v4735 = vmax.f32 %v4702, %v4703
        %4736 = vmax.xlane.f32.xlu0 %v4735
        %v4737 = vpop.xlane.xlu0 %4736
        %v4738 = vmax.f32 %v4704, %v4705
        %4739 = vmax.xlane.f32.xlu0 %v4738
        %v4740 = vpop.xlane.xlu0 %4739
        %v4741 = vmax.f32 %v4706, %v4707
        %4742 = vmax.xlane.f32.xlu0 %v4741
        %v4743 = vpop.xlane.xlu0 %4742
        %v4744 = vmax.f32 %v4708, %v4709
        %4745 = vmax.xlane.f32.xlu0 %v4744
        %v4746 = vpop.xlane.xlu0 %4745
        %v4747 = vmax.f32 %v4710, %v4711
        %4748 = vmax.xlane.f32.xlu0 %v4747
        %v4749 = vpop.xlane.xlu0 %4748
        %v4750 = vmax.f32 %v4712, %v4713
        %4751 = vmax.xlane.f32.xlu0 %v4750
        %v4752 = vpop.xlane.xlu0 %4751
        %v4753 = vmax.f32 %v4714, %v4715
        %4754 = vmax.xlane.f32.xlu0 %v4753
        %v4755 = vpop.xlane.xlu0 %4754
        %v4756 = vmax.f32 %v4716, %v4717
        %4757 = vmax.xlane.f32.xlu0 %v4756
        %v4758 = vpop.xlane.xlu0 %4757
        %v4759 = vmax.f32 %v4718, %v4719
        %4760 = vmax.xlane.f32.xlu0 %v4759
        %v4761 = vpop.xlane.xlu0 %4760
        %v4762 = vmax.f32 %v4720, %v4721
        %4763 = vmax.xlane.f32.xlu0 %v4762
        %v4764 = vpop.xlane.xlu0 %4763
        %v4765 = vmax.f32 %v4722, %v4723
        %4766 = vmax.xlane.f32.xlu0 %v4765
        %v4767 = vpop.xlane.xlu0 %4766
        %v4768 = vmax.f32 %v4724, %v4725
        %4769 = vmax.xlane.f32.xlu0 %v4768
        %v4770 = vpop.xlane.xlu0 %4769
        %v4771 = vmax.f32 %v4726, %v4727
        %4772 = vmax.xlane.f32.xlu0 %v4771
        %v4773 = vpop.xlane.xlu0 %4772
        %v4774 = vmax.f32 %v4728, %v4729
        %4775 = vmax.xlane.f32.xlu0 %v4774
        %v4776 = vpop.xlane.xlu0 %4775
        %v4777 = vmax.f32 %v4730, %v4731
        %4778 = vmax.xlane.f32.xlu0 %v4777
        %v4779 = vpop.xlane.xlu0 %4778
        %vm4780 = vcmask 138368
        %4781 = vst.msk [vmem:[#allocation2] sm:$0xff] %vm4780, %v4734
        %4782 = vst.msk [vmem:[#allocation2 + $0x8] sm:$0xff] %vm4780, %v4737
        %4783 = vst.msk [vmem:[#allocation2 + $0x10] sm:$0xff] %vm4780, %v4740
        %4784 = vst.msk [vmem:[#allocation2 + $0x18] sm:$0xff] %vm4780, %v4743
        %4785 = vst.msk [vmem:[#allocation2 + $0x20] sm:$0xff] %vm4780, %v4746
        %4786 = vst.msk [vmem:[#allocation2 + $0x28] sm:$0xff] %vm4780, %v4749
        %4787 = vst.msk [vmem:[#allocation2 + $0x30] sm:$0xff] %vm4780, %v4752
        %4788 = vst.msk [vmem:[#allocation2 + $0x38] sm:$0xff] %vm4780, %v4755
        %4789 = vst.msk [vmem:[#allocation2 + $0x40] sm:$0xff] %vm4780, %v4758
        %4790 = vst.msk [vmem:[#allocation2 + $0x48] sm:$0xff] %vm4780, %v4761
        %4791 = vst.msk [vmem:[#allocation2 + $0x50] sm:$0xff] %vm4780, %v4764
        %4792 = vst.msk [vmem:[#allocation2 + $0x58] sm:$0xff] %vm4780, %v4767
        %4793 = vst.msk [vmem:[#allocation2 + $0x60] sm:$0xff] %vm4780, %v4770
        %4794 = vst.msk [vmem:[#allocation2 + $0x68] sm:$0xff] %vm4780, %v4773
        %4795 = vst.msk [vmem:[#allocation2 + $0x70] sm:$0xff] %vm4780, %v4776
        %4796 = vst.msk [vmem:[#allocation2 + $0x78] sm:$0xff] %vm4780, %v4779
        %v4797 = vperm.slane %v1524, 1
        %v4798 = vperm.slane %v1553, 1
        %v4799 = vmul.f32 %v2216, %v4797
        %v4800 = vmul.f32 %v2217, %v4798
        %v4801 = vmul.f32 %v2218, %v4797
        %v4802 = vmul.f32 %v2219, %v4798
        %v4803 = vmul.f32 %v2220, %v4797
        %v4804 = vmul.f32 %v2221, %v4798
        %v4805 = vmul.f32 %v2222, %v4797
        %v4806 = vmul.f32 %v2223, %v4798
        %v4807 = vmul.f32 %v2224, %v4797
        %v4808 = vmul.f32 %v2225, %v4798
        %v4809 = vmul.f32 %v2226, %v4797
        %v4810 = vmul.f32 %v2227, %v4798
        %v4811 = vmul.f32 %v2228, %v4797
        %v4812 = vmul.f32 %v2229, %v4798
        %v4813 = vmul.f32 %v2230, %v4797
        %v4814 = vmul.f32 %v2231, %v4798
        %v4815 = vmul.f32 %v2232, %v4797
        %v4816 = vmul.f32 %v2233, %v4798
        %v4817 = vmul.f32 %v2234, %v4797
        %v4818 = vmul.f32 %v2235, %v4798
        %v4819 = vmul.f32 %v2236, %v4797
        %v4820 = vmul.f32 %v2237, %v4798
        %v4821 = vmul.f32 %v2238, %v4797
        %v4822 = vmul.f32 %v2239, %v4798
        %v4823 = vmul.f32 %v2240, %v4797
        %v4824 = vmul.f32 %v2241, %v4798
        %v4825 = vmul.f32 %v2242, %v4797
        %v4826 = vmul.f32 %v2243, %v4798
        %v4827 = vmul.f32 %v2244, %v4797
        %v4828 = vmul.f32 %v2245, %v4798
        %v4829 = vmul.f32 %v2246, %v4797
        %v4830 = vmul.f32 %v2247, %v4798
        %v4831 = vadd.f32 %v4799, %v2538
        %v4832 = vadd.f32 %v4800, %v2539
        %v4833 = vadd.f32 %v4801, %v2540
        %v4834 = vadd.f32 %v4802, %v2541
        %v4835 = vadd.f32 %v4803, %v2542
        %v4836 = vadd.f32 %v4804, %v2543
        %v4837 = vadd.f32 %v4805, %v2544
        %v4838 = vadd.f32 %v4806, %v2545
        %v4839 = vadd.f32 %v4807, %v2546
        %v4840 = vadd.f32 %v4808, %v2547
        %v4841 = vadd.f32 %v4809, %v2548
        %v4842 = vadd.f32 %v4810, %v2549
        %v4843 = vadd.f32 %v4811, %v2550
        %v4844 = vadd.f32 %v4812, %v2551
        %v4845 = vadd.f32 %v4813, %v2552
        %v4846 = vadd.f32 %v4814, %v2553
        %v4847 = vadd.f32 %v4815, %v2554
        %v4848 = vadd.f32 %v4816, %v2555
        %v4849 = vadd.f32 %v4817, %v2556
        %v4850 = vadd.f32 %v4818, %v2557
        %v4851 = vadd.f32 %v4819, %v2558
        %v4852 = vadd.f32 %v4820, %v2559
        %v4853 = vadd.f32 %v4821, %v2560
        %v4854 = vadd.f32 %v4822, %v2561
        %v4855 = vadd.f32 %v4823, %v2562
        %v4856 = vadd.f32 %v4824, %v2563
        %v4857 = vadd.f32 %v4825, %v2564
        %v4858 = vadd.f32 %v4826, %v2565
        %v4859 = vadd.f32 %v4827, %v2566
        %v4860 = vadd.f32 %v4828, %v2567
        %v4861 = vadd.f32 %v4829, %v2568
        %v4862 = vadd.f32 %v4830, %v2569
        %v4863 = vmax.f32 %v4831, %v4832
        %4864 = vmax.xlane.f32.xlu0 %v4863
        %v4865 = vpop.xlane.xlu0 %4864
        %v4866 = vmax.f32 %v4833, %v4834
        %4867 = vmax.xlane.f32.xlu0 %v4866
        %v4868 = vpop.xlane.xlu0 %4867
        %v4869 = vmax.f32 %v4835, %v4836
        %4870 = vmax.xlane.f32.xlu0 %v4869
        %v4871 = vpop.xlane.xlu0 %4870
        %v4872 = vmax.f32 %v4837, %v4838
        %4873 = vmax.xlane.f32.xlu0 %v4872
        %v4874 = vpop.xlane.xlu0 %4873
        %v4875 = vmax.f32 %v4839, %v4840
        %4876 = vmax.xlane.f32.xlu0 %v4875
        %v4877 = vpop.xlane.xlu0 %4876
        %v4878 = vmax.f32 %v4841, %v4842
        %4879 = vmax.xlane.f32.xlu0 %v4878
        %v4880 = vpop.xlane.xlu0 %4879
        %v4881 = vmax.f32 %v4843, %v4844
        %4882 = vmax.xlane.f32.xlu0 %v4881
        %v4883 = vpop.xlane.xlu0 %4882
        %v4884 = vmax.f32 %v4845, %v4846
        %4885 = vmax.xlane.f32.xlu0 %v4884
        %v4886 = vpop.xlane.xlu0 %4885
        %v4887 = vmax.f32 %v4847, %v4848
        %4888 = vmax.xlane.f32.xlu0 %v4887
        %v4889 = vpop.xlane.xlu0 %4888
        %v4890 = vmax.f32 %v4849, %v4850
        %4891 = vmax.xlane.f32.xlu0 %v4890
        %v4892 = vpop.xlane.xlu0 %4891
        %v4893 = vmax.f32 %v4851, %v4852
        %4894 = vmax.xlane.f32.xlu0 %v4893
        %v4895 = vpop.xlane.xlu0 %4894
        %v4896 = vmax.f32 %v4853, %v4854
        %4897 = vmax.xlane.f32.xlu0 %v4896
        %v4898 = vpop.xlane.xlu0 %4897
        %v4899 = vmax.f32 %v4855, %v4856
        %4900 = vmax.xlane.f32.xlu0 %v4899
        %v4901 = vpop.xlane.xlu0 %4900
        %v4902 = vmax.f32 %v4857, %v4858
        %4903 = vmax.xlane.f32.xlu0 %v4902
        %v4904 = vpop.xlane.xlu0 %4903
        %v4905 = vmax.f32 %v4859, %v4860
        %4906 = vmax.xlane.f32.xlu0 %v4905
        %v4907 = vpop.xlane.xlu0 %4906
        %v4908 = vmax.f32 %v4861, %v4862
        %4909 = vmax.xlane.f32.xlu0 %v4908
        %v4910 = vpop.xlane.xlu0 %4909
        %vm4911 = vcmask 146568
        %4912 = vst.msk [vmem:[#allocation2] sm:$0xff] %vm4911, %v4865
        %4913 = vst.msk [vmem:[#allocation2 + $0x8] sm:$0xff] %vm4911, %v4868
        %4914 = vst.msk [vmem:[#allocation2 + $0x10] sm:$0xff] %vm4911, %v4871
        %4915 = vst.msk [vmem:[#allocation2 + $0x18] sm:$0xff] %vm4911, %v4874
        %4916 = vst.msk [vmem:[#allocation2 + $0x20] sm:$0xff] %vm4911, %v4877
        %4917 = vst.msk [vmem:[#allocation2 + $0x28] sm:$0xff] %vm4911, %v4880
        %4918 = vst.msk [vmem:[#allocation2 + $0x30] sm:$0xff] %vm4911, %v4883
        %4919 = vst.msk [vmem:[#allocation2 + $0x38] sm:$0xff] %vm4911, %v4886
        %4920 = vst.msk [vmem:[#allocation2 + $0x40] sm:$0xff] %vm4911, %v4889
        %4921 = vst.msk [vmem:[#allocation2 + $0x48] sm:$0xff] %vm4911, %v4892
        %4922 = vst.msk [vmem:[#allocation2 + $0x50] sm:$0xff] %vm4911, %v4895
        %4923 = vst.msk [vmem:[#allocation2 + $0x58] sm:$0xff] %vm4911, %v4898
        %4924 = vst.msk [vmem:[#allocation2 + $0x60] sm:$0xff] %vm4911, %v4901
        %4925 = vst.msk [vmem:[#allocation2 + $0x68] sm:$0xff] %vm4911, %v4904
        %4926 = vst.msk [vmem:[#allocation2 + $0x70] sm:$0xff] %vm4911, %v4907
        %4927 = vst.msk [vmem:[#allocation2 + $0x78] sm:$0xff] %vm4911, %v4910
        %v4928 = vperm.slane %v1524, 2
        %v4929 = vperm.slane %v1553, 2
        %v4930 = vmul.f32 %v2216, %v4928
        %v4931 = vmul.f32 %v2217, %v4929
        %v4932 = vmul.f32 %v2218, %v4928
        %v4933 = vmul.f32 %v2219, %v4929
        %v4934 = vmul.f32 %v2220, %v4928
        %v4935 = vmul.f32 %v2221, %v4929
        %v4936 = vmul.f32 %v2222, %v4928
        %v4937 = vmul.f32 %v2223, %v4929
        %v4938 = vmul.f32 %v2224, %v4928
        %v4939 = vmul.f32 %v2225, %v4929
        %v4940 = vmul.f32 %v2226, %v4928
        %v4941 = vmul.f32 %v2227, %v4929
        %v4942 = vmul.f32 %v2228, %v4928
        %v4943 = vmul.f32 %v2229, %v4929
        %v4944 = vmul.f32 %v2230, %v4928
        %v4945 = vmul.f32 %v2231, %v4929
        %v4946 = vmul.f32 %v2232, %v4928
        %v4947 = vmul.f32 %v2233, %v4929
        %v4948 = vmul.f32 %v2234, %v4928
        %v4949 = vmul.f32 %v2235, %v4929
        %v4950 = vmul.f32 %v2236, %v4928
        %v4951 = vmul.f32 %v2237, %v4929
        %v4952 = vmul.f32 %v2238, %v4928
        %v4953 = vmul.f32 %v2239, %v4929
        %v4954 = vmul.f32 %v2240, %v4928
        %v4955 = vmul.f32 %v2241, %v4929
        %v4956 = vmul.f32 %v2242, %v4928
        %v4957 = vmul.f32 %v2243, %v4929
        %v4958 = vmul.f32 %v2244, %v4928
        %v4959 = vmul.f32 %v2245, %v4929
        %v4960 = vmul.f32 %v2246, %v4928
        %v4961 = vmul.f32 %v2247, %v4929
        %v4962 = vadd.f32 %v4930, %v2538
        %v4963 = vadd.f32 %v4931, %v2539
        %v4964 = vadd.f32 %v4932, %v2540
        %v4965 = vadd.f32 %v4933, %v2541
        %v4966 = vadd.f32 %v4934, %v2542
        %v4967 = vadd.f32 %v4935, %v2543
        %v4968 = vadd.f32 %v4936, %v2544
        %v4969 = vadd.f32 %v4937, %v2545
        %v4970 = vadd.f32 %v4938, %v2546
        %v4971 = vadd.f32 %v4939, %v2547
        %v4972 = vadd.f32 %v4940, %v2548
        %v4973 = vadd.f32 %v4941, %v2549
        %v4974 = vadd.f32 %v4942, %v2550
        %v4975 = vadd.f32 %v4943, %v2551
        %v4976 = vadd.f32 %v4944, %v2552
        %v4977 = vadd.f32 %v4945, %v2553
        %v4978 = vadd.f32 %v4946, %v2554
        %v4979 = vadd.f32 %v4947, %v2555
        %v4980 = vadd.f32 %v4948, %v2556
        %v4981 = vadd.f32 %v4949, %v2557
        %v4982 = vadd.f32 %v4950, %v2558
        %v4983 = vadd.f32 %v4951, %v2559
        %v4984 = vadd.f32 %v4952, %v2560
        %v4985 = vadd.f32 %v4953, %v2561
        %v4986 = vadd.f32 %v4954, %v2562
        %v4987 = vadd.f32 %v4955, %v2563
        %v4988 = vadd.f32 %v4956, %v2564
        %v4989 = vadd.f32 %v4957, %v2565
        %v4990 = vadd.f32 %v4958, %v2566
        %v4991 = vadd.f32 %v4959, %v2567
        %v4992 = vadd.f32 %v4960, %v2568
        %v4993 = vadd.f32 %v4961, %v2569
        %v4994 = vmax.f32 %v4962, %v4963
        %4995 = vmax.xlane.f32.xlu0 %v4994
        %v4996 = vpop.xlane.xlu0 %4995
        %v4997 = vmax.f32 %v4964, %v4965
        %4998 = vmax.xlane.f32.xlu0 %v4997
        %v4999 = vpop.xlane.xlu0 %4998
        %v5000 = vmax.f32 %v4966, %v4967
        %5001 = vmax.xlane.f32.xlu0 %v5000
        %v5002 = vpop.xlane.xlu0 %5001
        %v5003 = vmax.f32 %v4968, %v4969
        %5004 = vmax.xlane.f32.xlu0 %v5003
        %v5005 = vpop.xlane.xlu0 %5004
        %v5006 = vmax.f32 %v4970, %v4971
        %5007 = vmax.xlane.f32.xlu0 %v5006
        %v5008 = vpop.xlane.xlu0 %5007
        %v5009 = vmax.f32 %v4972, %v4973
        %5010 = vmax.xlane.f32.xlu0 %v5009
        %v5011 = vpop.xlane.xlu0 %5010
        %v5012 = vmax.f32 %v4974, %v4975
        %5013 = vmax.xlane.f32.xlu0 %v5012
        %v5014 = vpop.xlane.xlu0 %5013
        %v5015 = vmax.f32 %v4976, %v4977
        %5016 = vmax.xlane.f32.xlu0 %v5015
        %v5017 = vpop.xlane.xlu0 %5016
        %v5018 = vmax.f32 %v4978, %v4979
        %5019 = vmax.xlane.f32.xlu0 %v5018
        %v5020 = vpop.xlane.xlu0 %5019
        %v5021 = vmax.f32 %v4980, %v4981
        %5022 = vmax.xlane.f32.xlu0 %v5021
        %v5023 = vpop.xlane.xlu0 %5022
        %v5024 = vmax.f32 %v4982, %v4983
        %5025 = vmax.xlane.f32.xlu0 %v5024
        %v5026 = vpop.xlane.xlu0 %5025
        %v5027 = vmax.f32 %v4984, %v4985
        %5028 = vmax.xlane.f32.xlu0 %v5027
        %v5029 = vpop.xlane.xlu0 %5028
        %v5030 = vmax.f32 %v4986, %v4987
        %5031 = vmax.xlane.f32.xlu0 %v5030
        %v5032 = vpop.xlane.xlu0 %5031
        %v5033 = vmax.f32 %v4988, %v4989
        %5034 = vmax.xlane.f32.xlu0 %v5033
        %v5035 = vpop.xlane.xlu0 %5034
        %v5036 = vmax.f32 %v4990, %v4991
        %5037 = vmax.xlane.f32.xlu0 %v5036
        %v5038 = vpop.xlane.xlu0 %5037
        %v5039 = vmax.f32 %v4992, %v4993
        %5040 = vmax.xlane.f32.xlu0 %v5039
        %v5041 = vpop.xlane.xlu0 %5040
        %vm5042 = vcmask 154768
        %5043 = vst.msk [vmem:[#allocation2] sm:$0xff] %vm5042, %v4996
        %5044 = vst.msk [vmem:[#allocation2 + $0x8] sm:$0xff] %vm5042, %v4999
        %5045 = vst.msk [vmem:[#allocation2 + $0x10] sm:$0xff] %vm5042, %v5002
        %5046 = vst.msk [vmem:[#allocation2 + $0x18] sm:$0xff] %vm5042, %v5005
        %5047 = vst.msk [vmem:[#allocation2 + $0x20] sm:$0xff] %vm5042, %v5008
        %5048 = vst.msk [vmem:[#allocation2 + $0x28] sm:$0xff] %vm5042, %v5011
        %5049 = vst.msk [vmem:[#allocation2 + $0x30] sm:$0xff] %vm5042, %v5014
        %5050 = vst.msk [vmem:[#allocation2 + $0x38] sm:$0xff] %vm5042, %v5017
        %5051 = vst.msk [vmem:[#allocation2 + $0x40] sm:$0xff] %vm5042, %v5020
        %5052 = vst.msk [vmem:[#allocation2 + $0x48] sm:$0xff] %vm5042, %v5023
        %5053 = vst.msk [vmem:[#allocation2 + $0x50] sm:$0xff] %vm5042, %v5026
        %5054 = vst.msk [vmem:[#allocation2 + $0x58] sm:$0xff] %vm5042, %v5029
        %5055 = vst.msk [vmem:[#allocation2 + $0x60] sm:$0xff] %vm5042, %v5032
        %5056 = vst.msk [vmem:[#allocation2 + $0x68] sm:$0xff] %vm5042, %v5035
        %5057 = vst.msk [vmem:[#allocation2 + $0x70] sm:$0xff] %vm5042, %v5038
        %5058 = vst.msk [vmem:[#allocation2 + $0x78] sm:$0xff] %vm5042, %v5041
        %v5059 = vperm.slane %v1524, 3
        %v5060 = vperm.slane %v1553, 3
        %v5061 = vmul.f32 %v2216, %v5059
        %v5062 = vmul.f32 %v2217, %v5060
        %v5063 = vmul.f32 %v2218, %v5059
        %v5064 = vmul.f32 %v2219, %v5060
        %v5065 = vmul.f32 %v2220, %v5059
        %v5066 = vmul.f32 %v2221, %v5060
        %v5067 = vmul.f32 %v2222, %v5059
        %v5068 = vmul.f32 %v2223, %v5060
        %v5069 = vmul.f32 %v2224, %v5059
        %v5070 = vmul.f32 %v2225, %v5060
        %v5071 = vmul.f32 %v2226, %v5059
        %v5072 = vmul.f32 %v2227, %v5060
        %v5073 = vmul.f32 %v2228, %v5059
        %v5074 = vmul.f32 %v2229, %v5060
        %v5075 = vmul.f32 %v2230, %v5059
        %v5076 = vmul.f32 %v2231, %v5060
        %v5077 = vmul.f32 %v2232, %v5059
        %v5078 = vmul.f32 %v2233, %v5060
        %v5079 = vmul.f32 %v2234, %v5059
        %v5080 = vmul.f32 %v2235, %v5060
        %v5081 = vmul.f32 %v2236, %v5059
        %v5082 = vmul.f32 %v2237, %v5060
        %v5083 = vmul.f32 %v2238, %v5059
        %v5084 = vmul.f32 %v2239, %v5060
        %v5085 = vmul.f32 %v2240, %v5059
        %v5086 = vmul.f32 %v2241, %v5060
        %v5087 = vmul.f32 %v2242, %v5059
        %v5088 = vmul.f32 %v2243, %v5060
        %v5089 = vmul.f32 %v2244, %v5059
        %v5090 = vmul.f32 %v2245, %v5060
        %v5091 = vmul.f32 %v2246, %v5059
        %v5092 = vmul.f32 %v2247, %v5060
        %v5093 = vadd.f32 %v5061, %v2538
        %v5094 = vadd.f32 %v5062, %v2539
        %v5095 = vadd.f32 %v5063, %v2540
        %v5096 = vadd.f32 %v5064, %v2541
        %v5097 = vadd.f32 %v5065, %v2542
        %v5098 = vadd.f32 %v5066, %v2543
        %v5099 = vadd.f32 %v5067, %v2544
        %v5100 = vadd.f32 %v5068, %v2545
        %v5101 = vadd.f32 %v5069, %v2546
        %v5102 = vadd.f32 %v5070, %v2547
        %v5103 = vadd.f32 %v5071, %v2548
        %v5104 = vadd.f32 %v5072, %v2549
        %v5105 = vadd.f32 %v5073, %v2550
        %v5106 = vadd.f32 %v5074, %v2551
        %v5107 = vadd.f32 %v5075, %v2552
        %v5108 = vadd.f32 %v5076, %v2553
        %v5109 = vadd.f32 %v5077, %v2554
        %v5110 = vadd.f32 %v5078, %v2555
        %v5111 = vadd.f32 %v5079, %v2556
        %v5112 = vadd.f32 %v5080, %v2557
        %v5113 = vadd.f32 %v5081, %v2558
        %v5114 = vadd.f32 %v5082, %v2559
        %v5115 = vadd.f32 %v5083, %v2560
        %v5116 = vadd.f32 %v5084, %v2561
        %v5117 = vadd.f32 %v5085, %v2562
        %v5118 = vadd.f32 %v5086, %v2563
        %v5119 = vadd.f32 %v5087, %v2564
        %v5120 = vadd.f32 %v5088, %v2565
        %v5121 = vadd.f32 %v5089, %v2566
        %v5122 = vadd.f32 %v5090, %v2567
        %v5123 = vadd.f32 %v5091, %v2568
        %v5124 = vadd.f32 %v5092, %v2569
        %v5125 = vmax.f32 %v5093, %v5094
        %5126 = vmax.xlane.f32.xlu0 %v5125
        %v5127 = vpop.xlane.xlu0 %5126
        %v5128 = vmax.f32 %v5095, %v5096
        %5129 = vmax.xlane.f32.xlu0 %v5128
        %v5130 = vpop.xlane.xlu0 %5129
        %v5131 = vmax.f32 %v5097, %v5098
        %5132 = vmax.xlane.f32.xlu0 %v5131
        %v5133 = vpop.xlane.xlu0 %5132
        %v5134 = vmax.f32 %v5099, %v5100
        %5135 = vmax.xlane.f32.xlu0 %v5134
        %v5136 = vpop.xlane.xlu0 %5135
        %v5137 = vmax.f32 %v5101, %v5102
        %5138 = vmax.xlane.f32.xlu0 %v5137
        %v5139 = vpop.xlane.xlu0 %5138
        %v5140 = vmax.f32 %v5103, %v5104
        %5141 = vmax.xlane.f32.xlu0 %v5140
        %v5142 = vpop.xlane.xlu0 %5141
        %v5143 = vmax.f32 %v5105, %v5106
        %5144 = vmax.xlane.f32.xlu0 %v5143
        %v5145 = vpop.xlane.xlu0 %5144
        %v5146 = vmax.f32 %v5107, %v5108
        %5147 = vmax.xlane.f32.xlu0 %v5146
        %v5148 = vpop.xlane.xlu0 %5147
        %v5149 = vmax.f32 %v5109, %v5110
        %5150 = vmax.xlane.f32.xlu0 %v5149
        %v5151 = vpop.xlane.xlu0 %5150
        %v5152 = vmax.f32 %v5111, %v5112
        %5153 = vmax.xlane.f32.xlu0 %v5152
        %v5154 = vpop.xlane.xlu0 %5153
        %v5155 = vmax.f32 %v5113, %v5114
        %5156 = vmax.xlane.f32.xlu0 %v5155
        %v5157 = vpop.xlane.xlu0 %5156
        %v5158 = vmax.f32 %v5115, %v5116
        %5159 = vmax.xlane.f32.xlu0 %v5158
        %v5160 = vpop.xlane.xlu0 %5159
        %v5161 = vmax.f32 %v5117, %v5118
        %5162 = vmax.xlane.f32.xlu0 %v5161
        %v5163 = vpop.xlane.xlu0 %5162
        %v5164 = vmax.f32 %v5119, %v5120
        %5165 = vmax.xlane.f32.xlu0 %v5164
        %v5166 = vpop.xlane.xlu0 %5165
        %v5167 = vmax.f32 %v5121, %v5122
        %5168 = vmax.xlane.f32.xlu0 %v5167
        %v5169 = vpop.xlane.xlu0 %5168
        %v5170 = vmax.f32 %v5123, %v5124
        %5171 = vmax.xlane.f32.xlu0 %v5170
        %v5172 = vpop.xlane.xlu0 %5171
        %vm5173 = vcmask 162968
        %5174 = vst.msk [vmem:[#allocation2] sm:$0xff] %vm5173, %v5127
        %5175 = vst.msk [vmem:[#allocation2 + $0x8] sm:$0xff] %vm5173, %v5130
        %5176 = vst.msk [vmem:[#allocation2 + $0x10] sm:$0xff] %vm5173, %v5133
        %5177 = vst.msk [vmem:[#allocation2 + $0x18] sm:$0xff] %vm5173, %v5136
        %5178 = vst.msk [vmem:[#allocation2 + $0x20] sm:$0xff] %vm5173, %v5139
        %5179 = vst.msk [vmem:[#allocation2 + $0x28] sm:$0xff] %vm5173, %v5142
        %5180 = vst.msk [vmem:[#allocation2 + $0x30] sm:$0xff] %vm5173, %v5145
        %5181 = vst.msk [vmem:[#allocation2 + $0x38] sm:$0xff] %vm5173, %v5148
        %5182 = vst.msk [vmem:[#allocation2 + $0x40] sm:$0xff] %vm5173, %v5151
        %5183 = vst.msk [vmem:[#allocation2 + $0x48] sm:$0xff] %vm5173, %v5154
        %5184 = vst.msk [vmem:[#allocation2 + $0x50] sm:$0xff] %vm5173, %v5157
        %5185 = vst.msk [vmem:[#allocation2 + $0x58] sm:$0xff] %vm5173, %v5160
        %5186 = vst.msk [vmem:[#allocation2 + $0x60] sm:$0xff] %vm5173, %v5163
        %5187 = vst.msk [vmem:[#allocation2 + $0x68] sm:$0xff] %vm5173, %v5166
        %5188 = vst.msk [vmem:[#allocation2 + $0x70] sm:$0xff] %vm5173, %v5169
        %5189 = vst.msk [vmem:[#allocation2 + $0x78] sm:$0xff] %vm5173, %v5172
        %v5190 = vperm.slane %v1524, 4
        %v5191 = vperm.slane %v1553, 4
        %v5192 = vmul.f32 %v2216, %v5190
        %v5193 = vmul.f32 %v2217, %v5191
        %v5194 = vmul.f32 %v2218, %v5190
        %v5195 = vmul.f32 %v2219, %v5191
        %v5196 = vmul.f32 %v2220, %v5190
        %v5197 = vmul.f32 %v2221, %v5191
        %v5198 = vmul.f32 %v2222, %v5190
        %v5199 = vmul.f32 %v2223, %v5191
        %v5200 = vmul.f32 %v2224, %v5190
        %v5201 = vmul.f32 %v2225, %v5191
        %v5202 = vmul.f32 %v2226, %v5190
        %v5203 = vmul.f32 %v2227, %v5191
        %v5204 = vmul.f32 %v2228, %v5190
        %v5205 = vmul.f32 %v2229, %v5191
        %v5206 = vmul.f32 %v2230, %v5190
        %v5207 = vmul.f32 %v2231, %v5191
        %v5208 = vmul.f32 %v2232, %v5190
        %v5209 = vmul.f32 %v2233, %v5191
        %v5210 = vmul.f32 %v2234, %v5190
        %v5211 = vmul.f32 %v2235, %v5191
        %v5212 = vmul.f32 %v2236, %v5190
        %v5213 = vmul.f32 %v2237, %v5191
        %v5214 = vmul.f32 %v2238, %v5190
        %v5215 = vmul.f32 %v2239, %v5191
        %v5216 = vmul.f32 %v2240, %v5190
        %v5217 = vmul.f32 %v2241, %v5191
        %v5218 = vmul.f32 %v2242, %v5190
        %v5219 = vmul.f32 %v2243, %v5191
        %v5220 = vmul.f32 %v2244, %v5190
        %v5221 = vmul.f32 %v2245, %v5191
        %v5222 = vmul.f32 %v2246, %v5190
        %v5223 = vmul.f32 %v2247, %v5191
        %v5224 = vadd.f32 %v5192, %v2538
        %v5225 = vadd.f32 %v5193, %v2539
        %v5226 = vadd.f32 %v5194, %v2540
        %v5227 = vadd.f32 %v5195, %v2541
        %v5228 = vadd.f32 %v5196, %v2542
        %v5229 = vadd.f32 %v5197, %v2543
        %v5230 = vadd.f32 %v5198, %v2544
        %v5231 = vadd.f32 %v5199, %v2545
        %v5232 = vadd.f32 %v5200, %v2546
        %v5233 = vadd.f32 %v5201, %v2547
        %v5234 = vadd.f32 %v5202, %v2548
        %v5235 = vadd.f32 %v5203, %v2549
        %v5236 = vadd.f32 %v5204, %v2550
        %v5237 = vadd.f32 %v5205, %v2551
        %v5238 = vadd.f32 %v5206, %v2552
        %v5239 = vadd.f32 %v5207, %v2553
        %v5240 = vadd.f32 %v5208, %v2554
        %v5241 = vadd.f32 %v5209, %v2555
        %v5242 = vadd.f32 %v5210, %v2556
        %v5243 = vadd.f32 %v5211, %v2557
        %v5244 = vadd.f32 %v5212, %v2558
        %v5245 = vadd.f32 %v5213, %v2559
        %v5246 = vadd.f32 %v5214, %v2560
        %v5247 = vadd.f32 %v5215, %v2561
        %v5248 = vadd.f32 %v5216, %v2562
        %v5249 = vadd.f32 %v5217, %v2563
        %v5250 = vadd.f32 %v5218, %v2564
        %v5251 = vadd.f32 %v5219, %v2565
        %v5252 = vadd.f32 %v5220, %v2566
        %v5253 = vadd.f32 %v5221, %v2567
        %v5254 = vadd.f32 %v5222, %v2568
        %v5255 = vadd.f32 %v5223, %v2569
        %v5256 = vmax.f32 %v5224, %v5225
        %5257 = vmax.xlane.f32.xlu0 %v5256
        %v5258 = vpop.xlane.xlu0 %5257
        %v5259 = vmax.f32 %v5226, %v5227
        %5260 = vmax.xlane.f32.xlu0 %v5259
        %v5261 = vpop.xlane.xlu0 %5260
        %v5262 = vmax.f32 %v5228, %v5229
        %5263 = vmax.xlane.f32.xlu0 %v5262
        %v5264 = vpop.xlane.xlu0 %5263
        %v5265 = vmax.f32 %v5230, %v5231
        %5266 = vmax.xlane.f32.xlu0 %v5265
        %v5267 = vpop.xlane.xlu0 %5266
        %v5268 = vmax.f32 %v5232, %v5233
        %5269 = vmax.xlane.f32.xlu0 %v5268
        %v5270 = vpop.xlane.xlu0 %5269
        %v5271 = vmax.f32 %v5234, %v5235
        %5272 = vmax.xlane.f32.xlu0 %v5271
        %v5273 = vpop.xlane.xlu0 %5272
        %v5274 = vmax.f32 %v5236, %v5237
        %5275 = vmax.xlane.f32.xlu0 %v5274
        %v5276 = vpop.xlane.xlu0 %5275
        %v5277 = vmax.f32 %v5238, %v5239
        %5278 = vmax.xlane.f32.xlu0 %v5277
        %v5279 = vpop.xlane.xlu0 %5278
        %v5280 = vmax.f32 %v5240, %v5241
        %5281 = vmax.xlane.f32.xlu0 %v5280
        %v5282 = vpop.xlane.xlu0 %5281
        %v5283 = vmax.f32 %v5242, %v5243
        %5284 = vmax.xlane.f32.xlu0 %v5283
        %v5285 = vpop.xlane.xlu0 %5284
        %v5286 = vmax.f32 %v5244, %v5245
        %5287 = vmax.xlane.f32.xlu0 %v5286
        %v5288 = vpop.xlane.xlu0 %5287
        %v5289 = vmax.f32 %v5246, %v5247
        %5290 = vmax.xlane.f32.xlu0 %v5289
        %v5291 = vpop.xlane.xlu0 %5290
        %v5292 = vmax.f32 %v5248, %v5249
        %5293 = vmax.xlane.f32.xlu0 %v5292
        %v5294 = vpop.xlane.xlu0 %5293
        %v5295 = vmax.f32 %v5250, %v5251
        %5296 = vmax.xlane.f32.xlu0 %v5295
        %v5297 = vpop.xlane.xlu0 %5296
        %v5298 = vmax.f32 %v5252, %v5253
        %5299 = vmax.xlane.f32.xlu0 %v5298
        %v5300 = vpop.xlane.xlu0 %5299
        %v5301 = vmax.f32 %v5254, %v5255
        %5302 = vmax.xlane.f32.xlu0 %v5301
        %v5303 = vpop.xlane.xlu0 %5302
        %vm5304 = vcmask 171168
        %5305 = vst.msk [vmem:[#allocation2] sm:$0xff] %vm5304, %v5258
        %5306 = vst.msk [vmem:[#allocation2 + $0x8] sm:$0xff] %vm5304, %v5261
        %5307 = vst.msk [vmem:[#allocation2 + $0x10] sm:$0xff] %vm5304, %v5264
        %5308 = vst.msk [vmem:[#allocation2 + $0x18] sm:$0xff] %vm5304, %v5267
        %5309 = vst.msk [vmem:[#allocation2 + $0x20] sm:$0xff] %vm5304, %v5270
        %5310 = vst.msk [vmem:[#allocation2 + $0x28] sm:$0xff] %vm5304, %v5273
        %5311 = vst.msk [vmem:[#allocation2 + $0x30] sm:$0xff] %vm5304, %v5276
        %5312 = vst.msk [vmem:[#allocation2 + $0x38] sm:$0xff] %vm5304, %v5279
        %5313 = vst.msk [vmem:[#allocation2 + $0x40] sm:$0xff] %vm5304, %v5282
        %5314 = vst.msk [vmem:[#allocation2 + $0x48] sm:$0xff] %vm5304, %v5285
        %5315 = vst.msk [vmem:[#allocation2 + $0x50] sm:$0xff] %vm5304, %v5288
        %5316 = vst.msk [vmem:[#allocation2 + $0x58] sm:$0xff] %vm5304, %v5291
        %5317 = vst.msk [vmem:[#allocation2 + $0x60] sm:$0xff] %vm5304, %v5294
        %5318 = vst.msk [vmem:[#allocation2 + $0x68] sm:$0xff] %vm5304, %v5297
        %5319 = vst.msk [vmem:[#allocation2 + $0x70] sm:$0xff] %vm5304, %v5300
        %5320 = vst.msk [vmem:[#allocation2 + $0x78] sm:$0xff] %vm5304, %v5303
        %v5321 = vperm.slane %v1524, 5
        %v5322 = vperm.slane %v1553, 5
        %v5323 = vmul.f32 %v2216, %v5321
        %v5324 = vmul.f32 %v2217, %v5322
        %v5325 = vmul.f32 %v2218, %v5321
        %v5326 = vmul.f32 %v2219, %v5322
        %v5327 = vmul.f32 %v2220, %v5321
        %v5328 = vmul.f32 %v2221, %v5322
        %v5329 = vmul.f32 %v2222, %v5321
        %v5330 = vmul.f32 %v2223, %v5322
        %v5331 = vmul.f32 %v2224, %v5321
        %v5332 = vmul.f32 %v2225, %v5322
        %v5333 = vmul.f32 %v2226, %v5321
        %v5334 = vmul.f32 %v2227, %v5322
        %v5335 = vmul.f32 %v2228, %v5321
        %v5336 = vmul.f32 %v2229, %v5322
        %v5337 = vmul.f32 %v2230, %v5321
        %v5338 = vmul.f32 %v2231, %v5322
        %v5339 = vmul.f32 %v2232, %v5321
        %v5340 = vmul.f32 %v2233, %v5322
        %v5341 = vmul.f32 %v2234, %v5321
        %v5342 = vmul.f32 %v2235, %v5322
        %v5343 = vmul.f32 %v2236, %v5321
        %v5344 = vmul.f32 %v2237, %v5322
        %v5345 = vmul.f32 %v2238, %v5321
        %v5346 = vmul.f32 %v2239, %v5322
        %v5347 = vmul.f32 %v2240, %v5321
        %v5348 = vmul.f32 %v2241, %v5322
        %v5349 = vmul.f32 %v2242, %v5321
        %v5350 = vmul.f32 %v2243, %v5322
        %v5351 = vmul.f32 %v2244, %v5321
        %v5352 = vmul.f32 %v2245, %v5322
        %v5353 = vmul.f32 %v2246, %v5321
        %v5354 = vmul.f32 %v2247, %v5322
        %v5355 = vadd.f32 %v5323, %v2538
        %v5356 = vadd.f32 %v5324, %v2539
        %v5357 = vadd.f32 %v5325, %v2540
        %v5358 = vadd.f32 %v5326, %v2541
        %v5359 = vadd.f32 %v5327, %v2542
        %v5360 = vadd.f32 %v5328, %v2543
        %v5361 = vadd.f32 %v5329, %v2544
        %v5362 = vadd.f32 %v5330, %v2545
        %v5363 = vadd.f32 %v5331, %v2546
        %v5364 = vadd.f32 %v5332, %v2547
        %v5365 = vadd.f32 %v5333, %v2548
        %v5366 = vadd.f32 %v5334, %v2549
        %v5367 = vadd.f32 %v5335, %v2550
        %v5368 = vadd.f32 %v5336, %v2551
        %v5369 = vadd.f32 %v5337, %v2552
        %v5370 = vadd.f32 %v5338, %v2553
        %v5371 = vadd.f32 %v5339, %v2554
        %v5372 = vadd.f32 %v5340, %v2555
        %v5373 = vadd.f32 %v5341, %v2556
        %v5374 = vadd.f32 %v5342, %v2557
        %v5375 = vadd.f32 %v5343, %v2558
        %v5376 = vadd.f32 %v5344, %v2559
        %v5377 = vadd.f32 %v5345, %v2560
        %v5378 = vadd.f32 %v5346, %v2561
        %v5379 = vadd.f32 %v5347, %v2562
        %v5380 = vadd.f32 %v5348, %v2563
        %v5381 = vadd.f32 %v5349, %v2564
        %v5382 = vadd.f32 %v5350, %v2565
        %v5383 = vadd.f32 %v5351, %v2566
        %v5384 = vadd.f32 %v5352, %v2567
        %v5385 = vadd.f32 %v5353, %v2568
        %v5386 = vadd.f32 %v5354, %v2569
        %v5387 = vmax.f32 %v5355, %v5356
        %5388 = vmax.xlane.f32.xlu0 %v5387
        %v5389 = vpop.xlane.xlu0 %5388
        %v5390 = vmax.f32 %v5357, %v5358
        %5391 = vmax.xlane.f32.xlu0 %v5390
        %v5392 = vpop.xlane.xlu0 %5391
        %v5393 = vmax.f32 %v5359, %v5360
        %5394 = vmax.xlane.f32.xlu0 %v5393
        %v5395 = vpop.xlane.xlu0 %5394
        %v5396 = vmax.f32 %v5361, %v5362
        %5397 = vmax.xlane.f32.xlu0 %v5396
        %v5398 = vpop.xlane.xlu0 %5397
        %v5399 = vmax.f32 %v5363, %v5364
        %5400 = vmax.xlane.f32.xlu0 %v5399
        %v5401 = vpop.xlane.xlu0 %5400
        %v5402 = vmax.f32 %v5365, %v5366
        %5403 = vmax.xlane.f32.xlu0 %v5402
        %v5404 = vpop.xlane.xlu0 %5403
        %v5405 = vmax.f32 %v5367, %v5368
        %5406 = vmax.xlane.f32.xlu0 %v5405
        %v5407 = vpop.xlane.xlu0 %5406
        %v5408 = vmax.f32 %v5369, %v5370
        %5409 = vmax.xlane.f32.xlu0 %v5408
        %v5410 = vpop.xlane.xlu0 %5409
        %v5411 = vmax.f32 %v5371, %v5372
        %5412 = vmax.xlane.f32.xlu0 %v5411
        %v5413 = vpop.xlane.xlu0 %5412
        %v5414 = vmax.f32 %v5373, %v5374
        %5415 = vmax.xlane.f32.xlu0 %v5414
        %v5416 = vpop.xlane.xlu0 %5415
        %v5417 = vmax.f32 %v5375, %v5376
        %5418 = vmax.xlane.f32.xlu0 %v5417
        %v5419 = vpop.xlane.xlu0 %5418
        %v5420 = vmax.f32 %v5377, %v5378
        %5421 = vmax.xlane.f32.xlu0 %v5420
        %v5422 = vpop.xlane.xlu0 %5421
        %v5423 = vmax.f32 %v5379, %v5380
        %5424 = vmax.xlane.f32.xlu0 %v5423
        %v5425 = vpop.xlane.xlu0 %5424
        %v5426 = vmax.f32 %v5381, %v5382
        %5427 = vmax.xlane.f32.xlu0 %v5426
        %v5428 = vpop.xlane.xlu0 %5427
        %v5429 = vmax.f32 %v5383, %v5384
        %5430 = vmax.xlane.f32.xlu0 %v5429
        %v5431 = vpop.xlane.xlu0 %5430
        %v5432 = vmax.f32 %v5385, %v5386
        %5433 = vmax.xlane.f32.xlu0 %v5432
        %v5434 = vpop.xlane.xlu0 %5433
        %vm5435 = vcmask 179368
        %5436 = vst.msk [vmem:[#allocation2] sm:$0xff] %vm5435, %v5389
        %5437 = vst.msk [vmem:[#allocation2 + $0x8] sm:$0xff] %vm5435, %v5392
        %5438 = vst.msk [vmem:[#allocation2 + $0x10] sm:$0xff] %vm5435, %v5395
        %5439 = vst.msk [vmem:[#allocation2 + $0x18] sm:$0xff] %vm5435, %v5398
        %5440 = vst.msk [vmem:[#allocation2 + $0x20] sm:$0xff] %vm5435, %v5401
        %5441 = vst.msk [vmem:[#allocation2 + $0x28] sm:$0xff] %vm5435, %v5404
        %5442 = vst.msk [vmem:[#allocation2 + $0x30] sm:$0xff] %vm5435, %v5407
        %5443 = vst.msk [vmem:[#allocation2 + $0x38] sm:$0xff] %vm5435, %v5410
        %5444 = vst.msk [vmem:[#allocation2 + $0x40] sm:$0xff] %vm5435, %v5413
        %5445 = vst.msk [vmem:[#allocation2 + $0x48] sm:$0xff] %vm5435, %v5416
        %5446 = vst.msk [vmem:[#allocation2 + $0x50] sm:$0xff] %vm5435, %v5419
        %5447 = vst.msk [vmem:[#allocation2 + $0x58] sm:$0xff] %vm5435, %v5422
        %5448 = vst.msk [vmem:[#allocation2 + $0x60] sm:$0xff] %vm5435, %v5425
        %5449 = vst.msk [vmem:[#allocation2 + $0x68] sm:$0xff] %vm5435, %v5428
        %5450 = vst.msk [vmem:[#allocation2 + $0x70] sm:$0xff] %vm5435, %v5431
        %5451 = vst.msk [vmem:[#allocation2 + $0x78] sm:$0xff] %vm5435, %v5434
        %v5452 = vperm.slane %v1524, 6
        %v5453 = vperm.slane %v1553, 6
        %v5454 = vmul.f32 %v2216, %v5452
        %v5455 = vmul.f32 %v2217, %v5453
        %v5456 = vmul.f32 %v2218, %v5452
        %v5457 = vmul.f32 %v2219, %v5453
        %v5458 = vmul.f32 %v2220, %v5452
        %v5459 = vmul.f32 %v2221, %v5453
        %v5460 = vmul.f32 %v2222, %v5452
        %v5461 = vmul.f32 %v2223, %v5453
        %v5462 = vmul.f32 %v2224, %v5452
        %v5463 = vmul.f32 %v2225, %v5453
        %v5464 = vmul.f32 %v2226, %v5452
        %v5465 = vmul.f32 %v2227, %v5453
        %v5466 = vmul.f32 %v2228, %v5452
        %v5467 = vmul.f32 %v2229, %v5453
        %v5468 = vmul.f32 %v2230, %v5452
        %v5469 = vmul.f32 %v2231, %v5453
        %v5470 = vmul.f32 %v2232, %v5452
        %v5471 = vmul.f32 %v2233, %v5453
        %v5472 = vmul.f32 %v2234, %v5452
        %v5473 = vmul.f32 %v2235, %v5453
        %v5474 = vmul.f32 %v2236, %v5452
        %v5475 = vmul.f32 %v2237, %v5453
        %v5476 = vmul.f32 %v2238, %v5452
        %v5477 = vmul.f32 %v2239, %v5453
        %v5478 = vmul.f32 %v2240, %v5452
        %v5479 = vmul.f32 %v2241, %v5453
        %v5480 = vmul.f32 %v2242, %v5452
        %v5481 = vmul.f32 %v2243, %v5453
        %v5482 = vmul.f32 %v2244, %v5452
        %v5483 = vmul.f32 %v2245, %v5453
        %v5484 = vmul.f32 %v2246, %v5452
        %v5485 = vmul.f32 %v2247, %v5453
        %v5486 = vadd.f32 %v5454, %v2538
        %v5487 = vadd.f32 %v5455, %v2539
        %v5488 = vadd.f32 %v5456, %v2540
        %v5489 = vadd.f32 %v5457, %v2541
        %v5490 = vadd.f32 %v5458, %v2542
        %v5491 = vadd.f32 %v5459, %v2543
        %v5492 = vadd.f32 %v5460, %v2544
        %v5493 = vadd.f32 %v5461, %v2545
        %v5494 = vadd.f32 %v5462, %v2546
        %v5495 = vadd.f32 %v5463, %v2547
        %v5496 = vadd.f32 %v5464, %v2548
        %v5497 = vadd.f32 %v5465, %v2549
        %v5498 = vadd.f32 %v5466, %v2550
        %v5499 = vadd.f32 %v5467, %v2551
        %v5500 = vadd.f32 %v5468, %v2552
        %v5501 = vadd.f32 %v5469, %v2553
        %v5502 = vadd.f32 %v5470, %v2554
        %v5503 = vadd.f32 %v5471, %v2555
        %v5504 = vadd.f32 %v5472, %v2556
        %v5505 = vadd.f32 %v5473, %v2557
        %v5506 = vadd.f32 %v5474, %v2558
        %v5507 = vadd.f32 %v5475, %v2559
        %v5508 = vadd.f32 %v5476, %v2560
        %v5509 = vadd.f32 %v5477, %v2561
        %v5510 = vadd.f32 %v5478, %v2562
        %v5511 = vadd.f32 %v5479, %v2563
        %v5512 = vadd.f32 %v5480, %v2564
        %v5513 = vadd.f32 %v5481, %v2565
        %v5514 = vadd.f32 %v5482, %v2566
        %v5515 = vadd.f32 %v5483, %v2567
        %v5516 = vadd.f32 %v5484, %v2568
        %v5517 = vadd.f32 %v5485, %v2569
        %v5518 = vmax.f32 %v5486, %v5487
        %5519 = vmax.xlane.f32.xlu0 %v5518
        %v5520 = vpop.xlane.xlu0 %5519
        %v5521 = vmax.f32 %v5488, %v5489
        %5522 = vmax.xlane.f32.xlu0 %v5521
        %v5523 = vpop.xlane.xlu0 %5522
        %v5524 = vmax.f32 %v5490, %v5491
        %5525 = vmax.xlane.f32.xlu0 %v5524
        %v5526 = vpop.xlane.xlu0 %5525
        %v5527 = vmax.f32 %v5492, %v5493
        %5528 = vmax.xlane.f32.xlu0 %v5527
        %v5529 = vpop.xlane.xlu0 %5528
        %v5530 = vmax.f32 %v5494, %v5495
        %5531 = vmax.xlane.f32.xlu0 %v5530
        %v5532 = vpop.xlane.xlu0 %5531
        %v5533 = vmax.f32 %v5496, %v5497
        %5534 = vmax.xlane.f32.xlu0 %v5533
        %v5535 = vpop.xlane.xlu0 %5534
        %v5536 = vmax.f32 %v5498, %v5499
        %5537 = vmax.xlane.f32.xlu0 %v5536
        %v5538 = vpop.xlane.xlu0 %5537
        %v5539 = vmax.f32 %v5500, %v5501
        %5540 = vmax.xlane.f32.xlu0 %v5539
        %v5541 = vpop.xlane.xlu0 %5540
        %v5542 = vmax.f32 %v5502, %v5503
        %5543 = vmax.xlane.f32.xlu0 %v5542
        %v5544 = vpop.xlane.xlu0 %5543
        %v5545 = vmax.f32 %v5504, %v5505
        %5546 = vmax.xlane.f32.xlu0 %v5545
        %v5547 = vpop.xlane.xlu0 %5546
        %v5548 = vmax.f32 %v5506, %v5507
        %5549 = vmax.xlane.f32.xlu0 %v5548
        %v5550 = vpop.xlane.xlu0 %5549
        %v5551 = vmax.f32 %v5508, %v5509
        %5552 = vmax.xlane.f32.xlu0 %v5551
        %v5553 = vpop.xlane.xlu0 %5552
        %v5554 = vmax.f32 %v5510, %v5511
        %5555 = vmax.xlane.f32.xlu0 %v5554
        %v5556 = vpop.xlane.xlu0 %5555
        %v5557 = vmax.f32 %v5512, %v5513
        %5558 = vmax.xlane.f32.xlu0 %v5557
        %v5559 = vpop.xlane.xlu0 %5558
        %v5560 = vmax.f32 %v5514, %v5515
        %5561 = vmax.xlane.f32.xlu0 %v5560
        %v5562 = vpop.xlane.xlu0 %5561
        %v5563 = vmax.f32 %v5516, %v5517
        %5564 = vmax.xlane.f32.xlu0 %v5563
        %v5565 = vpop.xlane.xlu0 %5564
        %vm5566 = vcmask 187568
        %5567 = vst.msk [vmem:[#allocation2] sm:$0xff] %vm5566, %v5520
        %5568 = vst.msk [vmem:[#allocation2 + $0x8] sm:$0xff] %vm5566, %v5523
        %5569 = vst.msk [vmem:[#allocation2 + $0x10] sm:$0xff] %vm5566, %v5526
        %5570 = vst.msk [vmem:[#allocation2 + $0x18] sm:$0xff] %vm5566, %v5529
        %5571 = vst.msk [vmem:[#allocation2 + $0x20] sm:$0xff] %vm5566, %v5532
        %5572 = vst.msk [vmem:[#allocation2 + $0x28] sm:$0xff] %vm5566, %v5535
        %5573 = vst.msk [vmem:[#allocation2 + $0x30] sm:$0xff] %vm5566, %v5538
        %5574 = vst.msk [vmem:[#allocation2 + $0x38] sm:$0xff] %vm5566, %v5541
        %5575 = vst.msk [vmem:[#allocation2 + $0x40] sm:$0xff] %vm5566, %v5544
        %5576 = vst.msk [vmem:[#allocation2 + $0x48] sm:$0xff] %vm5566, %v5547
        %5577 = vst.msk [vmem:[#allocation2 + $0x50] sm:$0xff] %vm5566, %v5550
        %5578 = vst.msk [vmem:[#allocation2 + $0x58] sm:$0xff] %vm5566, %v5553
        %5579 = vst.msk [vmem:[#allocation2 + $0x60] sm:$0xff] %vm5566, %v5556
        %5580 = vst.msk [vmem:[#allocation2 + $0x68] sm:$0xff] %vm5566, %v5559
        %5581 = vst.msk [vmem:[#allocation2 + $0x70] sm:$0xff] %vm5566, %v5562
        %5582 = vst.msk [vmem:[#allocation2 + $0x78] sm:$0xff] %vm5566, %v5565
        %v5583 = vperm.slane %v1524, 7
        %v5584 = vperm.slane %v1553, 7
        %v5585 = vmul.f32 %v2216, %v5583
        %v5586 = vmul.f32 %v2217, %v5584
        %v5587 = vmul.f32 %v2218, %v5583
        %v5588 = vmul.f32 %v2219, %v5584
        %v5589 = vmul.f32 %v2220, %v5583
        %v5590 = vmul.f32 %v2221, %v5584
        %v5591 = vmul.f32 %v2222, %v5583
        %v5592 = vmul.f32 %v2223, %v5584
        %v5593 = vmul.f32 %v2224, %v5583
        %v5594 = vmul.f32 %v2225, %v5584
        %v5595 = vmul.f32 %v2226, %v5583
        %v5596 = vmul.f32 %v2227, %v5584
        %v5597 = vmul.f32 %v2228, %v5583
        %v5598 = vmul.f32 %v2229, %v5584
        %v5599 = vmul.f32 %v2230, %v5583
        %v5600 = vmul.f32 %v2231, %v5584
        %v5601 = vmul.f32 %v2232, %v5583
        %v5602 = vmul.f32 %v2233, %v5584
        %v5603 = vmul.f32 %v2234, %v5583
        %v5604 = vmul.f32 %v2235, %v5584
        %v5605 = vmul.f32 %v2236, %v5583
        %v5606 = vmul.f32 %v2237, %v5584
        %v5607 = vmul.f32 %v2238, %v5583
        %v5608 = vmul.f32 %v2239, %v5584
        %v5609 = vmul.f32 %v2240, %v5583
        %v5610 = vmul.f32 %v2241, %v5584
        %v5611 = vmul.f32 %v2242, %v5583
        %v5612 = vmul.f32 %v2243, %v5584
        %v5613 = vmul.f32 %v2244, %v5583
        %v5614 = vmul.f32 %v2245, %v5584
        %v5615 = vmul.f32 %v2246, %v5583
        %v5616 = vmul.f32 %v2247, %v5584
        %v5617 = vadd.f32 %v5585, %v2538
        %v5618 = vadd.f32 %v5586, %v2539
        %v5619 = vadd.f32 %v5587, %v2540
        %v5620 = vadd.f32 %v5588, %v2541
        %v5621 = vadd.f32 %v5589, %v2542
        %v5622 = vadd.f32 %v5590, %v2543
        %v5623 = vadd.f32 %v5591, %v2544
        %v5624 = vadd.f32 %v5592, %v2545
        %v5625 = vadd.f32 %v5593, %v2546
        %v5626 = vadd.f32 %v5594, %v2547
        %v5627 = vadd.f32 %v5595, %v2548
        %v5628 = vadd.f32 %v5596, %v2549
        %v5629 = vadd.f32 %v5597, %v2550
        %v5630 = vadd.f32 %v5598, %v2551
        %v5631 = vadd.f32 %v5599, %v2552
        %v5632 = vadd.f32 %v5600, %v2553
        %v5633 = vadd.f32 %v5601, %v2554
        %v5634 = vadd.f32 %v5602, %v2555
        %v5635 = vadd.f32 %v5603, %v2556
        %v5636 = vadd.f32 %v5604, %v2557
        %v5637 = vadd.f32 %v5605, %v2558
        %v5638 = vadd.f32 %v5606, %v2559
        %v5639 = vadd.f32 %v5607, %v2560
        %v5640 = vadd.f32 %v5608, %v2561
        %v5641 = vadd.f32 %v5609, %v2562
        %v5642 = vadd.f32 %v5610, %v2563
        %v5643 = vadd.f32 %v5611, %v2564
        %v5644 = vadd.f32 %v5612, %v2565
        %v5645 = vadd.f32 %v5613, %v2566
        %v5646 = vadd.f32 %v5614, %v2567
        %v5647 = vadd.f32 %v5615, %v2568
        %v5648 = vadd.f32 %v5616, %v2569
        %v5649 = vmax.f32 %v5617, %v5618
        %5650 = vmax.xlane.f32.xlu0 %v5649
        %v5651 = vpop.xlane.xlu0 %5650
        %v5652 = vmax.f32 %v5619, %v5620
        %5653 = vmax.xlane.f32.xlu0 %v5652
        %v5654 = vpop.xlane.xlu0 %5653
        %v5655 = vmax.f32 %v5621, %v5622
        %5656 = vmax.xlane.f32.xlu0 %v5655
        %v5657 = vpop.xlane.xlu0 %5656
        %v5658 = vmax.f32 %v5623, %v5624
        %5659 = vmax.xlane.f32.xlu0 %v5658
        %v5660 = vpop.xlane.xlu0 %5659
        %v5661 = vmax.f32 %v5625, %v5626
        %5662 = vmax.xlane.f32.xlu0 %v5661
        %v5663 = vpop.xlane.xlu0 %5662
        %v5664 = vmax.f32 %v5627, %v5628
        %5665 = vmax.xlane.f32.xlu0 %v5664
        %v5666 = vpop.xlane.xlu0 %5665
        %v5667 = vmax.f32 %v5629, %v5630
        %5668 = vmax.xlane.f32.xlu0 %v5667
        %v5669 = vpop.xlane.xlu0 %5668
        %v5670 = vmax.f32 %v5631, %v5632
        %5671 = vmax.xlane.f32.xlu0 %v5670
        %v5672 = vpop.xlane.xlu0 %5671
        %v5673 = vmax.f32 %v5633, %v5634
        %5674 = vmax.xlane.f32.xlu0 %v5673
        %v5675 = vpop.xlane.xlu0 %5674
        %v5676 = vmax.f32 %v5635, %v5636
        %5677 = vmax.xlane.f32.xlu0 %v5676
        %v5678 = vpop.xlane.xlu0 %5677
        %v5679 = vmax.f32 %v5637, %v5638
        %5680 = vmax.xlane.f32.xlu0 %v5679
        %v5681 = vpop.xlane.xlu0 %5680
        %v5682 = vmax.f32 %v5639, %v5640
        %5683 = vmax.xlane.f32.xlu0 %v5682
        %v5684 = vpop.xlane.xlu0 %5683
        %v5685 = vmax.f32 %v5641, %v5642
        %5686 = vmax.xlane.f32.xlu0 %v5685
        %v5687 = vpop.xlane.xlu0 %5686
        %v5688 = vmax.f32 %v5643, %v5644
        %5689 = vmax.xlane.f32.xlu0 %v5688
        %v5690 = vpop.xlane.xlu0 %5689
        %v5691 = vmax.f32 %v5645, %v5646
        %5692 = vmax.xlane.f32.xlu0 %v5691
        %v5693 = vpop.xlane.xlu0 %5692
        %v5694 = vmax.f32 %v5647, %v5648
        %5695 = vmax.xlane.f32.xlu0 %v5694
        %v5696 = vpop.xlane.xlu0 %5695
        %vm5697 = vcmask 195768
        %5698 = vst.msk [vmem:[#allocation2] sm:$0xff] %vm5697, %v5651
        %5699 = vst.msk [vmem:[#allocation2 + $0x8] sm:$0xff] %vm5697, %v5654
        %5700 = vst.msk [vmem:[#allocation2 + $0x10] sm:$0xff] %vm5697, %v5657
        %5701 = vst.msk [vmem:[#allocation2 + $0x18] sm:$0xff] %vm5697, %v5660
        %5702 = vst.msk [vmem:[#allocation2 + $0x20] sm:$0xff] %vm5697, %v5663
        %5703 = vst.msk [vmem:[#allocation2 + $0x28] sm:$0xff] %vm5697, %v5666
        %5704 = vst.msk [vmem:[#allocation2 + $0x30] sm:$0xff] %vm5697, %v5669
        %5705 = vst.msk [vmem:[#allocation2 + $0x38] sm:$0xff] %vm5697, %v5672
        %5706 = vst.msk [vmem:[#allocation2 + $0x40] sm:$0xff] %vm5697, %v5675
        %5707 = vst.msk [vmem:[#allocation2 + $0x48] sm:$0xff] %vm5697, %v5678
        %5708 = vst.msk [vmem:[#allocation2 + $0x50] sm:$0xff] %vm5697, %v5681
        %5709 = vst.msk [vmem:[#allocation2 + $0x58] sm:$0xff] %vm5697, %v5684
        %5710 = vst.msk [vmem:[#allocation2 + $0x60] sm:$0xff] %vm5697, %v5687
        %5711 = vst.msk [vmem:[#allocation2 + $0x68] sm:$0xff] %vm5697, %v5690
        %5712 = vst.msk [vmem:[#allocation2 + $0x70] sm:$0xff] %vm5697, %v5693
        %5713 = vst.msk [vmem:[#allocation2 + $0x78] sm:$0xff] %vm5697, %v5696
        %v5714 = vperm.slane %v1527, 0
        %v5715 = vperm.slane %v1556, 0
        %v5716 = vmul.f32 %v2216, %v5714
        %v5717 = vmul.f32 %v2217, %v5715
        %v5718 = vmul.f32 %v2218, %v5714
        %v5719 = vmul.f32 %v2219, %v5715
        %v5720 = vmul.f32 %v2220, %v5714
        %v5721 = vmul.f32 %v2221, %v5715
        %v5722 = vmul.f32 %v2222, %v5714
        %v5723 = vmul.f32 %v2223, %v5715
        %v5724 = vmul.f32 %v2224, %v5714
        %v5725 = vmul.f32 %v2225, %v5715
        %v5726 = vmul.f32 %v2226, %v5714
        %v5727 = vmul.f32 %v2227, %v5715
        %v5728 = vmul.f32 %v2228, %v5714
        %v5729 = vmul.f32 %v2229, %v5715
        %v5730 = vmul.f32 %v2230, %v5714
        %v5731 = vmul.f32 %v2231, %v5715
        %v5732 = vmul.f32 %v2232, %v5714
        %v5733 = vmul.f32 %v2233, %v5715
        %v5734 = vmul.f32 %v2234, %v5714
        %v5735 = vmul.f32 %v2235, %v5715
        %v5736 = vmul.f32 %v2236, %v5714
        %v5737 = vmul.f32 %v2237, %v5715
        %v5738 = vmul.f32 %v2238, %v5714
        %v5739 = vmul.f32 %v2239, %v5715
        %v5740 = vmul.f32 %v2240, %v5714
        %v5741 = vmul.f32 %v2241, %v5715
        %v5742 = vmul.f32 %v2242, %v5714
        %v5743 = vmul.f32 %v2243, %v5715
        %v5744 = vmul.f32 %v2244, %v5714
        %v5745 = vmul.f32 %v2245, %v5715
        %v5746 = vmul.f32 %v2246, %v5714
        %v5747 = vmul.f32 %v2247, %v5715
        %v5748 = vadd.f32 %v5716, %v2538
        %v5749 = vadd.f32 %v5717, %v2539
        %v5750 = vadd.f32 %v5718, %v2540
        %v5751 = vadd.f32 %v5719, %v2541
        %v5752 = vadd.f32 %v5720, %v2542
        %v5753 = vadd.f32 %v5721, %v2543
        %v5754 = vadd.f32 %v5722, %v2544
        %v5755 = vadd.f32 %v5723, %v2545
        %v5756 = vadd.f32 %v5724, %v2546
        %v5757 = vadd.f32 %v5725, %v2547
        %v5758 = vadd.f32 %v5726, %v2548
        %v5759 = vadd.f32 %v5727, %v2549
        %v5760 = vadd.f32 %v5728, %v2550
        %v5761 = vadd.f32 %v5729, %v2551
        %v5762 = vadd.f32 %v5730, %v2552
        %v5763 = vadd.f32 %v5731, %v2553
        %v5764 = vadd.f32 %v5732, %v2554
        %v5765 = vadd.f32 %v5733, %v2555
        %v5766 = vadd.f32 %v5734, %v2556
        %v5767 = vadd.f32 %v5735, %v2557
        %v5768 = vadd.f32 %v5736, %v2558
        %v5769 = vadd.f32 %v5737, %v2559
        %v5770 = vadd.f32 %v5738, %v2560
        %v5771 = vadd.f32 %v5739, %v2561
        %v5772 = vadd.f32 %v5740, %v2562
        %v5773 = vadd.f32 %v5741, %v2563
        %v5774 = vadd.f32 %v5742, %v2564
        %v5775 = vadd.f32 %v5743, %v2565
        %v5776 = vadd.f32 %v5744, %v2566
        %v5777 = vadd.f32 %v5745, %v2567
        %v5778 = vadd.f32 %v5746, %v2568
        %v5779 = vadd.f32 %v5747, %v2569
        %v5780 = vmax.f32 %v5748, %v5749
        %5781 = vmax.xlane.f32.xlu0 %v5780
        %v5782 = vpop.xlane.xlu0 %5781
        %v5783 = vmax.f32 %v5750, %v5751
        %5784 = vmax.xlane.f32.xlu0 %v5783
        %v5785 = vpop.xlane.xlu0 %5784
        %v5786 = vmax.f32 %v5752, %v5753
        %5787 = vmax.xlane.f32.xlu0 %v5786
        %v5788 = vpop.xlane.xlu0 %5787
        %v5789 = vmax.f32 %v5754, %v5755
        %5790 = vmax.xlane.f32.xlu0 %v5789
        %v5791 = vpop.xlane.xlu0 %5790
        %v5792 = vmax.f32 %v5756, %v5757
        %5793 = vmax.xlane.f32.xlu0 %v5792
        %v5794 = vpop.xlane.xlu0 %5793
        %v5795 = vmax.f32 %v5758, %v5759
        %5796 = vmax.xlane.f32.xlu0 %v5795
        %v5797 = vpop.xlane.xlu0 %5796
        %v5798 = vmax.f32 %v5760, %v5761
        %5799 = vmax.xlane.f32.xlu0 %v5798
        %v5800 = vpop.xlane.xlu0 %5799
        %v5801 = vmax.f32 %v5762, %v5763
        %5802 = vmax.xlane.f32.xlu0 %v5801
        %v5803 = vpop.xlane.xlu0 %5802
        %v5804 = vmax.f32 %v5764, %v5765
        %5805 = vmax.xlane.f32.xlu0 %v5804
        %v5806 = vpop.xlane.xlu0 %5805
        %v5807 = vmax.f32 %v5766, %v5767
        %5808 = vmax.xlane.f32.xlu0 %v5807
        %v5809 = vpop.xlane.xlu0 %5808
        %v5810 = vmax.f32 %v5768, %v5769
        %5811 = vmax.xlane.f32.xlu0 %v5810
        %v5812 = vpop.xlane.xlu0 %5811
        %v5813 = vmax.f32 %v5770, %v5771
        %5814 = vmax.xlane.f32.xlu0 %v5813
        %v5815 = vpop.xlane.xlu0 %5814
        %v5816 = vmax.f32 %v5772, %v5773
        %5817 = vmax.xlane.f32.xlu0 %v5816
        %v5818 = vpop.xlane.xlu0 %5817
        %v5819 = vmax.f32 %v5774, %v5775
        %5820 = vmax.xlane.f32.xlu0 %v5819
        %v5821 = vpop.xlane.xlu0 %5820
        %v5822 = vmax.f32 %v5776, %v5777
        %5823 = vmax.xlane.f32.xlu0 %v5822
        %v5824 = vpop.xlane.xlu0 %5823
        %v5825 = vmax.f32 %v5778, %v5779
        %5826 = vmax.xlane.f32.xlu0 %v5825
        %v5827 = vpop.xlane.xlu0 %5826
        %vm5828 = vcmask 203968
        %5829 = vst.msk [vmem:[#allocation2] sm:$0xff] %vm5828, %v5782
        %5830 = vst.msk [vmem:[#allocation2 + $0x8] sm:$0xff] %vm5828, %v5785
        %5831 = vst.msk [vmem:[#allocation2 + $0x10] sm:$0xff] %vm5828, %v5788
        %5832 = vst.msk [vmem:[#allocation2 + $0x18] sm:$0xff] %vm5828, %v5791
        %5833 = vst.msk [vmem:[#allocation2 + $0x20] sm:$0xff] %vm5828, %v5794
        %5834 = vst.msk [vmem:[#allocation2 + $0x28] sm:$0xff] %vm5828, %v5797
        %5835 = vst.msk [vmem:[#allocation2 + $0x30] sm:$0xff] %vm5828, %v5800
        %5836 = vst.msk [vmem:[#allocation2 + $0x38] sm:$0xff] %vm5828, %v5803
        %5837 = vst.msk [vmem:[#allocation2 + $0x40] sm:$0xff] %vm5828, %v5806
        %5838 = vst.msk [vmem:[#allocation2 + $0x48] sm:$0xff] %vm5828, %v5809
        %5839 = vst.msk [vmem:[#allocation2 + $0x50] sm:$0xff] %vm5828, %v5812
        %5840 = vst.msk [vmem:[#allocation2 + $0x58] sm:$0xff] %vm5828, %v5815
        %5841 = vst.msk [vmem:[#allocation2 + $0x60] sm:$0xff] %vm5828, %v5818
        %5842 = vst.msk [vmem:[#allocation2 + $0x68] sm:$0xff] %vm5828, %v5821
        %5843 = vst.msk [vmem:[#allocation2 + $0x70] sm:$0xff] %vm5828, %v5824
        %5844 = vst.msk [vmem:[#allocation2 + $0x78] sm:$0xff] %vm5828, %v5827
        %v5845 = vperm.slane %v1527, 1
        %v5846 = vperm.slane %v1556, 1
        %v5847 = vmul.f32 %v2216, %v5845
        %v5848 = vmul.f32 %v2217, %v5846
        %v5849 = vmul.f32 %v2218, %v5845
        %v5850 = vmul.f32 %v2219, %v5846
        %v5851 = vmul.f32 %v2220, %v5845
        %v5852 = vmul.f32 %v2221, %v5846
        %v5853 = vmul.f32 %v2222, %v5845
        %v5854 = vmul.f32 %v2223, %v5846
        %v5855 = vmul.f32 %v2224, %v5845
        %v5856 = vmul.f32 %v2225, %v5846
        %v5857 = vmul.f32 %v2226, %v5845
        %v5858 = vmul.f32 %v2227, %v5846
        %v5859 = vmul.f32 %v2228, %v5845
        %v5860 = vmul.f32 %v2229, %v5846
        %v5861 = vmul.f32 %v2230, %v5845
        %v5862 = vmul.f32 %v2231, %v5846
        %v5863 = vmul.f32 %v2232, %v5845
        %v5864 = vmul.f32 %v2233, %v5846
        %v5865 = vmul.f32 %v2234, %v5845
        %v5866 = vmul.f32 %v2235, %v5846
        %v5867 = vmul.f32 %v2236, %v5845
        %v5868 = vmul.f32 %v2237, %v5846
        %v5869 = vmul.f32 %v2238, %v5845
        %v5870 = vmul.f32 %v2239, %v5846
        %v5871 = vmul.f32 %v2240, %v5845
        %v5872 = vmul.f32 %v2241, %v5846
        %v5873 = vmul.f32 %v2242, %v5845
        %v5874 = vmul.f32 %v2243, %v5846
        %v5875 = vmul.f32 %v2244, %v5845
        %v5876 = vmul.f32 %v2245, %v5846
        %v5877 = vmul.f32 %v2246, %v5845
        %v5878 = vmul.f32 %v2247, %v5846
        %v5879 = vadd.f32 %v5847, %v2538
        %v5880 = vadd.f32 %v5848, %v2539
        %v5881 = vadd.f32 %v5849, %v2540
        %v5882 = vadd.f32 %v5850, %v2541
        %v5883 = vadd.f32 %v5851, %v2542
        %v5884 = vadd.f32 %v5852, %v2543
        %v5885 = vadd.f32 %v5853, %v2544
        %v5886 = vadd.f32 %v5854, %v2545
        %v5887 = vadd.f32 %v5855, %v2546
        %v5888 = vadd.f32 %v5856, %v2547
        %v5889 = vadd.f32 %v5857, %v2548
        %v5890 = vadd.f32 %v5858, %v2549
        %v5891 = vadd.f32 %v5859, %v2550
        %v5892 = vadd.f32 %v5860, %v2551
        %v5893 = vadd.f32 %v5861, %v2552
        %v5894 = vadd.f32 %v5862, %v2553
        %v5895 = vadd.f32 %v5863, %v2554
        %v5896 = vadd.f32 %v5864, %v2555
        %v5897 = vadd.f32 %v5865, %v2556
        %v5898 = vadd.f32 %v5866, %v2557
        %v5899 = vadd.f32 %v5867, %v2558
        %v5900 = vadd.f32 %v5868, %v2559
        %v5901 = vadd.f32 %v5869, %v2560
        %v5902 = vadd.f32 %v5870, %v2561
        %v5903 = vadd.f32 %v5871, %v2562
        %v5904 = vadd.f32 %v5872, %v2563
        %v5905 = vadd.f32 %v5873, %v2564
        %v5906 = vadd.f32 %v5874, %v2565
        %v5907 = vadd.f32 %v5875, %v2566
        %v5908 = vadd.f32 %v5876, %v2567
        %v5909 = vadd.f32 %v5877, %v2568
        %v5910 = vadd.f32 %v5878, %v2569
        %v5911 = vmax.f32 %v5879, %v5880
        %5912 = vmax.xlane.f32.xlu0 %v5911
        %v5913 = vpop.xlane.xlu0 %5912
        %v5914 = vmax.f32 %v5881, %v5882
        %5915 = vmax.xlane.f32.xlu0 %v5914
        %v5916 = vpop.xlane.xlu0 %5915
        %v5917 = vmax.f32 %v5883, %v5884
        %5918 = vmax.xlane.f32.xlu0 %v5917
        %v5919 = vpop.xlane.xlu0 %5918
        %v5920 = vmax.f32 %v5885, %v5886
        %5921 = vmax.xlane.f32.xlu0 %v5920
        %v5922 = vpop.xlane.xlu0 %5921
        %v5923 = vmax.f32 %v5887, %v5888
        %5924 = vmax.xlane.f32.xlu0 %v5923
        %v5925 = vpop.xlane.xlu0 %5924
        %v5926 = vmax.f32 %v5889, %v5890
        %5927 = vmax.xlane.f32.xlu0 %v5926
        %v5928 = vpop.xlane.xlu0 %5927
        %v5929 = vmax.f32 %v5891, %v5892
        %5930 = vmax.xlane.f32.xlu0 %v5929
        %v5931 = vpop.xlane.xlu0 %5930
        %v5932 = vmax.f32 %v5893, %v5894
        %5933 = vmax.xlane.f32.xlu0 %v5932
        %v5934 = vpop.xlane.xlu0 %5933
        %v5935 = vmax.f32 %v5895, %v5896
        %5936 = vmax.xlane.f32.xlu0 %v5935
        %v5937 = vpop.xlane.xlu0 %5936
        %v5938 = vmax.f32 %v5897, %v5898
        %5939 = vmax.xlane.f32.xlu0 %v5938
        %v5940 = vpop.xlane.xlu0 %5939
        %v5941 = vmax.f32 %v5899, %v5900
        %5942 = vmax.xlane.f32.xlu0 %v5941
        %v5943 = vpop.xlane.xlu0 %5942
        %v5944 = vmax.f32 %v5901, %v5902
        %5945 = vmax.xlane.f32.xlu0 %v5944
        %v5946 = vpop.xlane.xlu0 %5945
        %v5947 = vmax.f32 %v5903, %v5904
        %5948 = vmax.xlane.f32.xlu0 %v5947
        %v5949 = vpop.xlane.xlu0 %5948
        %v5950 = vmax.f32 %v5905, %v5906
        %5951 = vmax.xlane.f32.xlu0 %v5950
        %v5952 = vpop.xlane.xlu0 %5951
        %v5953 = vmax.f32 %v5907, %v5908
        %5954 = vmax.xlane.f32.xlu0 %v5953
        %v5955 = vpop.xlane.xlu0 %5954
        %v5956 = vmax.f32 %v5909, %v5910
        %5957 = vmax.xlane.f32.xlu0 %v5956
        %v5958 = vpop.xlane.xlu0 %5957
        %vm5959 = vcmask 212168
        %5960 = vst.msk [vmem:[#allocation2] sm:$0xff] %vm5959, %v5913
        %5961 = vst.msk [vmem:[#allocation2 + $0x8] sm:$0xff] %vm5959, %v5916
        %5962 = vst.msk [vmem:[#allocation2 + $0x10] sm:$0xff] %vm5959, %v5919
        %5963 = vst.msk [vmem:[#allocation2 + $0x18] sm:$0xff] %vm5959, %v5922
        %5964 = vst.msk [vmem:[#allocation2 + $0x20] sm:$0xff] %vm5959, %v5925
        %5965 = vst.msk [vmem:[#allocation2 + $0x28] sm:$0xff] %vm5959, %v5928
        %5966 = vst.msk [vmem:[#allocation2 + $0x30] sm:$0xff] %vm5959, %v5931
        %5967 = vst.msk [vmem:[#allocation2 + $0x38] sm:$0xff] %vm5959, %v5934
        %5968 = vst.msk [vmem:[#allocation2 + $0x40] sm:$0xff] %vm5959, %v5937
        %5969 = vst.msk [vmem:[#allocation2 + $0x48] sm:$0xff] %vm5959, %v5940
        %5970 = vst.msk [vmem:[#allocation2 + $0x50] sm:$0xff] %vm5959, %v5943
        %5971 = vst.msk [vmem:[#allocation2 + $0x58] sm:$0xff] %vm5959, %v5946
        %5972 = vst.msk [vmem:[#allocation2 + $0x60] sm:$0xff] %vm5959, %v5949
        %5973 = vst.msk [vmem:[#allocation2 + $0x68] sm:$0xff] %vm5959, %v5952
        %5974 = vst.msk [vmem:[#allocation2 + $0x70] sm:$0xff] %vm5959, %v5955
        %5975 = vst.msk [vmem:[#allocation2 + $0x78] sm:$0xff] %vm5959, %v5958
        %v5976 = vperm.slane %v1527, 2
        %v5977 = vperm.slane %v1556, 2
        %v5978 = vmul.f32 %v2216, %v5976
        %v5979 = vmul.f32 %v2217, %v5977
        %v5980 = vmul.f32 %v2218, %v5976
        %v5981 = vmul.f32 %v2219, %v5977
        %v5982 = vmul.f32 %v2220, %v5976
        %v5983 = vmul.f32 %v2221, %v5977
        %v5984 = vmul.f32 %v2222, %v5976
        %v5985 = vmul.f32 %v2223, %v5977
        %v5986 = vmul.f32 %v2224, %v5976
        %v5987 = vmul.f32 %v2225, %v5977
        %v5988 = vmul.f32 %v2226, %v5976
        %v5989 = vmul.f32 %v2227, %v5977
        %v5990 = vmul.f32 %v2228, %v5976
        %v5991 = vmul.f32 %v2229, %v5977
        %v5992 = vmul.f32 %v2230, %v5976
        %v5993 = vmul.f32 %v2231, %v5977
        %v5994 = vmul.f32 %v2232, %v5976
        %v5995 = vmul.f32 %v2233, %v5977
        %v5996 = vmul.f32 %v2234, %v5976
        %v5997 = vmul.f32 %v2235, %v5977
        %v5998 = vmul.f32 %v2236, %v5976
        %v5999 = vmul.f32 %v2237, %v5977
        %v6000 = vmul.f32 %v2238, %v5976
        %v6001 = vmul.f32 %v2239, %v5977
        %v6002 = vmul.f32 %v2240, %v5976
        %v6003 = vmul.f32 %v2241, %v5977
        %v6004 = vmul.f32 %v2242, %v5976
        %v6005 = vmul.f32 %v2243, %v5977
        %v6006 = vmul.f32 %v2244, %v5976
        %v6007 = vmul.f32 %v2245, %v5977
        %v6008 = vmul.f32 %v2246, %v5976
        %v6009 = vmul.f32 %v2247, %v5977
        %v6010 = vadd.f32 %v5978, %v2538
        %v6011 = vadd.f32 %v5979, %v2539
        %v6012 = vadd.f32 %v5980, %v2540
        %v6013 = vadd.f32 %v5981, %v2541
        %v6014 = vadd.f32 %v5982, %v2542
        %v6015 = vadd.f32 %v5983, %v2543
        %v6016 = vadd.f32 %v5984, %v2544
        %v6017 = vadd.f32 %v5985, %v2545
        %v6018 = vadd.f32 %v5986, %v2546
        %v6019 = vadd.f32 %v5987, %v2547
        %v6020 = vadd.f32 %v5988, %v2548
        %v6021 = vadd.f32 %v5989, %v2549
        %v6022 = vadd.f32 %v5990, %v2550
        %v6023 = vadd.f32 %v5991, %v2551
        %v6024 = vadd.f32 %v5992, %v2552
        %v6025 = vadd.f32 %v5993, %v2553
        %v6026 = vadd.f32 %v5994, %v2554
        %v6027 = vadd.f32 %v5995, %v2555
        %v6028 = vadd.f32 %v5996, %v2556
        %v6029 = vadd.f32 %v5997, %v2557
        %v6030 = vadd.f32 %v5998, %v2558
        %v6031 = vadd.f32 %v5999, %v2559
        %v6032 = vadd.f32 %v6000, %v2560
        %v6033 = vadd.f32 %v6001, %v2561
        %v6034 = vadd.f32 %v6002, %v2562
        %v6035 = vadd.f32 %v6003, %v2563
        %v6036 = vadd.f32 %v6004, %v2564
        %v6037 = vadd.f32 %v6005, %v2565
        %v6038 = vadd.f32 %v6006, %v2566
        %v6039 = vadd.f32 %v6007, %v2567
        %v6040 = vadd.f32 %v6008, %v2568
        %v6041 = vadd.f32 %v6009, %v2569
        %v6042 = vmax.f32 %v6010, %v6011
        %6043 = vmax.xlane.f32.xlu0 %v6042
        %v6044 = vpop.xlane.xlu0 %6043
        %v6045 = vmax.f32 %v6012, %v6013
        %6046 = vmax.xlane.f32.xlu0 %v6045
        %v6047 = vpop.xlane.xlu0 %6046
        %v6048 = vmax.f32 %v6014, %v6015
        %6049 = vmax.xlane.f32.xlu0 %v6048
        %v6050 = vpop.xlane.xlu0 %6049
        %v6051 = vmax.f32 %v6016, %v6017
        %6052 = vmax.xlane.f32.xlu0 %v6051
        %v6053 = vpop.xlane.xlu0 %6052
        %v6054 = vmax.f32 %v6018, %v6019
        %6055 = vmax.xlane.f32.xlu0 %v6054
        %v6056 = vpop.xlane.xlu0 %6055
        %v6057 = vmax.f32 %v6020, %v6021
        %6058 = vmax.xlane.f32.xlu0 %v6057
        %v6059 = vpop.xlane.xlu0 %6058
        %v6060 = vmax.f32 %v6022, %v6023
        %6061 = vmax.xlane.f32.xlu0 %v6060
        %v6062 = vpop.xlane.xlu0 %6061
        %v6063 = vmax.f32 %v6024, %v6025
        %6064 = vmax.xlane.f32.xlu0 %v6063
        %v6065 = vpop.xlane.xlu0 %6064
        %v6066 = vmax.f32 %v6026, %v6027
        %6067 = vmax.xlane.f32.xlu0 %v6066
        %v6068 = vpop.xlane.xlu0 %6067
        %v6069 = vmax.f32 %v6028, %v6029
        %6070 = vmax.xlane.f32.xlu0 %v6069
        %v6071 = vpop.xlane.xlu0 %6070
        %v6072 = vmax.f32 %v6030, %v6031
        %6073 = vmax.xlane.f32.xlu0 %v6072
        %v6074 = vpop.xlane.xlu0 %6073
        %v6075 = vmax.f32 %v6032, %v6033
        %6076 = vmax.xlane.f32.xlu0 %v6075
        %v6077 = vpop.xlane.xlu0 %6076
        %v6078 = vmax.f32 %v6034, %v6035
        %6079 = vmax.xlane.f32.xlu0 %v6078
        %v6080 = vpop.xlane.xlu0 %6079
        %v6081 = vmax.f32 %v6036, %v6037
        %6082 = vmax.xlane.f32.xlu0 %v6081
        %v6083 = vpop.xlane.xlu0 %6082
        %v6084 = vmax.f32 %v6038, %v6039
        %6085 = vmax.xlane.f32.xlu0 %v6084
        %v6086 = vpop.xlane.xlu0 %6085
        %v6087 = vmax.f32 %v6040, %v6041
        %6088 = vmax.xlane.f32.xlu0 %v6087
        %v6089 = vpop.xlane.xlu0 %6088
        %vm6090 = vcmask 220368
        %6091 = vst.msk [vmem:[#allocation2] sm:$0xff] %vm6090, %v6044
        %6092 = vst.msk [vmem:[#allocation2 + $0x8] sm:$0xff] %vm6090, %v6047
        %6093 = vst.msk [vmem:[#allocation2 + $0x10] sm:$0xff] %vm6090, %v6050
        %6094 = vst.msk [vmem:[#allocation2 + $0x18] sm:$0xff] %vm6090, %v6053
        %6095 = vst.msk [vmem:[#allocation2 + $0x20] sm:$0xff] %vm6090, %v6056
        %6096 = vst.msk [vmem:[#allocation2 + $0x28] sm:$0xff] %vm6090, %v6059
        %6097 = vst.msk [vmem:[#allocation2 + $0x30] sm:$0xff] %vm6090, %v6062
        %6098 = vst.msk [vmem:[#allocation2 + $0x38] sm:$0xff] %vm6090, %v6065
        %6099 = vst.msk [vmem:[#allocation2 + $0x40] sm:$0xff] %vm6090, %v6068
        %6100 = vst.msk [vmem:[#allocation2 + $0x48] sm:$0xff] %vm6090, %v6071
        %6101 = vst.msk [vmem:[#allocation2 + $0x50] sm:$0xff] %vm6090, %v6074
        %6102 = vst.msk [vmem:[#allocation2 + $0x58] sm:$0xff] %vm6090, %v6077
        %6103 = vst.msk [vmem:[#allocation2 + $0x60] sm:$0xff] %vm6090, %v6080
        %6104 = vst.msk [vmem:[#allocation2 + $0x68] sm:$0xff] %vm6090, %v6083
        %6105 = vst.msk [vmem:[#allocation2 + $0x70] sm:$0xff] %vm6090, %v6086
        %6106 = vst.msk [vmem:[#allocation2 + $0x78] sm:$0xff] %vm6090, %v6089
        %v6107 = vperm.slane %v1527, 3
        %v6108 = vperm.slane %v1556, 3
        %v6109 = vmul.f32 %v2216, %v6107
        %v6110 = vmul.f32 %v2217, %v6108
        %v6111 = vmul.f32 %v2218, %v6107
        %v6112 = vmul.f32 %v2219, %v6108
        %v6113 = vmul.f32 %v2220, %v6107
        %v6114 = vmul.f32 %v2221, %v6108
        %v6115 = vmul.f32 %v2222, %v6107
        %v6116 = vmul.f32 %v2223, %v6108
        %v6117 = vmul.f32 %v2224, %v6107
        %v6118 = vmul.f32 %v2225, %v6108
        %v6119 = vmul.f32 %v2226, %v6107
        %v6120 = vmul.f32 %v2227, %v6108
        %v6121 = vmul.f32 %v2228, %v6107
        %v6122 = vmul.f32 %v2229, %v6108
        %v6123 = vmul.f32 %v2230, %v6107
        %v6124 = vmul.f32 %v2231, %v6108
        %v6125 = vmul.f32 %v2232, %v6107
        %v6126 = vmul.f32 %v2233, %v6108
        %v6127 = vmul.f32 %v2234, %v6107
        %v6128 = vmul.f32 %v2235, %v6108
        %v6129 = vmul.f32 %v2236, %v6107
        %v6130 = vmul.f32 %v2237, %v6108
        %v6131 = vmul.f32 %v2238, %v6107
        %v6132 = vmul.f32 %v2239, %v6108
        %v6133 = vmul.f32 %v2240, %v6107
        %v6134 = vmul.f32 %v2241, %v6108
        %v6135 = vmul.f32 %v2242, %v6107
        %v6136 = vmul.f32 %v2243, %v6108
        %v6137 = vmul.f32 %v2244, %v6107
        %v6138 = vmul.f32 %v2245, %v6108
        %v6139 = vmul.f32 %v2246, %v6107
        %v6140 = vmul.f32 %v2247, %v6108
        %v6141 = vadd.f32 %v6109, %v2538
        %v6142 = vadd.f32 %v6110, %v2539
        %v6143 = vadd.f32 %v6111, %v2540
        %v6144 = vadd.f32 %v6112, %v2541
        %v6145 = vadd.f32 %v6113, %v2542
        %v6146 = vadd.f32 %v6114, %v2543
        %v6147 = vadd.f32 %v6115, %v2544
        %v6148 = vadd.f32 %v6116, %v2545
        %v6149 = vadd.f32 %v6117, %v2546
        %v6150 = vadd.f32 %v6118, %v2547
        %v6151 = vadd.f32 %v6119, %v2548
        %v6152 = vadd.f32 %v6120, %v2549
        %v6153 = vadd.f32 %v6121, %v2550
        %v6154 = vadd.f32 %v6122, %v2551
        %v6155 = vadd.f32 %v6123, %v2552
        %v6156 = vadd.f32 %v6124, %v2553
        %v6157 = vadd.f32 %v6125, %v2554
        %v6158 = vadd.f32 %v6126, %v2555
        %v6159 = vadd.f32 %v6127, %v2556
        %v6160 = vadd.f32 %v6128, %v2557
        %v6161 = vadd.f32 %v6129, %v2558
        %v6162 = vadd.f32 %v6130, %v2559
        %v6163 = vadd.f32 %v6131, %v2560
        %v6164 = vadd.f32 %v6132, %v2561
        %v6165 = vadd.f32 %v6133, %v2562
        %v6166 = vadd.f32 %v6134, %v2563
        %v6167 = vadd.f32 %v6135, %v2564
        %v6168 = vadd.f32 %v6136, %v2565
        %v6169 = vadd.f32 %v6137, %v2566
        %v6170 = vadd.f32 %v6138, %v2567
        %v6171 = vadd.f32 %v6139, %v2568
        %v6172 = vadd.f32 %v6140, %v2569
        %v6173 = vmax.f32 %v6141, %v6142
        %6174 = vmax.xlane.f32.xlu0 %v6173
        %v6175 = vpop.xlane.xlu0 %6174
        %v6176 = vmax.f32 %v6143, %v6144
        %6177 = vmax.xlane.f32.xlu0 %v6176
        %v6178 = vpop.xlane.xlu0 %6177
        %v6179 = vmax.f32 %v6145, %v6146
        %6180 = vmax.xlane.f32.xlu0 %v6179
        %v6181 = vpop.xlane.xlu0 %6180
        %v6182 = vmax.f32 %v6147, %v6148
        %6183 = vmax.xlane.f32.xlu0 %v6182
        %v6184 = vpop.xlane.xlu0 %6183
        %v6185 = vmax.f32 %v6149, %v6150
        %6186 = vmax.xlane.f32.xlu0 %v6185
        %v6187 = vpop.xlane.xlu0 %6186
        %v6188 = vmax.f32 %v6151, %v6152
        %6189 = vmax.xlane.f32.xlu0 %v6188
        %v6190 = vpop.xlane.xlu0 %6189
        %v6191 = vmax.f32 %v6153, %v6154
        %6192 = vmax.xlane.f32.xlu0 %v6191
        %v6193 = vpop.xlane.xlu0 %6192
        %v6194 = vmax.f32 %v6155, %v6156
        %6195 = vmax.xlane.f32.xlu0 %v6194
        %v6196 = vpop.xlane.xlu0 %6195
        %v6197 = vmax.f32 %v6157, %v6158
        %6198 = vmax.xlane.f32.xlu0 %v6197
        %v6199 = vpop.xlane.xlu0 %6198
        %v6200 = vmax.f32 %v6159, %v6160
        %6201 = vmax.xlane.f32.xlu0 %v6200
        %v6202 = vpop.xlane.xlu0 %6201
        %v6203 = vmax.f32 %v6161, %v6162
        %6204 = vmax.xlane.f32.xlu0 %v6203
        %v6205 = vpop.xlane.xlu0 %6204
        %v6206 = vmax.f32 %v6163, %v6164
        %6207 = vmax.xlane.f32.xlu0 %v6206
        %v6208 = vpop.xlane.xlu0 %6207
        %v6209 = vmax.f32 %v6165, %v6166
        %6210 = vmax.xlane.f32.xlu0 %v6209
        %v6211 = vpop.xlane.xlu0 %6210
        %v6212 = vmax.f32 %v6167, %v6168
        %6213 = vmax.xlane.f32.xlu0 %v6212
        %v6214 = vpop.xlane.xlu0 %6213
        %v6215 = vmax.f32 %v6169, %v6170
        %6216 = vmax.xlane.f32.xlu0 %v6215
        %v6217 = vpop.xlane.xlu0 %6216
        %v6218 = vmax.f32 %v6171, %v6172
        %6219 = vmax.xlane.f32.xlu0 %v6218
        %v6220 = vpop.xlane.xlu0 %6219
        %vm6221 = vcmask 228568
        %6222 = vst.msk [vmem:[#allocation2] sm:$0xff] %vm6221, %v6175
        %6223 = vst.msk [vmem:[#allocation2 + $0x8] sm:$0xff] %vm6221, %v6178
        %6224 = vst.msk [vmem:[#allocation2 + $0x10] sm:$0xff] %vm6221, %v6181
        %6225 = vst.msk [vmem:[#allocation2 + $0x18] sm:$0xff] %vm6221, %v6184
        %6226 = vst.msk [vmem:[#allocation2 + $0x20] sm:$0xff] %vm6221, %v6187
        %6227 = vst.msk [vmem:[#allocation2 + $0x28] sm:$0xff] %vm6221, %v6190
        %6228 = vst.msk [vmem:[#allocation2 + $0x30] sm:$0xff] %vm6221, %v6193
        %6229 = vst.msk [vmem:[#allocation2 + $0x38] sm:$0xff] %vm6221, %v6196
        %6230 = vst.msk [vmem:[#allocation2 + $0x40] sm:$0xff] %vm6221, %v6199
        %6231 = vst.msk [vmem:[#allocation2 + $0x48] sm:$0xff] %vm6221, %v6202
        %6232 = vst.msk [vmem:[#allocation2 + $0x50] sm:$0xff] %vm6221, %v6205
        %6233 = vst.msk [vmem:[#allocation2 + $0x58] sm:$0xff] %vm6221, %v6208
        %6234 = vst.msk [vmem:[#allocation2 + $0x60] sm:$0xff] %vm6221, %v6211
        %6235 = vst.msk [vmem:[#allocation2 + $0x68] sm:$0xff] %vm6221, %v6214
        %6236 = vst.msk [vmem:[#allocation2 + $0x70] sm:$0xff] %vm6221, %v6217
        %6237 = vst.msk [vmem:[#allocation2 + $0x78] sm:$0xff] %vm6221, %v6220
        %v6238 = vperm.slane %v1527, 4
        %v6239 = vperm.slane %v1556, 4
        %v6240 = vmul.f32 %v2216, %v6238
        %v6241 = vmul.f32 %v2217, %v6239
        %v6242 = vmul.f32 %v2218, %v6238
        %v6243 = vmul.f32 %v2219, %v6239
        %v6244 = vmul.f32 %v2220, %v6238
        %v6245 = vmul.f32 %v2221, %v6239
        %v6246 = vmul.f32 %v2222, %v6238
        %v6247 = vmul.f32 %v2223, %v6239
        %v6248 = vmul.f32 %v2224, %v6238
        %v6249 = vmul.f32 %v2225, %v6239
        %v6250 = vmul.f32 %v2226, %v6238
        %v6251 = vmul.f32 %v2227, %v6239
        %v6252 = vmul.f32 %v2228, %v6238
        %v6253 = vmul.f32 %v2229, %v6239
        %v6254 = vmul.f32 %v2230, %v6238
        %v6255 = vmul.f32 %v2231, %v6239
        %v6256 = vmul.f32 %v2232, %v6238
        %v6257 = vmul.f32 %v2233, %v6239
        %v6258 = vmul.f32 %v2234, %v6238
        %v6259 = vmul.f32 %v2235, %v6239
        %v6260 = vmul.f32 %v2236, %v6238
        %v6261 = vmul.f32 %v2237, %v6239
        %v6262 = vmul.f32 %v2238, %v6238
        %v6263 = vmul.f32 %v2239, %v6239
        %v6264 = vmul.f32 %v2240, %v6238
        %v6265 = vmul.f32 %v2241, %v6239
        %v6266 = vmul.f32 %v2242, %v6238
        %v6267 = vmul.f32 %v2243, %v6239
        %v6268 = vmul.f32 %v2244, %v6238
        %v6269 = vmul.f32 %v2245, %v6239
        %v6270 = vmul.f32 %v2246, %v6238
        %v6271 = vmul.f32 %v2247, %v6239
        %v6272 = vadd.f32 %v6240, %v2538
        %v6273 = vadd.f32 %v6241, %v2539
        %v6274 = vadd.f32 %v6242, %v2540
        %v6275 = vadd.f32 %v6243, %v2541
        %v6276 = vadd.f32 %v6244, %v2542
        %v6277 = vadd.f32 %v6245, %v2543
        %v6278 = vadd.f32 %v6246, %v2544
        %v6279 = vadd.f32 %v6247, %v2545
        %v6280 = vadd.f32 %v6248, %v2546
        %v6281 = vadd.f32 %v6249, %v2547
        %v6282 = vadd.f32 %v6250, %v2548
        %v6283 = vadd.f32 %v6251, %v2549
        %v6284 = vadd.f32 %v6252, %v2550
        %v6285 = vadd.f32 %v6253, %v2551
        %v6286 = vadd.f32 %v6254, %v2552
        %v6287 = vadd.f32 %v6255, %v2553
        %v6288 = vadd.f32 %v6256, %v2554
        %v6289 = vadd.f32 %v6257, %v2555
        %v6290 = vadd.f32 %v6258, %v2556
        %v6291 = vadd.f32 %v6259, %v2557
        %v6292 = vadd.f32 %v6260, %v2558
        %v6293 = vadd.f32 %v6261, %v2559
        %v6294 = vadd.f32 %v6262, %v2560
        %v6295 = vadd.f32 %v6263, %v2561
        %v6296 = vadd.f32 %v6264, %v2562
        %v6297 = vadd.f32 %v6265, %v2563
        %v6298 = vadd.f32 %v6266, %v2564
        %v6299 = vadd.f32 %v6267, %v2565
        %v6300 = vadd.f32 %v6268, %v2566
        %v6301 = vadd.f32 %v6269, %v2567
        %v6302 = vadd.f32 %v6270, %v2568
        %v6303 = vadd.f32 %v6271, %v2569
        %v6304 = vmax.f32 %v6272, %v6273
        %6305 = vmax.xlane.f32.xlu0 %v6304
        %v6306 = vpop.xlane.xlu0 %6305
        %v6307 = vmax.f32 %v6274, %v6275
        %6308 = vmax.xlane.f32.xlu0 %v6307
        %v6309 = vpop.xlane.xlu0 %6308
        %v6310 = vmax.f32 %v6276, %v6277
        %6311 = vmax.xlane.f32.xlu0 %v6310
        %v6312 = vpop.xlane.xlu0 %6311
        %v6313 = vmax.f32 %v6278, %v6279
        %6314 = vmax.xlane.f32.xlu0 %v6313
        %v6315 = vpop.xlane.xlu0 %6314
        %v6316 = vmax.f32 %v6280, %v6281
        %6317 = vmax.xlane.f32.xlu0 %v6316
        %v6318 = vpop.xlane.xlu0 %6317
        %v6319 = vmax.f32 %v6282, %v6283
        %6320 = vmax.xlane.f32.xlu0 %v6319
        %v6321 = vpop.xlane.xlu0 %6320
        %v6322 = vmax.f32 %v6284, %v6285
        %6323 = vmax.xlane.f32.xlu0 %v6322
        %v6324 = vpop.xlane.xlu0 %6323
        %v6325 = vmax.f32 %v6286, %v6287
        %6326 = vmax.xlane.f32.xlu0 %v6325
        %v6327 = vpop.xlane.xlu0 %6326
        %v6328 = vmax.f32 %v6288, %v6289
        %6329 = vmax.xlane.f32.xlu0 %v6328
        %v6330 = vpop.xlane.xlu0 %6329
        %v6331 = vmax.f32 %v6290, %v6291
        %6332 = vmax.xlane.f32.xlu0 %v6331
        %v6333 = vpop.xlane.xlu0 %6332
        %v6334 = vmax.f32 %v6292, %v6293
        %6335 = vmax.xlane.f32.xlu0 %v6334
        %v6336 = vpop.xlane.xlu0 %6335
        %v6337 = vmax.f32 %v6294, %v6295
        %6338 = vmax.xlane.f32.xlu0 %v6337
        %v6339 = vpop.xlane.xlu0 %6338
        %v6340 = vmax.f32 %v6296, %v6297
        %6341 = vmax.xlane.f32.xlu0 %v6340
        %v6342 = vpop.xlane.xlu0 %6341
        %v6343 = vmax.f32 %v6298, %v6299
        %6344 = vmax.xlane.f32.xlu0 %v6343
        %v6345 = vpop.xlane.xlu0 %6344
        %v6346 = vmax.f32 %v6300, %v6301
        %6347 = vmax.xlane.f32.xlu0 %v6346
        %v6348 = vpop.xlane.xlu0 %6347
        %v6349 = vmax.f32 %v6302, %v6303
        %6350 = vmax.xlane.f32.xlu0 %v6349
        %v6351 = vpop.xlane.xlu0 %6350
        %vm6352 = vcmask 236768
        %6353 = vst.msk [vmem:[#allocation2] sm:$0xff] %vm6352, %v6306
        %6354 = vst.msk [vmem:[#allocation2 + $0x8] sm:$0xff] %vm6352, %v6309
        %6355 = vst.msk [vmem:[#allocation2 + $0x10] sm:$0xff] %vm6352, %v6312
        %6356 = vst.msk [vmem:[#allocation2 + $0x18] sm:$0xff] %vm6352, %v6315
        %6357 = vst.msk [vmem:[#allocation2 + $0x20] sm:$0xff] %vm6352, %v6318
        %6358 = vst.msk [vmem:[#allocation2 + $0x28] sm:$0xff] %vm6352, %v6321
        %6359 = vst.msk [vmem:[#allocation2 + $0x30] sm:$0xff] %vm6352, %v6324
        %6360 = vst.msk [vmem:[#allocation2 + $0x38] sm:$0xff] %vm6352, %v6327
        %6361 = vst.msk [vmem:[#allocation2 + $0x40] sm:$0xff] %vm6352, %v6330
        %6362 = vst.msk [vmem:[#allocation2 + $0x48] sm:$0xff] %vm6352, %v6333
        %6363 = vst.msk [vmem:[#allocation2 + $0x50] sm:$0xff] %vm6352, %v6336
        %6364 = vst.msk [vmem:[#allocation2 + $0x58] sm:$0xff] %vm6352, %v6339
        %6365 = vst.msk [vmem:[#allocation2 + $0x60] sm:$0xff] %vm6352, %v6342
        %6366 = vst.msk [vmem:[#allocation2 + $0x68] sm:$0xff] %vm6352, %v6345
        %6367 = vst.msk [vmem:[#allocation2 + $0x70] sm:$0xff] %vm6352, %v6348
        %6368 = vst.msk [vmem:[#allocation2 + $0x78] sm:$0xff] %vm6352, %v6351
        %v6369 = vperm.slane %v1527, 5
        %v6370 = vperm.slane %v1556, 5
        %v6371 = vmul.f32 %v2216, %v6369
        %v6372 = vmul.f32 %v2217, %v6370
        %v6373 = vmul.f32 %v2218, %v6369
        %v6374 = vmul.f32 %v2219, %v6370
        %v6375 = vmul.f32 %v2220, %v6369
        %v6376 = vmul.f32 %v2221, %v6370
        %v6377 = vmul.f32 %v2222, %v6369
        %v6378 = vmul.f32 %v2223, %v6370
        %v6379 = vmul.f32 %v2224, %v6369
        %v6380 = vmul.f32 %v2225, %v6370
        %v6381 = vmul.f32 %v2226, %v6369
        %v6382 = vmul.f32 %v2227, %v6370
        %v6383 = vmul.f32 %v2228, %v6369
        %v6384 = vmul.f32 %v2229, %v6370
        %v6385 = vmul.f32 %v2230, %v6369
        %v6386 = vmul.f32 %v2231, %v6370
        %v6387 = vmul.f32 %v2232, %v6369
        %v6388 = vmul.f32 %v2233, %v6370
        %v6389 = vmul.f32 %v2234, %v6369
        %v6390 = vmul.f32 %v2235, %v6370
        %v6391 = vmul.f32 %v2236, %v6369
        %v6392 = vmul.f32 %v2237, %v6370
        %v6393 = vmul.f32 %v2238, %v6369
        %v6394 = vmul.f32 %v2239, %v6370
        %v6395 = vmul.f32 %v2240, %v6369
        %v6396 = vmul.f32 %v2241, %v6370
        %v6397 = vmul.f32 %v2242, %v6369
        %v6398 = vmul.f32 %v2243, %v6370
        %v6399 = vmul.f32 %v2244, %v6369
        %v6400 = vmul.f32 %v2245, %v6370
        %v6401 = vmul.f32 %v2246, %v6369
        %v6402 = vmul.f32 %v2247, %v6370
        %v6403 = vadd.f32 %v6371, %v2538
        %v6404 = vadd.f32 %v6372, %v2539
        %v6405 = vadd.f32 %v6373, %v2540
        %v6406 = vadd.f32 %v6374, %v2541
        %v6407 = vadd.f32 %v6375, %v2542
        %v6408 = vadd.f32 %v6376, %v2543
        %v6409 = vadd.f32 %v6377, %v2544
        %v6410 = vadd.f32 %v6378, %v2545
        %v6411 = vadd.f32 %v6379, %v2546
        %v6412 = vadd.f32 %v6380, %v2547
        %v6413 = vadd.f32 %v6381, %v2548
        %v6414 = vadd.f32 %v6382, %v2549
        %v6415 = vadd.f32 %v6383, %v2550
        %v6416 = vadd.f32 %v6384, %v2551
        %v6417 = vadd.f32 %v6385, %v2552
        %v6418 = vadd.f32 %v6386, %v2553
        %v6419 = vadd.f32 %v6387, %v2554
        %v6420 = vadd.f32 %v6388, %v2555
        %v6421 = vadd.f32 %v6389, %v2556
        %v6422 = vadd.f32 %v6390, %v2557
        %v6423 = vadd.f32 %v6391, %v2558
        %v6424 = vadd.f32 %v6392, %v2559
        %v6425 = vadd.f32 %v6393, %v2560
        %v6426 = vadd.f32 %v6394, %v2561
        %v6427 = vadd.f32 %v6395, %v2562
        %v6428 = vadd.f32 %v6396, %v2563
        %v6429 = vadd.f32 %v6397, %v2564
        %v6430 = vadd.f32 %v6398, %v2565
        %v6431 = vadd.f32 %v6399, %v2566
        %v6432 = vadd.f32 %v6400, %v2567
        %v6433 = vadd.f32 %v6401, %v2568
        %v6434 = vadd.f32 %v6402, %v2569
        %v6435 = vmax.f32 %v6403, %v6404
        %6436 = vmax.xlane.f32.xlu0 %v6435
        %v6437 = vpop.xlane.xlu0 %6436
        %v6438 = vmax.f32 %v6405, %v6406
        %6439 = vmax.xlane.f32.xlu0 %v6438
        %v6440 = vpop.xlane.xlu0 %6439
        %v6441 = vmax.f32 %v6407, %v6408
        %6442 = vmax.xlane.f32.xlu0 %v6441
        %v6443 = vpop.xlane.xlu0 %6442
        %v6444 = vmax.f32 %v6409, %v6410
        %6445 = vmax.xlane.f32.xlu0 %v6444
        %v6446 = vpop.xlane.xlu0 %6445
        %v6447 = vmax.f32 %v6411, %v6412
        %6448 = vmax.xlane.f32.xlu0 %v6447
        %v6449 = vpop.xlane.xlu0 %6448
        %v6450 = vmax.f32 %v6413, %v6414
        %6451 = vmax.xlane.f32.xlu0 %v6450
        %v6452 = vpop.xlane.xlu0 %6451
        %v6453 = vmax.f32 %v6415, %v6416
        %6454 = vmax.xlane.f32.xlu0 %v6453
        %v6455 = vpop.xlane.xlu0 %6454
        %v6456 = vmax.f32 %v6417, %v6418
        %6457 = vmax.xlane.f32.xlu0 %v6456
        %v6458 = vpop.xlane.xlu0 %6457
        %v6459 = vmax.f32 %v6419, %v6420
        %6460 = vmax.xlane.f32.xlu0 %v6459
        %v6461 = vpop.xlane.xlu0 %6460
        %v6462 = vmax.f32 %v6421, %v6422
        %6463 = vmax.xlane.f32.xlu0 %v6462
        %v6464 = vpop.xlane.xlu0 %6463
        %v6465 = vmax.f32 %v6423, %v6424
        %6466 = vmax.xlane.f32.xlu0 %v6465
        %v6467 = vpop.xlane.xlu0 %6466
        %v6468 = vmax.f32 %v6425, %v6426
        %6469 = vmax.xlane.f32.xlu0 %v6468
        %v6470 = vpop.xlane.xlu0 %6469
        %v6471 = vmax.f32 %v6427, %v6428
        %6472 = vmax.xlane.f32.xlu0 %v6471
        %v6473 = vpop.xlane.xlu0 %6472
        %v6474 = vmax.f32 %v6429, %v6430
        %6475 = vmax.xlane.f32.xlu0 %v6474
        %v6476 = vpop.xlane.xlu0 %6475
        %v6477 = vmax.f32 %v6431, %v6432
        %6478 = vmax.xlane.f32.xlu0 %v6477
        %v6479 = vpop.xlane.xlu0 %6478
        %v6480 = vmax.f32 %v6433, %v6434
        %6481 = vmax.xlane.f32.xlu0 %v6480
        %v6482 = vpop.xlane.xlu0 %6481
        %vm6483 = vcmask 244968
        %6484 = vst.msk [vmem:[#allocation2] sm:$0xff] %vm6483, %v6437
        %6485 = vst.msk [vmem:[#allocation2 + $0x8] sm:$0xff] %vm6483, %v6440
        %6486 = vst.msk [vmem:[#allocation2 + $0x10] sm:$0xff] %vm6483, %v6443
        %6487 = vst.msk [vmem:[#allocation2 + $0x18] sm:$0xff] %vm6483, %v6446
        %6488 = vst.msk [vmem:[#allocation2 + $0x20] sm:$0xff] %vm6483, %v6449
        %6489 = vst.msk [vmem:[#allocation2 + $0x28] sm:$0xff] %vm6483, %v6452
        %6490 = vst.msk [vmem:[#allocation2 + $0x30] sm:$0xff] %vm6483, %v6455
        %6491 = vst.msk [vmem:[#allocation2 + $0x38] sm:$0xff] %vm6483, %v6458
        %6492 = vst.msk [vmem:[#allocation2 + $0x40] sm:$0xff] %vm6483, %v6461
        %6493 = vst.msk [vmem:[#allocation2 + $0x48] sm:$0xff] %vm6483, %v6464
        %6494 = vst.msk [vmem:[#allocation2 + $0x50] sm:$0xff] %vm6483, %v6467
        %6495 = vst.msk [vmem:[#allocation2 + $0x58] sm:$0xff] %vm6483, %v6470
        %6496 = vst.msk [vmem:[#allocation2 + $0x60] sm:$0xff] %vm6483, %v6473
        %6497 = vst.msk [vmem:[#allocation2 + $0x68] sm:$0xff] %vm6483, %v6476
        %6498 = vst.msk [vmem:[#allocation2 + $0x70] sm:$0xff] %vm6483, %v6479
        %6499 = vst.msk [vmem:[#allocation2 + $0x78] sm:$0xff] %vm6483, %v6482
        %v6500 = vperm.slane %v1527, 6
        %v6501 = vperm.slane %v1556, 6
        %v6502 = vmul.f32 %v2216, %v6500
        %v6503 = vmul.f32 %v2217, %v6501
        %v6504 = vmul.f32 %v2218, %v6500
        %v6505 = vmul.f32 %v2219, %v6501
        %v6506 = vmul.f32 %v2220, %v6500
        %v6507 = vmul.f32 %v2221, %v6501
        %v6508 = vmul.f32 %v2222, %v6500
        %v6509 = vmul.f32 %v2223, %v6501
        %v6510 = vmul.f32 %v2224, %v6500
        %v6511 = vmul.f32 %v2225, %v6501
        %v6512 = vmul.f32 %v2226, %v6500
        %v6513 = vmul.f32 %v2227, %v6501
        %v6514 = vmul.f32 %v2228, %v6500
        %v6515 = vmul.f32 %v2229, %v6501
        %v6516 = vmul.f32 %v2230, %v6500
        %v6517 = vmul.f32 %v2231, %v6501
        %v6518 = vmul.f32 %v2232, %v6500
        %v6519 = vmul.f32 %v2233, %v6501
        %v6520 = vmul.f32 %v2234, %v6500
        %v6521 = vmul.f32 %v2235, %v6501
        %v6522 = vmul.f32 %v2236, %v6500
        %v6523 = vmul.f32 %v2237, %v6501
        %v6524 = vmul.f32 %v2238, %v6500
        %v6525 = vmul.f32 %v2239, %v6501
        %v6526 = vmul.f32 %v2240, %v6500
        %v6527 = vmul.f32 %v2241, %v6501
        %v6528 = vmul.f32 %v2242, %v6500
        %v6529 = vmul.f32 %v2243, %v6501
        %v6530 = vmul.f32 %v2244, %v6500
        %v6531 = vmul.f32 %v2245, %v6501
        %v6532 = vmul.f32 %v2246, %v6500
        %v6533 = vmul.f32 %v2247, %v6501
        %v6534 = vadd.f32 %v6502, %v2538
        %v6535 = vadd.f32 %v6503, %v2539
        %v6536 = vadd.f32 %v6504, %v2540
        %v6537 = vadd.f32 %v6505, %v2541
        %v6538 = vadd.f32 %v6506, %v2542
        %v6539 = vadd.f32 %v6507, %v2543
        %v6540 = vadd.f32 %v6508, %v2544
        %v6541 = vadd.f32 %v6509, %v2545
        %v6542 = vadd.f32 %v6510, %v2546
        %v6543 = vadd.f32 %v6511, %v2547
        %v6544 = vadd.f32 %v6512, %v2548
        %v6545 = vadd.f32 %v6513, %v2549
        %v6546 = vadd.f32 %v6514, %v2550
        %v6547 = vadd.f32 %v6515, %v2551
        %v6548 = vadd.f32 %v6516, %v2552
        %v6549 = vadd.f32 %v6517, %v2553
        %v6550 = vadd.f32 %v6518, %v2554
        %v6551 = vadd.f32 %v6519, %v2555
        %v6552 = vadd.f32 %v6520, %v2556
        %v6553 = vadd.f32 %v6521, %v2557
        %v6554 = vadd.f32 %v6522, %v2558
        %v6555 = vadd.f32 %v6523, %v2559
        %v6556 = vadd.f32 %v6524, %v2560
        %v6557 = vadd.f32 %v6525, %v2561
        %v6558 = vadd.f32 %v6526, %v2562
        %v6559 = vadd.f32 %v6527, %v2563
        %v6560 = vadd.f32 %v6528, %v2564
        %v6561 = vadd.f32 %v6529, %v2565
        %v6562 = vadd.f32 %v6530, %v2566
        %v6563 = vadd.f32 %v6531, %v2567
        %v6564 = vadd.f32 %v6532, %v2568
        %v6565 = vadd.f32 %v6533, %v2569
        %v6566 = vmax.f32 %v6534, %v6535
        %6567 = vmax.xlane.f32.xlu0 %v6566
        %v6568 = vpop.xlane.xlu0 %6567
        %v6569 = vmax.f32 %v6536, %v6537
        %6570 = vmax.xlane.f32.xlu0 %v6569
        %v6571 = vpop.xlane.xlu0 %6570
        %v6572 = vmax.f32 %v6538, %v6539
        %6573 = vmax.xlane.f32.xlu0 %v6572
        %v6574 = vpop.xlane.xlu0 %6573
        %v6575 = vmax.f32 %v6540, %v6541
        %6576 = vmax.xlane.f32.xlu0 %v6575
        %v6577 = vpop.xlane.xlu0 %6576
        %v6578 = vmax.f32 %v6542, %v6543
        %6579 = vmax.xlane.f32.xlu0 %v6578
        %v6580 = vpop.xlane.xlu0 %6579
        %v6581 = vmax.f32 %v6544, %v6545
        %6582 = vmax.xlane.f32.xlu0 %v6581
        %v6583 = vpop.xlane.xlu0 %6582
        %v6584 = vmax.f32 %v6546, %v6547
        %6585 = vmax.xlane.f32.xlu0 %v6584
        %v6586 = vpop.xlane.xlu0 %6585
        %v6587 = vmax.f32 %v6548, %v6549
        %6588 = vmax.xlane.f32.xlu0 %v6587
        %v6589 = vpop.xlane.xlu0 %6588
        %v6590 = vmax.f32 %v6550, %v6551
        %6591 = vmax.xlane.f32.xlu0 %v6590
        %v6592 = vpop.xlane.xlu0 %6591
        %v6593 = vmax.f32 %v6552, %v6553
        %6594 = vmax.xlane.f32.xlu0 %v6593
        %v6595 = vpop.xlane.xlu0 %6594
        %v6596 = vmax.f32 %v6554, %v6555
        %6597 = vmax.xlane.f32.xlu0 %v6596
        %v6598 = vpop.xlane.xlu0 %6597
        %v6599 = vmax.f32 %v6556, %v6557
        %6600 = vmax.xlane.f32.xlu0 %v6599
        %v6601 = vpop.xlane.xlu0 %6600
        %v6602 = vmax.f32 %v6558, %v6559
        %6603 = vmax.xlane.f32.xlu0 %v6602
        %v6604 = vpop.xlane.xlu0 %6603
        %v6605 = vmax.f32 %v6560, %v6561
        %6606 = vmax.xlane.f32.xlu0 %v6605
        %v6607 = vpop.xlane.xlu0 %6606
        %v6608 = vmax.f32 %v6562, %v6563
        %6609 = vmax.xlane.f32.xlu0 %v6608
        %v6610 = vpop.xlane.xlu0 %6609
        %v6611 = vmax.f32 %v6564, %v6565
        %6612 = vmax.xlane.f32.xlu0 %v6611
        %v6613 = vpop.xlane.xlu0 %6612
        %vm6614 = vcmask 253168
        %6615 = vst.msk [vmem:[#allocation2] sm:$0xff] %vm6614, %v6568
        %6616 = vst.msk [vmem:[#allocation2 + $0x8] sm:$0xff] %vm6614, %v6571
        %6617 = vst.msk [vmem:[#allocation2 + $0x10] sm:$0xff] %vm6614, %v6574
        %6618 = vst.msk [vmem:[#allocation2 + $0x18] sm:$0xff] %vm6614, %v6577
        %6619 = vst.msk [vmem:[#allocation2 + $0x20] sm:$0xff] %vm6614, %v6580
        %6620 = vst.msk [vmem:[#allocation2 + $0x28] sm:$0xff] %vm6614, %v6583
        %6621 = vst.msk [vmem:[#allocation2 + $0x30] sm:$0xff] %vm6614, %v6586
        %6622 = vst.msk [vmem:[#allocation2 + $0x38] sm:$0xff] %vm6614, %v6589
        %6623 = vst.msk [vmem:[#allocation2 + $0x40] sm:$0xff] %vm6614, %v6592
        %6624 = vst.msk [vmem:[#allocation2 + $0x48] sm:$0xff] %vm6614, %v6595
        %6625 = vst.msk [vmem:[#allocation2 + $0x50] sm:$0xff] %vm6614, %v6598
        %6626 = vst.msk [vmem:[#allocation2 + $0x58] sm:$0xff] %vm6614, %v6601
        %6627 = vst.msk [vmem:[#allocation2 + $0x60] sm:$0xff] %vm6614, %v6604
        %6628 = vst.msk [vmem:[#allocation2 + $0x68] sm:$0xff] %vm6614, %v6607
        %6629 = vst.msk [vmem:[#allocation2 + $0x70] sm:$0xff] %vm6614, %v6610
        %6630 = vst.msk [vmem:[#allocation2 + $0x78] sm:$0xff] %vm6614, %v6613
        %v6631 = vperm.slane %v1527, 7
        %v6632 = vperm.slane %v1556, 7
        %v6633 = vmul.f32 %v2216, %v6631
        %v6634 = vmul.f32 %v2217, %v6632
        %v6635 = vmul.f32 %v2218, %v6631
        %v6636 = vmul.f32 %v2219, %v6632
        %v6637 = vmul.f32 %v2220, %v6631
        %v6638 = vmul.f32 %v2221, %v6632
        %v6639 = vmul.f32 %v2222, %v6631
        %v6640 = vmul.f32 %v2223, %v6632
        %v6641 = vmul.f32 %v2224, %v6631
        %v6642 = vmul.f32 %v2225, %v6632
        %v6643 = vmul.f32 %v2226, %v6631
        %v6644 = vmul.f32 %v2227, %v6632
        %v6645 = vmul.f32 %v2228, %v6631
        %v6646 = vmul.f32 %v2229, %v6632
        %v6647 = vmul.f32 %v2230, %v6631
        %v6648 = vmul.f32 %v2231, %v6632
        %v6649 = vmul.f32 %v2232, %v6631
        %v6650 = vmul.f32 %v2233, %v6632
        %v6651 = vmul.f32 %v2234, %v6631
        %v6652 = vmul.f32 %v2235, %v6632
        %v6653 = vmul.f32 %v2236, %v6631
        %v6654 = vmul.f32 %v2237, %v6632
        %v6655 = vmul.f32 %v2238, %v6631
        %v6656 = vmul.f32 %v2239, %v6632
        %v6657 = vmul.f32 %v2240, %v6631
        %v6658 = vmul.f32 %v2241, %v6632
        %v6659 = vmul.f32 %v2242, %v6631
        %v6660 = vmul.f32 %v2243, %v6632
        %v6661 = vmul.f32 %v2244, %v6631
        %v6662 = vmul.f32 %v2245, %v6632
        %v6663 = vmul.f32 %v2246, %v6631
        %v6664 = vmul.f32 %v2247, %v6632
        %v6665 = vadd.f32 %v6633, %v2538
        %v6666 = vadd.f32 %v6634, %v2539
        %v6667 = vadd.f32 %v6635, %v2540
        %v6668 = vadd.f32 %v6636, %v2541
        %v6669 = vadd.f32 %v6637, %v2542
        %v6670 = vadd.f32 %v6638, %v2543
        %v6671 = vadd.f32 %v6639, %v2544
        %v6672 = vadd.f32 %v6640, %v2545
        %v6673 = vadd.f32 %v6641, %v2546
        %v6674 = vadd.f32 %v6642, %v2547
        %v6675 = vadd.f32 %v6643, %v2548
        %v6676 = vadd.f32 %v6644, %v2549
        %v6677 = vadd.f32 %v6645, %v2550
        %v6678 = vadd.f32 %v6646, %v2551
        %v6679 = vadd.f32 %v6647, %v2552
        %v6680 = vadd.f32 %v6648, %v2553
        %v6681 = vadd.f32 %v6649, %v2554
        %v6682 = vadd.f32 %v6650, %v2555
        %v6683 = vadd.f32 %v6651, %v2556
        %v6684 = vadd.f32 %v6652, %v2557
        %v6685 = vadd.f32 %v6653, %v2558
        %v6686 = vadd.f32 %v6654, %v2559
        %v6687 = vadd.f32 %v6655, %v2560
        %v6688 = vadd.f32 %v6656, %v2561
        %v6689 = vadd.f32 %v6657, %v2562
        %v6690 = vadd.f32 %v6658, %v2563
        %v6691 = vadd.f32 %v6659, %v2564
        %v6692 = vadd.f32 %v6660, %v2565
        %v6693 = vadd.f32 %v6661, %v2566
        %v6694 = vadd.f32 %v6662, %v2567
        %v6695 = vadd.f32 %v6663, %v2568
        %v6696 = vadd.f32 %v6664, %v2569
        %v6697 = vmax.f32 %v6665, %v6666
        %6698 = vmax.xlane.f32.xlu0 %v6697
        %v6699 = vpop.xlane.xlu0 %6698
        %v6700 = vmax.f32 %v6667, %v6668
        %6701 = vmax.xlane.f32.xlu0 %v6700
        %v6702 = vpop.xlane.xlu0 %6701
        %v6703 = vmax.f32 %v6669, %v6670
        %6704 = vmax.xlane.f32.xlu0 %v6703
        %v6705 = vpop.xlane.xlu0 %6704
        %v6706 = vmax.f32 %v6671, %v6672
        %6707 = vmax.xlane.f32.xlu0 %v6706
        %v6708 = vpop.xlane.xlu0 %6707
        %v6709 = vmax.f32 %v6673, %v6674
        %6710 = vmax.xlane.f32.xlu0 %v6709
        %v6711 = vpop.xlane.xlu0 %6710
        %v6712 = vmax.f32 %v6675, %v6676
        %6713 = vmax.xlane.f32.xlu0 %v6712
        %v6714 = vpop.xlane.xlu0 %6713
        %v6715 = vmax.f32 %v6677, %v6678
        %6716 = vmax.xlane.f32.xlu0 %v6715
        %v6717 = vpop.xlane.xlu0 %6716
        %v6718 = vmax.f32 %v6679, %v6680
        %6719 = vmax.xlane.f32.xlu0 %v6718
        %v6720 = vpop.xlane.xlu0 %6719
        %v6721 = vmax.f32 %v6681, %v6682
        %6722 = vmax.xlane.f32.xlu0 %v6721
        %v6723 = vpop.xlane.xlu0 %6722
        %v6724 = vmax.f32 %v6683, %v6684
        %6725 = vmax.xlane.f32.xlu0 %v6724
        %v6726 = vpop.xlane.xlu0 %6725
        %v6727 = vmax.f32 %v6685, %v6686
        %6728 = vmax.xlane.f32.xlu0 %v6727
        %v6729 = vpop.xlane.xlu0 %6728
        %v6730 = vmax.f32 %v6687, %v6688
        %6731 = vmax.xlane.f32.xlu0 %v6730
        %v6732 = vpop.xlane.xlu0 %6731
        %v6733 = vmax.f32 %v6689, %v6690
        %6734 = vmax.xlane.f32.xlu0 %v6733
        %v6735 = vpop.xlane.xlu0 %6734
        %v6736 = vmax.f32 %v6691, %v6692
        %6737 = vmax.xlane.f32.xlu0 %v6736
        %v6738 = vpop.xlane.xlu0 %6737
        %v6739 = vmax.f32 %v6693, %v6694
        %6740 = vmax.xlane.f32.xlu0 %v6739
        %v6741 = vpop.xlane.xlu0 %6740
        %v6742 = vmax.f32 %v6695, %v6696
        %6743 = vmax.xlane.f32.xlu0 %v6742
        %v6744 = vpop.xlane.xlu0 %6743
        %vm6745 = vcmask 261368
        %6746 = vst.msk [vmem:[#allocation2] sm:$0xff] %vm6745, %v6699
        %6747 = vst.msk [vmem:[#allocation2 + $0x8] sm:$0xff] %vm6745, %v6702
        %6748 = vst.msk [vmem:[#allocation2 + $0x10] sm:$0xff] %vm6745, %v6705
        %6749 = vst.msk [vmem:[#allocation2 + $0x18] sm:$0xff] %vm6745, %v6708
        %6750 = vst.msk [vmem:[#allocation2 + $0x20] sm:$0xff] %vm6745, %v6711
        %6751 = vst.msk [vmem:[#allocation2 + $0x28] sm:$0xff] %vm6745, %v6714
        %6752 = vst.msk [vmem:[#allocation2 + $0x30] sm:$0xff] %vm6745, %v6717
        %6753 = vst.msk [vmem:[#allocation2 + $0x38] sm:$0xff] %vm6745, %v6720
        %6754 = vst.msk [vmem:[#allocation2 + $0x40] sm:$0xff] %vm6745, %v6723
        %6755 = vst.msk [vmem:[#allocation2 + $0x48] sm:$0xff] %vm6745, %v6726
        %6756 = vst.msk [vmem:[#allocation2 + $0x50] sm:$0xff] %vm6745, %v6729
        %6757 = vst.msk [vmem:[#allocation2 + $0x58] sm:$0xff] %vm6745, %v6732
        %6758 = vst.msk [vmem:[#allocation2 + $0x60] sm:$0xff] %vm6745, %v6735
        %6759 = vst.msk [vmem:[#allocation2 + $0x68] sm:$0xff] %vm6745, %v6738
        %6760 = vst.msk [vmem:[#allocation2 + $0x70] sm:$0xff] %vm6745, %v6741
        %6761 = vst.msk [vmem:[#allocation2 + $0x78] sm:$0xff] %vm6745, %v6744
        %vm6762 = vcmp.gt.f32.partialorder %v2314, 0.0
        %vm6763 = vcmp.gt.f32.partialorder %v2317, 0.0
        %vm6764 = vcmp.gt.f32.partialorder %v2320, 0.0
        %vm6765 = vcmp.gt.f32.partialorder %v2323, 0.0
        %vm6766 = vcmp.gt.f32.partialorder %v2326, 0.0
        %vm6767 = vcmp.gt.f32.partialorder %v2329, 0.0
        %vm6768 = vcmp.gt.f32.partialorder %v2332, 0.0
        %vm6769 = vcmp.gt.f32.partialorder %v2335, 0.0
        %vm6770 = vcmp.gt.f32.partialorder %v2338, 0.0
        %vm6771 = vcmp.gt.f32.partialorder %v2341, 0.0
        %vm6772 = vcmp.gt.f32.partialorder %v2344, 0.0
        %vm6773 = vcmp.gt.f32.partialorder %v2347, 0.0
        %vm6774 = vcmp.gt.f32.partialorder %v2350, 0.0
        %vm6775 = vcmp.gt.f32.partialorder %v2353, 0.0
        %vm6776 = vcmp.gt.f32.partialorder %v2356, 0.0
        %vm6777 = vcmp.gt.f32.partialorder %v2359, 0.0
        %v6778 = vld [vmem:[#allocation2] sm:$0xff]
        %v6779 = vld [vmem:[#allocation2 + $0x8] sm:$0xff]
        %v6780 = vld [vmem:[#allocation2 + $0x10] sm:$0xff]
        %v6781 = vld [vmem:[#allocation2 + $0x18] sm:$0xff]
        %v6782 = vld [vmem:[#allocation2 + $0x20] sm:$0xff]
        %v6783 = vld [vmem:[#allocation2 + $0x28] sm:$0xff]
        %v6784 = vld [vmem:[#allocation2 + $0x30] sm:$0xff]
        %v6785 = vld [vmem:[#allocation2 + $0x38] sm:$0xff]
        %v6786 = vld [vmem:[#allocation2 + $0x40] sm:$0xff]
        %v6787 = vld [vmem:[#allocation2 + $0x48] sm:$0xff]
        %v6788 = vld [vmem:[#allocation2 + $0x50] sm:$0xff]
        %v6789 = vld [vmem:[#allocation2 + $0x58] sm:$0xff]
        %v6790 = vld [vmem:[#allocation2 + $0x60] sm:$0xff]
        %v6791 = vld [vmem:[#allocation2 + $0x68] sm:$0xff]
        %v6792 = vld [vmem:[#allocation2 + $0x70] sm:$0xff]
        %v6793 = vld [vmem:[#allocation2 + $0x78] sm:$0xff]
        %v6794 = vsel %vm6762, 1, 0
        %v6795 = vsel %vm6763, 1, 0
        %v6796 = vsel %vm6764, 1, 0
        %v6797 = vsel %vm6765, 1, 0
        %v6798 = vsel %vm6766, 1, 0
        %v6799 = vsel %vm6767, 1, 0
        %v6800 = vsel %vm6768, 1, 0
        %v6801 = vsel %vm6769, 1, 0
        %v6802 = vsel %vm6770, 1, 0
        %v6803 = vsel %vm6771, 1, 0
        %v6804 = vsel %vm6772, 1, 0
        %v6805 = vsel %vm6773, 1, 0
        %v6806 = vsel %vm6774, 1, 0
        %v6807 = vsel %vm6775, 1, 0
        %v6808 = vsel %vm6776, 1, 0
        %v6809 = vsel %vm6777, 1, 0
        %vm6810 = vcmp.eq.s32.totalorder %v6794, 1
        %vm6811 = vcmp.eq.s32.totalorder %v6795, 1
        %vm6812 = vcmp.eq.s32.totalorder %v6796, 1
        %vm6813 = vcmp.eq.s32.totalorder %v6797, 1
        %vm6814 = vcmp.eq.s32.totalorder %v6798, 1
        %vm6815 = vcmp.eq.s32.totalorder %v6799, 1
        %vm6816 = vcmp.eq.s32.totalorder %v6800, 1
        %vm6817 = vcmp.eq.s32.totalorder %v6801, 1
        %vm6818 = vcmp.eq.s32.totalorder %v6802, 1
        %vm6819 = vcmp.eq.s32.totalorder %v6803, 1
        %vm6820 = vcmp.eq.s32.totalorder %v6804, 1
        %vm6821 = vcmp.eq.s32.totalorder %v6805, 1
        %vm6822 = vcmp.eq.s32.totalorder %v6806, 1
        %vm6823 = vcmp.eq.s32.totalorder %v6807, 1
        %vm6824 = vcmp.eq.s32.totalorder %v6808, 1
        %vm6825 = vcmp.eq.s32.totalorder %v6809, 1
        %v6826 = vsel %vm6810, %v6778, 0.0
        %v6827 = vsel %vm6811, %v6779, 0.0
        %v6828 = vsel %vm6812, %v6780, 0.0
        %v6829 = vsel %vm6813, %v6781, 0.0
        %v6830 = vsel %vm6814, %v6782, 0.0
        %v6831 = vsel %vm6815, %v6783, 0.0
        %v6832 = vsel %vm6816, %v6784, 0.0
        %v6833 = vsel %vm6817, %v6785, 0.0
        %v6834 = vsel %vm6818, %v6786, 0.0
        %v6835 = vsel %vm6819, %v6787, 0.0
        %v6836 = vsel %vm6820, %v6788, 0.0
        %v6837 = vsel %vm6821, %v6789, 0.0
        %v6838 = vsel %vm6822, %v6790, 0.0
        %v6839 = vsel %vm6823, %v6791, 0.0
        %v6840 = vsel %vm6824, %v6792, 0.0
        %v6841 = vsel %vm6825, %v6793, 0.0
        %v6842 = vld [vmem:[%s23] sm:$0xff]
        %v6843 = vld [vmem:[%s23 + $0x8] sm:$0xff]
        %v6844 = vld [vmem:[%s23 + $0x10] sm:$0xf]
        %v6845 = vld [vmem:[%s23 + $0x18] sm:$0xf]
        %v6846 = vld [vmem:[%s25] sm:$0xff]
        %v6847 = vld [vmem:[%s25 + $0x8] sm:$0xff]
        %v6848 = vld [vmem:[%s25 + $0x10] sm:$0xff]
        %v6849 = vld [vmem:[%s25 + $0x18] sm:$0xff]
        %v6850 = vld [vmem:[%s25 + $0x20] sm:$0xff]
        %v6851 = vld [vmem:[%s25 + $0x28] sm:$0xff]
        %v6852 = vld [vmem:[%s25 + $0x30] sm:$0xff]
        %v6853 = vld [vmem:[%s25 + $0x38] sm:$0xff]
        %vm6854 = vcmask 261120
        %v6856 = vsel %vm6854, %v2522, 0
        %v6859 = vsel %vm6854, %v2523, 0
        %v6862 = vsel %vm6854, %v2524, 0
        %v6865 = vsel %vm6854, %v2525, 0
        %v6868 = vsel %vm6854, %v2526, 0
        %v6871 = vsel %vm6854, %v2527, 0
        %v6874 = vsel %vm6854, %v2528, 0
        %v6877 = vsel %vm6854, %v2529, 0
        %v6880 = vsel %vm6854, %v2530, 0
        %v6883 = vsel %vm6854, %v2531, 0
        %v6886 = vsel %vm6854, %v2532, 0
        %v6889 = vsel %vm6854, %v2533, 0
        %v6892 = vsel %vm6854, %v2534, 0
        %v6895 = vsel %vm6854, %v2535, 0
        %v6898 = vsel %vm6854, %v2536, 0
        %v6901 = vsel %vm6854, %v2537, 0
        %6903 = vmatpush.msra.mxu0 0.0
        %6904 = vmatpush.msra.mxu0 0.0
        %6905 = vmatpush.msra.mxu0 0.0
        %6906 = vmatpush.msra.mxu0 0.0
        %6907 = vmatpush.msra.mxu0 0.0
        %6908 = vmatpush.msra.mxu0 0.0
        %6909 = vmatpush.msra.mxu0 0.0
        %6910 = vmatpush.msra.mxu0 0.0
        %6911 = vmatpush.msra.mxu0 0.0
        %6912 = vmatpush.msra.mxu0 0.0
        %6913 = vmatpush.msra.mxu0 0.0
        %6914 = vmatpush.msra.mxu0 0.0
        %6915 = vmatpush.msra.mxu0 %v6852
        %6916 = vmatpush.msra.mxu0 %v6850
        %6917 = vmatpush.msra.mxu0 %v6848
        %6918 = vmatpush.msra.mxu0 %v6846
        %6919 = vmatmul.f32.gmra.mxu0 %v6856
        %v6920 = vpop.f32.mrf.mxu0
        %v6921 = vadd.f32 0.0, %v6920
        %6922 = vmatmul.f32.gmra.mxu0 %v6859
        %v6923 = vpop.f32.mrf.mxu0
        %v6924 = vadd.f32 0.0, %v6923
        %6925 = vmatmul.f32.gmra.mxu0 %v6862
        %v6926 = vpop.f32.mrf.mxu0
        %v6927 = vadd.f32 0.0, %v6926
        %6928 = vmatmul.f32.gmra.mxu0 %v6865
        %v6929 = vpop.f32.mrf.mxu0
        %v6930 = vadd.f32 0.0, %v6929
        %6931 = vmatmul.f32.gmra.mxu0 %v6868
        %v6932 = vpop.f32.mrf.mxu0
        %v6933 = vadd.f32 0.0, %v6932
        %6934 = vmatmul.f32.gmra.mxu0 %v6871
        %v6935 = vpop.f32.mrf.mxu0
        %v6936 = vadd.f32 0.0, %v6935
        %6937 = vmatmul.f32.gmra.mxu0 %v6874
        %v6938 = vpop.f32.mrf.mxu0
        %v6939 = vadd.f32 0.0, %v6938
        %6940 = vmatmul.f32.gmra.mxu0 %v6877
        %v6941 = vpop.f32.mrf.mxu0
        %v6942 = vadd.f32 0.0, %v6941
        %6943 = vmatmul.f32.gmra.mxu0 %v6880
        %v6944 = vpop.f32.mrf.mxu0
        %v6945 = vadd.f32 0.0, %v6944
        %6946 = vmatmul.f32.gmra.mxu0 %v6883
        %v6947 = vpop.f32.mrf.mxu0
        %v6948 = vadd.f32 0.0, %v6947
        %6949 = vmatmul.f32.gmra.mxu0 %v6886
        %v6950 = vpop.f32.mrf.mxu0
        %v6951 = vadd.f32 0.0, %v6950
        %6952 = vmatmul.f32.gmra.mxu0 %v6889
        %v6953 = vpop.f32.mrf.mxu0
        %v6954 = vadd.f32 0.0, %v6953
        %6955 = vmatmul.f32.gmra.mxu0 %v6892
        %v6956 = vpop.f32.mrf.mxu0
        %v6957 = vadd.f32 0.0, %v6956
        %6958 = vmatmul.f32.gmra.mxu0 %v6895
        %v6959 = vpop.f32.mrf.mxu0
        %v6960 = vadd.f32 0.0, %v6959
        %6961 = vmatmul.f32.gmra.mxu0 %v6898
        %v6962 = vpop.f32.mrf.mxu0
        %v6963 = vadd.f32 0.0, %v6962
        %6964 = vmatmul.f32.gmra.mxu0 %v6901
        %v6965 = vpop.f32.mrf.mxu0
        %v6966 = vadd.f32 0.0, %v6965
        %6967 = vdwg.mxu0
        %6968 = vmatpush.msra.mxu0 0.0
        %6969 = vmatpush.msra.mxu0 0.0
        %6970 = vmatpush.msra.mxu0 0.0
        %6971 = vmatpush.msra.mxu0 0.0
        %6972 = vmatpush.msra.mxu0 0.0
        %6973 = vmatpush.msra.mxu0 0.0
        %6974 = vmatpush.msra.mxu0 0.0
        %6975 = vmatpush.msra.mxu0 0.0
        %6976 = vmatpush.msra.mxu0 0.0
        %6977 = vmatpush.msra.mxu0 0.0
        %6978 = vmatpush.msra.mxu0 0.0
        %6979 = vmatpush.msra.mxu0 0.0
        %6980 = vmatpush.msra.mxu0 %v6853
        %6981 = vmatpush.msra.mxu0 %v6851
        %6982 = vmatpush.msra.mxu0 %v6849
        %6983 = vmatpush.msra.mxu0 %v6847
        %6984 = vmatmul.f32.gmra.mxu0 %v6856
        %v6985 = vpop.f32.mrf.mxu0
        %v6986 = vadd.f32 0.0, %v6985
        %6987 = vmatmul.f32.gmra.mxu0 %v6859
        %v6988 = vpop.f32.mrf.mxu0
        %v6989 = vadd.f32 0.0, %v6988
        %6990 = vmatmul.f32.gmra.mxu0 %v6862
        %v6991 = vpop.f32.mrf.mxu0
        %v6992 = vadd.f32 0.0, %v6991
        %6993 = vmatmul.f32.gmra.mxu0 %v6865
        %v6994 = vpop.f32.mrf.mxu0
        %v6995 = vadd.f32 0.0, %v6994
        %6996 = vmatmul.f32.gmra.mxu0 %v6868
        %v6997 = vpop.f32.mrf.mxu0
        %v6998 = vadd.f32 0.0, %v6997
        %6999 = vmatmul.f32.gmra.mxu0 %v6871
        %v7000 = vpop.f32.mrf.mxu0
        %v7001 = vadd.f32 0.0, %v7000
        %7002 = vmatmul.f32.gmra.mxu0 %v6874
        %v7003 = vpop.f32.mrf.mxu0
        %v7004 = vadd.f32 0.0, %v7003
        %7005 = vmatmul.f32.gmra.mxu0 %v6877
        %v7006 = vpop.f32.mrf.mxu0
        %v7007 = vadd.f32 0.0, %v7006
        %7008 = vmatmul.f32.gmra.mxu0 %v6880
        %v7009 = vpop.f32.mrf.mxu0
        %v7010 = vadd.f32 0.0, %v7009
        %7011 = vmatmul.f32.gmra.mxu0 %v6883
        %v7012 = vpop.f32.mrf.mxu0
        %v7013 = vadd.f32 0.0, %v7012
        %7014 = vmatmul.f32.gmra.mxu0 %v6886
        %v7015 = vpop.f32.mrf.mxu0
        %v7016 = vadd.f32 0.0, %v7015
        %7017 = vmatmul.f32.gmra.mxu0 %v6889
        %v7018 = vpop.f32.mrf.mxu0
        %v7019 = vadd.f32 0.0, %v7018
        %7020 = vmatmul.f32.gmra.mxu0 %v6892
        %v7021 = vpop.f32.mrf.mxu0
        %v7022 = vadd.f32 0.0, %v7021
        %7023 = vmatmul.f32.gmra.mxu0 %v6895
        %v7024 = vpop.f32.mrf.mxu0
        %v7025 = vadd.f32 0.0, %v7024
        %7026 = vmatmul.f32.gmra.mxu0 %v6898
        %v7027 = vpop.f32.mrf.mxu0
        %v7028 = vadd.f32 0.0, %v7027
        %7029 = vmatmul.f32.gmra.mxu0 %v6901
        %v7030 = vpop.f32.mrf.mxu0
        %v7031 = vadd.f32 0.0, %v7030
        %7032 = vdwg.mxu0
        %v7034 = vsel %vm1117, %v6844, 0
        %v7037 = vsel %vm1117, %v6845, 0
        %7039 = vmatpush.msra.mxu0 0.0
        %7040 = vmatpush.msra.mxu0 0.0
        %7041 = vmatpush.msra.mxu0 0.0
        %7042 = vmatpush.msra.mxu0 0.0
        %7043 = vmatpush.msra.mxu0 0.0
        %7044 = vmatpush.msra.mxu0 0.0
        %7045 = vmatpush.msra.mxu0 0.0
        %7046 = vmatpush.msra.mxu0 0.0
        %7047 = vmatpush.msra.mxu0 0.0
        %7048 = vmatpush.msra.mxu0 0.0
        %7049 = vmatpush.msra.mxu0 0.0
        %7050 = vmatpush.msra.mxu0 0.0
        %7051 = vmatpush.msra.mxu0 0.0
        %7052 = vmatpush.msra.mxu0 0.0
        %7053 = vmatpush.msra.mxu0 %v7034
        %7054 = vmatpush.msra.mxu0 %v6842
        %7055 = vmatmul.f32.gmra.mxu0 %v1070
        %v7056 = vpop.f32.mrf.mxu0
        %v7057 = vadd.f32 %v6921, %v7056
        %7058 = vmatmul.f32.gmra.mxu0 %v1073
        %v7059 = vpop.f32.mrf.mxu0
        %v7060 = vadd.f32 %v6924, %v7059
        %7061 = vmatmul.f32.gmra.mxu0 %v1076
        %v7062 = vpop.f32.mrf.mxu0
        %v7063 = vadd.f32 %v6927, %v7062
        %7064 = vmatmul.f32.gmra.mxu0 %v1079
        %v7065 = vpop.f32.mrf.mxu0
        %v7066 = vadd.f32 %v6930, %v7065
        %7067 = vmatmul.f32.gmra.mxu0 %v1082
        %v7068 = vpop.f32.mrf.mxu0
        %v7069 = vadd.f32 %v6933, %v7068
        %7070 = vmatmul.f32.gmra.mxu0 %v1085
        %v7071 = vpop.f32.mrf.mxu0
        %v7072 = vadd.f32 %v6936, %v7071
        %7073 = vmatmul.f32.gmra.mxu0 %v1088
        %v7074 = vpop.f32.mrf.mxu0
        %v7075 = vadd.f32 %v6939, %v7074
        %7076 = vmatmul.f32.gmra.mxu0 %v1091
        %v7077 = vpop.f32.mrf.mxu0
        %v7078 = vadd.f32 %v6942, %v7077
        %7079 = vmatmul.f32.gmra.mxu0 %v1094
        %v7080 = vpop.f32.mrf.mxu0
        %v7081 = vadd.f32 %v6945, %v7080
        %7082 = vmatmul.f32.gmra.mxu0 %v1097
        %v7083 = vpop.f32.mrf.mxu0
        %v7084 = vadd.f32 %v6948, %v7083
        %7085 = vmatmul.f32.gmra.mxu0 %v1100
        %v7086 = vpop.f32.mrf.mxu0
        %v7087 = vadd.f32 %v6951, %v7086
        %7088 = vmatmul.f32.gmra.mxu0 %v1103
        %v7089 = vpop.f32.mrf.mxu0
        %v7090 = vadd.f32 %v6954, %v7089
        %7091 = vmatmul.f32.gmra.mxu0 %v1106
        %v7092 = vpop.f32.mrf.mxu0
        %v7093 = vadd.f32 %v6957, %v7092
        %7094 = vmatmul.f32.gmra.mxu0 %v1109
        %v7095 = vpop.f32.mrf.mxu0
        %v7096 = vadd.f32 %v6960, %v7095
        %7097 = vmatmul.f32.gmra.mxu0 %v1112
        %v7098 = vpop.f32.mrf.mxu0
        %v7099 = vadd.f32 %v6963, %v7098
        %7100 = vmatmul.f32.gmra.mxu0 %v1115
        %v7101 = vpop.f32.mrf.mxu0
        %v7102 = vadd.f32 %v6966, %v7101
        %7103 = vdwg.mxu0
        %7104 = vmatpush.msra.mxu0 0.0
        %7105 = vmatpush.msra.mxu0 0.0
        %7106 = vmatpush.msra.mxu0 0.0
        %7107 = vmatpush.msra.mxu0 0.0
        %7108 = vmatpush.msra.mxu0 0.0
        %7109 = vmatpush.msra.mxu0 0.0
        %7110 = vmatpush.msra.mxu0 0.0
        %7111 = vmatpush.msra.mxu0 0.0
        %7112 = vmatpush.msra.mxu0 0.0
        %7113 = vmatpush.msra.mxu0 0.0
        %7114 = vmatpush.msra.mxu0 0.0
        %7115 = vmatpush.msra.mxu0 0.0
        %7116 = vmatpush.msra.mxu0 0.0
        %7117 = vmatpush.msra.mxu0 0.0
        %7118 = vmatpush.msra.mxu0 %v7037
        %7119 = vmatpush.msra.mxu0 %v6843
        %7120 = vmatmul.f32.gmra.mxu0 %v1070
        %v7121 = vpop.f32.mrf.mxu0
        %v7122 = vadd.f32 %v6986, %v7121
        %7123 = vmatmul.f32.gmra.mxu0 %v1073
        %v7124 = vpop.f32.mrf.mxu0
        %v7125 = vadd.f32 %v6989, %v7124
        %7126 = vmatmul.f32.gmra.mxu0 %v1076
        %v7127 = vpop.f32.mrf.mxu0
        %v7128 = vadd.f32 %v6992, %v7127
        %7129 = vmatmul.f32.gmra.mxu0 %v1079
        %v7130 = vpop.f32.mrf.mxu0
        %v7131 = vadd.f32 %v6995, %v7130
        %7132 = vmatmul.f32.gmra.mxu0 %v1082
        %v7133 = vpop.f32.mrf.mxu0
        %v7134 = vadd.f32 %v6998, %v7133
        %7135 = vmatmul.f32.gmra.mxu0 %v1085
        %v7136 = vpop.f32.mrf.mxu0
        %v7137 = vadd.f32 %v7001, %v7136
        %7138 = vmatmul.f32.gmra.mxu0 %v1088
        %v7139 = vpop.f32.mrf.mxu0
        %v7140 = vadd.f32 %v7004, %v7139
        %7141 = vmatmul.f32.gmra.mxu0 %v1091
        %v7142 = vpop.f32.mrf.mxu0
        %v7143 = vadd.f32 %v7007, %v7142
        %7144 = vmatmul.f32.gmra.mxu0 %v1094
        %v7145 = vpop.f32.mrf.mxu0
        %v7146 = vadd.f32 %v7010, %v7145
        %7147 = vmatmul.f32.gmra.mxu0 %v1097
        %v7148 = vpop.f32.mrf.mxu0
        %v7149 = vadd.f32 %v7013, %v7148
        %7150 = vmatmul.f32.gmra.mxu0 %v1100
        %v7151 = vpop.f32.mrf.mxu0
        %v7152 = vadd.f32 %v7016, %v7151
        %7153 = vmatmul.f32.gmra.mxu0 %v1103
        %v7154 = vpop.f32.mrf.mxu0
        %v7155 = vadd.f32 %v7019, %v7154
        %7156 = vmatmul.f32.gmra.mxu0 %v1106
        %v7157 = vpop.f32.mrf.mxu0
        %v7158 = vadd.f32 %v7022, %v7157
        %7159 = vmatmul.f32.gmra.mxu0 %v1109
        %v7160 = vpop.f32.mrf.mxu0
        %v7161 = vadd.f32 %v7025, %v7160
        %7162 = vmatmul.f32.gmra.mxu0 %v1112
        %v7163 = vpop.f32.mrf.mxu0
        %v7164 = vadd.f32 %v7028, %v7163
        %7165 = vmatmul.f32.gmra.mxu0 %v1115
        %v7166 = vpop.f32.mrf.mxu0
        %v7167 = vadd.f32 %v7031, %v7166
        %7168 = vdwg.mxu0
        %v7169 = vld [vmem:[%s27] sm:$0xff]
        %v7170 = vld [vmem:[%s27 + $0x8] sm:$0xff]
        %v7171 = vld [vmem:[%s27 + $0x10] sm:$0xff]
        %v7172 = vld [vmem:[%s27 + $0x18] sm:$0xff]
        %v7173 = vld [vmem:[%s27 + $0x20] sm:$0xff]
        %v7174 = vld [vmem:[%s27 + $0x28] sm:$0xff]
        %v7175 = vld [vmem:[%s27 + $0x30] sm:$0xff]
        %v7176 = vld [vmem:[%s27 + $0x38] sm:$0xff]
        %v7178 = vsel %vm6854, %v6826, 0
        %v7181 = vsel %vm6854, %v6827, 0
        %v7184 = vsel %vm6854, %v6828, 0
        %v7187 = vsel %vm6854, %v6829, 0
        %v7190 = vsel %vm6854, %v6830, 0
        %v7193 = vsel %vm6854, %v6831, 0
        %v7196 = vsel %vm6854, %v6832, 0
        %v7199 = vsel %vm6854, %v6833, 0
        %v7202 = vsel %vm6854, %v6834, 0
        %v7205 = vsel %vm6854, %v6835, 0
        %v7208 = vsel %vm6854, %v6836, 0
        %v7211 = vsel %vm6854, %v6837, 0
        %v7214 = vsel %vm6854, %v6838, 0
        %v7217 = vsel %vm6854, %v6839, 0
        %v7220 = vsel %vm6854, %v6840, 0
        %v7223 = vsel %vm6854, %v6841, 0
        %7225 = vmatpush.msra.mxu0 0.0
        %7226 = vmatpush.msra.mxu0 0.0
        %7227 = vmatpush.msra.mxu0 0.0
        %7228 = vmatpush.msra.mxu0 0.0
        %7229 = vmatpush.msra.mxu0 0.0
        %7230 = vmatpush.msra.mxu0 0.0
        %7231 = vmatpush.msra.mxu0 0.0
        %7232 = vmatpush.msra.mxu0 0.0
        %7233 = vmatpush.msra.mxu0 0.0
        %7234 = vmatpush.msra.mxu0 0.0
        %7235 = vmatpush.msra.mxu0 0.0
        %7236 = vmatpush.msra.mxu0 0.0
        %7237 = vmatpush.msra.mxu0 %v7175
        %7238 = vmatpush.msra.mxu0 %v7173
        %7239 = vmatpush.msra.mxu0 %v7171
        %7240 = vmatpush.msra.mxu0 %v7169
        %7241 = vmatmul.f32.gmra.mxu0 %v7178
        %v7242 = vpop.f32.mrf.mxu0
        %v7243 = vadd.f32 0.0, %v7242
        %7244 = vmatmul.f32.gmra.mxu0 %v7181
        %v7245 = vpop.f32.mrf.mxu0
        %v7246 = vadd.f32 0.0, %v7245
        %7247 = vmatmul.f32.gmra.mxu0 %v7184
        %v7248 = vpop.f32.mrf.mxu0
        %v7249 = vadd.f32 0.0, %v7248
        %7250 = vmatmul.f32.gmra.mxu0 %v7187
        %v7251 = vpop.f32.mrf.mxu0
        %v7252 = vadd.f32 0.0, %v7251
        %7253 = vmatmul.f32.gmra.mxu0 %v7190
        %v7254 = vpop.f32.mrf.mxu0
        %v7255 = vadd.f32 0.0, %v7254
        %7256 = vmatmul.f32.gmra.mxu0 %v7193
        %v7257 = vpop.f32.mrf.mxu0
        %v7258 = vadd.f32 0.0, %v7257
        %7259 = vmatmul.f32.gmra.mxu0 %v7196
        %v7260 = vpop.f32.mrf.mxu0
        %v7261 = vadd.f32 0.0, %v7260
        %7262 = vmatmul.f32.gmra.mxu0 %v7199
        %v7263 = vpop.f32.mrf.mxu0
        %v7264 = vadd.f32 0.0, %v7263
        %7265 = vmatmul.f32.gmra.mxu0 %v7202
        %v7266 = vpop.f32.mrf.mxu0
        %v7267 = vadd.f32 0.0, %v7266
        %7268 = vmatmul.f32.gmra.mxu0 %v7205
        %v7269 = vpop.f32.mrf.mxu0
        %v7270 = vadd.f32 0.0, %v7269
        %7271 = vmatmul.f32.gmra.mxu0 %v7208
        %v7272 = vpop.f32.mrf.mxu0
        %v7273 = vadd.f32 0.0, %v7272
        %7274 = vmatmul.f32.gmra.mxu0 %v7211
        %v7275 = vpop.f32.mrf.mxu0
        %v7276 = vadd.f32 0.0, %v7275
        %7277 = vmatmul.f32.gmra.mxu0 %v7214
        %v7278 = vpop.f32.mrf.mxu0
        %v7279 = vadd.f32 0.0, %v7278
        %7280 = vmatmul.f32.gmra.mxu0 %v7217
        %v7281 = vpop.f32.mrf.mxu0
        %v7282 = vadd.f32 0.0, %v7281
        %7283 = vmatmul.f32.gmra.mxu0 %v7220
        %v7284 = vpop.f32.mrf.mxu0
        %v7285 = vadd.f32 0.0, %v7284
        %7286 = vmatmul.f32.gmra.mxu0 %v7223
        %v7287 = vpop.f32.mrf.mxu0
        %v7288 = vadd.f32 0.0, %v7287
        %7289 = vdwg.mxu0
        %7290 = vmatpush.msra.mxu0 0.0
        %7291 = vmatpush.msra.mxu0 0.0
        %7292 = vmatpush.msra.mxu0 0.0
        %7293 = vmatpush.msra.mxu0 0.0
        %7294 = vmatpush.msra.mxu0 0.0
        %7295 = vmatpush.msra.mxu0 0.0
        %7296 = vmatpush.msra.mxu0 0.0
        %7297 = vmatpush.msra.mxu0 0.0
        %7298 = vmatpush.msra.mxu0 0.0
        %7299 = vmatpush.msra.mxu0 0.0
        %7300 = vmatpush.msra.mxu0 0.0
        %7301 = vmatpush.msra.mxu0 0.0
        %7302 = vmatpush.msra.mxu0 %v7176
        %7303 = vmatpush.msra.mxu0 %v7174
        %7304 = vmatpush.msra.mxu0 %v7172
        %7305 = vmatpush.msra.mxu0 %v7170
        %7306 = vmatmul.f32.gmra.mxu0 %v7178
        %v7307 = vpop.f32.mrf.mxu0
        %v7308 = vadd.f32 0.0, %v7307
        %7309 = vmatmul.f32.gmra.mxu0 %v7181
        %v7310 = vpop.f32.mrf.mxu0
        %v7311 = vadd.f32 0.0, %v7310
        %7312 = vmatmul.f32.gmra.mxu0 %v7184
        %v7313 = vpop.f32.mrf.mxu0
        %v7314 = vadd.f32 0.0, %v7313
        %7315 = vmatmul.f32.gmra.mxu0 %v7187
        %v7316 = vpop.f32.mrf.mxu0
        %v7317 = vadd.f32 0.0, %v7316
        %7318 = vmatmul.f32.gmra.mxu0 %v7190
        %v7319 = vpop.f32.mrf.mxu0
        %v7320 = vadd.f32 0.0, %v7319
        %7321 = vmatmul.f32.gmra.mxu0 %v7193
        %v7322 = vpop.f32.mrf.mxu0
        %v7323 = vadd.f32 0.0, %v7322
        %7324 = vmatmul.f32.gmra.mxu0 %v7196
        %v7325 = vpop.f32.mrf.mxu0
        %v7326 = vadd.f32 0.0, %v7325
        %7327 = vmatmul.f32.gmra.mxu0 %v7199
        %v7328 = vpop.f32.mrf.mxu0
        %v7329 = vadd.f32 0.0, %v7328
        %7330 = vmatmul.f32.gmra.mxu0 %v7202
        %v7331 = vpop.f32.mrf.mxu0
        %v7332 = vadd.f32 0.0, %v7331
        %7333 = vmatmul.f32.gmra.mxu0 %v7205
        %v7334 = vpop.f32.mrf.mxu0
        %v7335 = vadd.f32 0.0, %v7334
        %7336 = vmatmul.f32.gmra.mxu0 %v7208
        %v7337 = vpop.f32.mrf.mxu0
        %v7338 = vadd.f32 0.0, %v7337
        %7339 = vmatmul.f32.gmra.mxu0 %v7211
        %v7340 = vpop.f32.mrf.mxu0
        %v7341 = vadd.f32 0.0, %v7340
        %7342 = vmatmul.f32.gmra.mxu0 %v7214
        %v7343 = vpop.f32.mrf.mxu0
        %v7344 = vadd.f32 0.0, %v7343
        %7345 = vmatmul.f32.gmra.mxu0 %v7217
        %v7346 = vpop.f32.mrf.mxu0
        %v7347 = vadd.f32 0.0, %v7346
        %7348 = vmatmul.f32.gmra.mxu0 %v7220
        %v7349 = vpop.f32.mrf.mxu0
        %v7350 = vadd.f32 0.0, %v7349
        %7351 = vmatmul.f32.gmra.mxu0 %v7223
        %v7352 = vpop.f32.mrf.mxu0
        %v7353 = vadd.f32 0.0, %v7352
        %7354 = vdwg.mxu0
        %v7355 = vadd.f32 %v7057, %v7243
        %v7356 = vadd.f32 %v7122, %v7308
        %v7357 = vadd.f32 %v7060, %v7246
        %v7358 = vadd.f32 %v7125, %v7311
        %v7359 = vadd.f32 %v7063, %v7249
        %v7360 = vadd.f32 %v7128, %v7314
        %v7361 = vadd.f32 %v7066, %v7252
        %v7362 = vadd.f32 %v7131, %v7317
        %v7363 = vadd.f32 %v7069, %v7255
        %v7364 = vadd.f32 %v7134, %v7320
        %v7365 = vadd.f32 %v7072, %v7258
        %v7366 = vadd.f32 %v7137, %v7323
        %v7367 = vadd.f32 %v7075, %v7261
        %v7368 = vadd.f32 %v7140, %v7326
        %v7369 = vadd.f32 %v7078, %v7264
        %v7370 = vadd.f32 %v7143, %v7329
        %v7371 = vadd.f32 %v7081, %v7267
        %v7372 = vadd.f32 %v7146, %v7332
        %v7373 = vadd.f32 %v7084, %v7270
        %v7374 = vadd.f32 %v7149, %v7335
        %v7375 = vadd.f32 %v7087, %v7273
        %v7376 = vadd.f32 %v7152, %v7338
        %v7377 = vadd.f32 %v7090, %v7276
        %v7378 = vadd.f32 %v7155, %v7341
        %v7379 = vadd.f32 %v7093, %v7279
        %v7380 = vadd.f32 %v7158, %v7344
        %v7381 = vadd.f32 %v7096, %v7282
        %v7382 = vadd.f32 %v7161, %v7347
        %v7383 = vadd.f32 %v7099, %v7285
        %v7384 = vadd.f32 %v7164, %v7350
        %v7385 = vadd.f32 %v7102, %v7288
        %v7386 = vadd.f32 %v7167, %v7353
        %v7387 = vld [vmem:[%s29] sm:$0x3]
        %v7389 = vperm.slane %v7387, 0
        %v7390 = vperm.slane %v7387, 1
        %v7393 = vadd.f32 %v7355, %v7389
        %v7394 = vadd.f32 %v7356, %v7390
        %v7395 = vadd.f32 %v7357, %v7389
        %v7396 = vadd.f32 %v7358, %v7390
        %v7397 = vadd.f32 %v7359, %v7389
        %v7398 = vadd.f32 %v7360, %v7390
        %v7399 = vadd.f32 %v7361, %v7389
        %v7400 = vadd.f32 %v7362, %v7390
        %v7401 = vadd.f32 %v7363, %v7389
        %v7402 = vadd.f32 %v7364, %v7390
        %v7403 = vadd.f32 %v7365, %v7389
        %v7404 = vadd.f32 %v7366, %v7390
        %v7405 = vadd.f32 %v7367, %v7389
        %v7406 = vadd.f32 %v7368, %v7390
        %v7407 = vadd.f32 %v7369, %v7389
        %v7408 = vadd.f32 %v7370, %v7390
        %v7409 = vadd.f32 %v7371, %v7389
        %v7410 = vadd.f32 %v7372, %v7390
        %v7411 = vadd.f32 %v7373, %v7389
        %v7412 = vadd.f32 %v7374, %v7390
        %v7413 = vadd.f32 %v7375, %v7389
        %v7414 = vadd.f32 %v7376, %v7390
        %v7415 = vadd.f32 %v7377, %v7389
        %v7416 = vadd.f32 %v7378, %v7390
        %v7417 = vadd.f32 %v7379, %v7389
        %v7418 = vadd.f32 %v7380, %v7390
        %v7419 = vadd.f32 %v7381, %v7389
        %v7420 = vadd.f32 %v7382, %v7390
        %v7421 = vadd.f32 %v7383, %v7389
        %v7422 = vadd.f32 %v7384, %v7390
        %v7423 = vadd.f32 %v7385, %v7389
        %v7424 = vadd.f32 %v7386, %v7390
        %vm7425 = vcmp.ge.f32.partialorder %v7393, 0.0
        %vm7426 = vcmp.ge.f32.partialorder %v7394, 0.0
        %vm7427 = vcmp.ge.f32.partialorder %v7395, 0.0
        %vm7428 = vcmp.ge.f32.partialorder %v7396, 0.0
        %vm7429 = vcmp.ge.f32.partialorder %v7397, 0.0
        %vm7430 = vcmp.ge.f32.partialorder %v7398, 0.0
        %vm7431 = vcmp.ge.f32.partialorder %v7399, 0.0
        %vm7432 = vcmp.ge.f32.partialorder %v7400, 0.0
        %vm7433 = vcmp.ge.f32.partialorder %v7401, 0.0
        %vm7434 = vcmp.ge.f32.partialorder %v7402, 0.0
        %vm7435 = vcmp.ge.f32.partialorder %v7403, 0.0
        %vm7436 = vcmp.ge.f32.partialorder %v7404, 0.0
        %vm7437 = vcmp.ge.f32.partialorder %v7405, 0.0
        %vm7438 = vcmp.ge.f32.partialorder %v7406, 0.0
        %vm7439 = vcmp.ge.f32.partialorder %v7407, 0.0
        %vm7440 = vcmp.ge.f32.partialorder %v7408, 0.0
        %vm7441 = vcmp.ge.f32.partialorder %v7409, 0.0
        %vm7442 = vcmp.ge.f32.partialorder %v7410, 0.0
        %vm7443 = vcmp.ge.f32.partialorder %v7411, 0.0
        %vm7444 = vcmp.ge.f32.partialorder %v7412, 0.0
        %vm7445 = vcmp.ge.f32.partialorder %v7413, 0.0
        %vm7446 = vcmp.ge.f32.partialorder %v7414, 0.0
        %vm7447 = vcmp.ge.f32.partialorder %v7415, 0.0
        %vm7448 = vcmp.ge.f32.partialorder %v7416, 0.0
        %vm7449 = vcmp.ge.f32.partialorder %v7417, 0.0
        %vm7450 = vcmp.ge.f32.partialorder %v7418, 0.0
        %vm7451 = vcmp.ge.f32.partialorder %v7419, 0.0
        %vm7452 = vcmp.ge.f32.partialorder %v7420, 0.0
        %vm7453 = vcmp.ge.f32.partialorder %v7421, 0.0
        %vm7454 = vcmp.ge.f32.partialorder %v7422, 0.0
        %vm7455 = vcmp.ge.f32.partialorder %v7423, 0.0
        %vm7456 = vcmp.ge.f32.partialorder %v7424, 0.0
        %v7457 = vmul.f32 %v7393, 0.01
        %v7458 = vmul.f32 %v7394, 0.01
        %v7459 = vmul.f32 %v7395, 0.01
        %v7460 = vmul.f32 %v7396, 0.01
        %v7461 = vmul.f32 %v7397, 0.01
        %v7462 = vmul.f32 %v7398, 0.01
        %v7463 = vmul.f32 %v7399, 0.01
        %v7464 = vmul.f32 %v7400, 0.01
        %v7465 = vmul.f32 %v7401, 0.01
        %v7466 = vmul.f32 %v7402, 0.01
        %v7467 = vmul.f32 %v7403, 0.01
        %v7468 = vmul.f32 %v7404, 0.01
        %v7469 = vmul.f32 %v7405, 0.01
        %v7470 = vmul.f32 %v7406, 0.01
        %v7471 = vmul.f32 %v7407, 0.01
        %v7472 = vmul.f32 %v7408, 0.01
        %v7473 = vmul.f32 %v7409, 0.01
        %v7474 = vmul.f32 %v7410, 0.01
        %v7475 = vmul.f32 %v7411, 0.01
        %v7476 = vmul.f32 %v7412, 0.01
        %v7477 = vmul.f32 %v7413, 0.01
        %v7478 = vmul.f32 %v7414, 0.01
        %v7479 = vmul.f32 %v7415, 0.01
        %v7480 = vmul.f32 %v7416, 0.01
        %v7481 = vmul.f32 %v7417, 0.01
        %v7482 = vmul.f32 %v7418, 0.01
        %v7483 = vmul.f32 %v7419, 0.01
        %v7484 = vmul.f32 %v7420, 0.01
        %v7485 = vmul.f32 %v7421, 0.01
        %v7486 = vmul.f32 %v7422, 0.01
        %v7487 = vmul.f32 %v7423, 0.01
        %v7488 = vmul.f32 %v7424, 0.01
        %v7489 = vsel %vm7425, %v7393, %v7457
        %v7490 = vsel %vm7426, %v7394, %v7458
        %v7491 = vsel %vm7427, %v7395, %v7459
        %v7492 = vsel %vm7428, %v7396, %v7460
        %v7493 = vsel %vm7429, %v7397, %v7461
        %v7494 = vsel %vm7430, %v7398, %v7462
        %v7495 = vsel %vm7431, %v7399, %v7463
        %v7496 = vsel %vm7432, %v7400, %v7464
        %v7497 = vsel %vm7433, %v7401, %v7465
        %v7498 = vsel %vm7434, %v7402, %v7466
        %v7499 = vsel %vm7435, %v7403, %v7467
        %v7500 = vsel %vm7436, %v7404, %v7468
        %v7501 = vsel %vm7437, %v7405, %v7469
        %v7502 = vsel %vm7438, %v7406, %v7470
        %v7503 = vsel %vm7439, %v7407, %v7471
        %v7504 = vsel %vm7440, %v7408, %v7472
        %v7505 = vsel %vm7441, %v7409, %v7473
        %v7506 = vsel %vm7442, %v7410, %v7474
        %v7507 = vsel %vm7443, %v7411, %v7475
        %v7508 = vsel %vm7444, %v7412, %v7476
        %v7509 = vsel %vm7445, %v7413, %v7477
        %v7510 = vsel %vm7446, %v7414, %v7478
        %v7511 = vsel %vm7447, %v7415, %v7479
        %v7512 = vsel %vm7448, %v7416, %v7480
        %v7513 = vsel %vm7449, %v7417, %v7481
        %v7514 = vsel %vm7450, %v7418, %v7482
        %v7515 = vsel %vm7451, %v7419, %v7483
        %v7516 = vsel %vm7452, %v7420, %v7484
        %v7517 = vsel %vm7453, %v7421, %v7485
        %v7518 = vsel %vm7454, %v7422, %v7486
        %v7519 = vsel %vm7455, %v7423, %v7487
        %v7520 = vsel %vm7456, %v7424, %v7488
        %v7521 = vld [vmem:[%s31] sm:$0xff]
        %v7522 = vld [vmem:[%s31 + $0x8] sm:$0xff]
        %v7523 = vld [vmem:[%s31 + $0x10] sm:$0xff]
        %v7524 = vld [vmem:[%s31 + $0x18] sm:$0xff]
        %v7525 = vld [vmem:[%s31 + $0x20] sm:$0xff]
        %v7526 = vld [vmem:[%s31 + $0x28] sm:$0xff]
        %v7527 = vld [vmem:[%s31 + $0x30] sm:$0xff]
        %v7528 = vld [vmem:[%s31 + $0x38] sm:$0xff]
        %v7529 = vld [vmem:[%s31 + $0x40] sm:$0xff]
        %v7530 = vld [vmem:[%s31 + $0x48] sm:$0xff]
        %v7531 = vld [vmem:[%s31 + $0x50] sm:$0xff]
        %v7532 = vld [vmem:[%s31 + $0x58] sm:$0xff]
        %v7533 = vld [vmem:[%s31 + $0x60] sm:$0xff]
        %v7534 = vld [vmem:[%s31 + $0x68] sm:$0xff]
        %v7535 = vld [vmem:[%s31 + $0x70] sm:$0xff]
        %v7536 = vld [vmem:[%s31 + $0x78] sm:$0xff]
        %v7537 = vld [vmem:[%s31 + $0x80] sm:$0xff]
        %v7538 = vld [vmem:[%s31 + $0x88] sm:$0xff]
        %v7539 = vld [vmem:[%s31 + $0x90] sm:$0xff]
        %v7540 = vld [vmem:[%s31 + $0x98] sm:$0xff]
        %v7541 = vld [vmem:[%s31 + $0xa0] sm:$0xff]
        %v7542 = vld [vmem:[%s31 + $0xa8] sm:$0xff]
        %v7543 = vld [vmem:[%s31 + $0xb0] sm:$0xff]
        %v7544 = vld [vmem:[%s31 + $0xb8] sm:$0xff]
        %v7545 = vld [vmem:[%s31 + $0xc0] sm:$0xff]
        %v7546 = vld [vmem:[%s31 + $0xc8] sm:$0xff]
        %v7547 = vld [vmem:[%s31 + $0xd0] sm:$0xff]
        %v7548 = vld [vmem:[%s31 + $0xd8] sm:$0xff]
        %v7549 = vld [vmem:[%s31 + $0xe0] sm:$0xff]
        %v7550 = vld [vmem:[%s31 + $0xe8] sm:$0xff]
        %v7551 = vld [vmem:[%s31 + $0xf0] sm:$0xff]
        %v7552 = vld [vmem:[%s31 + $0xf8] sm:$0xff]
        %v7553 = vld [vmem:[%s33] sm:$0x1]
        %v7555 = vperm.slane %v7553, 0
        %7557 = vmatpush.msra.mxu0 %v7536
        %7558 = vmatpush.msra.mxu0 %v7535
        %7559 = vmatpush.msra.mxu0 %v7534
        %7560 = vmatpush.msra.mxu0 %v7533
        %7561 = vmatpush.msra.mxu0 %v7532
        %7562 = vmatpush.msra.mxu0 %v7531
        %7563 = vmatpush.msra.mxu0 %v7530
        %7564 = vmatpush.msra.mxu0 %v7529
        %7565 = vmatpush.msra.mxu0 %v7528
        %7566 = vmatpush.msra.mxu0 %v7527
        %7567 = vmatpush.msra.mxu0 %v7526
        %7568 = vmatpush.msra.mxu0 %v7525
        %7569 = vmatpush.msra.mxu0 %v7524
        %7570 = vmatpush.msra.mxu0 %v7523
        %7571 = vmatpush.msra.mxu0 %v7522
        %7572 = vmatpush.msra.mxu0 %v7521
        %7573 = vmatmul.f32.gmra.mxu0 %v7489
        %v7574 = vpop.f32.mrf.mxu0
        %v7575 = vadd.f32 %v7555, %v7574
        %7576 = vmatmul.f32.gmra.mxu0 %v7491
        %v7577 = vpop.f32.mrf.mxu0
        %v7578 = vadd.f32 %v7555, %v7577
        %7579 = vmatmul.f32.gmra.mxu0 %v7493
        %v7580 = vpop.f32.mrf.mxu0
        %v7581 = vadd.f32 %v7555, %v7580
        %7582 = vmatmul.f32.gmra.mxu0 %v7495
        %v7583 = vpop.f32.mrf.mxu0
        %v7584 = vadd.f32 %v7555, %v7583
        %7585 = vmatmul.f32.gmra.mxu0 %v7497
        %v7586 = vpop.f32.mrf.mxu0
        %v7587 = vadd.f32 %v7555, %v7586
        %7588 = vmatmul.f32.gmra.mxu0 %v7499
        %v7589 = vpop.f32.mrf.mxu0
        %v7590 = vadd.f32 %v7555, %v7589
        %7591 = vmatmul.f32.gmra.mxu0 %v7501
        %v7592 = vpop.f32.mrf.mxu0
        %v7593 = vadd.f32 %v7555, %v7592
        %7594 = vmatmul.f32.gmra.mxu0 %v7503
        %v7595 = vpop.f32.mrf.mxu0
        %v7596 = vadd.f32 %v7555, %v7595
        %7597 = vmatmul.f32.gmra.mxu0 %v7505
        %v7598 = vpop.f32.mrf.mxu0
        %v7599 = vadd.f32 %v7555, %v7598
        %7600 = vmatmul.f32.gmra.mxu0 %v7507
        %v7601 = vpop.f32.mrf.mxu0
        %v7602 = vadd.f32 %v7555, %v7601
        %7603 = vmatmul.f32.gmra.mxu0 %v7509
        %v7604 = vpop.f32.mrf.mxu0
        %v7605 = vadd.f32 %v7555, %v7604
        %7606 = vmatmul.f32.gmra.mxu0 %v7511
        %v7607 = vpop.f32.mrf.mxu0
        %v7608 = vadd.f32 %v7555, %v7607
        %7609 = vmatmul.f32.gmra.mxu0 %v7513
        %v7610 = vpop.f32.mrf.mxu0
        %v7611 = vadd.f32 %v7555, %v7610
        %7612 = vmatmul.f32.gmra.mxu0 %v7515
        %v7613 = vpop.f32.mrf.mxu0
        %v7614 = vadd.f32 %v7555, %v7613
        %7615 = vmatmul.f32.gmra.mxu0 %v7517
        %v7616 = vpop.f32.mrf.mxu0
        %v7617 = vadd.f32 %v7555, %v7616
        %7618 = vmatmul.f32.gmra.mxu0 %v7519
        %v7619 = vpop.f32.mrf.mxu0
        %v7620 = vadd.f32 %v7555, %v7619
        %7621 = vdwg.mxu0
        %7622 = vmatpush.msra.mxu0 %v7552
        %7623 = vmatpush.msra.mxu0 %v7551
        %7624 = vmatpush.msra.mxu0 %v7550
        %7625 = vmatpush.msra.mxu0 %v7549
        %7626 = vmatpush.msra.mxu0 %v7548
        %7627 = vmatpush.msra.mxu0 %v7547
        %7628 = vmatpush.msra.mxu0 %v7546
        %7629 = vmatpush.msra.mxu0 %v7545
        %7630 = vmatpush.msra.mxu0 %v7544
        %7631 = vmatpush.msra.mxu0 %v7543
        %7632 = vmatpush.msra.mxu0 %v7542
        %7633 = vmatpush.msra.mxu0 %v7541
        %7634 = vmatpush.msra.mxu0 %v7540
        %7635 = vmatpush.msra.mxu0 %v7539
        %7636 = vmatpush.msra.mxu0 %v7538
        %7637 = vmatpush.msra.mxu0 %v7537
        %7638 = vmatmul.f32.gmra.mxu0 %v7490
        %v7639 = vpop.f32.mrf.mxu0
        %v7640 = vadd.f32 %v7575, %v7639
        %7641 = vmatmul.f32.gmra.mxu0 %v7492
        %v7642 = vpop.f32.mrf.mxu0
        %v7643 = vadd.f32 %v7578, %v7642
        %7644 = vmatmul.f32.gmra.mxu0 %v7494
        %v7645 = vpop.f32.mrf.mxu0
        %v7646 = vadd.f32 %v7581, %v7645
        %7647 = vmatmul.f32.gmra.mxu0 %v7496
        %v7648 = vpop.f32.mrf.mxu0
        %v7649 = vadd.f32 %v7584, %v7648
        %7650 = vmatmul.f32.gmra.mxu0 %v7498
        %v7651 = vpop.f32.mrf.mxu0
        %v7652 = vadd.f32 %v7587, %v7651
        %7653 = vmatmul.f32.gmra.mxu0 %v7500
        %v7654 = vpop.f32.mrf.mxu0
        %v7655 = vadd.f32 %v7590, %v7654
        %7656 = vmatmul.f32.gmra.mxu0 %v7502
        %v7657 = vpop.f32.mrf.mxu0
        %v7658 = vadd.f32 %v7593, %v7657
        %7659 = vmatmul.f32.gmra.mxu0 %v7504
        %v7660 = vpop.f32.mrf.mxu0
        %v7661 = vadd.f32 %v7596, %v7660
        %7662 = vmatmul.f32.gmra.mxu0 %v7506
        %v7663 = vpop.f32.mrf.mxu0
        %v7664 = vadd.f32 %v7599, %v7663
        %7665 = vmatmul.f32.gmra.mxu0 %v7508
        %v7666 = vpop.f32.mrf.mxu0
        %v7667 = vadd.f32 %v7602, %v7666
        %7668 = vmatmul.f32.gmra.mxu0 %v7510
        %v7669 = vpop.f32.mrf.mxu0
        %v7670 = vadd.f32 %v7605, %v7669
        %7671 = vmatmul.f32.gmra.mxu0 %v7512
        %v7672 = vpop.f32.mrf.mxu0
        %v7673 = vadd.f32 %v7608, %v7672
        %7674 = vmatmul.f32.gmra.mxu0 %v7514
        %v7675 = vpop.f32.mrf.mxu0
        %v7676 = vadd.f32 %v7611, %v7675
        %7677 = vmatmul.f32.gmra.mxu0 %v7516
        %v7678 = vpop.f32.mrf.mxu0
        %v7679 = vadd.f32 %v7614, %v7678
        %7680 = vmatmul.f32.gmra.mxu0 %v7518
        %v7681 = vpop.f32.mrf.mxu0
        %v7682 = vadd.f32 %v7617, %v7681
        %7683 = vmatmul.f32.gmra.mxu0 %v7520
        %v7684 = vpop.f32.mrf.mxu0
        %v7685 = vadd.f32 %v7620, %v7684
        %7686 = vdwg.mxu0
        %vm7687 = vcmp.ge.f32.partialorder %v7640, 0.0
        %vm7688 = vcmp.ge.f32.partialorder %v7643, 0.0
        %vm7689 = vcmp.ge.f32.partialorder %v7646, 0.0
        %vm7690 = vcmp.ge.f32.partialorder %v7649, 0.0
        %vm7691 = vcmp.ge.f32.partialorder %v7652, 0.0
        %vm7692 = vcmp.ge.f32.partialorder %v7655, 0.0
        %vm7693 = vcmp.ge.f32.partialorder %v7658, 0.0
        %vm7694 = vcmp.ge.f32.partialorder %v7661, 0.0
        %vm7695 = vcmp.ge.f32.partialorder %v7664, 0.0
        %vm7696 = vcmp.ge.f32.partialorder %v7667, 0.0
        %vm7697 = vcmp.ge.f32.partialorder %v7670, 0.0
        %vm7698 = vcmp.ge.f32.partialorder %v7673, 0.0
        %vm7699 = vcmp.ge.f32.partialorder %v7676, 0.0
        %vm7700 = vcmp.ge.f32.partialorder %v7679, 0.0
        %vm7701 = vcmp.ge.f32.partialorder %v7682, 0.0
        %vm7702 = vcmp.ge.f32.partialorder %v7685, 0.0
        %v7703 = vmul.f32 %v7640, 0.01
        %v7704 = vmul.f32 %v7643, 0.01
        %v7705 = vmul.f32 %v7646, 0.01
        %v7706 = vmul.f32 %v7649, 0.01
        %v7707 = vmul.f32 %v7652, 0.01
        %v7708 = vmul.f32 %v7655, 0.01
        %v7709 = vmul.f32 %v7658, 0.01
        %v7710 = vmul.f32 %v7661, 0.01
        %v7711 = vmul.f32 %v7664, 0.01
        %v7712 = vmul.f32 %v7667, 0.01
        %v7713 = vmul.f32 %v7670, 0.01
        %v7714 = vmul.f32 %v7673, 0.01
        %v7715 = vmul.f32 %v7676, 0.01
        %v7716 = vmul.f32 %v7679, 0.01
        %v7717 = vmul.f32 %v7682, 0.01
        %v7718 = vmul.f32 %v7685, 0.01
        %v7719 = vsel %vm7687, %v7640, %v7703
        %v7720 = vsel %vm7688, %v7643, %v7704
        %v7721 = vsel %vm7689, %v7646, %v7705
        %v7722 = vsel %vm7690, %v7649, %v7706
        %v7723 = vsel %vm7691, %v7652, %v7707
        %v7724 = vsel %vm7692, %v7655, %v7708
        %v7725 = vsel %vm7693, %v7658, %v7709
        %v7726 = vsel %vm7694, %v7661, %v7710
        %v7727 = vsel %vm7695, %v7664, %v7711
        %v7728 = vsel %vm7696, %v7667, %v7712
        %v7729 = vsel %vm7697, %v7670, %v7713
        %v7730 = vsel %vm7698, %v7673, %v7714
        %v7731 = vsel %vm7699, %v7676, %v7715
        %v7732 = vsel %vm7700, %v7679, %v7716
        %v7733 = vsel %vm7701, %v7682, %v7717
        %v7734 = vsel %vm7702, %v7685, %v7718
        %v7735 = vld [vmem:[%s35] sm:$0xff]
        %v7736 = vld [vmem:[%s35 + $0x8] sm:$0xff]
        %v7737 = vld [vmem:[%s35 + $0x10] sm:$0xff]
        %v7738 = vld [vmem:[%s35 + $0x18] sm:$0xff]
        %v7739 = vld [vmem:[%s37] sm:$0x1]
        %v7741 = vperm.slane %v7739, 0
        %v7744 = vsel %vm6854, %v7719, 0
        %v7747 = vsel %vm6854, %v7720, 0
        %v7750 = vsel %vm6854, %v7721, 0
        %v7753 = vsel %vm6854, %v7722, 0
        %v7756 = vsel %vm6854, %v7723, 0
        %v7759 = vsel %vm6854, %v7724, 0
        %v7762 = vsel %vm6854, %v7725, 0
        %v7765 = vsel %vm6854, %v7726, 0
        %v7768 = vsel %vm6854, %v7727, 0
        %v7771 = vsel %vm6854, %v7728, 0
        %v7774 = vsel %vm6854, %v7729, 0
        %v7777 = vsel %vm6854, %v7730, 0
        %v7780 = vsel %vm6854, %v7731, 0
        %v7783 = vsel %vm6854, %v7732, 0
        %v7786 = vsel %vm6854, %v7733, 0
        %v7789 = vsel %vm6854, %v7734, 0
        %7791 = vmatpush.msra.mxu0 0.0
        %7792 = vmatpush.msra.mxu0 0.0
        %7793 = vmatpush.msra.mxu0 0.0
        %7794 = vmatpush.msra.mxu0 0.0
        %7795 = vmatpush.msra.mxu0 0.0
        %7796 = vmatpush.msra.mxu0 0.0
        %7797 = vmatpush.msra.mxu0 0.0
        %7798 = vmatpush.msra.mxu0 0.0
        %7799 = vmatpush.msra.mxu0 0.0
        %7800 = vmatpush.msra.mxu0 0.0
        %7801 = vmatpush.msra.mxu0 0.0
        %7802 = vmatpush.msra.mxu0 0.0
        %7803 = vmatpush.msra.mxu0 %v7738
        %7804 = vmatpush.msra.mxu0 %v7737
        %7805 = vmatpush.msra.mxu0 %v7736
        %7806 = vmatpush.msra.mxu0 %v7735
        %7807 = vmatmul.f32.gmra.mxu0 %v7744
        %v7808 = vpop.f32.mrf.mxu0
        %v7809 = vadd.f32 %v7741, %v7808
        %7810 = vmatmul.f32.gmra.mxu0 %v7747
        %v7811 = vpop.f32.mrf.mxu0
        %v7812 = vadd.f32 %v7741, %v7811
        %7813 = vmatmul.f32.gmra.mxu0 %v7750
        %v7814 = vpop.f32.mrf.mxu0
        %v7815 = vadd.f32 %v7741, %v7814
        %7816 = vmatmul.f32.gmra.mxu0 %v7753
        %v7817 = vpop.f32.mrf.mxu0
        %v7818 = vadd.f32 %v7741, %v7817
        %7819 = vmatmul.f32.gmra.mxu0 %v7756
        %v7820 = vpop.f32.mrf.mxu0
        %v7821 = vadd.f32 %v7741, %v7820
        %7822 = vmatmul.f32.gmra.mxu0 %v7759
        %v7823 = vpop.f32.mrf.mxu0
        %v7824 = vadd.f32 %v7741, %v7823
        %7825 = vmatmul.f32.gmra.mxu0 %v7762
        %v7826 = vpop.f32.mrf.mxu0
        %v7827 = vadd.f32 %v7741, %v7826
        %7828 = vmatmul.f32.gmra.mxu0 %v7765
        %v7829 = vpop.f32.mrf.mxu0
        %v7830 = vadd.f32 %v7741, %v7829
        %7831 = vmatmul.f32.gmra.mxu0 %v7768
        %v7832 = vpop.f32.mrf.mxu0
        %v7833 = vadd.f32 %v7741, %v7832
        %7834 = vmatmul.f32.gmra.mxu0 %v7771
        %v7835 = vpop.f32.mrf.mxu0
        %v7836 = vadd.f32 %v7741, %v7835
        %7837 = vmatmul.f32.gmra.mxu0 %v7774
        %v7838 = vpop.f32.mrf.mxu0
        %v7839 = vadd.f32 %v7741, %v7838
        %7840 = vmatmul.f32.gmra.mxu0 %v7777
        %v7841 = vpop.f32.mrf.mxu0
        %v7842 = vadd.f32 %v7741, %v7841
        %7843 = vmatmul.f32.gmra.mxu0 %v7780
        %v7844 = vpop.f32.mrf.mxu0
        %v7845 = vadd.f32 %v7741, %v7844
        %7846 = vmatmul.f32.gmra.mxu0 %v7783
        %v7847 = vpop.f32.mrf.mxu0
        %v7848 = vadd.f32 %v7741, %v7847
        %7849 = vmatmul.f32.gmra.mxu0 %v7786
        %v7850 = vpop.f32.mrf.mxu0
        %v7851 = vadd.f32 %v7741, %v7850
        %7852 = vmatmul.f32.gmra.mxu0 %v7789
        %v7853 = vpop.f32.mrf.mxu0
        %v7854 = vadd.f32 %v7741, %v7853
        %7855 = vdwg.mxu0
        %vm7856 = vcmp.ge.f32.partialorder %v7809, 0.0
        %vm7857 = vcmp.ge.f32.partialorder %v7812, 0.0
        %vm7858 = vcmp.ge.f32.partialorder %v7815, 0.0
        %vm7859 = vcmp.ge.f32.partialorder %v7818, 0.0
        %vm7860 = vcmp.ge.f32.partialorder %v7821, 0.0
        %vm7861 = vcmp.ge.f32.partialorder %v7824, 0.0
        %vm7862 = vcmp.ge.f32.partialorder %v7827, 0.0
        %vm7863 = vcmp.ge.f32.partialorder %v7830, 0.0
        %vm7864 = vcmp.ge.f32.partialorder %v7833, 0.0
        %vm7865 = vcmp.ge.f32.partialorder %v7836, 0.0
        %vm7866 = vcmp.ge.f32.partialorder %v7839, 0.0
        %vm7867 = vcmp.ge.f32.partialorder %v7842, 0.0
        %vm7868 = vcmp.ge.f32.partialorder %v7845, 0.0
        %vm7869 = vcmp.ge.f32.partialorder %v7848, 0.0
        %vm7870 = vcmp.ge.f32.partialorder %v7851, 0.0
        %vm7871 = vcmp.ge.f32.partialorder %v7854, 0.0
        %v7872 = vmul.f32 %v7809, 0.01
        %v7873 = vmul.f32 %v7812, 0.01
        %v7874 = vmul.f32 %v7815, 0.01
        %v7875 = vmul.f32 %v7818, 0.01
        %v7876 = vmul.f32 %v7821, 0.01
        %v7877 = vmul.f32 %v7824, 0.01
        %v7878 = vmul.f32 %v7827, 0.01
        %v7879 = vmul.f32 %v7830, 0.01
        %v7880 = vmul.f32 %v7833, 0.01
        %v7881 = vmul.f32 %v7836, 0.01
        %v7882 = vmul.f32 %v7839, 0.01
        %v7883 = vmul.f32 %v7842, 0.01
        %v7884 = vmul.f32 %v7845, 0.01
        %v7885 = vmul.f32 %v7848, 0.01
        %v7886 = vmul.f32 %v7851, 0.01
        %v7887 = vmul.f32 %v7854, 0.01
        %v7888 = vsel %vm7856, %v7809, %v7872
        %v7889 = vsel %vm7857, %v7812, %v7873
        %v7890 = vsel %vm7858, %v7815, %v7874
        %v7891 = vsel %vm7859, %v7818, %v7875
        %v7892 = vsel %vm7860, %v7821, %v7876
        %v7893 = vsel %vm7861, %v7824, %v7877
        %v7894 = vsel %vm7862, %v7827, %v7878
        %v7895 = vsel %vm7863, %v7830, %v7879
        %v7896 = vsel %vm7864, %v7833, %v7880
        %v7897 = vsel %vm7865, %v7836, %v7881
        %v7898 = vsel %vm7866, %v7839, %v7882
        %v7899 = vsel %vm7867, %v7842, %v7883
        %v7900 = vsel %vm7868, %v7845, %v7884
        %v7901 = vsel %vm7869, %v7848, %v7885
        %v7902 = vsel %vm7870, %v7851, %v7886
        %v7903 = vsel %vm7871, %v7854, %v7887
        %v7904 = vld [vmem:[%s39] sm:$0xff]
        %v7905 = vld [vmem:[%s39 + $0x8] sm:$0xff]
        %v7906 = vld [vmem:[%s39 + $0x10] sm:$0xff]
        %v7907 = vld [vmem:[%s39 + $0x18] sm:$0xff]
        %v7908 = vld [vmem:[%s41] sm:$0x1]
        %v7910 = vperm.slane %v7908, 0
        %v7913 = vsel %vm6854, %v7888, 0
        %v7916 = vsel %vm6854, %v7889, 0
        %v7919 = vsel %vm6854, %v7890, 0
        %v7922 = vsel %vm6854, %v7891, 0
        %v7925 = vsel %vm6854, %v7892, 0
        %v7928 = vsel %vm6854, %v7893, 0
        %v7931 = vsel %vm6854, %v7894, 0
        %v7934 = vsel %vm6854, %v7895, 0
        %v7937 = vsel %vm6854, %v7896, 0
        %v7940 = vsel %vm6854, %v7897, 0
        %v7943 = vsel %vm6854, %v7898, 0
        %v7946 = vsel %vm6854, %v7899, 0
        %v7949 = vsel %vm6854, %v7900, 0
        %v7952 = vsel %vm6854, %v7901, 0
        %v7955 = vsel %vm6854, %v7902, 0
        %v7958 = vsel %vm6854, %v7903, 0
        %7960 = vmatpush.msra.mxu0 0.0
        %7961 = vmatpush.msra.mxu0 0.0
        %7962 = vmatpush.msra.mxu0 0.0
        %7963 = vmatpush.msra.mxu0 0.0
        %7964 = vmatpush.msra.mxu0 0.0
        %7965 = vmatpush.msra.mxu0 0.0
        %7966 = vmatpush.msra.mxu0 0.0
        %7967 = vmatpush.msra.mxu0 0.0
        %7968 = vmatpush.msra.mxu0 0.0
        %7969 = vmatpush.msra.mxu0 0.0
        %7970 = vmatpush.msra.mxu0 0.0
        %7971 = vmatpush.msra.mxu0 0.0
        %7972 = vmatpush.msra.mxu0 %v7907
        %7973 = vmatpush.msra.mxu0 %v7906
        %7974 = vmatpush.msra.mxu0 %v7905
        %7975 = vmatpush.msra.mxu0 %v7904
        %7976 = vmatmul.f32.gmra.mxu0 %v7913
        %v7977 = vpop.f32.mrf.mxu0
        %v7978 = vadd.f32 %v7910, %v7977
        %7979 = vmatmul.f32.gmra.mxu0 %v7916
        %v7980 = vpop.f32.mrf.mxu0
        %v7981 = vadd.f32 %v7910, %v7980
        %7982 = vmatmul.f32.gmra.mxu0 %v7919
        %v7983 = vpop.f32.mrf.mxu0
        %v7984 = vadd.f32 %v7910, %v7983
        %7985 = vmatmul.f32.gmra.mxu0 %v7922
        %v7986 = vpop.f32.mrf.mxu0
        %v7987 = vadd.f32 %v7910, %v7986
        %7988 = vmatmul.f32.gmra.mxu0 %v7925
        %v7989 = vpop.f32.mrf.mxu0
        %v7990 = vadd.f32 %v7910, %v7989
        %7991 = vmatmul.f32.gmra.mxu0 %v7928
        %v7992 = vpop.f32.mrf.mxu0
        %v7993 = vadd.f32 %v7910, %v7992
        %7994 = vmatmul.f32.gmra.mxu0 %v7931
        %v7995 = vpop.f32.mrf.mxu0
        %v7996 = vadd.f32 %v7910, %v7995
        %7997 = vmatmul.f32.gmra.mxu0 %v7934
        %v7998 = vpop.f32.mrf.mxu0
        %v7999 = vadd.f32 %v7910, %v7998
        %8000 = vmatmul.f32.gmra.mxu0 %v7937
        %v8001 = vpop.f32.mrf.mxu0
        %v8002 = vadd.f32 %v7910, %v8001
        %8003 = vmatmul.f32.gmra.mxu0 %v7940
        %v8004 = vpop.f32.mrf.mxu0
        %v8005 = vadd.f32 %v7910, %v8004
        %8006 = vmatmul.f32.gmra.mxu0 %v7943
        %v8007 = vpop.f32.mrf.mxu0
        %v8008 = vadd.f32 %v7910, %v8007
        %8009 = vmatmul.f32.gmra.mxu0 %v7946
        %v8010 = vpop.f32.mrf.mxu0
        %v8011 = vadd.f32 %v7910, %v8010
        %8012 = vmatmul.f32.gmra.mxu0 %v7949
        %v8013 = vpop.f32.mrf.mxu0
        %v8014 = vadd.f32 %v7910, %v8013
        %8015 = vmatmul.f32.gmra.mxu0 %v7952
        %v8016 = vpop.f32.mrf.mxu0
        %v8017 = vadd.f32 %v7910, %v8016
        %8018 = vmatmul.f32.gmra.mxu0 %v7955
        %v8019 = vpop.f32.mrf.mxu0
        %v8020 = vadd.f32 %v7910, %v8019
        %8021 = vmatmul.f32.gmra.mxu0 %v7958
        %v8022 = vpop.f32.mrf.mxu0
        %v8023 = vadd.f32 %v7910, %v8022
        %8024 = vdwg.mxu0
        %vm8025 = vcmp.ge.f32.partialorder %v7978, 0.0
        %vm8026 = vcmp.ge.f32.partialorder %v7981, 0.0
        %vm8027 = vcmp.ge.f32.partialorder %v7984, 0.0
        %vm8028 = vcmp.ge.f32.partialorder %v7987, 0.0
        %vm8029 = vcmp.ge.f32.partialorder %v7990, 0.0
        %vm8030 = vcmp.ge.f32.partialorder %v7993, 0.0
        %vm8031 = vcmp.ge.f32.partialorder %v7996, 0.0
        %vm8032 = vcmp.ge.f32.partialorder %v7999, 0.0
        %vm8033 = vcmp.ge.f32.partialorder %v8002, 0.0
        %vm8034 = vcmp.ge.f32.partialorder %v8005, 0.0
        %vm8035 = vcmp.ge.f32.partialorder %v8008, 0.0
        %vm8036 = vcmp.ge.f32.partialorder %v8011, 0.0
        %vm8037 = vcmp.ge.f32.partialorder %v8014, 0.0
        %vm8038 = vcmp.ge.f32.partialorder %v8017, 0.0
        %vm8039 = vcmp.ge.f32.partialorder %v8020, 0.0
        %vm8040 = vcmp.ge.f32.partialorder %v8023, 0.0
        %v8041 = vmul.f32 %v7978, 0.01
        %v8042 = vmul.f32 %v7981, 0.01
        %v8043 = vmul.f32 %v7984, 0.01
        %v8044 = vmul.f32 %v7987, 0.01
        %v8045 = vmul.f32 %v7990, 0.01
        %v8046 = vmul.f32 %v7993, 0.01
        %v8047 = vmul.f32 %v7996, 0.01
        %v8048 = vmul.f32 %v7999, 0.01
        %v8049 = vmul.f32 %v8002, 0.01
        %v8050 = vmul.f32 %v8005, 0.01
        %v8051 = vmul.f32 %v8008, 0.01
        %v8052 = vmul.f32 %v8011, 0.01
        %v8053 = vmul.f32 %v8014, 0.01
        %v8054 = vmul.f32 %v8017, 0.01
        %v8055 = vmul.f32 %v8020, 0.01
        %v8056 = vmul.f32 %v8023, 0.01
        %v8057 = vsel %vm8025, %v7978, %v8041
        %v8058 = vsel %vm8026, %v7981, %v8042
        %v8059 = vsel %vm8027, %v7984, %v8043
        %v8060 = vsel %vm8028, %v7987, %v8044
        %v8061 = vsel %vm8029, %v7990, %v8045
        %v8062 = vsel %vm8030, %v7993, %v8046
        %v8063 = vsel %vm8031, %v7996, %v8047
        %v8064 = vsel %vm8032, %v7999, %v8048
        %v8065 = vsel %vm8033, %v8002, %v8049
        %v8066 = vsel %vm8034, %v8005, %v8050
        %v8067 = vsel %vm8035, %v8008, %v8051
        %v8068 = vsel %vm8036, %v8011, %v8052
        %v8069 = vsel %vm8037, %v8014, %v8053
        %v8070 = vsel %vm8038, %v8017, %v8054
        %v8071 = vsel %vm8039, %v8020, %v8055
        %v8072 = vsel %vm8040, %v8023, %v8056
        %v8073 = vld [vmem:[%s43] sm:$0xff]
        %v8074 = vld [vmem:[%s43 + $0x8] sm:$0xff]
        %v8075 = vld [vmem:[%s43 + $0x10] sm:$0xff]
        %v8076 = vld [vmem:[%s43 + $0x18] sm:$0xff]
        %v8077 = vld [vmem:[%s45] sm:$0x1]
        %v8079 = vperm.slane %v8077, 0
        %v8082 = vsel %vm6854, %v8057, 0
        %v8085 = vsel %vm6854, %v8058, 0
        %v8088 = vsel %vm6854, %v8059, 0
        %v8091 = vsel %vm6854, %v8060, 0
        %v8094 = vsel %vm6854, %v8061, 0
        %v8097 = vsel %vm6854, %v8062, 0
        %v8100 = vsel %vm6854, %v8063, 0
        %v8103 = vsel %vm6854, %v8064, 0
        %v8106 = vsel %vm6854, %v8065, 0
        %v8109 = vsel %vm6854, %v8066, 0
        %v8112 = vsel %vm6854, %v8067, 0
        %v8115 = vsel %vm6854, %v8068, 0
        %v8118 = vsel %vm6854, %v8069, 0
        %v8121 = vsel %vm6854, %v8070, 0
        %v8124 = vsel %vm6854, %v8071, 0
        %v8127 = vsel %vm6854, %v8072, 0
        %8129 = vmatpush.msra.mxu0 0.0
        %8130 = vmatpush.msra.mxu0 0.0
        %8131 = vmatpush.msra.mxu0 0.0
        %8132 = vmatpush.msra.mxu0 0.0
        %8133 = vmatpush.msra.mxu0 0.0
        %8134 = vmatpush.msra.mxu0 0.0
        %8135 = vmatpush.msra.mxu0 0.0
        %8136 = vmatpush.msra.mxu0 0.0
        %8137 = vmatpush.msra.mxu0 0.0
        %8138 = vmatpush.msra.mxu0 0.0
        %8139 = vmatpush.msra.mxu0 0.0
        %8140 = vmatpush.msra.mxu0 0.0
        %8141 = vmatpush.msra.mxu0 %v8076
        %8142 = vmatpush.msra.mxu0 %v8075
        %8143 = vmatpush.msra.mxu0 %v8074
        %8144 = vmatpush.msra.mxu0 %v8073
        %8145 = vmatmul.f32.gmra.mxu0 %v8082
        %v8146 = vpop.f32.mrf.mxu0
        %v8147 = vadd.f32 %v8079, %v8146
        %8148 = vmatmul.f32.gmra.mxu0 %v8085
        %v8149 = vpop.f32.mrf.mxu0
        %v8150 = vadd.f32 %v8079, %v8149
        %8151 = vmatmul.f32.gmra.mxu0 %v8088
        %v8152 = vpop.f32.mrf.mxu0
        %v8153 = vadd.f32 %v8079, %v8152
        %8154 = vmatmul.f32.gmra.mxu0 %v8091
        %v8155 = vpop.f32.mrf.mxu0
        %v8156 = vadd.f32 %v8079, %v8155
        %8157 = vmatmul.f32.gmra.mxu0 %v8094
        %v8158 = vpop.f32.mrf.mxu0
        %v8159 = vadd.f32 %v8079, %v8158
        %8160 = vmatmul.f32.gmra.mxu0 %v8097
        %v8161 = vpop.f32.mrf.mxu0
        %v8162 = vadd.f32 %v8079, %v8161
        %8163 = vmatmul.f32.gmra.mxu0 %v8100
        %v8164 = vpop.f32.mrf.mxu0
        %v8165 = vadd.f32 %v8079, %v8164
        %8166 = vmatmul.f32.gmra.mxu0 %v8103
        %v8167 = vpop.f32.mrf.mxu0
        %v8168 = vadd.f32 %v8079, %v8167
        %8169 = vmatmul.f32.gmra.mxu0 %v8106
        %v8170 = vpop.f32.mrf.mxu0
        %v8171 = vadd.f32 %v8079, %v8170
        %8172 = vmatmul.f32.gmra.mxu0 %v8109
        %v8173 = vpop.f32.mrf.mxu0
        %v8174 = vadd.f32 %v8079, %v8173
        %8175 = vmatmul.f32.gmra.mxu0 %v8112
        %v8176 = vpop.f32.mrf.mxu0
        %v8177 = vadd.f32 %v8079, %v8176
        %8178 = vmatmul.f32.gmra.mxu0 %v8115
        %v8179 = vpop.f32.mrf.mxu0
        %v8180 = vadd.f32 %v8079, %v8179
        %8181 = vmatmul.f32.gmra.mxu0 %v8118
        %v8182 = vpop.f32.mrf.mxu0
        %v8183 = vadd.f32 %v8079, %v8182
        %8184 = vmatmul.f32.gmra.mxu0 %v8121
        %v8185 = vpop.f32.mrf.mxu0
        %v8186 = vadd.f32 %v8079, %v8185
        %8187 = vmatmul.f32.gmra.mxu0 %v8124
        %v8188 = vpop.f32.mrf.mxu0
        %v8189 = vadd.f32 %v8079, %v8188
        %8190 = vmatmul.f32.gmra.mxu0 %v8127
        %v8191 = vpop.f32.mrf.mxu0
        %v8192 = vadd.f32 %v8079, %v8191
        %8193 = vdwg.mxu0
        %v8194 = vld [vmem:[%s47] sm:$0xff]
        %v8195 = vld [vmem:[%s47 + $0x8] sm:$0xff]
        %v8196 = vld [vmem:[%s47 + $0x10] sm:$0xff]
        %v8197 = vld [vmem:[%s47 + $0x18] sm:$0xff]
        %v8198 = vld [vmem:[%s47 + $0x20] sm:$0xff]
        %v8199 = vld [vmem:[%s47 + $0x28] sm:$0xff]
        %v8200 = vld [vmem:[%s47 + $0x30] sm:$0xff]
        %v8201 = vld [vmem:[%s47 + $0x38] sm:$0xff]
        %v8202 = vld [vmem:[%s47 + $0x40] sm:$0xff]
        %v8203 = vld [vmem:[%s47 + $0x48] sm:$0xff]
        %v8204 = vld [vmem:[%s47 + $0x50] sm:$0xff]
        %v8205 = vld [vmem:[%s47 + $0x58] sm:$0xff]
        %v8206 = vld [vmem:[%s47 + $0x60] sm:$0xff]
        %v8207 = vld [vmem:[%s47 + $0x68] sm:$0xff]
        %v8208 = vld [vmem:[%s47 + $0x70] sm:$0xff]
        %v8209 = vld [vmem:[%s47 + $0x78] sm:$0xff]
        %8210 = vmatpush.msra.mxu0 %v8209
        %8211 = vmatpush.msra.mxu0 %v8208
        %8212 = vmatpush.msra.mxu0 %v8207
        %8213 = vmatpush.msra.mxu0 %v8206
        %8214 = vmatpush.msra.mxu0 %v8205
        %8215 = vmatpush.msra.mxu0 %v8204
        %8216 = vmatpush.msra.mxu0 %v8203
        %8217 = vmatpush.msra.mxu0 %v8202
        %8218 = vmatpush.msra.mxu0 %v8201
        %8219 = vmatpush.msra.mxu0 %v8200
        %8220 = vmatpush.msra.mxu0 %v8199
        %8221 = vmatpush.msra.mxu0 %v8198
        %8222 = vmatpush.msra.mxu0 %v8197
        %8223 = vmatpush.msra.mxu0 %v8196
        %8224 = vmatpush.msra.mxu0 %v8195
        %8225 = vmatpush.msra.mxu0 %v8194
        %8226 = vmatmul.f32.gmra.mxu0 %v8147
        %v8227 = vpop.f32.mrf.mxu0
        %v8228 = vadd.f32 0.0, %v8227
        %8229 = vmatmul.f32.gmra.mxu0 %v8150
        %v8230 = vpop.f32.mrf.mxu0
        %v8231 = vadd.f32 0.0, %v8230
        %8232 = vmatmul.f32.gmra.mxu0 %v8153
        %v8233 = vpop.f32.mrf.mxu0
        %v8234 = vadd.f32 0.0, %v8233
        %8235 = vmatmul.f32.gmra.mxu0 %v8156
        %v8236 = vpop.f32.mrf.mxu0
        %v8237 = vadd.f32 0.0, %v8236
        %8238 = vmatmul.f32.gmra.mxu0 %v8159
        %v8239 = vpop.f32.mrf.mxu0
        %v8240 = vadd.f32 0.0, %v8239
        %8241 = vmatmul.f32.gmra.mxu0 %v8162
        %v8242 = vpop.f32.mrf.mxu0
        %v8243 = vadd.f32 0.0, %v8242
        %8244 = vmatmul.f32.gmra.mxu0 %v8165
        %v8245 = vpop.f32.mrf.mxu0
        %v8246 = vadd.f32 0.0, %v8245
        %8247 = vmatmul.f32.gmra.mxu0 %v8168
        %v8248 = vpop.f32.mrf.mxu0
        %v8249 = vadd.f32 0.0, %v8248
        %8250 = vmatmul.f32.gmra.mxu0 %v8171
        %v8251 = vpop.f32.mrf.mxu0
        %v8252 = vadd.f32 0.0, %v8251
        %8253 = vmatmul.f32.gmra.mxu0 %v8174
        %v8254 = vpop.f32.mrf.mxu0
        %v8255 = vadd.f32 0.0, %v8254
        %8256 = vmatmul.f32.gmra.mxu0 %v8177
        %v8257 = vpop.f32.mrf.mxu0
        %v8258 = vadd.f32 0.0, %v8257
        %8259 = vmatmul.f32.gmra.mxu0 %v8180
        %v8260 = vpop.f32.mrf.mxu0
        %v8261 = vadd.f32 0.0, %v8260
        %8262 = vmatmul.f32.gmra.mxu0 %v8183
        %v8263 = vpop.f32.mrf.mxu0
        %v8264 = vadd.f32 0.0, %v8263
        %8265 = vmatmul.f32.gmra.mxu0 %v8186
        %v8266 = vpop.f32.mrf.mxu0
        %v8267 = vadd.f32 0.0, %v8266
        %8268 = vmatmul.f32.gmra.mxu0 %v8189
        %v8269 = vpop.f32.mrf.mxu0
        %v8270 = vadd.f32 0.0, %v8269
        %8271 = vmatmul.f32.gmra.mxu0 %v8192
        %v8272 = vpop.f32.mrf.mxu0
        %v8273 = vadd.f32 0.0, %v8272
        %8274 = vdwg.mxu0
        %8291 = vrot.lane.b32.xlu0 %v8228, 32
        %v8292 = vpop.permute.xlu0 %8291
        %8293 = vrot.lane.b32.xlu0 %v8231, 32
        %v8294 = vpop.permute.xlu0 %8293
        %8295 = vrot.lane.b32.xlu0 %v8234, 32
        %v8296 = vpop.permute.xlu0 %8295
        %8297 = vrot.lane.b32.xlu0 %v8237, 32
        %v8298 = vpop.permute.xlu0 %8297
        %8299 = vrot.lane.b32.xlu0 %v8240, 32
        %v8300 = vpop.permute.xlu0 %8299
        %8301 = vrot.lane.b32.xlu0 %v8243, 32
        %v8302 = vpop.permute.xlu0 %8301
        %8303 = vrot.lane.b32.xlu0 %v8246, 32
        %v8304 = vpop.permute.xlu0 %8303
        %8305 = vrot.lane.b32.xlu0 %v8249, 32
        %v8306 = vpop.permute.xlu0 %8305
        %8307 = vrot.lane.b32.xlu0 %v8252, 32
        %v8308 = vpop.permute.xlu0 %8307
        %8309 = vrot.lane.b32.xlu0 %v8255, 32
        %v8310 = vpop.permute.xlu0 %8309
        %8311 = vrot.lane.b32.xlu0 %v8258, 32
        %v8312 = vpop.permute.xlu0 %8311
        %8313 = vrot.lane.b32.xlu0 %v8261, 32
        %v8314 = vpop.permute.xlu0 %8313
        %8315 = vrot.lane.b32.xlu0 %v8264, 32
        %v8316 = vpop.permute.xlu0 %8315
        %8317 = vrot.lane.b32.xlu0 %v8267, 32
        %v8318 = vpop.permute.xlu0 %8317
        %8319 = vrot.lane.b32.xlu0 %v8270, 32
        %v8320 = vpop.permute.xlu0 %8319
        %8321 = vrot.lane.b32.xlu0 %v8273, 32
        %v8322 = vpop.permute.xlu0 %8321
        %v8339 = vadd.f32 %v7640, %v8292
        %v8340 = vadd.f32 %v7643, %v8294
        %v8341 = vadd.f32 %v7646, %v8296
        %v8342 = vadd.f32 %v7649, %v8298
        %v8343 = vadd.f32 %v7652, %v8300
        %v8344 = vadd.f32 %v7655, %v8302
        %v8345 = vadd.f32 %v7658, %v8304
        %v8346 = vadd.f32 %v7661, %v8306
        %v8347 = vadd.f32 %v7664, %v8308
        %v8348 = vadd.f32 %v7667, %v8310
        %v8349 = vadd.f32 %v7670, %v8312
        %v8350 = vadd.f32 %v7673, %v8314
        %v8351 = vadd.f32 %v7676, %v8316
        %v8352 = vadd.f32 %v7679, %v8318
        %v8353 = vadd.f32 %v7682, %v8320
        %v8354 = vadd.f32 %v7685, %v8322
        %vm8355 = vcmp.ge.f32.partialorder %v8339, 0.0
        %vm8356 = vcmp.ge.f32.partialorder %v8340, 0.0
        %vm8357 = vcmp.ge.f32.partialorder %v8341, 0.0
        %vm8358 = vcmp.ge.f32.partialorder %v8342, 0.0
        %vm8359 = vcmp.ge.f32.partialorder %v8343, 0.0
        %vm8360 = vcmp.ge.f32.partialorder %v8344, 0.0
        %vm8361 = vcmp.ge.f32.partialorder %v8345, 0.0
        %vm8362 = vcmp.ge.f32.partialorder %v8346, 0.0
        %vm8363 = vcmp.ge.f32.partialorder %v8347, 0.0
        %vm8364 = vcmp.ge.f32.partialorder %v8348, 0.0
        %vm8365 = vcmp.ge.f32.partialorder %v8349, 0.0
        %vm8366 = vcmp.ge.f32.partialorder %v8350, 0.0
        %vm8367 = vcmp.ge.f32.partialorder %v8351, 0.0
        %vm8368 = vcmp.ge.f32.partialorder %v8352, 0.0
        %vm8369 = vcmp.ge.f32.partialorder %v8353, 0.0
        %vm8370 = vcmp.ge.f32.partialorder %v8354, 0.0
        %v8371 = vmul.f32 %v8339, 0.01
        %v8372 = vmul.f32 %v8340, 0.01
        %v8373 = vmul.f32 %v8341, 0.01
        %v8374 = vmul.f32 %v8342, 0.01
        %v8375 = vmul.f32 %v8343, 0.01
        %v8376 = vmul.f32 %v8344, 0.01
        %v8377 = vmul.f32 %v8345, 0.01
        %v8378 = vmul.f32 %v8346, 0.01
        %v8379 = vmul.f32 %v8347, 0.01
        %v8380 = vmul.f32 %v8348, 0.01
        %v8381 = vmul.f32 %v8349, 0.01
        %v8382 = vmul.f32 %v8350, 0.01
        %v8383 = vmul.f32 %v8351, 0.01
        %v8384 = vmul.f32 %v8352, 0.01
        %v8385 = vmul.f32 %v8353, 0.01
        %v8386 = vmul.f32 %v8354, 0.01
        %v8387 = vsel %vm8355, %v8339, %v8371
        %v8388 = vsel %vm8356, %v8340, %v8372
        %v8389 = vsel %vm8357, %v8341, %v8373
        %v8390 = vsel %vm8358, %v8342, %v8374
        %v8391 = vsel %vm8359, %v8343, %v8375
        %v8392 = vsel %vm8360, %v8344, %v8376
        %v8393 = vsel %vm8361, %v8345, %v8377
        %v8394 = vsel %vm8362, %v8346, %v8378
        %v8395 = vsel %vm8363, %v8347, %v8379
        %v8396 = vsel %vm8364, %v8348, %v8380
        %v8397 = vsel %vm8365, %v8349, %v8381
        %v8398 = vsel %vm8366, %v8350, %v8382
        %v8399 = vsel %vm8367, %v8351, %v8383
        %v8400 = vsel %vm8368, %v8352, %v8384
        %v8401 = vsel %vm8369, %v8353, %v8385
        %v8402 = vsel %vm8370, %v8354, %v8386
        %v8403 = vld [vmem:[%s49] sm:$0xff]
        %v8404 = vld [vmem:[%s49 + $0x8] sm:$0xff]
        %v8405 = vld [vmem:[%s49 + $0x10] sm:$0xff]
        %v8406 = vld [vmem:[%s49 + $0x18] sm:$0xff]
        %v8407 = vld [vmem:[%s51] sm:$0x1]
        %v8409 = vperm.slane %v8407, 0
        %8427 = vrot.lane.b32.xlu0 %v8387, 96
        %v8428 = vpop.permute.xlu0 %8427
        %8429 = vrot.lane.b32.xlu0 %v8388, 96
        %v8430 = vpop.permute.xlu0 %8429
        %8431 = vrot.lane.b32.xlu0 %v8389, 96
        %v8432 = vpop.permute.xlu0 %8431
        %8433 = vrot.lane.b32.xlu0 %v8390, 96
        %v8434 = vpop.permute.xlu0 %8433
        %8435 = vrot.lane.b32.xlu0 %v8391, 96
        %v8436 = vpop.permute.xlu0 %8435
        %8437 = vrot.lane.b32.xlu0 %v8392, 96
        %v8438 = vpop.permute.xlu0 %8437
        %8439 = vrot.lane.b32.xlu0 %v8393, 96
        %v8440 = vpop.permute.xlu0 %8439
        %8441 = vrot.lane.b32.xlu0 %v8394, 96
        %v8442 = vpop.permute.xlu0 %8441
        %8443 = vrot.lane.b32.xlu0 %v8395, 96
        %v8444 = vpop.permute.xlu0 %8443
        %8445 = vrot.lane.b32.xlu0 %v8396, 96
        %v8446 = vpop.permute.xlu0 %8445
        %8447 = vrot.lane.b32.xlu0 %v8397, 96
        %v8448 = vpop.permute.xlu0 %8447
        %8449 = vrot.lane.b32.xlu0 %v8398, 96
        %v8450 = vpop.permute.xlu0 %8449
        %8451 = vrot.lane.b32.xlu0 %v8399, 96
        %v8452 = vpop.permute.xlu0 %8451
        %8453 = vrot.lane.b32.xlu0 %v8400, 96
        %v8454 = vpop.permute.xlu0 %8453
        %8455 = vrot.lane.b32.xlu0 %v8401, 96
        %v8456 = vpop.permute.xlu0 %8455
        %8457 = vrot.lane.b32.xlu0 %v8402, 96
        %v8458 = vpop.permute.xlu0 %8457
        %v8459 = vsel %vm6854, %v8428, 0
        %v8461 = vsel %vm6854, %v8430, 0
        %v8463 = vsel %vm6854, %v8432, 0
        %v8465 = vsel %vm6854, %v8434, 0
        %v8467 = vsel %vm6854, %v8436, 0
        %v8469 = vsel %vm6854, %v8438, 0
        %v8471 = vsel %vm6854, %v8440, 0
        %v8473 = vsel %vm6854, %v8442, 0
        %v8475 = vsel %vm6854, %v8444, 0
        %v8477 = vsel %vm6854, %v8446, 0
        %v8479 = vsel %vm6854, %v8448, 0
        %v8481 = vsel %vm6854, %v8450, 0
        %v8483 = vsel %vm6854, %v8452, 0
        %v8485 = vsel %vm6854, %v8454, 0
        %v8487 = vsel %vm6854, %v8456, 0
        %v8489 = vsel %vm6854, %v8458, 0
        %8491 = vmatpush.msra.mxu0 0.0
        %8492 = vmatpush.msra.mxu0 0.0
        %8493 = vmatpush.msra.mxu0 0.0
        %8494 = vmatpush.msra.mxu0 0.0
        %8495 = vmatpush.msra.mxu0 0.0
        %8496 = vmatpush.msra.mxu0 0.0
        %8497 = vmatpush.msra.mxu0 0.0
        %8498 = vmatpush.msra.mxu0 0.0
        %8499 = vmatpush.msra.mxu0 0.0
        %8500 = vmatpush.msra.mxu0 0.0
        %8501 = vmatpush.msra.mxu0 0.0
        %8502 = vmatpush.msra.mxu0 0.0
        %8503 = vmatpush.msra.mxu0 %v8406
        %8504 = vmatpush.msra.mxu0 %v8405
        %8505 = vmatpush.msra.mxu0 %v8404
        %8506 = vmatpush.msra.mxu0 %v8403
        %8507 = vmatmul.f32.gmra.mxu0 %v8459
        %v8508 = vpop.f32.mrf.mxu0
        %v8509 = vadd.f32 %v8409, %v8508
        %8510 = vmatmul.f32.gmra.mxu0 %v8461
        %v8511 = vpop.f32.mrf.mxu0
        %v8512 = vadd.f32 %v8409, %v8511
        %8513 = vmatmul.f32.gmra.mxu0 %v8463
        %v8514 = vpop.f32.mrf.mxu0
        %v8515 = vadd.f32 %v8409, %v8514
        %8516 = vmatmul.f32.gmra.mxu0 %v8465
        %v8517 = vpop.f32.mrf.mxu0
        %v8518 = vadd.f32 %v8409, %v8517
        %8519 = vmatmul.f32.gmra.mxu0 %v8467
        %v8520 = vpop.f32.mrf.mxu0
        %v8521 = vadd.f32 %v8409, %v8520
        %8522 = vmatmul.f32.gmra.mxu0 %v8469
        %v8523 = vpop.f32.mrf.mxu0
        %v8524 = vadd.f32 %v8409, %v8523
        %8525 = vmatmul.f32.gmra.mxu0 %v8471
        %v8526 = vpop.f32.mrf.mxu0
        %v8527 = vadd.f32 %v8409, %v8526
        %8528 = vmatmul.f32.gmra.mxu0 %v8473
        %v8529 = vpop.f32.mrf.mxu0
        %v8530 = vadd.f32 %v8409, %v8529
        %8531 = vmatmul.f32.gmra.mxu0 %v8475
        %v8532 = vpop.f32.mrf.mxu0
        %v8533 = vadd.f32 %v8409, %v8532
        %8534 = vmatmul.f32.gmra.mxu0 %v8477
        %v8535 = vpop.f32.mrf.mxu0
        %v8536 = vadd.f32 %v8409, %v8535
        %8537 = vmatmul.f32.gmra.mxu0 %v8479
        %v8538 = vpop.f32.mrf.mxu0
        %v8539 = vadd.f32 %v8409, %v8538
        %8540 = vmatmul.f32.gmra.mxu0 %v8481
        %v8541 = vpop.f32.mrf.mxu0
        %v8542 = vadd.f32 %v8409, %v8541
        %8543 = vmatmul.f32.gmra.mxu0 %v8483
        %v8544 = vpop.f32.mrf.mxu0
        %v8545 = vadd.f32 %v8409, %v8544
        %8546 = vmatmul.f32.gmra.mxu0 %v8485
        %v8547 = vpop.f32.mrf.mxu0
        %v8548 = vadd.f32 %v8409, %v8547
        %8549 = vmatmul.f32.gmra.mxu0 %v8487
        %v8550 = vpop.f32.mrf.mxu0
        %v8551 = vadd.f32 %v8409, %v8550
        %8552 = vmatmul.f32.gmra.mxu0 %v8489
        %v8553 = vpop.f32.mrf.mxu0
        %v8554 = vadd.f32 %v8409, %v8553
        %8555 = vdwg.mxu0
        %vm8556 = vcmp.ge.f32.partialorder %v8509, 0.0
        %vm8557 = vcmp.ge.f32.partialorder %v8512, 0.0
        %vm8558 = vcmp.ge.f32.partialorder %v8515, 0.0
        %vm8559 = vcmp.ge.f32.partialorder %v8518, 0.0
        %vm8560 = vcmp.ge.f32.partialorder %v8521, 0.0
        %vm8561 = vcmp.ge.f32.partialorder %v8524, 0.0
        %vm8562 = vcmp.ge.f32.partialorder %v8527, 0.0
        %vm8563 = vcmp.ge.f32.partialorder %v8530, 0.0
        %vm8564 = vcmp.ge.f32.partialorder %v8533, 0.0
        %vm8565 = vcmp.ge.f32.partialorder %v8536, 0.0
        %vm8566 = vcmp.ge.f32.partialorder %v8539, 0.0
        %vm8567 = vcmp.ge.f32.partialorder %v8542, 0.0
        %vm8568 = vcmp.ge.f32.partialorder %v8545, 0.0
        %vm8569 = vcmp.ge.f32.partialorder %v8548, 0.0
        %vm8570 = vcmp.ge.f32.partialorder %v8551, 0.0
        %vm8571 = vcmp.ge.f32.partialorder %v8554, 0.0
        %v8572 = vmul.f32 %v8509, 0.01
        %v8573 = vmul.f32 %v8512, 0.01
        %v8574 = vmul.f32 %v8515, 0.01
        %v8575 = vmul.f32 %v8518, 0.01
        %v8576 = vmul.f32 %v8521, 0.01
        %v8577 = vmul.f32 %v8524, 0.01
        %v8578 = vmul.f32 %v8527, 0.01
        %v8579 = vmul.f32 %v8530, 0.01
        %v8580 = vmul.f32 %v8533, 0.01
        %v8581 = vmul.f32 %v8536, 0.01
        %v8582 = vmul.f32 %v8539, 0.01
        %v8583 = vmul.f32 %v8542, 0.01
        %v8584 = vmul.f32 %v8545, 0.01
        %v8585 = vmul.f32 %v8548, 0.01
        %v8586 = vmul.f32 %v8551, 0.01
        %v8587 = vmul.f32 %v8554, 0.01
        %v8588 = vsel %vm8556, %v8509, %v8572
        %v8589 = vsel %vm8557, %v8512, %v8573
        %v8590 = vsel %vm8558, %v8515, %v8574
        %v8591 = vsel %vm8559, %v8518, %v8575
        %v8592 = vsel %vm8560, %v8521, %v8576
        %v8593 = vsel %vm8561, %v8524, %v8577
        %v8594 = vsel %vm8562, %v8527, %v8578
        %v8595 = vsel %vm8563, %v8530, %v8579
        %v8596 = vsel %vm8564, %v8533, %v8580
        %v8597 = vsel %vm8565, %v8536, %v8581
        %v8598 = vsel %vm8566, %v8539, %v8582
        %v8599 = vsel %vm8567, %v8542, %v8583
        %v8600 = vsel %vm8568, %v8545, %v8584
        %v8601 = vsel %vm8569, %v8548, %v8585
        %v8602 = vsel %vm8570, %v8551, %v8586
        %v8603 = vsel %vm8571, %v8554, %v8587
        %v8604 = vld [vmem:[%s53] sm:$0xff]
        %v8605 = vld [vmem:[%s53 + $0x8] sm:$0xff]
        %v8606 = vld [vmem:[%s53 + $0x10] sm:$0xff]
        %v8607 = vld [vmem:[%s53 + $0x18] sm:$0xff]
        %v8608 = vld [vmem:[%s55] sm:$0x1]
        %v8610 = vperm.slane %v8608, 0
        %v8613 = vsel %vm6854, %v8588, 0
        %v8616 = vsel %vm6854, %v8589, 0
        %v8619 = vsel %vm6854, %v8590, 0
        %v8622 = vsel %vm6854, %v8591, 0
        %v8625 = vsel %vm6854, %v8592, 0
        %v8628 = vsel %vm6854, %v8593, 0
        %v8631 = vsel %vm6854, %v8594, 0
        %v8634 = vsel %vm6854, %v8595, 0
        %v8637 = vsel %vm6854, %v8596, 0
        %v8640 = vsel %vm6854, %v8597, 0
        %v8643 = vsel %vm6854, %v8598, 0
        %v8646 = vsel %vm6854, %v8599, 0
        %v8649 = vsel %vm6854, %v8600, 0
        %v8652 = vsel %vm6854, %v8601, 0
        %v8655 = vsel %vm6854, %v8602, 0
        %v8658 = vsel %vm6854, %v8603, 0
        %8660 = vmatpush.msra.mxu0 0.0
        %8661 = vmatpush.msra.mxu0 0.0
        %8662 = vmatpush.msra.mxu0 0.0
        %8663 = vmatpush.msra.mxu0 0.0
        %8664 = vmatpush.msra.mxu0 0.0
        %8665 = vmatpush.msra.mxu0 0.0
        %8666 = vmatpush.msra.mxu0 0.0
        %8667 = vmatpush.msra.mxu0 0.0
        %8668 = vmatpush.msra.mxu0 0.0
        %8669 = vmatpush.msra.mxu0 0.0
        %8670 = vmatpush.msra.mxu0 0.0
        %8671 = vmatpush.msra.mxu0 0.0
        %8672 = vmatpush.msra.mxu0 %v8607
        %8673 = vmatpush.msra.mxu0 %v8606
        %8674 = vmatpush.msra.mxu0 %v8605
        %8675 = vmatpush.msra.mxu0 %v8604
        %8676 = vmatmul.f32.gmra.mxu0 %v8613
        %v8677 = vpop.f32.mrf.mxu0
        %v8678 = vadd.f32 %v8610, %v8677
        %8679 = vmatmul.f32.gmra.mxu0 %v8616
        %v8680 = vpop.f32.mrf.mxu0
        %v8681 = vadd.f32 %v8610, %v8680
        %8682 = vmatmul.f32.gmra.mxu0 %v8619
        %v8683 = vpop.f32.mrf.mxu0
        %v8684 = vadd.f32 %v8610, %v8683
        %8685 = vmatmul.f32.gmra.mxu0 %v8622
        %v8686 = vpop.f32.mrf.mxu0
        %v8687 = vadd.f32 %v8610, %v8686
        %8688 = vmatmul.f32.gmra.mxu0 %v8625
        %v8689 = vpop.f32.mrf.mxu0
        %v8690 = vadd.f32 %v8610, %v8689
        %8691 = vmatmul.f32.gmra.mxu0 %v8628
        %v8692 = vpop.f32.mrf.mxu0
        %v8693 = vadd.f32 %v8610, %v8692
        %8694 = vmatmul.f32.gmra.mxu0 %v8631
        %v8695 = vpop.f32.mrf.mxu0
        %v8696 = vadd.f32 %v8610, %v8695
        %8697 = vmatmul.f32.gmra.mxu0 %v8634
        %v8698 = vpop.f32.mrf.mxu0
        %v8699 = vadd.f32 %v8610, %v8698
        %8700 = vmatmul.f32.gmra.mxu0 %v8637
        %v8701 = vpop.f32.mrf.mxu0
        %v8702 = vadd.f32 %v8610, %v8701
        %8703 = vmatmul.f32.gmra.mxu0 %v8640
        %v8704 = vpop.f32.mrf.mxu0
        %v8705 = vadd.f32 %v8610, %v8704
        %8706 = vmatmul.f32.gmra.mxu0 %v8643
        %v8707 = vpop.f32.mrf.mxu0
        %v8708 = vadd.f32 %v8610, %v8707
        %8709 = vmatmul.f32.gmra.mxu0 %v8646
        %v8710 = vpop.f32.mrf.mxu0
        %v8711 = vadd.f32 %v8610, %v8710
        %8712 = vmatmul.f32.gmra.mxu0 %v8649
        %v8713 = vpop.f32.mrf.mxu0
        %v8714 = vadd.f32 %v8610, %v8713
        %8715 = vmatmul.f32.gmra.mxu0 %v8652
        %v8716 = vpop.f32.mrf.mxu0
        %v8717 = vadd.f32 %v8610, %v8716
        %8718 = vmatmul.f32.gmra.mxu0 %v8655
        %v8719 = vpop.f32.mrf.mxu0
        %v8720 = vadd.f32 %v8610, %v8719
        %8721 = vmatmul.f32.gmra.mxu0 %v8658
        %v8722 = vpop.f32.mrf.mxu0
        %v8723 = vadd.f32 %v8610, %v8722
        %8724 = vdwg.mxu0
        %vm8725 = vcmp.ge.f32.partialorder %v8678, 0.0
        %vm8726 = vcmp.ge.f32.partialorder %v8681, 0.0
        %vm8727 = vcmp.ge.f32.partialorder %v8684, 0.0
        %vm8728 = vcmp.ge.f32.partialorder %v8687, 0.0
        %vm8729 = vcmp.ge.f32.partialorder %v8690, 0.0
        %vm8730 = vcmp.ge.f32.partialorder %v8693, 0.0
        %vm8731 = vcmp.ge.f32.partialorder %v8696, 0.0
        %vm8732 = vcmp.ge.f32.partialorder %v8699, 0.0
        %vm8733 = vcmp.ge.f32.partialorder %v8702, 0.0
        %vm8734 = vcmp.ge.f32.partialorder %v8705, 0.0
        %vm8735 = vcmp.ge.f32.partialorder %v8708, 0.0
        %vm8736 = vcmp.ge.f32.partialorder %v8711, 0.0
        %vm8737 = vcmp.ge.f32.partialorder %v8714, 0.0
        %vm8738 = vcmp.ge.f32.partialorder %v8717, 0.0
        %vm8739 = vcmp.ge.f32.partialorder %v8720, 0.0
        %vm8740 = vcmp.ge.f32.partialorder %v8723, 0.0
        %v8741 = vmul.f32 %v8678, 0.01
        %v8742 = vmul.f32 %v8681, 0.01
        %v8743 = vmul.f32 %v8684, 0.01
        %v8744 = vmul.f32 %v8687, 0.01
        %v8745 = vmul.f32 %v8690, 0.01
        %v8746 = vmul.f32 %v8693, 0.01
        %v8747 = vmul.f32 %v8696, 0.01
        %v8748 = vmul.f32 %v8699, 0.01
        %v8749 = vmul.f32 %v8702, 0.01
        %v8750 = vmul.f32 %v8705, 0.01
        %v8751 = vmul.f32 %v8708, 0.01
        %v8752 = vmul.f32 %v8711, 0.01
        %v8753 = vmul.f32 %v8714, 0.01
        %v8754 = vmul.f32 %v8717, 0.01
        %v8755 = vmul.f32 %v8720, 0.01
        %v8756 = vmul.f32 %v8723, 0.01
        %v8757 = vsel %vm8725, %v8678, %v8741
        %v8758 = vsel %vm8726, %v8681, %v8742
        %v8759 = vsel %vm8727, %v8684, %v8743
        %v8760 = vsel %vm8728, %v8687, %v8744
        %v8761 = vsel %vm8729, %v8690, %v8745
        %v8762 = vsel %vm8730, %v8693, %v8746
        %v8763 = vsel %vm8731, %v8696, %v8747
        %v8764 = vsel %vm8732, %v8699, %v8748
        %v8765 = vsel %vm8733, %v8702, %v8749
        %v8766 = vsel %vm8734, %v8705, %v8750
        %v8767 = vsel %vm8735, %v8708, %v8751
        %v8768 = vsel %vm8736, %v8711, %v8752
        %v8769 = vsel %vm8737, %v8714, %v8753
        %v8770 = vsel %vm8738, %v8717, %v8754
        %v8771 = vsel %vm8739, %v8720, %v8755
        %v8772 = vsel %vm8740, %v8723, %v8756
        %v8773 = vld [vmem:[%s57] sm:$0xff]
        %v8774 = vld [vmem:[%s57 + $0x8] sm:$0xff]
        %v8775 = vld [vmem:[%s57 + $0x10] sm:$0xff]
        %v8776 = vld [vmem:[%s57 + $0x18] sm:$0xff]
        %v8777 = vld [vmem:[%s59] sm:$0x1]
        %v8779 = vperm.slane %v8777, 0
        %v8782 = vsel %vm6854, %v8757, 0
        %v8785 = vsel %vm6854, %v8758, 0
        %v8788 = vsel %vm6854, %v8759, 0
        %v8791 = vsel %vm6854, %v8760, 0
        %v8794 = vsel %vm6854, %v8761, 0
        %v8797 = vsel %vm6854, %v8762, 0
        %v8800 = vsel %vm6854, %v8763, 0
        %v8803 = vsel %vm6854, %v8764, 0
        %v8806 = vsel %vm6854, %v8765, 0
        %v8809 = vsel %vm6854, %v8766, 0
        %v8812 = vsel %vm6854, %v8767, 0
        %v8815 = vsel %vm6854, %v8768, 0
        %v8818 = vsel %vm6854, %v8769, 0
        %v8821 = vsel %vm6854, %v8770, 0
        %v8824 = vsel %vm6854, %v8771, 0
        %v8827 = vsel %vm6854, %v8772, 0
        %8829 = vmatpush.msra.mxu0 0.0
        %8830 = vmatpush.msra.mxu0 0.0
        %8831 = vmatpush.msra.mxu0 0.0
        %8832 = vmatpush.msra.mxu0 0.0
        %8833 = vmatpush.msra.mxu0 0.0
        %8834 = vmatpush.msra.mxu0 0.0
        %8835 = vmatpush.msra.mxu0 0.0
        %8836 = vmatpush.msra.mxu0 0.0
        %8837 = vmatpush.msra.mxu0 0.0
        %8838 = vmatpush.msra.mxu0 0.0
        %8839 = vmatpush.msra.mxu0 0.0
        %8840 = vmatpush.msra.mxu0 0.0
        %8841 = vmatpush.msra.mxu0 %v8776
        %8842 = vmatpush.msra.mxu0 %v8775
        %8843 = vmatpush.msra.mxu0 %v8774
        %8844 = vmatpush.msra.mxu0 %v8773
        %8845 = vmatmul.f32.gmra.mxu0 %v8782
        %v8846 = vpop.f32.mrf.mxu0
        %v8847 = vadd.f32 %v8779, %v8846
        %8848 = vmatmul.f32.gmra.mxu0 %v8785
        %v8849 = vpop.f32.mrf.mxu0
        %v8850 = vadd.f32 %v8779, %v8849
        %8851 = vmatmul.f32.gmra.mxu0 %v8788
        %v8852 = vpop.f32.mrf.mxu0
        %v8853 = vadd.f32 %v8779, %v8852
        %8854 = vmatmul.f32.gmra.mxu0 %v8791
        %v8855 = vpop.f32.mrf.mxu0
        %v8856 = vadd.f32 %v8779, %v8855
        %8857 = vmatmul.f32.gmra.mxu0 %v8794
        %v8858 = vpop.f32.mrf.mxu0
        %v8859 = vadd.f32 %v8779, %v8858
        %8860 = vmatmul.f32.gmra.mxu0 %v8797
        %v8861 = vpop.f32.mrf.mxu0
        %v8862 = vadd.f32 %v8779, %v8861
        %8863 = vmatmul.f32.gmra.mxu0 %v8800
        %v8864 = vpop.f32.mrf.mxu0
        %v8865 = vadd.f32 %v8779, %v8864
        %8866 = vmatmul.f32.gmra.mxu0 %v8803
        %v8867 = vpop.f32.mrf.mxu0
        %v8868 = vadd.f32 %v8779, %v8867
        %8869 = vmatmul.f32.gmra.mxu0 %v8806
        %v8870 = vpop.f32.mrf.mxu0
        %v8871 = vadd.f32 %v8779, %v8870
        %8872 = vmatmul.f32.gmra.mxu0 %v8809
        %v8873 = vpop.f32.mrf.mxu0
        %v8874 = vadd.f32 %v8779, %v8873
        %8875 = vmatmul.f32.gmra.mxu0 %v8812
        %v8876 = vpop.f32.mrf.mxu0
        %v8877 = vadd.f32 %v8779, %v8876
        %8878 = vmatmul.f32.gmra.mxu0 %v8815
        %v8879 = vpop.f32.mrf.mxu0
        %v8880 = vadd.f32 %v8779, %v8879
        %8881 = vmatmul.f32.gmra.mxu0 %v8818
        %v8882 = vpop.f32.mrf.mxu0
        %v8883 = vadd.f32 %v8779, %v8882
        %8884 = vmatmul.f32.gmra.mxu0 %v8821
        %v8885 = vpop.f32.mrf.mxu0
        %v8886 = vadd.f32 %v8779, %v8885
        %8887 = vmatmul.f32.gmra.mxu0 %v8824
        %v8888 = vpop.f32.mrf.mxu0
        %v8889 = vadd.f32 %v8779, %v8888
        %8890 = vmatmul.f32.gmra.mxu0 %v8827
        %v8891 = vpop.f32.mrf.mxu0
        %v8892 = vadd.f32 %v8779, %v8891
        %8893 = vdwg.mxu0
        %8894 = vst [vmem:[%s984] sm:$0xff] %v8147
        %8895 = vst [vmem:[%s984 + $0x8] sm:$0xff] %v8150
        %8896 = vst [vmem:[%s984 + $0x10] sm:$0xff] %v8153
        %8897 = vst [vmem:[%s984 + $0x18] sm:$0xff] %v8156
        %8898 = vst [vmem:[%s984 + $0x20] sm:$0xff] %v8159
        %8899 = vst [vmem:[%s984 + $0x28] sm:$0xff] %v8162
        %8900 = vst [vmem:[%s984 + $0x30] sm:$0xff] %v8165
        %8901 = vst [vmem:[%s984 + $0x38] sm:$0xff] %v8168
        %8902 = vst [vmem:[%s984 + $0x40] sm:$0xff] %v8171
        %8903 = vst [vmem:[%s984 + $0x48] sm:$0xff] %v8174
        %8904 = vst [vmem:[%s984 + $0x50] sm:$0xff] %v8177
        %8905 = vst [vmem:[%s984 + $0x58] sm:$0xff] %v8180
        %8906 = vst [vmem:[%s984 + $0x60] sm:$0xff] %v8183
        %8907 = vst [vmem:[%s984 + $0x68] sm:$0xff] %v8186
        %8908 = vst [vmem:[%s984 + $0x70] sm:$0xff] %v8189
        %8909 = vst [vmem:[%s984 + $0x78] sm:$0xff] %v8192
        %8910 = vst [vmem:[%s991] sm:$0xff] %v8847
        %8911 = vst [vmem:[%s991 + $0x8] sm:$0xff] %v8850
        %8912 = vst [vmem:[%s991 + $0x10] sm:$0xff] %v8853
        %8913 = vst [vmem:[%s991 + $0x18] sm:$0xff] %v8856
        %8914 = vst [vmem:[%s991 + $0x20] sm:$0xff] %v8859
        %8915 = vst [vmem:[%s991 + $0x28] sm:$0xff] %v8862
        %8916 = vst [vmem:[%s991 + $0x30] sm:$0xff] %v8865
        %8917 = vst [vmem:[%s991 + $0x38] sm:$0xff] %v8868
        %8918 = vst [vmem:[%s991 + $0x40] sm:$0xff] %v8871
        %8919 = vst [vmem:[%s991 + $0x48] sm:$0xff] %v8874
        %8920 = vst [vmem:[%s991 + $0x50] sm:$0xff] %v8877
        %8921 = vst [vmem:[%s991 + $0x58] sm:$0xff] %v8880
        %8922 = vst [vmem:[%s991 + $0x60] sm:$0xff] %v8883
        %8923 = vst [vmem:[%s991 + $0x68] sm:$0xff] %v8886
        %8924 = vst [vmem:[%s991 + $0x70] sm:$0xff] %v8889
        %8925 = vst [vmem:[%s991 + $0x78] sm:$0xff] %v8892
        %vm8926 = vmpackc.low %vm2090, %vm2088
        %vm8927 = vmpackc.low %vm2094, %vm2092
        %v8928 = vsel %vm8926, 16711935, 0
        %v8929 = vsel %vm8927, 16711935, 0
        %v8930 = vpack.c.b8 %v8929, %v8928
        %vm8931 = vnez %v8930
        %vm8932 = vmpackc.low %vm2091, %vm2089
        %vm8933 = vmpackc.low %vm2095, %vm2093
        %v8934 = vsel %vm8932, 16711935, 0
        %v8935 = vsel %vm8933, 16711935, 0
        %v8936 = vpack.c.b8 %v8935, %v8934
        %vm8937 = vnez %v8936
        %vm8938 = vmpackc.low %vm2098, %vm2096
        %vm8939 = vmpackc.low %vm2102, %vm2100
        %v8940 = vsel %vm8938, 16711935, 0
        %v8941 = vsel %vm8939, 16711935, 0
        %v8942 = vpack.c.b8 %v8941, %v8940
        %vm8943 = vnez %v8942
        %vm8944 = vmpackc.low %vm2099, %vm2097
        %vm8945 = vmpackc.low %vm2103, %vm2101
        %v8946 = vsel %vm8944, 16711935, 0
        %v8947 = vsel %vm8945, 16711935, 0
        %v8948 = vpack.c.b8 %v8947, %v8946
        %vm8949 = vnez %v8948
        %vm8950 = vmpackc.low %vm2106, %vm2104
        %vm8951 = vmpackc.low %vm2110, %vm2108
        %v8952 = vsel %vm8950, 16711935, 0
        %v8953 = vsel %vm8951, 16711935, 0
        %v8954 = vpack.c.b8 %v8953, %v8952
        %vm8955 = vnez %v8954
        %vm8956 = vmpackc.low %vm2107, %vm2105
        %vm8957 = vmpackc.low %vm2111, %vm2109
        %v8958 = vsel %vm8956, 16711935, 0
        %v8959 = vsel %vm8957, 16711935, 0
        %v8960 = vpack.c.b8 %v8959, %v8958
        %vm8961 = vnez %v8960
        %vm8962 = vmpackc.low %vm2114, %vm2112
        %vm8963 = vmpackc.low %vm2118, %vm2116
        %v8964 = vsel %vm8962, 16711935, 0
        %v8965 = vsel %vm8963, 16711935, 0
        %v8966 = vpack.c.b8 %v8965, %v8964
        %vm8967 = vnez %v8966
        %vm8968 = vmpackc.low %vm2115, %vm2113
        %vm8969 = vmpackc.low %vm2119, %vm2117
        %v8970 = vsel %vm8968, 16711935, 0
        %v8971 = vsel %vm8969, 16711935, 0
        %v8972 = vpack.c.b8 %v8971, %v8970
        %vm8973 = vnez %v8972
        %v8974 = vsel %vm8931, 16843009, 0
        %v8975 = vsel %vm8937, 16843009, 0
        %v8976 = vsel %vm8943, 16843009, 0
        %v8977 = vsel %vm8949, 16843009, 0
        %v8978 = vsel %vm8955, 16843009, 0
        %v8979 = vsel %vm8961, 16843009, 0
        %v8980 = vsel %vm8967, 16843009, 0
        %v8981 = vsel %vm8973, 16843009, 0
        %8982 = vst [vmem:[%s998] sm:$0xff] %v8974
        %8983 = vst [vmem:[%s998 + $0x8] sm:$0xff] %v8975
        %8984 = vst [vmem:[%s998 + $0x10] sm:$0xff] %v8976
        %8985 = vst [vmem:[%s998 + $0x18] sm:$0xff] %v8977
        %8986 = vst [vmem:[%s998 + $0x20] sm:$0xff] %v8978
        %8987 = vst [vmem:[%s998 + $0x28] sm:$0xff] %v8979
        %8988 = vst [vmem:[%s998 + $0x30] sm:$0xff] %v8980
        %8989 = vst [vmem:[%s998 + $0x38] sm:$0xff] %v8981
        %s8990 = sand.u32 %s726, 1
        %s8991 = scalar_lea.sflag [#allocation4], %s8990
        %s8992 = sand.u32 %s726, 1
        %s8993 = smul.addr %s8992, 128
        %s8994 = scalar_lea.vmem [#allocation3], %s8993
        %s8995 = sand.u32 %s83, 1
        %s8996 = scalar_lea.sflag [#allocation6], %s8995
        %s8997 = sand.u32 %s752, 1
        %s8998 = smul.addr %s8997, 128
        %s8999 = scalar_lea.vmem [#allocation5], %s8998
        %s9000 = sand.u32 %s83, 1
        %s9001 = scalar_lea.sflag [#allocation6], %s9000
        %s9002 = sand.u32 %s778, 1
        %s9003 = smul.addr %s9002, 64
        %s9004 = scalar_lea.vmem [#allocation7], %s9003
        // Predicated region
        $region141: #{tpu_custom_call.1} parent=139 // pred_check
          %p9005 = pneg %p736
        $region142: #{tpu_custom_call.1} parent=139 // pred_check_branch
          %9007 = sbr.rel (%p9005) target = $region144
        $region143: #{tpu_custom_call.1} parent=139 // pred_region
          %s9008 = smul.u32 16, %s83
          %9010 = vsyncadd %s8991, 0
          %s9011 = smul.addr %s9008, 8
          %s9012 = scalar_lea.hbm %s61, %s9011
          %s9013 = sshll.u32 %s8994, 4
          %s9014 = int_to_ptr.vmem [resolvable:$true] %s9013
          %s9015 = sshll.u32 %s9012, 4
          %s9016 = int_to_ptr.hbm [resolvable:$true] %s9015
          %9021 = dma.vmem_to_hbm [thread:$0]  %s9014, 2048, %s9016, %s8991, 128, 128, 8
        $region144: #{tpu_custom_call.1} parent=139 // pred_fallthru
          _
        // Predicated region
        $region145: #{tpu_custom_call.1} parent=139 // pred_check
          %p9022 = pneg %p762
        $region146: #{tpu_custom_call.1} parent=139 // pred_check_branch
          %9024 = sbr.rel (%p9022) target = $region148
        $region147: #{tpu_custom_call.1} parent=139 // pred_region
          %s9025 = smul.u32 16, %s83
          %9027 = vsyncadd %s8996, 0
          %s9028 = smul.addr %s9025, 8
          %s9029 = scalar_lea.hbm %s63, %s9028
          %s9030 = sshll.u32 %s8999, 4
          %s9031 = int_to_ptr.vmem [resolvable:$true] %s9030
          %s9032 = sshll.u32 %s9029, 4
          %s9033 = int_to_ptr.hbm [resolvable:$true] %s9032
          %9038 = dma.vmem_to_hbm [thread:$0]  %s9031, 2048, %s9033, %s8996, 128, 128, 8
        $region148: #{tpu_custom_call.1} parent=139 // pred_fallthru
          _
        // Predicated region
        $region149: #{tpu_custom_call.1} parent=139 // pred_check
          %p9039 = pneg %p788
        $region150: #{tpu_custom_call.1} parent=139 // pred_check_branch
          %9041 = sbr.rel (%p9039) target = $region152
        $region151: #{tpu_custom_call.1} parent=139 // pred_region
          %s9042 = smul.u32 4, %s83
          %9044 = vsyncadd %s9001, 0
          %s9045 = smul.addr %s9042, 2
          %s9046 = smul.addr %s9045, 8
          %s9047 = scalar_lea.hbm %s65, %s9046
          %s9048 = sshll.u32 %s9004, 4
          %s9049 = int_to_ptr.vmem [resolvable:$true] %s9048
          %s9050 = sshll.u32 %s9047, 4
          %s9051 = int_to_ptr.hbm [resolvable:$true] %s9050
          %9056 = dma.vmem_to_hbm [thread:$0]  %s9049, 1024, %s9051, %s9001, 256, 256, 16
        $region152: #{tpu_custom_call.1} parent=139 // pred_fallthru
          _
      $region140: #{tpu_custom_call.1} parent=5 // pred_fallthru
        _
      %p9057 = scmp.le.s32.totalorder 2, %s78
      // Predicated region
      $region153: #{tpu_custom_call.1} parent=5 // pred_check
        %p9058 = pneg %p9057
      $region154: #{tpu_custom_call.1} parent=5 // pred_check_branch
        %9060 = sbr.rel (%p9058) target = $region156
      $region155: #{tpu_custom_call.1} parent=5 // pred_region
        %s9061 = ssub.s32 %s78, 2
        // Predicated region
        $region157: #{tpu_custom_call.1} parent=155 // pred_check
          %p9062 = pneg %p742
        $region158: #{tpu_custom_call.1} parent=155 // pred_check_branch
          %9064 = sbr.rel (%p9062) target = $region160
        $region159: #{tpu_custom_call.1} parent=155 // pred_region
          %s9065 = sand.u32 %s727, 1
          %s9066 = scalar_lea.sflag [#allocation4], %s9065
          %s9067 = sand.u32 %s727, 1
          %s9068 = smul.addr %s9067, 128
          %s9069 = scalar_lea.vmem [#allocation3], %s9068
          %9071 = dma.done %s9066, 2048
        $region160: #{tpu_custom_call.1} parent=155 // pred_fallthru
          _
        // Predicated region
        $region161: #{tpu_custom_call.1} parent=155 // pred_check
          %p9072 = pneg %p768
        $region162: #{tpu_custom_call.1} parent=155 // pred_check_branch
          %9074 = sbr.rel (%p9072) target = $region164
        $region163: #{tpu_custom_call.1} parent=155 // pred_region
          %s9075 = sand.u32 %s84, 1
          %s9076 = scalar_lea.sflag [#allocation6], %s9075
          %s9077 = sand.u32 %s753, 1
          %s9078 = smul.addr %s9077, 128
          %s9079 = scalar_lea.vmem [#allocation5], %s9078
          %9081 = dma.done %s9076, 2048
        $region164: #{tpu_custom_call.1} parent=155 // pred_fallthru
          _
        // Predicated region
        $region165: #{tpu_custom_call.1} parent=155 // pred_check
          %p9082 = pneg %p794
        $region166: #{tpu_custom_call.1} parent=155 // pred_check_branch
          %9084 = sbr.rel (%p9082) target = $region168
        $region167: #{tpu_custom_call.1} parent=155 // pred_region
          %s9085 = sand.u32 %s84, 1
          %s9086 = scalar_lea.sflag [#allocation6], %s9085
          %s9087 = sand.u32 %s779, 1
          %s9088 = smul.addr %s9087, 64
          %s9089 = scalar_lea.vmem [#allocation7], %s9088
          %9091 = dma.done %s9086, 1024
        $region168: #{tpu_custom_call.1} parent=155 // pred_fallthru
          _
      $region156: #{tpu_custom_call.1} parent=5 // pred_fallthru
        _
    $region6: #{tpu_custom_call.1} parent=1 // loop_footer
      %s82 = sadd.s32 1, %s78
    $region7: #{tpu_custom_call.1} parent=1 // loop_footer_branch
      %77 = sbr.rel target = $region3
    $region8: #{tpu_custom_call.1} parent=1 // loop_exit
      _
    %9092 = vsyncpa [#allocation4], 1
    %s9093 = scalar_lea.sflag [#allocation4], 1
    %9094 = vsyncpa %s9093, 1
    %9095 = vsyncpa [#allocation6], 1
    %s9096 = scalar_lea.sflag [#allocation6], 1
    %9097 = vsyncpa %s9096, 1

</llo_original>
